<compile_context>
chip_gen: v5e
topology: v5e:2x2
jax: 0.10.0
libtpu: 0.0.40
codegen_flags: <defaults>
</compile_context>

<pallas_src>
import functools

import jax
import jax.numpy as jnp
from jax import lax
from jax.experimental import pallas as pl
from jax.experimental.pallas import tpu as pltpu


# Static architecture constants implied by the PyTorch module (8192 = 8*32*32).
_H0, _W0, _C0 = 32, 32, 8          # FC output viewed as (B, 8, 32, 32) NCHW
_H1, _W1, _C1 = 30, 30, 16         # after conv1 3x3 valid
_H2, _W2, _C2 = 28, 28, 16         # after conv2 3x3 valid


# ----------------------------------------------------------------------------- kernel
def _generator_kernel(hrep_ref, wfc_ref, bfc_ref, wb1_ref, b1_ref,
                      wb2_ref, b2_ref, w3_ref, b3_ref, o_ref):
    """Bb batch elements per grid step; everything stays in VMEM/vregs.

    Activation layout throughout: rows = spatial row h, cols = w*C + c (NHWC flattened
    over the last two axes), so every conv is a sum of 3 shifted 2D matmuls against
    pre-banded weights.
    """
    Bb = hrep_ref.shape[0]
    kin32 = hrep_ref.shape[1]                      # 32 * (latent + num_classes) = 1152

    # --- fully connected ---------------------------------------------------------------
    # Block-diagonal FC operand built in registers (no HBM a_exp):
    #   a_b[h, k*32 + h'] = h_in[b, k] if h == h' else 0
    # so a_b @ wfc lands the FC output directly in rows=h, cols=(w*C0+c) NHWC layout.
    col_h = lax.broadcasted_iota(jnp.int32, (_H0, kin32), 1) & (_H0 - 1)   # h' (col % 32)
    row_h = lax.broadcasted_iota(jnp.int32, (_H0, kin32), 0)               # h
    mask = row_h == col_h                                                   # (32, 1152)

    hr = hrep_ref[...]                                                      # (Bb, 1152)
    blocks = [jnp.where(mask, jnp.broadcast_to(hr[b:b + 1, :], (_H0, kin32)), 0.0)
              for b in range(Bb)]
    a_exp = blocks[0] if Bb == 1 else jnp.concatenate(blocks, axis=0)       # (Bb*32, 1152)

    fc = jnp.dot(a_exp, wfc_ref[...], preferred_element_type=jnp.float32)   # (Bb*32, 256)
    x0 = jnp.maximum(fc + bfc_ref[...], 0.0)                                # (Bb*H0, W0*C0)

    wb1_0, wb1_1, wb1_2 = wb1_ref[0], wb1_ref[1], wb1_ref[2]
    wb2_0, wb2_1, wb2_2 = wb2_ref[0], wb2_ref[1], wb2_ref[2]
    b1 = b1_ref[...]
    b2 = b2_ref[...]
    w3 = w3_ref[...]
    b3 = b3_ref[...]

    for b in range(Bb):                                                     # static unroll
        xb = x0[b * _H0:(b + 1) * _H0, :]                                   # (32, 256)

        # --- conv1: 3x3, 8->16, valid --------------------------------------------------
        acc1 = jnp.dot(xb[0:_H1, :], wb1_0, preferred_element_type=jnp.float32)
        acc1 = acc1 + jnp.dot(xb[1:_H1 + 1, :], wb1_1, preferred_element_type=jnp.float32)
        acc1 = acc1 + jnp.dot(xb[2:_H1 + 2, :], wb1_2, preferred_element_type=jnp.float32)
        x1 = jnp.maximum(acc1 + b1, 0.0)                                    # (30, 480)

        # --- conv2: 3x3, 16->16, valid -------------------------------------------------
        acc2 = jnp.dot(x1[0:_H2, :], wb2_0, preferred_element_type=jnp.float32)
        acc2 = acc2 + jnp.dot(x1[1:_H2 + 1, :], wb2_1, preferred_element_type=jnp.float32)
        acc2 = acc2 + jnp.dot(x1[2:_H2 + 2, :], wb2_2, preferred_element_type=jnp.float32)
        x2 = jnp.maximum(acc2 + b2, 0.0)                                    # (28, 448)

        # --- conv3: 1x1, 16->1 + sigmoid (tanh form -> EUP slot) -------------------------
        zpre = jnp.dot(x2, w3, preferred_element_type=jnp.float32) + b3     # (28, 28)
        o_ref[b] = 0.5 * jnp.tanh(0.5 * zpre) + 0.5


def fused_generator_call(h_rep, kp, *, max_block_batch=8):
    """Single fused pallas_call over grid=(ceil(B/Bb),), Bb images per step."""
    B, kin32 = h_rep.shape
    Bb = B if B <= max_block_batch else max_block_batch
    steps = -(-B // Bb)
    Bpad = steps * Bb
    if Bpad != B:
        h_rep = jnp.pad(h_rep, ((0, Bpad - B), (0, 0)))

    bfc_stack = jnp.tile(kp["bfc"], (Bb, 1))                                # (Bb*32, 256)

    operands = (h_rep, kp["wfc"], bfc_stack, kp["wb1"], kp["b1t"],
                kp["wb2"], kp["b2t"], kp["w3"], kp["b3t"])

    flops = 2 * Bpad * (_H0 * kin32 * (_W0 * _C0)
                        + 3 * _H1 * (_W0 * _C0) * (_W1 * _C1)
                        + 3 * _H2 * (_W1 * _C1) * (_W2 * _C2)
                        + _H2 * (_W2 * _C2) * _W2)
    bytes_accessed = sum(int(x.size) * x.dtype.itemsize for x in operands) + Bpad * _H2 * _W2 * 4
    cost = pl.CostEstimate(flops=flops, transcendentals=Bpad * _H2 * _W2,
                           bytes_accessed=bytes_accessed)

    # Only shard the grid across TensorCores (v7x) when there is enough work per core to
    # amortize the duplicated ~5.3 MB weight fetch.
    semantics = ("parallel",) if steps >= 4 else ("arbitrary",)

    out = pl.pallas_call(
        _generator_kernel,
        out_shape=jax.ShapeDtypeStruct((Bpad, _H2, _W2), jnp.float32),
        grid=(steps,),
        in_specs=[
            pl.BlockSpec((Bb, kin32), lambda g: (g, 0)),                    # h_rep block
            pl.BlockSpec(kp["wfc"].shape, lambda g: (0, 0)),                # (1152, 256)
            pl.BlockSpec(bfc_stack.shape, lambda g: (0, 0)),                # (Bb*32, 256)
            pl.BlockSpec(kp["wb1"].shape, lambda g: (0, 0, 0)),             # (3, 256, 480)
            pl.BlockSpec(kp["b1t"].shape, lambda g: (0, 0)),                # (1, 480)
            pl.BlockSpec(kp["wb2"].shape, lambda g: (0, 0, 0)),             # (3, 480, 448)
            pl.BlockSpec(kp["b2t"].shape, lambda g: (0, 0)),                # (1, 448)
            pl.BlockSpec(kp["w3"].shape, lambda g: (0, 0)),                 # (448, 28)
            pl.BlockSpec(kp["b3t"].shape, lambda g: (0, 0)),                # (1, 28)
        ],
        out_specs=pl.BlockSpec((Bb, _H2, _W2), lambda g: (g, 0, 0)),
        compiler_params=pltpu.CompilerParams(
            dimension_semantics=semantics,
            vmem_limit_bytes=32 * 1024 * 1024),   # ~13 MB worst case; safe on v5e/v6e/v7x
        cost_estimate=cost,
    )(*operands)
    return out[:B] if Bpad != B else out


# ----------------------------------------------------------------------------- weight prep
def _band_conv_weights(w_hwio, w_in):
    """Banded matrices M_i (i = kernel row) with
       M_i[w*Cin+ci, x*Cout+co] = w_hwio[i, w-x, ci, co] if 0 <= w-x < KW else 0,
    so a 3x3 valid conv becomes: out_rows = sum_i X[i:i+Ho, :] @ M_i."""
    KH, KW, Cin, Cout = w_hwio.shape
    Wo = w_in - KW + 1
    d = jnp.arange(w_in)[:, None] - jnp.arange(Wo)[None, :]          # (w_in, Wo)
    valid = (d >= 0) & (d < KW)
    dc = jnp.clip(d, 0, KW - 1)
    mats = []
    for i in range(KH):
        g = w_hwio[i][dc]                                            # (w_in, Wo, Cin, Cout)
        g = jnp.where(valid[:, :, None, None], g, 0.0)
        g = jnp.transpose(g, (0, 2, 1, 3)).reshape(w_in * Cin, Wo * Cout)
        mats.append(g)
    return jnp.stack(mats, axis=0)                                   # (KH, w_in*Cin, Wo*Cout)


def prepare_kernel_params(params):
    """One-time re-layout of the weights into the forms the fused kernel consumes."""
    fc_w, fc_b = params["fc_w"], params["fc_b"]                      # (36, 8192), (8192,)
    kin = fc_w.shape[0]
    # FC weight columns are (c, h, w) in PyTorch's .view(B,8,32,32); reorder so the FC
    # lands directly in rows=h, cols=(w, c) layout, with the row index folded into the
    # contraction dim (k-major block-diagonal input built in-kernel):
    #   wfc[k*32 + h, w*C0 + c] = fc_w[k, c*1024 + h*32 + w]
    wfc = fc_w.reshape(kin, _C0, _H0, _W0).transpose(0, 2, 3, 1).reshape(kin * _H0, _W0 * _C0)
    bfc = fc_b.reshape(_C0, _H0, _W0).transpose(1, 2, 0).reshape(_H0, _W0 * _C0)

    wb1 = _band_conv_weights(params["conv1_w"], _W0)                 # (3, 256, 480)
    b1t = jnp.tile(params["conv1_b"], _W1).reshape(1, _W1 * _C1)     # (1, 480)
    wb2 = _band_conv_weights(params["conv2_w"], _W1)                 # (3, 480, 448)
    b2t = jnp.tile(params["conv2_b"], _W2).reshape(1, _W2 * _C2)     # (1, 448)
    # conv3 (1x1, 16->1): block-diagonal (W2*16, W2) matrix so it is one matmul.
    w3 = jnp.kron(jnp.eye(_W2, dtype=jnp.float32), params["conv3_w"].reshape(_C2, 1))
    b3t = jnp.tile(params["conv3_b"], _W2).reshape(1, _W2)           # (1, 28)

    return {"wfc": wfc, "bfc": bfc, "wb1": wb1, "b1t": b1t,
            "wb2": wb2, "b2t": b2t, "w3": w3, "b3t": b3t}


# ----------------------------------------------------------------------------- model
def init_params(key, latent_space, num_classes):
    ks = jax.random.split(key, 9)
    scale = 0.05
    return {
        "emb":     jax.random.normal(ks[0], (num_classes, num_classes), jnp.float32) * scale,
        # Linear: stored as (in_features, out_features) = PyTorch weight.T.
        "fc_w":    jax.random.normal(ks[1], (latent_space + num_classes, 8192), jnp.float32) * scale,
        "fc_b":    jax.random.normal(ks[2], (8192,), jnp.float32) * 0.01,
        # Convs: stored HWIO (PyTorch OIHW transposed (2,3,1,0)).
        "conv1_w": jax.random.normal(ks[3], (3, 3, 8, 16), jnp.float32) * scale,
        "conv1_b": jax.random.normal(ks[4], (16,), jnp.float32) * 0.01,
        "conv2_w": jax.random.normal(ks[5], (3, 3, 16, 16), jnp.float32) * scale,
        "conv2_b": jax.random.normal(ks[6], (16,), jnp.float32) * 0.01,
        "conv3_w": jax.random.normal(ks[7], (1, 1, 16, 1), jnp.float32) * scale,
        "conv3_b": jax.random.normal(ks[8], (1,), jnp.float32) * 0.01,
    }


def generator_forward(params, kparams, z, y, batch_size):
    emb = jnp.take(params["emb"], y, axis=0)                  # embedding gather (glue)
    h_in = jnp.concatenate([emb, z], axis=-1)                 # (B, 36)
    # h_rep[b, k*32 + h'] = h_in[b, k]: the only per-image payload shipped to the kernel
    # (4.6 KB/image vs 147 KB/image for the old HBM-materialized block-diagonal input).
    h_rep = jnp.repeat(h_in, _H0, axis=-1)                    # (B, 1152)
    out = fused_generator_call(h_rep, kparams)                # (B, 28, 28)
    return out[:, None, :, :]                                 # NCHW (B, 1, 28, 28)


def reference_forward(params, z, y, batch_size):
    # Pure-JAX reference (XLA convs) for correctness checking.
    emb = jnp.take(params["emb"], y, axis=0)
    h = jnp.concatenate([emb, z], axis=-1)
    h = jnp.maximum(h @ params["fc_w"] + params["fc_b"], 0.0)
    h = h.reshape(batch_size, 8, 32, 32).transpose(0, 2, 3, 1)
    dn = ("NHWC", "HWIO", "NHWC")
    h = jnp.maximum(
        lax.conv_general_dilated(h, params["conv1_w"], (1, 1), "VALID",
                                 dimension_numbers=dn, precision=lax.Precision.HIGHEST)
        + params["conv1_b"], 0.0)
    h = jnp.maximum(
        lax.conv_general_dilated(h, params["conv2_w"], (1, 1), "VALID",
                                 dimension_numbers=dn, precision=lax.Precision.HIGHEST)
        + params["conv2_b"], 0.0)
    h = jax.nn.sigmoid(
        lax.conv_general_dilated(h, params["conv3_w"], (1, 1), "VALID",
                                 dimension_numbers=dn, precision=lax.Precision.HIGHEST)
        + params["conv3_b"])
    return h.transpose(0, 3, 1, 2)


# ----------------------------------------------------------------------------- main
if __name__ == "__main__":
    batch_size = 2
    latent_space = 32
    num_classes = 4

    key = jax.random.PRNGKey(0)
    k_param, k_z, k_y = jax.random.split(key, 3)

    params = init_params(k_param, latent_space, num_classes)
    kparams = prepare_kernel_params(params)
    z = jax.random.normal(k_z, (batch_size, latent_space), jnp.float32)
    y = jax.random.randint(k_y, (batch_size,), 0, num_classes, jnp.int32)

    fwd = jax.jit(functools.partial(generator_forward, batch_size=batch_size))
    out = jax.block_until_ready(fwd(params, kparams, z, y))

    assert out.shape == (batch_size, 1, 28, 28), out.shape
    assert out.dtype == jnp.float32

    ref = jax.block_until_ready(reference_forward(params, z, y, batch_size))
    assert bool(jnp.all(jnp.isfinite(out)))
    assert jnp.allclose(out, ref, rtol=1e-3, atol=1e-3), (
        float(jnp.max(jnp.abs(out - ref))))

    print("KERNEL_OK")
</pallas_src>

<mosaic_0001>
module attributes {stable_mosaic.version = 11 : i64} {
  func.func @_generator_kernel(%arg0: i32, %arg1: memref<2x1152xf32, #tpu.memory_space<vmem>>, %arg2: memref<1152x256xf32, #tpu.memory_space<vmem>>, %arg3: memref<64x256xf32, #tpu.memory_space<vmem>>, %arg4: memref<3x256x480xf32, #tpu.memory_space<vmem>>, %arg5: memref<1x480xf32, #tpu.memory_space<vmem>>, %arg6: memref<3x480x448xf32, #tpu.memory_space<vmem>>, %arg7: memref<1x448xf32, #tpu.memory_space<vmem>>, %arg8: memref<448x28xf32, #tpu.memory_space<vmem>>, %arg9: memref<1x28xf32, #tpu.memory_space<vmem>>, %arg10: memref<2x28x28xf32, #tpu.memory_space<vmem>>) attributes {dimension_semantics = [#tpu.dimension_semantics<arbitrary>], iteration_bounds = array<i64: 1>, scalar_prefetch = 0 : i64, scratch_operands = 0 : i64, tpu.core_type = #tpu.core_type<tc>, window_params = [{transform_indices = @transform_0, window_bounds = array<i64: 2, 1152>}, {pipeline_mode = #tpu.pipeline_mode<synchronous>, transform_indices = @transform_1, window_bounds = array<i64: 1152, 256>}, {pipeline_mode = #tpu.pipeline_mode<synchronous>, transform_indices = @transform_2, window_bounds = array<i64: 64, 256>}, {pipeline_mode = #tpu.pipeline_mode<synchronous>, transform_indices = @transform_3, window_bounds = array<i64: 3, 256, 480>}, {pipeline_mode = #tpu.pipeline_mode<synchronous>, transform_indices = @transform_4, window_bounds = array<i64: 1, 480>}, {pipeline_mode = #tpu.pipeline_mode<synchronous>, transform_indices = @transform_5, window_bounds = array<i64: 3, 480, 448>}, {pipeline_mode = #tpu.pipeline_mode<synchronous>, transform_indices = @transform_6, window_bounds = array<i64: 1, 448>}, {pipeline_mode = #tpu.pipeline_mode<synchronous>, transform_indices = @transform_7, window_bounds = array<i64: 448, 28>}, {pipeline_mode = #tpu.pipeline_mode<synchronous>, transform_indices = @transform_8, window_bounds = array<i64: 1, 28>}, {transform_indices = @transform_9, window_bounds = array<i64: 2, 28, 28>}]} {
    %0 = tpu.iota {dimensions = array<i32: 1>} : vector<32x1152xi32>
    %c31_i32 = arith.constant 31 : i32
    %1 = vector.broadcast %c31_i32 : i32 to vector<32x1152xi32>
    %2 = arith.andi %0, %1 : vector<32x1152xi32>
    %3 = tpu.iota {dimensions = array<i32: 0>} : vector<32x1152xi32>
    %4 = arith.cmpi eq, %3, %2 : vector<32x1152xi32>
    %c0 = arith.constant 0 : index
    %c0_0 = arith.constant 0 : index
    %5 = vector.load %arg1[%c0, %c0_0] : memref<2x1152xf32, #tpu.memory_space<vmem>>, vector<2x1152xf32>
    %6 = vector.extract_strided_slice %5 {offsets = [0, 0], sizes = [1, 1152], strides = [1, 1]} : vector<2x1152xf32> to vector<1x1152xf32>
    %7 = vector.shape_cast %6 : vector<1x1152xf32> to vector<1x1152xf32>
    %8 = vector.broadcast %7 : vector<1x1152xf32> to vector<32x1152xf32>
    %cst = arith.constant 0.000000e+00 : f32
    %9 = vector.broadcast %cst : f32 to vector<32x1152xf32>
    %10 = arith.select %4, %8, %9 : vector<32x1152xi1>, vector<32x1152xf32>
    %11 = vector.extract_strided_slice %5 {offsets = [1, 0], sizes = [1, 1152], strides = [1, 1]} : vector<2x1152xf32> to vector<1x1152xf32>
    %12 = vector.shape_cast %11 : vector<1x1152xf32> to vector<1x1152xf32>
    %13 = vector.broadcast %12 : vector<1x1152xf32> to vector<32x1152xf32>
    %cst_1 = arith.constant 0.000000e+00 : f32
    %14 = vector.broadcast %cst_1 : f32 to vector<32x1152xf32>
    %15 = arith.select %4, %13, %14 : vector<32x1152xi1>, vector<32x1152xf32>
    %16 = tpu.concatenate %10, %15 in 0 : vector<32x1152xf32>, vector<32x1152xf32> -> vector<64x1152xf32>
    %c0_2 = arith.constant 0 : index
    %c0_3 = arith.constant 0 : index
    %17 = vector.load %arg2[%c0_2, %c0_3] : memref<1152x256xf32, #tpu.memory_space<vmem>>, vector<1152x256xf32>
    %cst_4 = arith.constant dense<0.000000e+00> : vector<64x256xf32>
    %18 = tpu.matmul %16, %17, %cst_4 {dimension_numbers = #tpu.dot_dimension_numbers<[1], [0], [0], [1], [0, 0, 1, 1], [], []>} : vector<64x1152xf32>, vector<1152x256xf32>, vector<64x256xf32> -> vector<64x256xf32>
    %c0_5 = arith.constant 0 : index
    %c0_6 = arith.constant 0 : index
    %19 = vector.load %arg3[%c0_5, %c0_6] : memref<64x256xf32, #tpu.memory_space<vmem>>, vector<64x256xf32>
    %20 = arith.addf %18, %19 : vector<64x256xf32>
    %cst_7 = arith.constant 0.000000e+00 : f32
    %21 = vector.broadcast %cst_7 : f32 to vector<64x256xf32>
    %22 = arith.maximumf %20, %21 : vector<64x256xf32>
    %c0_8 = arith.constant 0 : index
    %c0_9 = arith.constant 0 : index
    %c0_10 = arith.constant 0 : index
    %23 = vector.load %arg4[%c0_8, %c0_9, %c0_10] : memref<3x256x480xf32, #tpu.memory_space<vmem>>, vector<1x256x480xf32>
    %24 = vector.shape_cast %23 : vector<1x256x480xf32> to vector<256x480xf32>
    %c1 = arith.constant 1 : index
    %c0_11 = arith.constant 0 : index
    %c0_12 = arith.constant 0 : index
    %25 = vector.load %arg4[%c1, %c0_11, %c0_12] : memref<3x256x480xf32, #tpu.memory_space<vmem>>, vector<1x256x480xf32>
    %26 = vector.shape_cast %25 : vector<1x256x480xf32> to vector<256x480xf32>
    %c2 = arith.constant 2 : index
    %c0_13 = arith.constant 0 : index
    %c0_14 = arith.constant 0 : index
    %27 = vector.load %arg4[%c2, %c0_13, %c0_14] : memref<3x256x480xf32, #tpu.memory_space<vmem>>, vector<1x256x480xf32>
    %28 = vector.shape_cast %27 : vector<1x256x480xf32> to vector<256x480xf32>
    %c0_15 = arith.constant 0 : index
    %c0_16 = arith.constant 0 : index
    %c0_17 = arith.constant 0 : index
    %29 = vector.load %arg6[%c0_15, %c0_16, %c0_17] : memref<3x480x448xf32, #tpu.memory_space<vmem>>, vector<1x480x448xf32>
    %30 = vector.shape_cast %29 : vector<1x480x448xf32> to vector<480x448xf32>
    %c1_18 = arith.constant 1 : index
    %c0_19 = arith.constant 0 : index
    %c0_20 = arith.constant 0 : index
    %31 = vector.load %arg6[%c1_18, %c0_19, %c0_20] : memref<3x480x448xf32, #tpu.memory_space<vmem>>, vector<1x480x448xf32>
    %32 = vector.shape_cast %31 : vector<1x480x448xf32> to vector<480x448xf32>
    %c2_21 = arith.constant 2 : index
    %c0_22 = arith.constant 0 : index
    %c0_23 = arith.constant 0 : index
    %33 = vector.load %arg6[%c2_21, %c0_22, %c0_23] : memref<3x480x448xf32, #tpu.memory_space<vmem>>, vector<1x480x448xf32>
    %34 = vector.shape_cast %33 : vector<1x480x448xf32> to vector<480x448xf32>
    %c0_24 = arith.constant 0 : index
    %c0_25 = arith.constant 0 : index
    %35 = vector.load %arg5[%c0_24, %c0_25] : memref<1x480xf32, #tpu.memory_space<vmem>>, vector<1x480xf32>
    %c0_26 = arith.constant 0 : index
    %c0_27 = arith.constant 0 : index
    %36 = vector.load %arg7[%c0_26, %c0_27] : memref<1x448xf32, #tpu.memory_space<vmem>>, vector<1x448xf32>
    %c0_28 = arith.constant 0 : index
    %c0_29 = arith.constant 0 : index
    %37 = vector.load %arg8[%c0_28, %c0_29] : memref<448x28xf32, #tpu.memory_space<vmem>>, vector<448x28xf32>
    %c0_30 = arith.constant 0 : index
    %c0_31 = arith.constant 0 : index
    %38 = vector.load %arg9[%c0_30, %c0_31] : memref<1x28xf32, #tpu.memory_space<vmem>>, vector<1x28xf32>
    %39 = vector.extract_strided_slice %22 {offsets = [0, 0], sizes = [32, 256], strides = [1, 1]} : vector<64x256xf32> to vector<32x256xf32>
    %40 = vector.extract_strided_slice %39 {offsets = [0, 0], sizes = [30, 256], strides = [1, 1]} : vector<32x256xf32> to vector<30x256xf32>
    %cst_32 = arith.constant dense<0.000000e+00> : vector<30x480xf32>
    %41 = tpu.matmul %40, %24, %cst_32 {dimension_numbers = #tpu.dot_dimension_numbers<[1], [0], [0], [1], [0, 0, 1, 1], [], []>} : vector<30x256xf32>, vector<256x480xf32>, vector<30x480xf32> -> vector<30x480xf32>
    %42 = vector.extract_strided_slice %39 {offsets = [1, 0], sizes = [30, 256], strides = [1, 1]} : vector<32x256xf32> to vector<30x256xf32>
    %cst_33 = arith.constant dense<0.000000e+00> : vector<30x480xf32>
    %43 = tpu.matmul %42, %26, %cst_33 {dimension_numbers = #tpu.dot_dimension_numbers<[1], [0], [0], [1], [0, 0, 1, 1], [], []>} : vector<30x256xf32>, vector<256x480xf32>, vector<30x480xf32> -> vector<30x480xf32>
    %44 = arith.addf %41, %43 : vector<30x480xf32>
    %45 = vector.extract_strided_slice %39 {offsets = [2, 0], sizes = [30, 256], strides = [1, 1]} : vector<32x256xf32> to vector<30x256xf32>
    %cst_34 = arith.constant dense<0.000000e+00> : vector<30x480xf32>
    %46 = tpu.matmul %45, %28, %cst_34 {dimension_numbers = #tpu.dot_dimension_numbers<[1], [0], [0], [1], [0, 0, 1, 1], [], []>} : vector<30x256xf32>, vector<256x480xf32>, vector<30x480xf32> -> vector<30x480xf32>
    %47 = arith.addf %44, %46 : vector<30x480xf32>
    %48 = vector.broadcast %35 : vector<1x480xf32> to vector<30x480xf32>
    %49 = arith.addf %47, %48 : vector<30x480xf32>
    %cst_35 = arith.constant 0.000000e+00 : f32
    %50 = vector.broadcast %cst_35 : f32 to vector<30x480xf32>
    %51 = arith.maximumf %49, %50 : vector<30x480xf32>
    %52 = vector.extract_strided_slice %51 {offsets = [0, 0], sizes = [28, 480], strides = [1, 1]} : vector<30x480xf32> to vector<28x480xf32>
    %cst_36 = arith.constant dense<0.000000e+00> : vector<28x448xf32>
    %53 = tpu.matmul %52, %30, %cst_36 {dimension_numbers = #tpu.dot_dimension_numbers<[1], [0], [0], [1], [0, 0, 1, 1], [], []>} : vector<28x480xf32>, vector<480x448xf32>, vector<28x448xf32> -> vector<28x448xf32>
    %54 = vector.extract_strided_slice %51 {offsets = [1, 0], sizes = [28, 480], strides = [1, 1]} : vector<30x480xf32> to vector<28x480xf32>
    %cst_37 = arith.constant dense<0.000000e+00> : vector<28x448xf32>
    %55 = tpu.matmul %54, %32, %cst_37 {dimension_numbers = #tpu.dot_dimension_numbers<[1], [0], [0], [1], [0, 0, 1, 1], [], []>} : vector<28x480xf32>, vector<480x448xf32>, vector<28x448xf32> -> vector<28x448xf32>
    %56 = arith.addf %53, %55 : vector<28x448xf32>
    %57 = vector.extract_strided_slice %51 {offsets = [2, 0], sizes = [28, 480], strides = [1, 1]} : vector<30x480xf32> to vector<28x480xf32>
    %cst_38 = arith.constant dense<0.000000e+00> : vector<28x448xf32>
    %58 = tpu.matmul %57, %34, %cst_38 {dimension_numbers = #tpu.dot_dimension_numbers<[1], [0], [0], [1], [0, 0, 1, 1], [], []>} : vector<28x480xf32>, vector<480x448xf32>, vector<28x448xf32> -> vector<28x448xf32>
    %59 = arith.addf %56, %58 : vector<28x448xf32>
    %60 = vector.broadcast %36 : vector<1x448xf32> to vector<28x448xf32>
    %61 = arith.addf %59, %60 : vector<28x448xf32>
    %cst_39 = arith.constant 0.000000e+00 : f32
    %62 = vector.broadcast %cst_39 : f32 to vector<28x448xf32>
    %63 = arith.maximumf %61, %62 : vector<28x448xf32>
    %cst_40 = arith.constant dense<0.000000e+00> : vector<28x28xf32>
    %64 = tpu.matmul %63, %37, %cst_40 {dimension_numbers = #tpu.dot_dimension_numbers<[1], [0], [0], [1], [0, 0, 1, 1], [], []>} : vector<28x448xf32>, vector<448x28xf32>, vector<28x28xf32> -> vector<28x28xf32>
    %65 = vector.broadcast %38 : vector<1x28xf32> to vector<28x28xf32>
    %66 = arith.addf %64, %65 : vector<28x28xf32>
    %cst_41 = arith.constant 5.000000e-01 : f32
    %67 = vector.broadcast %cst_41 : f32 to vector<28x28xf32>
    %68 = arith.mulf %67, %66 : vector<28x28xf32>
    %69 = math.tanh %68 : vector<28x28xf32>
    %cst_42 = arith.constant 5.000000e-01 : f32
    %70 = vector.broadcast %cst_42 : f32 to vector<28x28xf32>
    %71 = arith.mulf %70, %69 : vector<28x28xf32>
    %cst_43 = arith.constant 5.000000e-01 : f32
    %72 = vector.broadcast %cst_43 : f32 to vector<28x28xf32>
    %73 = arith.addf %71, %72 : vector<28x28xf32>
    %c0_44 = arith.constant 0 : index
    %c0_45 = arith.constant 0 : index
    %c0_46 = arith.constant 0 : index
    %74 = vector.load %arg10[%c0_44, %c0_45, %c0_46] : memref<2x28x28xf32, #tpu.memory_space<vmem>>, vector<1x28x28xf32>
    %75 = vector.shape_cast %74 : vector<1x28x28xf32> to vector<28x28xf32>
    %76 = vector.shape_cast %73 : vector<28x28xf32> to vector<1x28x28xf32>
    tpu.vector_store %arg10[%c0_44, %c0_45, %c0_46], %76 {strides = array<i32>} : memref<2x28x28xf32, #tpu.memory_space<vmem>>, vector<1x28x28xf32>,
    %77 = vector.extract_strided_slice %22 {offsets = [32, 0], sizes = [32, 256], strides = [1, 1]} : vector<64x256xf32> to vector<32x256xf32>
    %78 = vector.extract_strided_slice %77 {offsets = [0, 0], sizes = [30, 256], strides = [1, 1]} : vector<32x256xf32> to vector<30x256xf32>
    %cst_47 = arith.constant dense<0.000000e+00> : vector<30x480xf32>
    %79 = tpu.matmul %78, %24, %cst_47 {dimension_numbers = #tpu.dot_dimension_numbers<[1], [0], [0], [1], [0, 0, 1, 1], [], []>} : vector<30x256xf32>, vector<256x480xf32>, vector<30x480xf32> -> vector<30x480xf32>
    %80 = vector.extract_strided_slice %77 {offsets = [1, 0], sizes = [30, 256], strides = [1, 1]} : vector<32x256xf32> to vector<30x256xf32>
    %cst_48 = arith.constant dense<0.000000e+00> : vector<30x480xf32>
    %81 = tpu.matmul %80, %26, %cst_48 {dimension_numbers = #tpu.dot_dimension_numbers<[1], [0], [0], [1], [0, 0, 1, 1], [], []>} : vector<30x256xf32>, vector<256x480xf32>, vector<30x480xf32> -> vector<30x480xf32>
    %82 = arith.addf %79, %81 : vector<30x480xf32>
    %83 = vector.extract_strided_slice %77 {offsets = [2, 0], sizes = [30, 256], strides = [1, 1]} : vector<32x256xf32> to vector<30x256xf32>
    %cst_49 = arith.constant dense<0.000000e+00> : vector<30x480xf32>
    %84 = tpu.matmul %83, %28, %cst_49 {dimension_numbers = #tpu.dot_dimension_numbers<[1], [0], [0], [1], [0, 0, 1, 1], [], []>} : vector<30x256xf32>, vector<256x480xf32>, vector<30x480xf32> -> vector<30x480xf32>
    %85 = arith.addf %82, %84 : vector<30x480xf32>
    %86 = vector.broadcast %35 : vector<1x480xf32> to vector<30x480xf32>
    %87 = arith.addf %85, %86 : vector<30x480xf32>
    %cst_50 = arith.constant 0.000000e+00 : f32
    %88 = vector.broadcast %cst_50 : f32 to vector<30x480xf32>
    %89 = arith.maximumf %87, %88 : vector<30x480xf32>
    %90 = vector.extract_strided_slice %89 {offsets = [0, 0], sizes = [28, 480], strides = [1, 1]} : vector<30x480xf32> to vector<28x480xf32>
    %cst_51 = arith.constant dense<0.000000e+00> : vector<28x448xf32>
    %91 = tpu.matmul %90, %30, %cst_51 {dimension_numbers = #tpu.dot_dimension_numbers<[1], [0], [0], [1], [0, 0, 1, 1], [], []>} : vector<28x480xf32>, vector<480x448xf32>, vector<28x448xf32> -> vector<28x448xf32>
    %92 = vector.extract_strided_slice %89 {offsets = [1, 0], sizes = [28, 480], strides = [1, 1]} : vector<30x480xf32> to vector<28x480xf32>
    %cst_52 = arith.constant dense<0.000000e+00> : vector<28x448xf32>
    %93 = tpu.matmul %92, %32, %cst_52 {dimension_numbers = #tpu.dot_dimension_numbers<[1], [0], [0], [1], [0, 0, 1, 1], [], []>} : vector<28x480xf32>, vector<480x448xf32>, vector<28x448xf32> -> vector<28x448xf32>
    %94 = arith.addf %91, %93 : vector<28x448xf32>
    %95 = vector.extract_strided_slice %89 {offsets = [2, 0], sizes = [28, 480], strides = [1, 1]} : vector<30x480xf32> to vector<28x480xf32>
    %cst_53 = arith.constant dense<0.000000e+00> : vector<28x448xf32>
    %96 = tpu.matmul %95, %34, %cst_53 {dimension_numbers = #tpu.dot_dimension_numbers<[1], [0], [0], [1], [0, 0, 1, 1], [], []>} : vector<28x480xf32>, vector<480x448xf32>, vector<28x448xf32> -> vector<28x448xf32>
    %97 = arith.addf %94, %96 : vector<28x448xf32>
    %98 = vector.broadcast %36 : vector<1x448xf32> to vector<28x448xf32>
    %99 = arith.addf %97, %98 : vector<28x448xf32>
    %cst_54 = arith.constant 0.000000e+00 : f32
    %100 = vector.broadcast %cst_54 : f32 to vector<28x448xf32>
    %101 = arith.maximumf %99, %100 : vector<28x448xf32>
    %cst_55 = arith.constant dense<0.000000e+00> : vector<28x28xf32>
    %102 = tpu.matmul %101, %37, %cst_55 {dimension_numbers = #tpu.dot_dimension_numbers<[1], [0], [0], [1], [0, 0, 1, 1], [], []>} : vector<28x448xf32>, vector<448x28xf32>, vector<28x28xf32> -> vector<28x28xf32>
    %103 = vector.broadcast %38 : vector<1x28xf32> to vector<28x28xf32>
    %104 = arith.addf %102, %103 : vector<28x28xf32>
    %cst_56 = arith.constant 5.000000e-01 : f32
    %105 = vector.broadcast %cst_56 : f32 to vector<28x28xf32>
    %106 = arith.mulf %105, %104 : vector<28x28xf32>
    %107 = math.tanh %106 : vector<28x28xf32>
    %cst_57 = arith.constant 5.000000e-01 : f32
    %108 = vector.broadcast %cst_57 : f32 to vector<28x28xf32>
    %109 = arith.mulf %108, %107 : vector<28x28xf32>
    %cst_58 = arith.constant 5.000000e-01 : f32
    %110 = vector.broadcast %cst_58 : f32 to vector<28x28xf32>
    %111 = arith.addf %109, %110 : vector<28x28xf32>
    %c1_59 = arith.constant 1 : index
    %c0_60 = arith.constant 0 : index
    %c0_61 = arith.constant 0 : index
    %112 = vector.load %arg10[%c1_59, %c0_60, %c0_61] : memref<2x28x28xf32, #tpu.memory_space<vmem>>, vector<1x28x28xf32>
    %113 = vector.shape_cast %112 : vector<1x28x28xf32> to vector<28x28xf32>
    %114 = vector.shape_cast %111 : vector<28x28xf32> to vector<1x28x28xf32>
    tpu.vector_store %arg10[%c1_59, %c0_60, %c0_61], %114 {strides = array<i32>} : memref<2x28x28xf32, #tpu.memory_space<vmem>>, vector<1x28x28xf32>,
    return
  }
  func.func @transform_0(%arg0: i32) -> (i32, i32) {
    %c0_i32 = arith.constant 0 : i32
    %c0_i32_0 = arith.constant 0 : i32
    return %arg0, %c0_i32 : i32, i32
  }
  func.func @transform_1(%arg0: i32) -> (i32, i32) {
    %c0_i32 = arith.constant 0 : i32
    %c0_i32_0 = arith.constant 0 : i32
    %c0_i32_1 = arith.constant 0 : i32
    return %c0_i32, %c0_i32_0 : i32, i32
  }
  func.func @transform_2(%arg0: i32) -> (i32, i32) {
    %c0_i32 = arith.constant 0 : i32
    %c0_i32_0 = arith.constant 0 : i32
    %c0_i32_1 = arith.constant 0 : i32
    return %c0_i32, %c0_i32_0 : i32, i32
  }
  func.func @transform_3(%arg0: i32) -> (i32, i32, i32) {
    %c0_i32 = arith.constant 0 : i32
    %c0_i32_0 = arith.constant 0 : i32
    %c0_i32_1 = arith.constant 0 : i32
    %c0_i32_2 = arith.constant 0 : i32
    return %c0_i32, %c0_i32_0, %c0_i32_1 : i32, i32, i32
  }
  func.func @transform_4(%arg0: i32) -> (i32, i32) {
    %c0_i32 = arith.constant 0 : i32
    %c0_i32_0 = arith.constant 0 : i32
    %c0_i32_1 = arith.constant 0 : i32
    return %c0_i32, %c0_i32_0 : i32, i32
  }
  func.func @transform_5(%arg0: i32) -> (i32, i32, i32) {
    %c0_i32 = arith.constant 0 : i32
    %c0_i32_0 = arith.constant 0 : i32
    %c0_i32_1 = arith.constant 0 : i32
    %c0_i32_2 = arith.constant 0 : i32
    return %c0_i32, %c0_i32_0, %c0_i32_1 : i32, i32, i32
  }
  func.func @transform_6(%arg0: i32) -> (i32, i32) {
    %c0_i32 = arith.constant 0 : i32
    %c0_i32_0 = arith.constant 0 : i32
    %c0_i32_1 = arith.constant 0 : i32
    return %c0_i32, %c0_i32_0 : i32, i32
  }
  func.func @transform_7(%arg0: i32) -> (i32, i32) {
    %c0_i32 = arith.constant 0 : i32
    %c0_i32_0 = arith.constant 0 : i32
    %c0_i32_1 = arith.constant 0 : i32
    return %c0_i32, %c0_i32_0 : i32, i32
  }
  func.func @transform_8(%arg0: i32) -> (i32, i32) {
    %c0_i32 = arith.constant 0 : i32
    %c0_i32_0 = arith.constant 0 : i32
    %c0_i32_1 = arith.constant 0 : i32
    return %c0_i32, %c0_i32_0 : i32, i32
  }
  func.func @transform_9(%arg0: i32) -> (i32, i32, i32) {
    %c0_i32 = arith.constant 0 : i32
    %c0_i32_0 = arith.constant 0 : i32
    %c0_i32_1 = arith.constant 0 : i32
    return %arg0, %c0_i32, %c0_i32_0 : i32, i32, i32
  }
}

</mosaic_0001>

<llo_original>
// kernel: generator_forward.1
$region0: #{generator_forward.1}
  #allocation0 [shape = 'u32[]', space=smem, size = 0x4, offset = 0x4, fixed_abs, tag = 'smem constant byte address 0x4 - core index']
  #allocation1 [shape = 'u32[72,128]{1,0:T(1,128)}', space=vmem, size = 0x9000, scoped, tag = 'internal scratch']
  %s0 = inlined_call_operand.vmem [shape: f32[2,1152], index: 0, kind: input, shape index: {}]
  %s1 = inlined_call_operand.vmem [shape: f32[1152,256], index: 1, kind: input, shape index: {}]
  %s2 = inlined_call_operand.vmem [shape: f32[64,256], index: 2, kind: input, shape index: {}]
  %s3 = inlined_call_operand.vmem [shape: f32[3,256,480], index: 3, kind: input, shape index: {}]
  %s4 = inlined_call_operand.vmem [shape: f32[1,480], index: 4, kind: input, shape index: {}]
  %s5 = inlined_call_operand.vmem [shape: f32[3,480,448], index: 5, kind: input, shape index: {}]
  %s6 = inlined_call_operand.vmem [shape: f32[1,448], index: 6, kind: input, shape index: {}]
  %s7 = inlined_call_operand.vmem [shape: f32[448,28], index: 7, kind: input, shape index: {}]
  %s8 = inlined_call_operand.vmem [shape: f32[1,28], index: 8, kind: input, shape index: {}]
  %s9 = inlined_call_operand.vmem [shape: f32[2,28,28], index: 9, kind: output, shape index: {}]
  %s10 = sld [smem:[#allocation0]]
  $region46: #{generator_forward.1} parent=0
    _
  %s12 = ssub.s32 1, %s10
  %s13 = scalar_select 0, %s12, %s10
  // Predicated region
  $region2: #{generator_forward.1} parent=0 // pred_check
    _
  $region3: #{generator_forward.1} parent=0 // pred_check_branch
    %15 = sbr.rel (0) target = $region5
  $region4: #{generator_forward.1} parent=0 // pred_region
    _
  $region5: #{generator_forward.1} parent=0 // pred_fallthru
    _
  // Predicated region
  $region6: #{generator_forward.1} parent=0 // pred_check
    _
  $region7: #{generator_forward.1} parent=0 // pred_check_branch
    %17 = sbr.rel (0) target = $region9
  $region8: #{generator_forward.1} parent=0 // pred_region
    _
  $region9: #{generator_forward.1} parent=0 // pred_fallthru
    _
  // Predicated region
  $region10: #{generator_forward.1} parent=0 // pred_check
    _
  $region11: #{generator_forward.1} parent=0 // pred_check_branch
    %19 = sbr.rel (0) target = $region13
  $region12: #{generator_forward.1} parent=0 // pred_region
    _
  $region13: #{generator_forward.1} parent=0 // pred_fallthru
    _
  // Predicated region
  $region14: #{generator_forward.1} parent=0 // pred_check
    _
  $region15: #{generator_forward.1} parent=0 // pred_check_branch
    %21 = sbr.rel (0) target = $region17
  $region16: #{generator_forward.1} parent=0 // pred_region
    _
  $region17: #{generator_forward.1} parent=0 // pred_fallthru
    _
  // Predicated region
  $region18: #{generator_forward.1} parent=0 // pred_check
    _
  $region19: #{generator_forward.1} parent=0 // pred_check_branch
    %23 = sbr.rel (0) target = $region21
  $region20: #{generator_forward.1} parent=0 // pred_region
    _
  $region21: #{generator_forward.1} parent=0 // pred_fallthru
    _
  // Predicated region
  $region22: #{generator_forward.1} parent=0 // pred_check
    _
  $region23: #{generator_forward.1} parent=0 // pred_check_branch
    %25 = sbr.rel (0) target = $region25
  $region24: #{generator_forward.1} parent=0 // pred_region
    _
  $region25: #{generator_forward.1} parent=0 // pred_fallthru
    _
  // Predicated region
  $region26: #{generator_forward.1} parent=0 // pred_check
    _
  $region27: #{generator_forward.1} parent=0 // pred_check_branch
    %27 = sbr.rel (0) target = $region29
  $region28: #{generator_forward.1} parent=0 // pred_region
    _
  $region29: #{generator_forward.1} parent=0 // pred_fallthru
    _
  // Predicated region
  $region30: #{generator_forward.1} parent=0 // pred_check
    _
  $region31: #{generator_forward.1} parent=0 // pred_check_branch
    %29 = sbr.rel (0) target = $region33
  $region32: #{generator_forward.1} parent=0 // pred_region
    _
  $region33: #{generator_forward.1} parent=0 // pred_fallthru
    _
  // Predicated region
  $region34: #{generator_forward.1} parent=0 // pred_check
    _
  $region35: #{generator_forward.1} parent=0 // pred_check_branch
    %31 = sbr.rel (0) target = $region37
  $region36: #{generator_forward.1} parent=0 // pred_region
    _
  $region37: #{generator_forward.1} parent=0 // pred_fallthru
    _
  %v32 = vlaneseq
  %v33 = vand.u32 %v32, 127
  %v34 = vadd.s32 %v33, 128
  %v35 = vadd.s32 %v33, 256
  %v36 = vadd.s32 %v33, 384
  %v37 = vadd.s32 %v33, 512
  %v38 = vadd.s32 %v33, 640
  %v39 = vadd.s32 %v33, 768
  %v40 = vadd.s32 %v33, 896
  %v41 = vadd.s32 %v33, 1024
  %v42 = vand.u32 %v33, 31
  %v43 = vand.u32 %v34, 31
  %v44 = vand.u32 %v35, 31
  %v45 = vand.u32 %v36, 31
  %v46 = vand.u32 %v37, 31
  %v47 = vand.u32 %v38, 31
  %v48 = vand.u32 %v39, 31
  %v49 = vand.u32 %v40, 31
  %v50 = vand.u32 %v41, 31
  %v51 = vlaneseq
  %v52 = vshrl.u32 %v51, 7
  %v53 = vadd.s32 %v52, 8
  %v54 = vadd.s32 %v52, 16
  %v55 = vadd.s32 %v52, 24
  %vm56 = vcmp.eq.s32.totalorder %v52, %v42
  %vm57 = vcmp.eq.s32.totalorder %v52, %v43
  %vm58 = vcmp.eq.s32.totalorder %v52, %v44
  %vm59 = vcmp.eq.s32.totalorder %v52, %v45
  %vm60 = vcmp.eq.s32.totalorder %v52, %v46
  %vm61 = vcmp.eq.s32.totalorder %v52, %v47
  %vm62 = vcmp.eq.s32.totalorder %v52, %v48
  %vm63 = vcmp.eq.s32.totalorder %v52, %v49
  %vm64 = vcmp.eq.s32.totalorder %v52, %v50
  %vm65 = vcmp.eq.s32.totalorder %v53, %v42
  %vm66 = vcmp.eq.s32.totalorder %v53, %v43
  %vm67 = vcmp.eq.s32.totalorder %v53, %v44
  %vm68 = vcmp.eq.s32.totalorder %v53, %v45
  %vm69 = vcmp.eq.s32.totalorder %v53, %v46
  %vm70 = vcmp.eq.s32.totalorder %v53, %v47
  %vm71 = vcmp.eq.s32.totalorder %v53, %v48
  %vm72 = vcmp.eq.s32.totalorder %v53, %v49
  %vm73 = vcmp.eq.s32.totalorder %v53, %v50
  %vm74 = vcmp.eq.s32.totalorder %v54, %v42
  %vm75 = vcmp.eq.s32.totalorder %v54, %v43
  %vm76 = vcmp.eq.s32.totalorder %v54, %v44
  %vm77 = vcmp.eq.s32.totalorder %v54, %v45
  %vm78 = vcmp.eq.s32.totalorder %v54, %v46
  %vm79 = vcmp.eq.s32.totalorder %v54, %v47
  %vm80 = vcmp.eq.s32.totalorder %v54, %v48
  %vm81 = vcmp.eq.s32.totalorder %v54, %v49
  %vm82 = vcmp.eq.s32.totalorder %v54, %v50
  %vm83 = vcmp.eq.s32.totalorder %v55, %v42
  %vm84 = vcmp.eq.s32.totalorder %v55, %v43
  %vm85 = vcmp.eq.s32.totalorder %v55, %v44
  %vm86 = vcmp.eq.s32.totalorder %v55, %v45
  %vm87 = vcmp.eq.s32.totalorder %v55, %v46
  %vm88 = vcmp.eq.s32.totalorder %v55, %v47
  %vm89 = vcmp.eq.s32.totalorder %v55, %v48
  %vm90 = vcmp.eq.s32.totalorder %v55, %v49
  %vm91 = vcmp.eq.s32.totalorder %v55, %v50
  %v92 = vld [vmem:[%s0] sm:$0xff]
  %v93 = vld [vmem:[%s0 + $0x8] sm:$0xff]
  %v94 = vld [vmem:[%s0 + $0x10] sm:$0x3]
  %v98 = vperm.slane %v92, 0
  %v99 = vperm.slane %v92, 2
  %v100 = vperm.slane %v92, 4
  %v101 = vperm.slane %v92, 6
  %v102 = vperm.slane %v93, 0
  %v103 = vperm.slane %v93, 2
  %v104 = vperm.slane %v93, 4
  %v105 = vperm.slane %v93, 6
  %v106 = vperm.slane %v94, 0
  %v116 = vperm.slane %v98, 0
  %v117 = vperm.slane %v99, 0
  %v118 = vperm.slane %v100, 0
  %v119 = vperm.slane %v101, 0
  %v120 = vperm.slane %v102, 0
  %v121 = vperm.slane %v103, 0
  %v122 = vperm.slane %v104, 0
  %v123 = vperm.slane %v105, 0
  %v124 = vperm.slane %v106, 0
  %v125 = vsel %vm56, %v116, 0.0
  %v126 = vsel %vm57, %v117, 0.0
  %v127 = vsel %vm58, %v118, 0.0
  %v128 = vsel %vm59, %v119, 0.0
  %v129 = vsel %vm60, %v120, 0.0
  %v130 = vsel %vm61, %v121, 0.0
  %v131 = vsel %vm62, %v122, 0.0
  %v132 = vsel %vm63, %v123, 0.0
  %v133 = vsel %vm64, %v124, 0.0
  %v134 = vsel %vm65, %v116, 0.0
  %v135 = vsel %vm66, %v117, 0.0
  %v136 = vsel %vm67, %v118, 0.0
  %v137 = vsel %vm68, %v119, 0.0
  %v138 = vsel %vm69, %v120, 0.0
  %v139 = vsel %vm70, %v121, 0.0
  %v140 = vsel %vm71, %v122, 0.0
  %v141 = vsel %vm72, %v123, 0.0
  %v142 = vsel %vm73, %v124, 0.0
  %v143 = vsel %vm74, %v116, 0.0
  %v144 = vsel %vm75, %v117, 0.0
  %v145 = vsel %vm76, %v118, 0.0
  %v146 = vsel %vm77, %v119, 0.0
  %v147 = vsel %vm78, %v120, 0.0
  %v148 = vsel %vm79, %v121, 0.0
  %v149 = vsel %vm80, %v122, 0.0
  %v150 = vsel %vm81, %v123, 0.0
  %v151 = vsel %vm82, %v124, 0.0
  %v152 = vsel %vm83, %v116, 0.0
  %v153 = vsel %vm84, %v117, 0.0
  %v154 = vsel %vm85, %v118, 0.0
  %v155 = vsel %vm86, %v119, 0.0
  %v156 = vsel %vm87, %v120, 0.0
  %v157 = vsel %vm88, %v121, 0.0
  %v158 = vsel %vm89, %v122, 0.0
  %v159 = vsel %vm90, %v123, 0.0
  %v160 = vsel %vm91, %v124, 0.0
  %v161 = vperm.slane %v92, 1
  %v162 = vperm.slane %v92, 3
  %v163 = vperm.slane %v92, 5
  %v164 = vperm.slane %v92, 7
  %v165 = vperm.slane %v93, 1
  %v166 = vperm.slane %v93, 3
  %v167 = vperm.slane %v93, 5
  %v168 = vperm.slane %v93, 7
  %v169 = vperm.slane %v94, 1
  %v179 = vperm.slane %v161, 1
  %v180 = vperm.slane %v162, 1
  %v181 = vperm.slane %v163, 1
  %v182 = vperm.slane %v164, 1
  %v183 = vperm.slane %v165, 1
  %v184 = vperm.slane %v166, 1
  %v185 = vperm.slane %v167, 1
  %v186 = vperm.slane %v168, 1
  %v187 = vperm.slane %v169, 1
  %v188 = vsel %vm56, %v179, 0.0
  %v189 = vsel %vm57, %v180, 0.0
  %v190 = vsel %vm58, %v181, 0.0
  %v191 = vsel %vm59, %v182, 0.0
  %v192 = vsel %vm60, %v183, 0.0
  %v193 = vsel %vm61, %v184, 0.0
  %v194 = vsel %vm62, %v185, 0.0
  %v195 = vsel %vm63, %v186, 0.0
  %v196 = vsel %vm64, %v187, 0.0
  %v197 = vsel %vm65, %v179, 0.0
  %v198 = vsel %vm66, %v180, 0.0
  %v199 = vsel %vm67, %v181, 0.0
  %v200 = vsel %vm68, %v182, 0.0
  %v201 = vsel %vm69, %v183, 0.0
  %v202 = vsel %vm70, %v184, 0.0
  %v203 = vsel %vm71, %v185, 0.0
  %v204 = vsel %vm72, %v186, 0.0
  %v205 = vsel %vm73, %v187, 0.0
  %v206 = vsel %vm74, %v179, 0.0
  %v207 = vsel %vm75, %v180, 0.0
  %v208 = vsel %vm76, %v181, 0.0
  %v209 = vsel %vm77, %v182, 0.0
  %v210 = vsel %vm78, %v183, 0.0
  %v211 = vsel %vm79, %v184, 0.0
  %v212 = vsel %vm80, %v185, 0.0
  %v213 = vsel %vm81, %v186, 0.0
  %v214 = vsel %vm82, %v187, 0.0
  %v215 = vsel %vm83, %v179, 0.0
  %v216 = vsel %vm84, %v180, 0.0
  %v217 = vsel %vm85, %v181, 0.0
  %v218 = vsel %vm86, %v182, 0.0
  %v219 = vsel %vm87, %v183, 0.0
  %v220 = vsel %vm88, %v184, 0.0
  %v221 = vsel %vm89, %v185, 0.0
  %v222 = vsel %vm90, %v186, 0.0
  %v223 = vsel %vm91, %v187, 0.0
  %v224 = vld [vmem:[%s1] sm:$0xff]
  %v225 = vld [vmem:[%s1 + $0x8] sm:$0xff]
  %v226 = vld [vmem:[%s1 + $0x10] sm:$0xff]
  %v227 = vld [vmem:[%s1 + $0x18] sm:$0xff]
  %v228 = vld [vmem:[%s1 + $0x20] sm:$0xff]
  %v229 = vld [vmem:[%s1 + $0x28] sm:$0xff]
  %v230 = vld [vmem:[%s1 + $0x30] sm:$0xff]
  %v231 = vld [vmem:[%s1 + $0x38] sm:$0xff]
  %v232 = vld [vmem:[%s1 + $0x40] sm:$0xff]
  %v233 = vld [vmem:[%s1 + $0x48] sm:$0xff]
  %v234 = vld [vmem:[%s1 + $0x50] sm:$0xff]
  %v235 = vld [vmem:[%s1 + $0x58] sm:$0xff]
  %v236 = vld [vmem:[%s1 + $0x60] sm:$0xff]
  %v237 = vld [vmem:[%s1 + $0x68] sm:$0xff]
  %v238 = vld [vmem:[%s1 + $0x70] sm:$0xff]
  %v239 = vld [vmem:[%s1 + $0x78] sm:$0xff]
  %v240 = vld [vmem:[%s1 + $0x80] sm:$0xff]
  %v241 = vld [vmem:[%s1 + $0x88] sm:$0xff]
  %v242 = vld [vmem:[%s1 + $0x90] sm:$0xff]
  %v243 = vld [vmem:[%s1 + $0x98] sm:$0xff]
  %v244 = vld [vmem:[%s1 + $0xa0] sm:$0xff]
  %v245 = vld [vmem:[%s1 + $0xa8] sm:$0xff]
  %v246 = vld [vmem:[%s1 + $0xb0] sm:$0xff]
  %v247 = vld [vmem:[%s1 + $0xb8] sm:$0xff]
  %v248 = vld [vmem:[%s1 + $0xc0] sm:$0xff]
  %v249 = vld [vmem:[%s1 + $0xc8] sm:$0xff]
  %v250 = vld [vmem:[%s1 + $0xd0] sm:$0xff]
  %v251 = vld [vmem:[%s1 + $0xd8] sm:$0xff]
  %v252 = vld [vmem:[%s1 + $0xe0] sm:$0xff]
  %v253 = vld [vmem:[%s1 + $0xe8] sm:$0xff]
  %v254 = vld [vmem:[%s1 + $0xf0] sm:$0xff]
  %v255 = vld [vmem:[%s1 + $0xf8] sm:$0xff]
  %v256 = vld [vmem:[%s1 + $0x100] sm:$0xff]
  %v257 = vld [vmem:[%s1 + $0x108] sm:$0xff]
  %v258 = vld [vmem:[%s1 + $0x110] sm:$0xff]
  %v259 = vld [vmem:[%s1 + $0x118] sm:$0xff]
  %v260 = vld [vmem:[%s1 + $0x120] sm:$0xff]
  %v261 = vld [vmem:[%s1 + $0x128] sm:$0xff]
  %v262 = vld [vmem:[%s1 + $0x130] sm:$0xff]
  %v263 = vld [vmem:[%s1 + $0x138] sm:$0xff]
  %v264 = vld [vmem:[%s1 + $0x140] sm:$0xff]
  %v265 = vld [vmem:[%s1 + $0x148] sm:$0xff]
  %v266 = vld [vmem:[%s1 + $0x150] sm:$0xff]
  %v267 = vld [vmem:[%s1 + $0x158] sm:$0xff]
  %v268 = vld [vmem:[%s1 + $0x160] sm:$0xff]
  %v269 = vld [vmem:[%s1 + $0x168] sm:$0xff]
  %v270 = vld [vmem:[%s1 + $0x170] sm:$0xff]
  %v271 = vld [vmem:[%s1 + $0x178] sm:$0xff]
  %v272 = vld [vmem:[%s1 + $0x180] sm:$0xff]
  %v273 = vld [vmem:[%s1 + $0x188] sm:$0xff]
  %v274 = vld [vmem:[%s1 + $0x190] sm:$0xff]
  %v275 = vld [vmem:[%s1 + $0x198] sm:$0xff]
  %v276 = vld [vmem:[%s1 + $0x1a0] sm:$0xff]
  %v277 = vld [vmem:[%s1 + $0x1a8] sm:$0xff]
  %v278 = vld [vmem:[%s1 + $0x1b0] sm:$0xff]
  %v279 = vld [vmem:[%s1 + $0x1b8] sm:$0xff]
  %v280 = vld [vmem:[%s1 + $0x1c0] sm:$0xff]
  %v281 = vld [vmem:[%s1 + $0x1c8] sm:$0xff]
  %v282 = vld [vmem:[%s1 + $0x1d0] sm:$0xff]
  %v283 = vld [vmem:[%s1 + $0x1d8] sm:$0xff]
  %v284 = vld [vmem:[%s1 + $0x1e0] sm:$0xff]
  %v285 = vld [vmem:[%s1 + $0x1e8] sm:$0xff]
  %v286 = vld [vmem:[%s1 + $0x1f0] sm:$0xff]
  %v287 = vld [vmem:[%s1 + $0x1f8] sm:$0xff]
  %v288 = vld [vmem:[%s1 + $0x200] sm:$0xff]
  %v289 = vld [vmem:[%s1 + $0x208] sm:$0xff]
  %v290 = vld [vmem:[%s1 + $0x210] sm:$0xff]
  %v291 = vld [vmem:[%s1 + $0x218] sm:$0xff]
  %v292 = vld [vmem:[%s1 + $0x220] sm:$0xff]
  %v293 = vld [vmem:[%s1 + $0x228] sm:$0xff]
  %v294 = vld [vmem:[%s1 + $0x230] sm:$0xff]
  %v295 = vld [vmem:[%s1 + $0x238] sm:$0xff]
  %v296 = vld [vmem:[%s1 + $0x240] sm:$0xff]
  %v297 = vld [vmem:[%s1 + $0x248] sm:$0xff]
  %v298 = vld [vmem:[%s1 + $0x250] sm:$0xff]
  %v299 = vld [vmem:[%s1 + $0x258] sm:$0xff]
  %v300 = vld [vmem:[%s1 + $0x260] sm:$0xff]
  %v301 = vld [vmem:[%s1 + $0x268] sm:$0xff]
  %v302 = vld [vmem:[%s1 + $0x270] sm:$0xff]
  %v303 = vld [vmem:[%s1 + $0x278] sm:$0xff]
  %v304 = vld [vmem:[%s1 + $0x280] sm:$0xff]
  %v305 = vld [vmem:[%s1 + $0x288] sm:$0xff]
  %v306 = vld [vmem:[%s1 + $0x290] sm:$0xff]
  %v307 = vld [vmem:[%s1 + $0x298] sm:$0xff]
  %v308 = vld [vmem:[%s1 + $0x2a0] sm:$0xff]
  %v309 = vld [vmem:[%s1 + $0x2a8] sm:$0xff]
  %v310 = vld [vmem:[%s1 + $0x2b0] sm:$0xff]
  %v311 = vld [vmem:[%s1 + $0x2b8] sm:$0xff]
  %v312 = vld [vmem:[%s1 + $0x2c0] sm:$0xff]
  %v313 = vld [vmem:[%s1 + $0x2c8] sm:$0xff]
  %v314 = vld [vmem:[%s1 + $0x2d0] sm:$0xff]
  %v315 = vld [vmem:[%s1 + $0x2d8] sm:$0xff]
  %v316 = vld [vmem:[%s1 + $0x2e0] sm:$0xff]
  %v317 = vld [vmem:[%s1 + $0x2e8] sm:$0xff]
  %v318 = vld [vmem:[%s1 + $0x2f0] sm:$0xff]
  %v319 = vld [vmem:[%s1 + $0x2f8] sm:$0xff]
  %v320 = vld [vmem:[%s1 + $0x300] sm:$0xff]
  %v321 = vld [vmem:[%s1 + $0x308] sm:$0xff]
  %v322 = vld [vmem:[%s1 + $0x310] sm:$0xff]
  %v323 = vld [vmem:[%s1 + $0x318] sm:$0xff]
  %v324 = vld [vmem:[%s1 + $0x320] sm:$0xff]
  %v325 = vld [vmem:[%s1 + $0x328] sm:$0xff]
  %v326 = vld [vmem:[%s1 + $0x330] sm:$0xff]
  %v327 = vld [vmem:[%s1 + $0x338] sm:$0xff]
  %v328 = vld [vmem:[%s1 + $0x340] sm:$0xff]
  %v329 = vld [vmem:[%s1 + $0x348] sm:$0xff]
  %v330 = vld [vmem:[%s1 + $0x350] sm:$0xff]
  %v331 = vld [vmem:[%s1 + $0x358] sm:$0xff]
  %v332 = vld [vmem:[%s1 + $0x360] sm:$0xff]
  %v333 = vld [vmem:[%s1 + $0x368] sm:$0xff]
  %v334 = vld [vmem:[%s1 + $0x370] sm:$0xff]
  %v335 = vld [vmem:[%s1 + $0x378] sm:$0xff]
  %v336 = vld [vmem:[%s1 + $0x380] sm:$0xff]
  %v337 = vld [vmem:[%s1 + $0x388] sm:$0xff]
  %v338 = vld [vmem:[%s1 + $0x390] sm:$0xff]
  %v339 = vld [vmem:[%s1 + $0x398] sm:$0xff]
  %v340 = vld [vmem:[%s1 + $0x3a0] sm:$0xff]
  %v341 = vld [vmem:[%s1 + $0x3a8] sm:$0xff]
  %v342 = vld [vmem:[%s1 + $0x3b0] sm:$0xff]
  %v343 = vld [vmem:[%s1 + $0x3b8] sm:$0xff]
  %v344 = vld [vmem:[%s1 + $0x3c0] sm:$0xff]
  %v345 = vld [vmem:[%s1 + $0x3c8] sm:$0xff]
  %v346 = vld [vmem:[%s1 + $0x3d0] sm:$0xff]
  %v347 = vld [vmem:[%s1 + $0x3d8] sm:$0xff]
  %v348 = vld [vmem:[%s1 + $0x3e0] sm:$0xff]
  %v349 = vld [vmem:[%s1 + $0x3e8] sm:$0xff]
  %v350 = vld [vmem:[%s1 + $0x3f0] sm:$0xff]
  %v351 = vld [vmem:[%s1 + $0x3f8] sm:$0xff]
  %v352 = vld [vmem:[%s1 + $0x400] sm:$0xff]
  %v353 = vld [vmem:[%s1 + $0x408] sm:$0xff]
  %v354 = vld [vmem:[%s1 + $0x410] sm:$0xff]
  %v355 = vld [vmem:[%s1 + $0x418] sm:$0xff]
  %v356 = vld [vmem:[%s1 + $0x420] sm:$0xff]
  %v357 = vld [vmem:[%s1 + $0x428] sm:$0xff]
  %v358 = vld [vmem:[%s1 + $0x430] sm:$0xff]
  %v359 = vld [vmem:[%s1 + $0x438] sm:$0xff]
  %v360 = vld [vmem:[%s1 + $0x440] sm:$0xff]
  %v361 = vld [vmem:[%s1 + $0x448] sm:$0xff]
  %v362 = vld [vmem:[%s1 + $0x450] sm:$0xff]
  %v363 = vld [vmem:[%s1 + $0x458] sm:$0xff]
  %v364 = vld [vmem:[%s1 + $0x460] sm:$0xff]
  %v365 = vld [vmem:[%s1 + $0x468] sm:$0xff]
  %v366 = vld [vmem:[%s1 + $0x470] sm:$0xff]
  %v367 = vld [vmem:[%s1 + $0x478] sm:$0xff]
  %v368 = vld [vmem:[%s1 + $0x480] sm:$0xff]
  %v369 = vld [vmem:[%s1 + $0x488] sm:$0xff]
  %v370 = vld [vmem:[%s1 + $0x490] sm:$0xff]
  %v371 = vld [vmem:[%s1 + $0x498] sm:$0xff]
  %v372 = vld [vmem:[%s1 + $0x4a0] sm:$0xff]
  %v373 = vld [vmem:[%s1 + $0x4a8] sm:$0xff]
  %v374 = vld [vmem:[%s1 + $0x4b0] sm:$0xff]
  %v375 = vld [vmem:[%s1 + $0x4b8] sm:$0xff]
  %v376 = vld [vmem:[%s1 + $0x4c0] sm:$0xff]
  %v377 = vld [vmem:[%s1 + $0x4c8] sm:$0xff]
  %v378 = vld [vmem:[%s1 + $0x4d0] sm:$0xff]
  %v379 = vld [vmem:[%s1 + $0x4d8] sm:$0xff]
  %v380 = vld [vmem:[%s1 + $0x4e0] sm:$0xff]
  %v381 = vld [vmem:[%s1 + $0x4e8] sm:$0xff]
  %v382 = vld [vmem:[%s1 + $0x4f0] sm:$0xff]
  %v383 = vld [vmem:[%s1 + $0x4f8] sm:$0xff]
  %v384 = vld [vmem:[%s1 + $0x500] sm:$0xff]
  %v385 = vld [vmem:[%s1 + $0x508] sm:$0xff]
  %v386 = vld [vmem:[%s1 + $0x510] sm:$0xff]
  %v387 = vld [vmem:[%s1 + $0x518] sm:$0xff]
  %v388 = vld [vmem:[%s1 + $0x520] sm:$0xff]
  %v389 = vld [vmem:[%s1 + $0x528] sm:$0xff]
  %v390 = vld [vmem:[%s1 + $0x530] sm:$0xff]
  %v391 = vld [vmem:[%s1 + $0x538] sm:$0xff]
  %v392 = vld [vmem:[%s1 + $0x540] sm:$0xff]
  %v393 = vld [vmem:[%s1 + $0x548] sm:$0xff]
  %v394 = vld [vmem:[%s1 + $0x550] sm:$0xff]
  %v395 = vld [vmem:[%s1 + $0x558] sm:$0xff]
  %v396 = vld [vmem:[%s1 + $0x560] sm:$0xff]
  %v397 = vld [vmem:[%s1 + $0x568] sm:$0xff]
  %v398 = vld [vmem:[%s1 + $0x570] sm:$0xff]
  %v399 = vld [vmem:[%s1 + $0x578] sm:$0xff]
  %v400 = vld [vmem:[%s1 + $0x580] sm:$0xff]
  %v401 = vld [vmem:[%s1 + $0x588] sm:$0xff]
  %v402 = vld [vmem:[%s1 + $0x590] sm:$0xff]
  %v403 = vld [vmem:[%s1 + $0x598] sm:$0xff]
  %v404 = vld [vmem:[%s1 + $0x5a0] sm:$0xff]
  %v405 = vld [vmem:[%s1 + $0x5a8] sm:$0xff]
  %v406 = vld [vmem:[%s1 + $0x5b0] sm:$0xff]
  %v407 = vld [vmem:[%s1 + $0x5b8] sm:$0xff]
  %v408 = vld [vmem:[%s1 + $0x5c0] sm:$0xff]
  %v409 = vld [vmem:[%s1 + $0x5c8] sm:$0xff]
  %v410 = vld [vmem:[%s1 + $0x5d0] sm:$0xff]
  %v411 = vld [vmem:[%s1 + $0x5d8] sm:$0xff]
  %v412 = vld [vmem:[%s1 + $0x5e0] sm:$0xff]
  %v413 = vld [vmem:[%s1 + $0x5e8] sm:$0xff]
  %v414 = vld [vmem:[%s1 + $0x5f0] sm:$0xff]
  %v415 = vld [vmem:[%s1 + $0x5f8] sm:$0xff]
  %v416 = vld [vmem:[%s1 + $0x600] sm:$0xff]
  %v417 = vld [vmem:[%s1 + $0x608] sm:$0xff]
  %v418 = vld [vmem:[%s1 + $0x610] sm:$0xff]
  %v419 = vld [vmem:[%s1 + $0x618] sm:$0xff]
  %v420 = vld [vmem:[%s1 + $0x620] sm:$0xff]
  %v421 = vld [vmem:[%s1 + $0x628] sm:$0xff]
  %v422 = vld [vmem:[%s1 + $0x630] sm:$0xff]
  %v423 = vld [vmem:[%s1 + $0x638] sm:$0xff]
  %v424 = vld [vmem:[%s1 + $0x640] sm:$0xff]
  %v425 = vld [vmem:[%s1 + $0x648] sm:$0xff]
  %v426 = vld [vmem:[%s1 + $0x650] sm:$0xff]
  %v427 = vld [vmem:[%s1 + $0x658] sm:$0xff]
  %v428 = vld [vmem:[%s1 + $0x660] sm:$0xff]
  %v429 = vld [vmem:[%s1 + $0x668] sm:$0xff]
  %v430 = vld [vmem:[%s1 + $0x670] sm:$0xff]
  %v431 = vld [vmem:[%s1 + $0x678] sm:$0xff]
  %v432 = vld [vmem:[%s1 + $0x680] sm:$0xff]
  %v433 = vld [vmem:[%s1 + $0x688] sm:$0xff]
  %v434 = vld [vmem:[%s1 + $0x690] sm:$0xff]
  %v435 = vld [vmem:[%s1 + $0x698] sm:$0xff]
  %v436 = vld [vmem:[%s1 + $0x6a0] sm:$0xff]
  %v437 = vld [vmem:[%s1 + $0x6a8] sm:$0xff]
  %v438 = vld [vmem:[%s1 + $0x6b0] sm:$0xff]
  %v439 = vld [vmem:[%s1 + $0x6b8] sm:$0xff]
  %v440 = vld [vmem:[%s1 + $0x6c0] sm:$0xff]
  %v441 = vld [vmem:[%s1 + $0x6c8] sm:$0xff]
  %v442 = vld [vmem:[%s1 + $0x6d0] sm:$0xff]
  %v443 = vld [vmem:[%s1 + $0x6d8] sm:$0xff]
  %v444 = vld [vmem:[%s1 + $0x6e0] sm:$0xff]
  %v445 = vld [vmem:[%s1 + $0x6e8] sm:$0xff]
  %v446 = vld [vmem:[%s1 + $0x6f0] sm:$0xff]
  %v447 = vld [vmem:[%s1 + $0x6f8] sm:$0xff]
  %v448 = vld [vmem:[%s1 + $0x700] sm:$0xff]
  %v449 = vld [vmem:[%s1 + $0x708] sm:$0xff]
  %v450 = vld [vmem:[%s1 + $0x710] sm:$0xff]
  %v451 = vld [vmem:[%s1 + $0x718] sm:$0xff]
  %v452 = vld [vmem:[%s1 + $0x720] sm:$0xff]
  %v453 = vld [vmem:[%s1 + $0x728] sm:$0xff]
  %v454 = vld [vmem:[%s1 + $0x730] sm:$0xff]
  %v455 = vld [vmem:[%s1 + $0x738] sm:$0xff]
  %v456 = vld [vmem:[%s1 + $0x740] sm:$0xff]
  %v457 = vld [vmem:[%s1 + $0x748] sm:$0xff]
  %v458 = vld [vmem:[%s1 + $0x750] sm:$0xff]
  %v459 = vld [vmem:[%s1 + $0x758] sm:$0xff]
  %v460 = vld [vmem:[%s1 + $0x760] sm:$0xff]
  %v461 = vld [vmem:[%s1 + $0x768] sm:$0xff]
  %v462 = vld [vmem:[%s1 + $0x770] sm:$0xff]
  %v463 = vld [vmem:[%s1 + $0x778] sm:$0xff]
  %v464 = vld [vmem:[%s1 + $0x780] sm:$0xff]
  %v465 = vld [vmem:[%s1 + $0x788] sm:$0xff]
  %v466 = vld [vmem:[%s1 + $0x790] sm:$0xff]
  %v467 = vld [vmem:[%s1 + $0x798] sm:$0xff]
  %v468 = vld [vmem:[%s1 + $0x7a0] sm:$0xff]
  %v469 = vld [vmem:[%s1 + $0x7a8] sm:$0xff]
  %v470 = vld [vmem:[%s1 + $0x7b0] sm:$0xff]
  %v471 = vld [vmem:[%s1 + $0x7b8] sm:$0xff]
  %v472 = vld [vmem:[%s1 + $0x7c0] sm:$0xff]
  %v473 = vld [vmem:[%s1 + $0x7c8] sm:$0xff]
  %v474 = vld [vmem:[%s1 + $0x7d0] sm:$0xff]
  %v475 = vld [vmem:[%s1 + $0x7d8] sm:$0xff]
  %v476 = vld [vmem:[%s1 + $0x7e0] sm:$0xff]
  %v477 = vld [vmem:[%s1 + $0x7e8] sm:$0xff]
  %v478 = vld [vmem:[%s1 + $0x7f0] sm:$0xff]
  %v479 = vld [vmem:[%s1 + $0x7f8] sm:$0xff]
  %v480 = vld [vmem:[%s1 + $0x800] sm:$0xff]
  %v481 = vld [vmem:[%s1 + $0x808] sm:$0xff]
  %v482 = vld [vmem:[%s1 + $0x810] sm:$0xff]
  %v483 = vld [vmem:[%s1 + $0x818] sm:$0xff]
  %v484 = vld [vmem:[%s1 + $0x820] sm:$0xff]
  %v485 = vld [vmem:[%s1 + $0x828] sm:$0xff]
  %v486 = vld [vmem:[%s1 + $0x830] sm:$0xff]
  %v487 = vld [vmem:[%s1 + $0x838] sm:$0xff]
  %v488 = vld [vmem:[%s1 + $0x840] sm:$0xff]
  %v489 = vld [vmem:[%s1 + $0x848] sm:$0xff]
  %v490 = vld [vmem:[%s1 + $0x850] sm:$0xff]
  %v491 = vld [vmem:[%s1 + $0x858] sm:$0xff]
  %v492 = vld [vmem:[%s1 + $0x860] sm:$0xff]
  %v493 = vld [vmem:[%s1 + $0x868] sm:$0xff]
  %v494 = vld [vmem:[%s1 + $0x870] sm:$0xff]
  %v495 = vld [vmem:[%s1 + $0x878] sm:$0xff]
  %v496 = vld [vmem:[%s1 + $0x880] sm:$0xff]
  %v497 = vld [vmem:[%s1 + $0x888] sm:$0xff]
  %v498 = vld [vmem:[%s1 + $0x890] sm:$0xff]
  %v499 = vld [vmem:[%s1 + $0x898] sm:$0xff]
  %v500 = vld [vmem:[%s1 + $0x8a0] sm:$0xff]
  %v501 = vld [vmem:[%s1 + $0x8a8] sm:$0xff]
  %v502 = vld [vmem:[%s1 + $0x8b0] sm:$0xff]
  %v503 = vld [vmem:[%s1 + $0x8b8] sm:$0xff]
  %v504 = vld [vmem:[%s1 + $0x8c0] sm:$0xff]
  %v505 = vld [vmem:[%s1 + $0x8c8] sm:$0xff]
  %v506 = vld [vmem:[%s1 + $0x8d0] sm:$0xff]
  %v507 = vld [vmem:[%s1 + $0x8d8] sm:$0xff]
  %v508 = vld [vmem:[%s1 + $0x8e0] sm:$0xff]
  %v509 = vld [vmem:[%s1 + $0x8e8] sm:$0xff]
  %v510 = vld [vmem:[%s1 + $0x8f0] sm:$0xff]
  %v511 = vld [vmem:[%s1 + $0x8f8] sm:$0xff]
  %v512 = vld [vmem:[%s2] sm:$0xff]
  %v513 = vld [vmem:[%s2 + $0x8] sm:$0xff]
  %v514 = vld [vmem:[%s2 + $0x10] sm:$0xff]
  %v515 = vld [vmem:[%s2 + $0x18] sm:$0xff]
  %v516 = vld [vmem:[%s2 + $0x20] sm:$0xff]
  %v517 = vld [vmem:[%s2 + $0x28] sm:$0xff]
  %v518 = vld [vmem:[%s2 + $0x30] sm:$0xff]
  %v519 = vld [vmem:[%s2 + $0x38] sm:$0xff]
  %v520 = vld [vmem:[%s2 + $0x40] sm:$0xff]
  %v521 = vld [vmem:[%s2 + $0x48] sm:$0xff]
  %v522 = vld [vmem:[%s2 + $0x50] sm:$0xff]
  %v523 = vld [vmem:[%s2 + $0x58] sm:$0xff]
  %v524 = vld [vmem:[%s2 + $0x60] sm:$0xff]
  %v525 = vld [vmem:[%s2 + $0x68] sm:$0xff]
  %v526 = vld [vmem:[%s2 + $0x70] sm:$0xff]
  %v527 = vld [vmem:[%s2 + $0x78] sm:$0xff]
  %528 = vmatpush.msra.mxu0 %v254
  %529 = vmatpush.msra.mxu0 %v252
  %530 = vmatpush.msra.mxu0 %v250
  %531 = vmatpush.msra.mxu0 %v248
  %532 = vmatpush.msra.mxu0 %v246
  %533 = vmatpush.msra.mxu0 %v244
  %534 = vmatpush.msra.mxu0 %v242
  %535 = vmatpush.msra.mxu0 %v240
  %536 = vmatpush.msra.mxu0 %v238
  %537 = vmatpush.msra.mxu0 %v236
  %538 = vmatpush.msra.mxu0 %v234
  %539 = vmatpush.msra.mxu0 %v232
  %540 = vmatpush.msra.mxu0 %v230
  %541 = vmatpush.msra.mxu0 %v228
  %542 = vmatpush.msra.mxu0 %v226
  %543 = vmatpush.msra.mxu0 %v224
  %544 = vmatmul.f32.gmra.mxu0 %v125
  %v545 = vpop.f32.mrf.mxu0
  %v546 = vadd.f32 %v512, %v545
  %547 = vmatmul.f32.gmra.mxu0 %v134
  %v548 = vpop.f32.mrf.mxu0
  %v549 = vadd.f32 %v514, %v548
  %550 = vmatmul.f32.gmra.mxu0 %v143
  %v551 = vpop.f32.mrf.mxu0
  %v552 = vadd.f32 %v516, %v551
  %553 = vmatmul.f32.gmra.mxu0 %v152
  %v554 = vpop.f32.mrf.mxu0
  %v555 = vadd.f32 %v518, %v554
  %556 = vmatmul.f32.gmra.mxu0 %v188
  %v557 = vpop.f32.mrf.mxu0
  %v558 = vadd.f32 %v520, %v557
  %559 = vmatmul.f32.gmra.mxu0 %v197
  %v560 = vpop.f32.mrf.mxu0
  %v561 = vadd.f32 %v522, %v560
  %562 = vmatmul.f32.gmra.mxu0 %v206
  %v563 = vpop.f32.mrf.mxu0
  %v564 = vadd.f32 %v524, %v563
  %565 = vmatmul.f32.gmra.mxu0 %v215
  %v566 = vpop.f32.mrf.mxu0
  %v567 = vadd.f32 %v526, %v566
  %568 = vdwg.mxu0
  %569 = vmatpush.msra.mxu0 %v286
  %570 = vmatpush.msra.mxu0 %v284
  %571 = vmatpush.msra.mxu0 %v282
  %572 = vmatpush.msra.mxu0 %v280
  %573 = vmatpush.msra.mxu0 %v278
  %574 = vmatpush.msra.mxu0 %v276
  %575 = vmatpush.msra.mxu0 %v274
  %576 = vmatpush.msra.mxu0 %v272
  %577 = vmatpush.msra.mxu0 %v270
  %578 = vmatpush.msra.mxu0 %v268
  %579 = vmatpush.msra.mxu0 %v266
  %580 = vmatpush.msra.mxu0 %v264
  %581 = vmatpush.msra.mxu0 %v262
  %582 = vmatpush.msra.mxu0 %v260
  %583 = vmatpush.msra.mxu0 %v258
  %584 = vmatpush.msra.mxu0 %v256
  %585 = vmatmul.f32.gmra.mxu0 %v126
  %v586 = vpop.f32.mrf.mxu0
  %v587 = vadd.f32 %v546, %v586
  %588 = vmatmul.f32.gmra.mxu0 %v135
  %v589 = vpop.f32.mrf.mxu0
  %v590 = vadd.f32 %v549, %v589
  %591 = vmatmul.f32.gmra.mxu0 %v144
  %v592 = vpop.f32.mrf.mxu0
  %v593 = vadd.f32 %v552, %v592
  %594 = vmatmul.f32.gmra.mxu0 %v153
  %v595 = vpop.f32.mrf.mxu0
  %v596 = vadd.f32 %v555, %v595
  %597 = vmatmul.f32.gmra.mxu0 %v189
  %v598 = vpop.f32.mrf.mxu0
  %v599 = vadd.f32 %v558, %v598
  %600 = vmatmul.f32.gmra.mxu0 %v198
  %v601 = vpop.f32.mrf.mxu0
  %v602 = vadd.f32 %v561, %v601
  %603 = vmatmul.f32.gmra.mxu0 %v207
  %v604 = vpop.f32.mrf.mxu0
  %v605 = vadd.f32 %v564, %v604
  %606 = vmatmul.f32.gmra.mxu0 %v216
  %v607 = vpop.f32.mrf.mxu0
  %v608 = vadd.f32 %v567, %v607
  %609 = vdwg.mxu0
  %610 = vmatpush.msra.mxu0 %v318
  %611 = vmatpush.msra.mxu0 %v316
  %612 = vmatpush.msra.mxu0 %v314
  %613 = vmatpush.msra.mxu0 %v312
  %614 = vmatpush.msra.mxu0 %v310
  %615 = vmatpush.msra.mxu0 %v308
  %616 = vmatpush.msra.mxu0 %v306
  %617 = vmatpush.msra.mxu0 %v304
  %618 = vmatpush.msra.mxu0 %v302
  %619 = vmatpush.msra.mxu0 %v300
  %620 = vmatpush.msra.mxu0 %v298
  %621 = vmatpush.msra.mxu0 %v296
  %622 = vmatpush.msra.mxu0 %v294
  %623 = vmatpush.msra.mxu0 %v292
  %624 = vmatpush.msra.mxu0 %v290
  %625 = vmatpush.msra.mxu0 %v288
  %626 = vmatmul.f32.gmra.mxu0 %v127
  %v627 = vpop.f32.mrf.mxu0
  %v628 = vadd.f32 %v587, %v627
  %629 = vmatmul.f32.gmra.mxu0 %v136
  %v630 = vpop.f32.mrf.mxu0
  %v631 = vadd.f32 %v590, %v630
  %632 = vmatmul.f32.gmra.mxu0 %v145
  %v633 = vpop.f32.mrf.mxu0
  %v634 = vadd.f32 %v593, %v633
  %635 = vmatmul.f32.gmra.mxu0 %v154
  %v636 = vpop.f32.mrf.mxu0
  %v637 = vadd.f32 %v596, %v636
  %638 = vmatmul.f32.gmra.mxu0 %v190
  %v639 = vpop.f32.mrf.mxu0
  %v640 = vadd.f32 %v599, %v639
  %641 = vmatmul.f32.gmra.mxu0 %v199
  %v642 = vpop.f32.mrf.mxu0
  %v643 = vadd.f32 %v602, %v642
  %644 = vmatmul.f32.gmra.mxu0 %v208
  %v645 = vpop.f32.mrf.mxu0
  %v646 = vadd.f32 %v605, %v645
  %647 = vmatmul.f32.gmra.mxu0 %v217
  %v648 = vpop.f32.mrf.mxu0
  %v649 = vadd.f32 %v608, %v648
  %650 = vdwg.mxu0
  %651 = vmatpush.msra.mxu0 %v350
  %652 = vmatpush.msra.mxu0 %v348
  %653 = vmatpush.msra.mxu0 %v346
  %654 = vmatpush.msra.mxu0 %v344
  %655 = vmatpush.msra.mxu0 %v342
  %656 = vmatpush.msra.mxu0 %v340
  %657 = vmatpush.msra.mxu0 %v338
  %658 = vmatpush.msra.mxu0 %v336
  %659 = vmatpush.msra.mxu0 %v334
  %660 = vmatpush.msra.mxu0 %v332
  %661 = vmatpush.msra.mxu0 %v330
  %662 = vmatpush.msra.mxu0 %v328
  %663 = vmatpush.msra.mxu0 %v326
  %664 = vmatpush.msra.mxu0 %v324
  %665 = vmatpush.msra.mxu0 %v322
  %666 = vmatpush.msra.mxu0 %v320
  %667 = vmatmul.f32.gmra.mxu0 %v128
  %v668 = vpop.f32.mrf.mxu0
  %v669 = vadd.f32 %v628, %v668
  %670 = vmatmul.f32.gmra.mxu0 %v137
  %v671 = vpop.f32.mrf.mxu0
  %v672 = vadd.f32 %v631, %v671
  %673 = vmatmul.f32.gmra.mxu0 %v146
  %v674 = vpop.f32.mrf.mxu0
  %v675 = vadd.f32 %v634, %v674
  %676 = vmatmul.f32.gmra.mxu0 %v155
  %v677 = vpop.f32.mrf.mxu0
  %v678 = vadd.f32 %v637, %v677
  %679 = vmatmul.f32.gmra.mxu0 %v191
  %v680 = vpop.f32.mrf.mxu0
  %v681 = vadd.f32 %v640, %v680
  %682 = vmatmul.f32.gmra.mxu0 %v200
  %v683 = vpop.f32.mrf.mxu0
  %v684 = vadd.f32 %v643, %v683
  %685 = vmatmul.f32.gmra.mxu0 %v209
  %v686 = vpop.f32.mrf.mxu0
  %v687 = vadd.f32 %v646, %v686
  %688 = vmatmul.f32.gmra.mxu0 %v218
  %v689 = vpop.f32.mrf.mxu0
  %v690 = vadd.f32 %v649, %v689
  %691 = vdwg.mxu0
  %692 = vmatpush.msra.mxu0 %v382
  %693 = vmatpush.msra.mxu0 %v380
  %694 = vmatpush.msra.mxu0 %v378
  %695 = vmatpush.msra.mxu0 %v376
  %696 = vmatpush.msra.mxu0 %v374
  %697 = vmatpush.msra.mxu0 %v372
  %698 = vmatpush.msra.mxu0 %v370
  %699 = vmatpush.msra.mxu0 %v368
  %700 = vmatpush.msra.mxu0 %v366
  %701 = vmatpush.msra.mxu0 %v364
  %702 = vmatpush.msra.mxu0 %v362
  %703 = vmatpush.msra.mxu0 %v360
  %704 = vmatpush.msra.mxu0 %v358
  %705 = vmatpush.msra.mxu0 %v356
  %706 = vmatpush.msra.mxu0 %v354
  %707 = vmatpush.msra.mxu0 %v352
  %708 = vmatmul.f32.gmra.mxu0 %v129
  %v709 = vpop.f32.mrf.mxu0
  %v710 = vadd.f32 %v669, %v709
  %711 = vmatmul.f32.gmra.mxu0 %v138
  %v712 = vpop.f32.mrf.mxu0
  %v713 = vadd.f32 %v672, %v712
  %714 = vmatmul.f32.gmra.mxu0 %v147
  %v715 = vpop.f32.mrf.mxu0
  %v716 = vadd.f32 %v675, %v715
  %717 = vmatmul.f32.gmra.mxu0 %v156
  %v718 = vpop.f32.mrf.mxu0
  %v719 = vadd.f32 %v678, %v718
  %720 = vmatmul.f32.gmra.mxu0 %v192
  %v721 = vpop.f32.mrf.mxu0
  %v722 = vadd.f32 %v681, %v721
  %723 = vmatmul.f32.gmra.mxu0 %v201
  %v724 = vpop.f32.mrf.mxu0
  %v725 = vadd.f32 %v684, %v724
  %726 = vmatmul.f32.gmra.mxu0 %v210
  %v727 = vpop.f32.mrf.mxu0
  %v728 = vadd.f32 %v687, %v727
  %729 = vmatmul.f32.gmra.mxu0 %v219
  %v730 = vpop.f32.mrf.mxu0
  %v731 = vadd.f32 %v690, %v730
  %732 = vdwg.mxu0
  %733 = vmatpush.msra.mxu0 %v414
  %734 = vmatpush.msra.mxu0 %v412
  %735 = vmatpush.msra.mxu0 %v410
  %736 = vmatpush.msra.mxu0 %v408
  %737 = vmatpush.msra.mxu0 %v406
  %738 = vmatpush.msra.mxu0 %v404
  %739 = vmatpush.msra.mxu0 %v402
  %740 = vmatpush.msra.mxu0 %v400
  %741 = vmatpush.msra.mxu0 %v398
  %742 = vmatpush.msra.mxu0 %v396
  %743 = vmatpush.msra.mxu0 %v394
  %744 = vmatpush.msra.mxu0 %v392
  %745 = vmatpush.msra.mxu0 %v390
  %746 = vmatpush.msra.mxu0 %v388
  %747 = vmatpush.msra.mxu0 %v386
  %748 = vmatpush.msra.mxu0 %v384
  %749 = vmatmul.f32.gmra.mxu0 %v130
  %v750 = vpop.f32.mrf.mxu0
  %v751 = vadd.f32 %v710, %v750
  %752 = vmatmul.f32.gmra.mxu0 %v139
  %v753 = vpop.f32.mrf.mxu0
  %v754 = vadd.f32 %v713, %v753
  %755 = vmatmul.f32.gmra.mxu0 %v148
  %v756 = vpop.f32.mrf.mxu0
  %v757 = vadd.f32 %v716, %v756
  %758 = vmatmul.f32.gmra.mxu0 %v157
  %v759 = vpop.f32.mrf.mxu0
  %v760 = vadd.f32 %v719, %v759
  %761 = vmatmul.f32.gmra.mxu0 %v193
  %v762 = vpop.f32.mrf.mxu0
  %v763 = vadd.f32 %v722, %v762
  %764 = vmatmul.f32.gmra.mxu0 %v202
  %v765 = vpop.f32.mrf.mxu0
  %v766 = vadd.f32 %v725, %v765
  %767 = vmatmul.f32.gmra.mxu0 %v211
  %v768 = vpop.f32.mrf.mxu0
  %v769 = vadd.f32 %v728, %v768
  %770 = vmatmul.f32.gmra.mxu0 %v220
  %v771 = vpop.f32.mrf.mxu0
  %v772 = vadd.f32 %v731, %v771
  %773 = vdwg.mxu0
  %774 = vmatpush.msra.mxu0 %v446
  %775 = vmatpush.msra.mxu0 %v444
  %776 = vmatpush.msra.mxu0 %v442
  %777 = vmatpush.msra.mxu0 %v440
  %778 = vmatpush.msra.mxu0 %v438
  %779 = vmatpush.msra.mxu0 %v436
  %780 = vmatpush.msra.mxu0 %v434
  %781 = vmatpush.msra.mxu0 %v432
  %782 = vmatpush.msra.mxu0 %v430
  %783 = vmatpush.msra.mxu0 %v428
  %784 = vmatpush.msra.mxu0 %v426
  %785 = vmatpush.msra.mxu0 %v424
  %786 = vmatpush.msra.mxu0 %v422
  %787 = vmatpush.msra.mxu0 %v420
  %788 = vmatpush.msra.mxu0 %v418
  %789 = vmatpush.msra.mxu0 %v416
  %790 = vmatmul.f32.gmra.mxu0 %v131
  %v791 = vpop.f32.mrf.mxu0
  %v792 = vadd.f32 %v751, %v791
  %793 = vmatmul.f32.gmra.mxu0 %v140
  %v794 = vpop.f32.mrf.mxu0
  %v795 = vadd.f32 %v754, %v794
  %796 = vmatmul.f32.gmra.mxu0 %v149
  %v797 = vpop.f32.mrf.mxu0
  %v798 = vadd.f32 %v757, %v797
  %799 = vmatmul.f32.gmra.mxu0 %v158
  %v800 = vpop.f32.mrf.mxu0
  %v801 = vadd.f32 %v760, %v800
  %802 = vmatmul.f32.gmra.mxu0 %v194
  %v803 = vpop.f32.mrf.mxu0
  %v804 = vadd.f32 %v763, %v803
  %805 = vmatmul.f32.gmra.mxu0 %v203
  %v806 = vpop.f32.mrf.mxu0
  %v807 = vadd.f32 %v766, %v806
  %808 = vmatmul.f32.gmra.mxu0 %v212
  %v809 = vpop.f32.mrf.mxu0
  %v810 = vadd.f32 %v769, %v809
  %811 = vmatmul.f32.gmra.mxu0 %v221
  %v812 = vpop.f32.mrf.mxu0
  %v813 = vadd.f32 %v772, %v812
  %814 = vdwg.mxu0
  %815 = vmatpush.msra.mxu0 %v478
  %816 = vmatpush.msra.mxu0 %v476
  %817 = vmatpush.msra.mxu0 %v474
  %818 = vmatpush.msra.mxu0 %v472
  %819 = vmatpush.msra.mxu0 %v470
  %820 = vmatpush.msra.mxu0 %v468
  %821 = vmatpush.msra.mxu0 %v466
  %822 = vmatpush.msra.mxu0 %v464
  %823 = vmatpush.msra.mxu0 %v462
  %824 = vmatpush.msra.mxu0 %v460
  %825 = vmatpush.msra.mxu0 %v458
  %826 = vmatpush.msra.mxu0 %v456
  %827 = vmatpush.msra.mxu0 %v454
  %828 = vmatpush.msra.mxu0 %v452
  %829 = vmatpush.msra.mxu0 %v450
  %830 = vmatpush.msra.mxu0 %v448
  %831 = vmatmul.f32.gmra.mxu0 %v132
  %v832 = vpop.f32.mrf.mxu0
  %v833 = vadd.f32 %v792, %v832
  %834 = vmatmul.f32.gmra.mxu0 %v141
  %v835 = vpop.f32.mrf.mxu0
  %v836 = vadd.f32 %v795, %v835
  %837 = vmatmul.f32.gmra.mxu0 %v150
  %v838 = vpop.f32.mrf.mxu0
  %v839 = vadd.f32 %v798, %v838
  %840 = vmatmul.f32.gmra.mxu0 %v159
  %v841 = vpop.f32.mrf.mxu0
  %v842 = vadd.f32 %v801, %v841
  %843 = vmatmul.f32.gmra.mxu0 %v195
  %v844 = vpop.f32.mrf.mxu0
  %v845 = vadd.f32 %v804, %v844
  %846 = vmatmul.f32.gmra.mxu0 %v204
  %v847 = vpop.f32.mrf.mxu0
  %v848 = vadd.f32 %v807, %v847
  %849 = vmatmul.f32.gmra.mxu0 %v213
  %v850 = vpop.f32.mrf.mxu0
  %v851 = vadd.f32 %v810, %v850
  %852 = vmatmul.f32.gmra.mxu0 %v222
  %v853 = vpop.f32.mrf.mxu0
  %v854 = vadd.f32 %v813, %v853
  %855 = vdwg.mxu0
  %856 = vmatpush.msra.mxu0 %v510
  %857 = vmatpush.msra.mxu0 %v508
  %858 = vmatpush.msra.mxu0 %v506
  %859 = vmatpush.msra.mxu0 %v504
  %860 = vmatpush.msra.mxu0 %v502
  %861 = vmatpush.msra.mxu0 %v500
  %862 = vmatpush.msra.mxu0 %v498
  %863 = vmatpush.msra.mxu0 %v496
  %864 = vmatpush.msra.mxu0 %v494
  %865 = vmatpush.msra.mxu0 %v492
  %866 = vmatpush.msra.mxu0 %v490
  %867 = vmatpush.msra.mxu0 %v488
  %868 = vmatpush.msra.mxu0 %v486
  %869 = vmatpush.msra.mxu0 %v484
  %870 = vmatpush.msra.mxu0 %v482
  %871 = vmatpush.msra.mxu0 %v480
  %872 = vmatmul.f32.gmra.mxu0 %v133
  %v873 = vpop.f32.mrf.mxu0
  %v874 = vadd.f32 %v833, %v873
  %875 = vmatmul.f32.gmra.mxu0 %v142
  %v876 = vpop.f32.mrf.mxu0
  %v877 = vadd.f32 %v836, %v876
  %878 = vmatmul.f32.gmra.mxu0 %v151
  %v879 = vpop.f32.mrf.mxu0
  %v880 = vadd.f32 %v839, %v879
  %881 = vmatmul.f32.gmra.mxu0 %v160
  %v882 = vpop.f32.mrf.mxu0
  %v883 = vadd.f32 %v842, %v882
  %884 = vmatmul.f32.gmra.mxu0 %v196
  %v885 = vpop.f32.mrf.mxu0
  %v886 = vadd.f32 %v845, %v885
  %887 = vmatmul.f32.gmra.mxu0 %v205
  %v888 = vpop.f32.mrf.mxu0
  %v889 = vadd.f32 %v848, %v888
  %890 = vmatmul.f32.gmra.mxu0 %v214
  %v891 = vpop.f32.mrf.mxu0
  %v892 = vadd.f32 %v851, %v891
  %893 = vmatmul.f32.gmra.mxu0 %v223
  %v894 = vpop.f32.mrf.mxu0
  %v895 = vadd.f32 %v854, %v894
  %896 = vdwg.mxu0
  %897 = vmatpush.msra.mxu0 %v255
  %898 = vmatpush.msra.mxu0 %v253
  %899 = vmatpush.msra.mxu0 %v251
  %900 = vmatpush.msra.mxu0 %v249
  %901 = vmatpush.msra.mxu0 %v247
  %902 = vmatpush.msra.mxu0 %v245
  %903 = vmatpush.msra.mxu0 %v243
  %904 = vmatpush.msra.mxu0 %v241
  %905 = vmatpush.msra.mxu0 %v239
  %906 = vmatpush.msra.mxu0 %v237
  %907 = vmatpush.msra.mxu0 %v235
  %908 = vmatpush.msra.mxu0 %v233
  %909 = vmatpush.msra.mxu0 %v231
  %910 = vmatpush.msra.mxu0 %v229
  %911 = vmatpush.msra.mxu0 %v227
  %912 = vmatpush.msra.mxu0 %v225
  %913 = vmatmul.f32.gmra.mxu0 %v125
  %v914 = vpop.f32.mrf.mxu0
  %v915 = vadd.f32 %v513, %v914
  %916 = vmatmul.f32.gmra.mxu0 %v134
  %v917 = vpop.f32.mrf.mxu0
  %v918 = vadd.f32 %v515, %v917
  %919 = vmatmul.f32.gmra.mxu0 %v143
  %v920 = vpop.f32.mrf.mxu0
  %v921 = vadd.f32 %v517, %v920
  %922 = vmatmul.f32.gmra.mxu0 %v152
  %v923 = vpop.f32.mrf.mxu0
  %v924 = vadd.f32 %v519, %v923
  %925 = vmatmul.f32.gmra.mxu0 %v188
  %v926 = vpop.f32.mrf.mxu0
  %v927 = vadd.f32 %v521, %v926
  %928 = vmatmul.f32.gmra.mxu0 %v197
  %v929 = vpop.f32.mrf.mxu0
  %v930 = vadd.f32 %v523, %v929
  %931 = vmatmul.f32.gmra.mxu0 %v206
  %v932 = vpop.f32.mrf.mxu0
  %v933 = vadd.f32 %v525, %v932
  %934 = vmatmul.f32.gmra.mxu0 %v215
  %v935 = vpop.f32.mrf.mxu0
  %v936 = vadd.f32 %v527, %v935
  %937 = vdwg.mxu0
  %938 = vmatpush.msra.mxu0 %v287
  %939 = vmatpush.msra.mxu0 %v285
  %940 = vmatpush.msra.mxu0 %v283
  %941 = vmatpush.msra.mxu0 %v281
  %942 = vmatpush.msra.mxu0 %v279
  %943 = vmatpush.msra.mxu0 %v277
  %944 = vmatpush.msra.mxu0 %v275
  %945 = vmatpush.msra.mxu0 %v273
  %946 = vmatpush.msra.mxu0 %v271
  %947 = vmatpush.msra.mxu0 %v269
  %948 = vmatpush.msra.mxu0 %v267
  %949 = vmatpush.msra.mxu0 %v265
  %950 = vmatpush.msra.mxu0 %v263
  %951 = vmatpush.msra.mxu0 %v261
  %952 = vmatpush.msra.mxu0 %v259
  %953 = vmatpush.msra.mxu0 %v257
  %954 = vmatmul.f32.gmra.mxu0 %v126
  %v955 = vpop.f32.mrf.mxu0
  %v956 = vadd.f32 %v915, %v955
  %957 = vmatmul.f32.gmra.mxu0 %v135
  %v958 = vpop.f32.mrf.mxu0
  %v959 = vadd.f32 %v918, %v958
  %960 = vmatmul.f32.gmra.mxu0 %v144
  %v961 = vpop.f32.mrf.mxu0
  %v962 = vadd.f32 %v921, %v961
  %963 = vmatmul.f32.gmra.mxu0 %v153
  %v964 = vpop.f32.mrf.mxu0
  %v965 = vadd.f32 %v924, %v964
  %966 = vmatmul.f32.gmra.mxu0 %v189
  %v967 = vpop.f32.mrf.mxu0
  %v968 = vadd.f32 %v927, %v967
  %969 = vmatmul.f32.gmra.mxu0 %v198
  %v970 = vpop.f32.mrf.mxu0
  %v971 = vadd.f32 %v930, %v970
  %972 = vmatmul.f32.gmra.mxu0 %v207
  %v973 = vpop.f32.mrf.mxu0
  %v974 = vadd.f32 %v933, %v973
  %975 = vmatmul.f32.gmra.mxu0 %v216
  %v976 = vpop.f32.mrf.mxu0
  %v977 = vadd.f32 %v936, %v976
  %978 = vdwg.mxu0
  %979 = vmatpush.msra.mxu0 %v319
  %980 = vmatpush.msra.mxu0 %v317
  %981 = vmatpush.msra.mxu0 %v315
  %982 = vmatpush.msra.mxu0 %v313
  %983 = vmatpush.msra.mxu0 %v311
  %984 = vmatpush.msra.mxu0 %v309
  %985 = vmatpush.msra.mxu0 %v307
  %986 = vmatpush.msra.mxu0 %v305
  %987 = vmatpush.msra.mxu0 %v303
  %988 = vmatpush.msra.mxu0 %v301
  %989 = vmatpush.msra.mxu0 %v299
  %990 = vmatpush.msra.mxu0 %v297
  %991 = vmatpush.msra.mxu0 %v295
  %992 = vmatpush.msra.mxu0 %v293
  %993 = vmatpush.msra.mxu0 %v291
  %994 = vmatpush.msra.mxu0 %v289
  %995 = vmatmul.f32.gmra.mxu0 %v127
  %v996 = vpop.f32.mrf.mxu0
  %v997 = vadd.f32 %v956, %v996
  %998 = vmatmul.f32.gmra.mxu0 %v136
  %v999 = vpop.f32.mrf.mxu0
  %v1000 = vadd.f32 %v959, %v999
  %1001 = vmatmul.f32.gmra.mxu0 %v145
  %v1002 = vpop.f32.mrf.mxu0
  %v1003 = vadd.f32 %v962, %v1002
  %1004 = vmatmul.f32.gmra.mxu0 %v154
  %v1005 = vpop.f32.mrf.mxu0
  %v1006 = vadd.f32 %v965, %v1005
  %1007 = vmatmul.f32.gmra.mxu0 %v190
  %v1008 = vpop.f32.mrf.mxu0
  %v1009 = vadd.f32 %v968, %v1008
  %1010 = vmatmul.f32.gmra.mxu0 %v199
  %v1011 = vpop.f32.mrf.mxu0
  %v1012 = vadd.f32 %v971, %v1011
  %1013 = vmatmul.f32.gmra.mxu0 %v208
  %v1014 = vpop.f32.mrf.mxu0
  %v1015 = vadd.f32 %v974, %v1014
  %1016 = vmatmul.f32.gmra.mxu0 %v217
  %v1017 = vpop.f32.mrf.mxu0
  %v1018 = vadd.f32 %v977, %v1017
  %1019 = vdwg.mxu0
  %1020 = vmatpush.msra.mxu0 %v351
  %1021 = vmatpush.msra.mxu0 %v349
  %1022 = vmatpush.msra.mxu0 %v347
  %1023 = vmatpush.msra.mxu0 %v345
  %1024 = vmatpush.msra.mxu0 %v343
  %1025 = vmatpush.msra.mxu0 %v341
  %1026 = vmatpush.msra.mxu0 %v339
  %1027 = vmatpush.msra.mxu0 %v337
  %1028 = vmatpush.msra.mxu0 %v335
  %1029 = vmatpush.msra.mxu0 %v333
  %1030 = vmatpush.msra.mxu0 %v331
  %1031 = vmatpush.msra.mxu0 %v329
  %1032 = vmatpush.msra.mxu0 %v327
  %1033 = vmatpush.msra.mxu0 %v325
  %1034 = vmatpush.msra.mxu0 %v323
  %1035 = vmatpush.msra.mxu0 %v321
  %1036 = vmatmul.f32.gmra.mxu0 %v128
  %v1037 = vpop.f32.mrf.mxu0
  %v1038 = vadd.f32 %v997, %v1037
  %1039 = vmatmul.f32.gmra.mxu0 %v137
  %v1040 = vpop.f32.mrf.mxu0
  %v1041 = vadd.f32 %v1000, %v1040
  %1042 = vmatmul.f32.gmra.mxu0 %v146
  %v1043 = vpop.f32.mrf.mxu0
  %v1044 = vadd.f32 %v1003, %v1043
  %1045 = vmatmul.f32.gmra.mxu0 %v155
  %v1046 = vpop.f32.mrf.mxu0
  %v1047 = vadd.f32 %v1006, %v1046
  %1048 = vmatmul.f32.gmra.mxu0 %v191
  %v1049 = vpop.f32.mrf.mxu0
  %v1050 = vadd.f32 %v1009, %v1049
  %1051 = vmatmul.f32.gmra.mxu0 %v200
  %v1052 = vpop.f32.mrf.mxu0
  %v1053 = vadd.f32 %v1012, %v1052
  %1054 = vmatmul.f32.gmra.mxu0 %v209
  %v1055 = vpop.f32.mrf.mxu0
  %v1056 = vadd.f32 %v1015, %v1055
  %1057 = vmatmul.f32.gmra.mxu0 %v218
  %v1058 = vpop.f32.mrf.mxu0
  %v1059 = vadd.f32 %v1018, %v1058
  %1060 = vdwg.mxu0
  %1061 = vmatpush.msra.mxu0 %v383
  %1062 = vmatpush.msra.mxu0 %v381
  %1063 = vmatpush.msra.mxu0 %v379
  %1064 = vmatpush.msra.mxu0 %v377
  %1065 = vmatpush.msra.mxu0 %v375
  %1066 = vmatpush.msra.mxu0 %v373
  %1067 = vmatpush.msra.mxu0 %v371
  %1068 = vmatpush.msra.mxu0 %v369
  %1069 = vmatpush.msra.mxu0 %v367
  %1070 = vmatpush.msra.mxu0 %v365
  %1071 = vmatpush.msra.mxu0 %v363
  %1072 = vmatpush.msra.mxu0 %v361
  %1073 = vmatpush.msra.mxu0 %v359
  %1074 = vmatpush.msra.mxu0 %v357
  %1075 = vmatpush.msra.mxu0 %v355
  %1076 = vmatpush.msra.mxu0 %v353
  %1077 = vmatmul.f32.gmra.mxu0 %v129
  %v1078 = vpop.f32.mrf.mxu0
  %v1079 = vadd.f32 %v1038, %v1078
  %1080 = vmatmul.f32.gmra.mxu0 %v138
  %v1081 = vpop.f32.mrf.mxu0
  %v1082 = vadd.f32 %v1041, %v1081
  %1083 = vmatmul.f32.gmra.mxu0 %v147
  %v1084 = vpop.f32.mrf.mxu0
  %v1085 = vadd.f32 %v1044, %v1084
  %1086 = vmatmul.f32.gmra.mxu0 %v156
  %v1087 = vpop.f32.mrf.mxu0
  %v1088 = vadd.f32 %v1047, %v1087
  %1089 = vmatmul.f32.gmra.mxu0 %v192
  %v1090 = vpop.f32.mrf.mxu0
  %v1091 = vadd.f32 %v1050, %v1090
  %1092 = vmatmul.f32.gmra.mxu0 %v201
  %v1093 = vpop.f32.mrf.mxu0
  %v1094 = vadd.f32 %v1053, %v1093
  %1095 = vmatmul.f32.gmra.mxu0 %v210
  %v1096 = vpop.f32.mrf.mxu0
  %v1097 = vadd.f32 %v1056, %v1096
  %1098 = vmatmul.f32.gmra.mxu0 %v219
  %v1099 = vpop.f32.mrf.mxu0
  %v1100 = vadd.f32 %v1059, %v1099
  %1101 = vdwg.mxu0
  %1102 = vmatpush.msra.mxu0 %v415
  %1103 = vmatpush.msra.mxu0 %v413
  %1104 = vmatpush.msra.mxu0 %v411
  %1105 = vmatpush.msra.mxu0 %v409
  %1106 = vmatpush.msra.mxu0 %v407
  %1107 = vmatpush.msra.mxu0 %v405
  %1108 = vmatpush.msra.mxu0 %v403
  %1109 = vmatpush.msra.mxu0 %v401
  %1110 = vmatpush.msra.mxu0 %v399
  %1111 = vmatpush.msra.mxu0 %v397
  %1112 = vmatpush.msra.mxu0 %v395
  %1113 = vmatpush.msra.mxu0 %v393
  %1114 = vmatpush.msra.mxu0 %v391
  %1115 = vmatpush.msra.mxu0 %v389
  %1116 = vmatpush.msra.mxu0 %v387
  %1117 = vmatpush.msra.mxu0 %v385
  %1118 = vmatmul.f32.gmra.mxu0 %v130
  %v1119 = vpop.f32.mrf.mxu0
  %v1120 = vadd.f32 %v1079, %v1119
  %1121 = vmatmul.f32.gmra.mxu0 %v139
  %v1122 = vpop.f32.mrf.mxu0
  %v1123 = vadd.f32 %v1082, %v1122
  %1124 = vmatmul.f32.gmra.mxu0 %v148
  %v1125 = vpop.f32.mrf.mxu0
  %v1126 = vadd.f32 %v1085, %v1125
  %1127 = vmatmul.f32.gmra.mxu0 %v157
  %v1128 = vpop.f32.mrf.mxu0
  %v1129 = vadd.f32 %v1088, %v1128
  %1130 = vmatmul.f32.gmra.mxu0 %v193
  %v1131 = vpop.f32.mrf.mxu0
  %v1132 = vadd.f32 %v1091, %v1131
  %1133 = vmatmul.f32.gmra.mxu0 %v202
  %v1134 = vpop.f32.mrf.mxu0
  %v1135 = vadd.f32 %v1094, %v1134
  %1136 = vmatmul.f32.gmra.mxu0 %v211
  %v1137 = vpop.f32.mrf.mxu0
  %v1138 = vadd.f32 %v1097, %v1137
  %1139 = vmatmul.f32.gmra.mxu0 %v220
  %v1140 = vpop.f32.mrf.mxu0
  %v1141 = vadd.f32 %v1100, %v1140
  %1142 = vdwg.mxu0
  %1143 = vmatpush.msra.mxu0 %v447
  %1144 = vmatpush.msra.mxu0 %v445
  %1145 = vmatpush.msra.mxu0 %v443
  %1146 = vmatpush.msra.mxu0 %v441
  %1147 = vmatpush.msra.mxu0 %v439
  %1148 = vmatpush.msra.mxu0 %v437
  %1149 = vmatpush.msra.mxu0 %v435
  %1150 = vmatpush.msra.mxu0 %v433
  %1151 = vmatpush.msra.mxu0 %v431
  %1152 = vmatpush.msra.mxu0 %v429
  %1153 = vmatpush.msra.mxu0 %v427
  %1154 = vmatpush.msra.mxu0 %v425
  %1155 = vmatpush.msra.mxu0 %v423
  %1156 = vmatpush.msra.mxu0 %v421
  %1157 = vmatpush.msra.mxu0 %v419
  %1158 = vmatpush.msra.mxu0 %v417
  %1159 = vmatmul.f32.gmra.mxu0 %v131
  %v1160 = vpop.f32.mrf.mxu0
  %v1161 = vadd.f32 %v1120, %v1160
  %1162 = vmatmul.f32.gmra.mxu0 %v140
  %v1163 = vpop.f32.mrf.mxu0
  %v1164 = vadd.f32 %v1123, %v1163
  %1165 = vmatmul.f32.gmra.mxu0 %v149
  %v1166 = vpop.f32.mrf.mxu0
  %v1167 = vadd.f32 %v1126, %v1166
  %1168 = vmatmul.f32.gmra.mxu0 %v158
  %v1169 = vpop.f32.mrf.mxu0
  %v1170 = vadd.f32 %v1129, %v1169
  %1171 = vmatmul.f32.gmra.mxu0 %v194
  %v1172 = vpop.f32.mrf.mxu0
  %v1173 = vadd.f32 %v1132, %v1172
  %1174 = vmatmul.f32.gmra.mxu0 %v203
  %v1175 = vpop.f32.mrf.mxu0
  %v1176 = vadd.f32 %v1135, %v1175
  %1177 = vmatmul.f32.gmra.mxu0 %v212
  %v1178 = vpop.f32.mrf.mxu0
  %v1179 = vadd.f32 %v1138, %v1178
  %1180 = vmatmul.f32.gmra.mxu0 %v221
  %v1181 = vpop.f32.mrf.mxu0
  %v1182 = vadd.f32 %v1141, %v1181
  %1183 = vdwg.mxu0
  %1184 = vmatpush.msra.mxu0 %v479
  %1185 = vmatpush.msra.mxu0 %v477
  %1186 = vmatpush.msra.mxu0 %v475
  %1187 = vmatpush.msra.mxu0 %v473
  %1188 = vmatpush.msra.mxu0 %v471
  %1189 = vmatpush.msra.mxu0 %v469
  %1190 = vmatpush.msra.mxu0 %v467
  %1191 = vmatpush.msra.mxu0 %v465
  %1192 = vmatpush.msra.mxu0 %v463
  %1193 = vmatpush.msra.mxu0 %v461
  %1194 = vmatpush.msra.mxu0 %v459
  %1195 = vmatpush.msra.mxu0 %v457
  %1196 = vmatpush.msra.mxu0 %v455
  %1197 = vmatpush.msra.mxu0 %v453
  %1198 = vmatpush.msra.mxu0 %v451
  %1199 = vmatpush.msra.mxu0 %v449
  %1200 = vmatmul.f32.gmra.mxu0 %v132
  %v1201 = vpop.f32.mrf.mxu0
  %v1202 = vadd.f32 %v1161, %v1201
  %1203 = vmatmul.f32.gmra.mxu0 %v141
  %v1204 = vpop.f32.mrf.mxu0
  %v1205 = vadd.f32 %v1164, %v1204
  %1206 = vmatmul.f32.gmra.mxu0 %v150
  %v1207 = vpop.f32.mrf.mxu0
  %v1208 = vadd.f32 %v1167, %v1207
  %1209 = vmatmul.f32.gmra.mxu0 %v159
  %v1210 = vpop.f32.mrf.mxu0
  %v1211 = vadd.f32 %v1170, %v1210
  %1212 = vmatmul.f32.gmra.mxu0 %v195
  %v1213 = vpop.f32.mrf.mxu0
  %v1214 = vadd.f32 %v1173, %v1213
  %1215 = vmatmul.f32.gmra.mxu0 %v204
  %v1216 = vpop.f32.mrf.mxu0
  %v1217 = vadd.f32 %v1176, %v1216
  %1218 = vmatmul.f32.gmra.mxu0 %v213
  %v1219 = vpop.f32.mrf.mxu0
  %v1220 = vadd.f32 %v1179, %v1219
  %1221 = vmatmul.f32.gmra.mxu0 %v222
  %v1222 = vpop.f32.mrf.mxu0
  %v1223 = vadd.f32 %v1182, %v1222
  %1224 = vdwg.mxu0
  %1225 = vmatpush.msra.mxu0 %v511
  %1226 = vmatpush.msra.mxu0 %v509
  %1227 = vmatpush.msra.mxu0 %v507
  %1228 = vmatpush.msra.mxu0 %v505
  %1229 = vmatpush.msra.mxu0 %v503
  %1230 = vmatpush.msra.mxu0 %v501
  %1231 = vmatpush.msra.mxu0 %v499
  %1232 = vmatpush.msra.mxu0 %v497
  %1233 = vmatpush.msra.mxu0 %v495
  %1234 = vmatpush.msra.mxu0 %v493
  %1235 = vmatpush.msra.mxu0 %v491
  %1236 = vmatpush.msra.mxu0 %v489
  %1237 = vmatpush.msra.mxu0 %v487
  %1238 = vmatpush.msra.mxu0 %v485
  %1239 = vmatpush.msra.mxu0 %v483
  %1240 = vmatpush.msra.mxu0 %v481
  %1241 = vmatmul.f32.gmra.mxu0 %v133
  %v1242 = vpop.f32.mrf.mxu0
  %v1243 = vadd.f32 %v1202, %v1242
  %1244 = vmatmul.f32.gmra.mxu0 %v142
  %v1245 = vpop.f32.mrf.mxu0
  %v1246 = vadd.f32 %v1205, %v1245
  %1247 = vmatmul.f32.gmra.mxu0 %v151
  %v1248 = vpop.f32.mrf.mxu0
  %v1249 = vadd.f32 %v1208, %v1248
  %1250 = vmatmul.f32.gmra.mxu0 %v160
  %v1251 = vpop.f32.mrf.mxu0
  %v1252 = vadd.f32 %v1211, %v1251
  %1253 = vmatmul.f32.gmra.mxu0 %v196
  %v1254 = vpop.f32.mrf.mxu0
  %v1255 = vadd.f32 %v1214, %v1254
  %1256 = vmatmul.f32.gmra.mxu0 %v205
  %v1257 = vpop.f32.mrf.mxu0
  %v1258 = vadd.f32 %v1217, %v1257
  %1259 = vmatmul.f32.gmra.mxu0 %v214
  %v1260 = vpop.f32.mrf.mxu0
  %v1261 = vadd.f32 %v1220, %v1260
  %1262 = vmatmul.f32.gmra.mxu0 %v223
  %v1263 = vpop.f32.mrf.mxu0
  %v1264 = vadd.f32 %v1223, %v1263
  %1265 = vdwg.mxu0
  %v1266 = vmax.f32 %v874, 0.0
  %v1267 = vmax.f32 %v1243, 0.0
  %v1268 = vmax.f32 %v877, 0.0
  %v1269 = vmax.f32 %v1246, 0.0
  %v1270 = vmax.f32 %v880, 0.0
  %v1271 = vmax.f32 %v1249, 0.0
  %v1272 = vmax.f32 %v883, 0.0
  %v1273 = vmax.f32 %v1252, 0.0
  %v1274 = vmax.f32 %v886, 0.0
  %v1275 = vmax.f32 %v1255, 0.0
  %v1276 = vmax.f32 %v889, 0.0
  %v1277 = vmax.f32 %v1258, 0.0
  %v1278 = vmax.f32 %v892, 0.0
  %v1279 = vmax.f32 %v1261, 0.0
  %v1280 = vmax.f32 %v895, 0.0
  %v1281 = vmax.f32 %v1264, 0.0
  %v1282 = vld [vmem:[%s3] sm:$0xff]
  %v1283 = vld [vmem:[%s3 + $0x8] sm:$0xff]
  %v1284 = vld [vmem:[%s3 + $0x10] sm:$0xff]
  %v1285 = vld [vmem:[%s3 + $0x18] sm:$0xff]
  %v1286 = vld [vmem:[%s3 + $0x20] sm:$0xff]
  %v1287 = vld [vmem:[%s3 + $0x28] sm:$0xff]
  %v1288 = vld [vmem:[%s3 + $0x30] sm:$0xff]
  %v1289 = vld [vmem:[%s3 + $0x38] sm:$0xff]
  %v1290 = vld [vmem:[%s3 + $0x40] sm:$0xff]
  %v1291 = vld [vmem:[%s3 + $0x48] sm:$0xff]
  %v1292 = vld [vmem:[%s3 + $0x50] sm:$0xff]
  %v1293 = vld [vmem:[%s3 + $0x58] sm:$0xff]
  %v1294 = vld [vmem:[%s3 + $0x60] sm:$0xff]
  %v1295 = vld [vmem:[%s3 + $0x68] sm:$0xff]
  %v1296 = vld [vmem:[%s3 + $0x70] sm:$0xff]
  %v1297 = vld [vmem:[%s3 + $0x78] sm:$0xff]
  %v1298 = vld [vmem:[%s3 + $0x80] sm:$0xff]
  %v1299 = vld [vmem:[%s3 + $0x88] sm:$0xff]
  %v1300 = vld [vmem:[%s3 + $0x90] sm:$0xff]
  %v1301 = vld [vmem:[%s3 + $0x98] sm:$0xff]
  %v1302 = vld [vmem:[%s3 + $0xa0] sm:$0xff]
  %v1303 = vld [vmem:[%s3 + $0xa8] sm:$0xff]
  %v1304 = vld [vmem:[%s3 + $0xb0] sm:$0xff]
  %v1305 = vld [vmem:[%s3 + $0xb8] sm:$0xff]
  %v1306 = vld [vmem:[%s3 + $0xc0] sm:$0xff]
  %v1307 = vld [vmem:[%s3 + $0xc8] sm:$0xff]
  %v1308 = vld [vmem:[%s3 + $0xd0] sm:$0xff]
  %v1309 = vld [vmem:[%s3 + $0xd8] sm:$0xff]
  %v1310 = vld [vmem:[%s3 + $0xe0] sm:$0xff]
  %v1311 = vld [vmem:[%s3 + $0xe8] sm:$0xff]
  %v1312 = vld [vmem:[%s3 + $0xf0] sm:$0xff]
  %v1313 = vld [vmem:[%s3 + $0xf8] sm:$0xff]
  %v1314 = vld [vmem:[%s3 + $0x100] sm:$0xff]
  %v1315 = vld [vmem:[%s3 + $0x108] sm:$0xff]
  %v1316 = vld [vmem:[%s3 + $0x110] sm:$0xff]
  %v1317 = vld [vmem:[%s3 + $0x118] sm:$0xff]
  %v1318 = vld [vmem:[%s3 + $0x120] sm:$0xff]
  %v1319 = vld [vmem:[%s3 + $0x128] sm:$0xff]
  %v1320 = vld [vmem:[%s3 + $0x130] sm:$0xff]
  %v1321 = vld [vmem:[%s3 + $0x138] sm:$0xff]
  %v1322 = vld [vmem:[%s3 + $0x140] sm:$0xff]
  %v1323 = vld [vmem:[%s3 + $0x148] sm:$0xff]
  %v1324 = vld [vmem:[%s3 + $0x150] sm:$0xff]
  %v1325 = vld [vmem:[%s3 + $0x158] sm:$0xff]
  %v1326 = vld [vmem:[%s3 + $0x160] sm:$0xff]
  %v1327 = vld [vmem:[%s3 + $0x168] sm:$0xff]
  %v1328 = vld [vmem:[%s3 + $0x170] sm:$0xff]
  %v1329 = vld [vmem:[%s3 + $0x178] sm:$0xff]
  %v1330 = vld [vmem:[%s3 + $0x180] sm:$0xff]
  %v1331 = vld [vmem:[%s3 + $0x188] sm:$0xff]
  %v1332 = vld [vmem:[%s3 + $0x190] sm:$0xff]
  %v1333 = vld [vmem:[%s3 + $0x198] sm:$0xff]
  %v1334 = vld [vmem:[%s3 + $0x1a0] sm:$0xff]
  %v1335 = vld [vmem:[%s3 + $0x1a8] sm:$0xff]
  %v1336 = vld [vmem:[%s3 + $0x1b0] sm:$0xff]
  %v1337 = vld [vmem:[%s3 + $0x1b8] sm:$0xff]
  %v1338 = vld [vmem:[%s3 + $0x1c0] sm:$0xff]
  %v1339 = vld [vmem:[%s3 + $0x1c8] sm:$0xff]
  %v1340 = vld [vmem:[%s3 + $0x1d0] sm:$0xff]
  %v1341 = vld [vmem:[%s3 + $0x1d8] sm:$0xff]
  %v1342 = vld [vmem:[%s3 + $0x1e0] sm:$0xff]
  %v1343 = vld [vmem:[%s3 + $0x1e8] sm:$0xff]
  %v1344 = vld [vmem:[%s3 + $0x1f0] sm:$0xff]
  %v1345 = vld [vmem:[%s3 + $0x1f8] sm:$0xff]
  %v1346 = vld [vmem:[%s3 + $0x200] sm:$0xff]
  %v1347 = vld [vmem:[%s3 + $0x208] sm:$0xff]
  %v1348 = vld [vmem:[%s3 + $0x210] sm:$0xff]
  %v1349 = vld [vmem:[%s3 + $0x218] sm:$0xff]
  %v1350 = vld [vmem:[%s3 + $0x220] sm:$0xff]
  %v1351 = vld [vmem:[%s3 + $0x228] sm:$0xff]
  %v1352 = vld [vmem:[%s3 + $0x230] sm:$0xff]
  %v1353 = vld [vmem:[%s3 + $0x238] sm:$0xff]
  %v1354 = vld [vmem:[%s3 + $0x240] sm:$0xff]
  %v1355 = vld [vmem:[%s3 + $0x248] sm:$0xff]
  %v1356 = vld [vmem:[%s3 + $0x250] sm:$0xff]
  %v1357 = vld [vmem:[%s3 + $0x258] sm:$0xff]
  %v1358 = vld [vmem:[%s3 + $0x260] sm:$0xff]
  %v1359 = vld [vmem:[%s3 + $0x268] sm:$0xff]
  %v1360 = vld [vmem:[%s3 + $0x270] sm:$0xff]
  %v1361 = vld [vmem:[%s3 + $0x278] sm:$0xff]
  %v1362 = vld [vmem:[%s3 + $0x280] sm:$0xff]
  %v1363 = vld [vmem:[%s3 + $0x288] sm:$0xff]
  %v1364 = vld [vmem:[%s3 + $0x290] sm:$0xff]
  %v1365 = vld [vmem:[%s3 + $0x298] sm:$0xff]
  %v1366 = vld [vmem:[%s3 + $0x2a0] sm:$0xff]
  %v1367 = vld [vmem:[%s3 + $0x2a8] sm:$0xff]
  %v1368 = vld [vmem:[%s3 + $0x2b0] sm:$0xff]
  %v1369 = vld [vmem:[%s3 + $0x2b8] sm:$0xff]
  %v1370 = vld [vmem:[%s3 + $0x2c0] sm:$0xff]
  %v1371 = vld [vmem:[%s3 + $0x2c8] sm:$0xff]
  %v1372 = vld [vmem:[%s3 + $0x2d0] sm:$0xff]
  %v1373 = vld [vmem:[%s3 + $0x2d8] sm:$0xff]
  %v1374 = vld [vmem:[%s3 + $0x2e0] sm:$0xff]
  %v1375 = vld [vmem:[%s3 + $0x2e8] sm:$0xff]
  %v1376 = vld [vmem:[%s3 + $0x2f0] sm:$0xff]
  %v1377 = vld [vmem:[%s3 + $0x2f8] sm:$0xff]
  %v1378 = vld [vmem:[%s3 + $0x300] sm:$0xff]
  %v1379 = vld [vmem:[%s3 + $0x308] sm:$0xff]
  %v1380 = vld [vmem:[%s3 + $0x310] sm:$0xff]
  %v1381 = vld [vmem:[%s3 + $0x318] sm:$0xff]
  %v1382 = vld [vmem:[%s3 + $0x320] sm:$0xff]
  %v1383 = vld [vmem:[%s3 + $0x328] sm:$0xff]
  %v1384 = vld [vmem:[%s3 + $0x330] sm:$0xff]
  %v1385 = vld [vmem:[%s3 + $0x338] sm:$0xff]
  %v1386 = vld [vmem:[%s3 + $0x340] sm:$0xff]
  %v1387 = vld [vmem:[%s3 + $0x348] sm:$0xff]
  %v1388 = vld [vmem:[%s3 + $0x350] sm:$0xff]
  %v1389 = vld [vmem:[%s3 + $0x358] sm:$0xff]
  %v1390 = vld [vmem:[%s3 + $0x360] sm:$0xff]
  %v1391 = vld [vmem:[%s3 + $0x368] sm:$0xff]
  %v1392 = vld [vmem:[%s3 + $0x370] sm:$0xff]
  %v1393 = vld [vmem:[%s3 + $0x378] sm:$0xff]
  %v1394 = vld [vmem:[%s3 + $0x380] sm:$0xff]
  %v1395 = vld [vmem:[%s3 + $0x388] sm:$0xff]
  %v1396 = vld [vmem:[%s3 + $0x390] sm:$0xff]
  %v1397 = vld [vmem:[%s3 + $0x398] sm:$0xff]
  %v1398 = vld [vmem:[%s3 + $0x3a0] sm:$0xff]
  %v1399 = vld [vmem:[%s3 + $0x3a8] sm:$0xff]
  %v1400 = vld [vmem:[%s3 + $0x3b0] sm:$0xff]
  %v1401 = vld [vmem:[%s3 + $0x3b8] sm:$0xff]
  %v1402 = vld [vmem:[%s3 + $0x3c0] sm:$0xff]
  %v1403 = vld [vmem:[%s3 + $0x3c8] sm:$0xff]
  %v1404 = vld [vmem:[%s3 + $0x3d0] sm:$0xff]
  %v1405 = vld [vmem:[%s3 + $0x3d8] sm:$0xff]
  %v1406 = vld [vmem:[%s3 + $0x3e0] sm:$0xff]
  %v1407 = vld [vmem:[%s3 + $0x3e8] sm:$0xff]
  %v1408 = vld [vmem:[%s3 + $0x3f0] sm:$0xff]
  %v1409 = vld [vmem:[%s3 + $0x3f8] sm:$0xff]
  %s1410 = scalar_lea.vmem %s3, 1024
  %v1411 = vld [vmem:[%s1410] sm:$0xff]
  %v1412 = vld [vmem:[%s1410 + $0x8] sm:$0xff]
  %v1413 = vld [vmem:[%s1410 + $0x10] sm:$0xff]
  %v1414 = vld [vmem:[%s1410 + $0x18] sm:$0xff]
  %v1415 = vld [vmem:[%s1410 + $0x20] sm:$0xff]
  %v1416 = vld [vmem:[%s1410 + $0x28] sm:$0xff]
  %v1417 = vld [vmem:[%s1410 + $0x30] sm:$0xff]
  %v1418 = vld [vmem:[%s1410 + $0x38] sm:$0xff]
  %v1419 = vld [vmem:[%s1410 + $0x40] sm:$0xff]
  %v1420 = vld [vmem:[%s1410 + $0x48] sm:$0xff]
  %v1421 = vld [vmem:[%s1410 + $0x50] sm:$0xff]
  %v1422 = vld [vmem:[%s1410 + $0x58] sm:$0xff]
  %v1423 = vld [vmem:[%s1410 + $0x60] sm:$0xff]
  %v1424 = vld [vmem:[%s1410 + $0x68] sm:$0xff]
  %v1425 = vld [vmem:[%s1410 + $0x70] sm:$0xff]
  %v1426 = vld [vmem:[%s1410 + $0x78] sm:$0xff]
  %v1427 = vld [vmem:[%s1410 + $0x80] sm:$0xff]
  %v1428 = vld [vmem:[%s1410 + $0x88] sm:$0xff]
  %v1429 = vld [vmem:[%s1410 + $0x90] sm:$0xff]
  %v1430 = vld [vmem:[%s1410 + $0x98] sm:$0xff]
  %v1431 = vld [vmem:[%s1410 + $0xa0] sm:$0xff]
  %v1432 = vld [vmem:[%s1410 + $0xa8] sm:$0xff]
  %v1433 = vld [vmem:[%s1410 + $0xb0] sm:$0xff]
  %v1434 = vld [vmem:[%s1410 + $0xb8] sm:$0xff]
  %v1435 = vld [vmem:[%s1410 + $0xc0] sm:$0xff]
  %v1436 = vld [vmem:[%s1410 + $0xc8] sm:$0xff]
  %v1437 = vld [vmem:[%s1410 + $0xd0] sm:$0xff]
  %v1438 = vld [vmem:[%s1410 + $0xd8] sm:$0xff]
  %v1439 = vld [vmem:[%s1410 + $0xe0] sm:$0xff]
  %v1440 = vld [vmem:[%s1410 + $0xe8] sm:$0xff]
  %v1441 = vld [vmem:[%s1410 + $0xf0] sm:$0xff]
  %v1442 = vld [vmem:[%s1410 + $0xf8] sm:$0xff]
  %v1443 = vld [vmem:[%s1410 + $0x100] sm:$0xff]
  %v1444 = vld [vmem:[%s1410 + $0x108] sm:$0xff]
  %v1445 = vld [vmem:[%s1410 + $0x110] sm:$0xff]
  %v1446 = vld [vmem:[%s1410 + $0x118] sm:$0xff]
  %v1447 = vld [vmem:[%s1410 + $0x120] sm:$0xff]
  %v1448 = vld [vmem:[%s1410 + $0x128] sm:$0xff]
  %v1449 = vld [vmem:[%s1410 + $0x130] sm:$0xff]
  %v1450 = vld [vmem:[%s1410 + $0x138] sm:$0xff]
  %v1451 = vld [vmem:[%s1410 + $0x140] sm:$0xff]
  %v1452 = vld [vmem:[%s1410 + $0x148] sm:$0xff]
  %v1453 = vld [vmem:[%s1410 + $0x150] sm:$0xff]
  %v1454 = vld [vmem:[%s1410 + $0x158] sm:$0xff]
  %v1455 = vld [vmem:[%s1410 + $0x160] sm:$0xff]
  %v1456 = vld [vmem:[%s1410 + $0x168] sm:$0xff]
  %v1457 = vld [vmem:[%s1410 + $0x170] sm:$0xff]
  %v1458 = vld [vmem:[%s1410 + $0x178] sm:$0xff]
  %v1459 = vld [vmem:[%s1410 + $0x180] sm:$0xff]
  %v1460 = vld [vmem:[%s1410 + $0x188] sm:$0xff]
  %v1461 = vld [vmem:[%s1410 + $0x190] sm:$0xff]
  %v1462 = vld [vmem:[%s1410 + $0x198] sm:$0xff]
  %v1463 = vld [vmem:[%s1410 + $0x1a0] sm:$0xff]
  %v1464 = vld [vmem:[%s1410 + $0x1a8] sm:$0xff]
  %v1465 = vld [vmem:[%s1410 + $0x1b0] sm:$0xff]
  %v1466 = vld [vmem:[%s1410 + $0x1b8] sm:$0xff]
  %v1467 = vld [vmem:[%s1410 + $0x1c0] sm:$0xff]
  %v1468 = vld [vmem:[%s1410 + $0x1c8] sm:$0xff]
  %v1469 = vld [vmem:[%s1410 + $0x1d0] sm:$0xff]
  %v1470 = vld [vmem:[%s1410 + $0x1d8] sm:$0xff]
  %v1471 = vld [vmem:[%s1410 + $0x1e0] sm:$0xff]
  %v1472 = vld [vmem:[%s1410 + $0x1e8] sm:$0xff]
  %v1473 = vld [vmem:[%s1410 + $0x1f0] sm:$0xff]
  %v1474 = vld [vmem:[%s1410 + $0x1f8] sm:$0xff]
  %v1475 = vld [vmem:[%s1410 + $0x200] sm:$0xff]
  %v1476 = vld [vmem:[%s1410 + $0x208] sm:$0xff]
  %v1477 = vld [vmem:[%s1410 + $0x210] sm:$0xff]
  %v1478 = vld [vmem:[%s1410 + $0x218] sm:$0xff]
  %v1479 = vld [vmem:[%s1410 + $0x220] sm:$0xff]
  %v1480 = vld [vmem:[%s1410 + $0x228] sm:$0xff]
  %v1481 = vld [vmem:[%s1410 + $0x230] sm:$0xff]
  %v1482 = vld [vmem:[%s1410 + $0x238] sm:$0xff]
  %v1483 = vld [vmem:[%s1410 + $0x240] sm:$0xff]
  %v1484 = vld [vmem:[%s1410 + $0x248] sm:$0xff]
  %v1485 = vld [vmem:[%s1410 + $0x250] sm:$0xff]
  %v1486 = vld [vmem:[%s1410 + $0x258] sm:$0xff]
  %v1487 = vld [vmem:[%s1410 + $0x260] sm:$0xff]
  %v1488 = vld [vmem:[%s1410 + $0x268] sm:$0xff]
  %v1489 = vld [vmem:[%s1410 + $0x270] sm:$0xff]
  %v1490 = vld [vmem:[%s1410 + $0x278] sm:$0xff]
  %v1491 = vld [vmem:[%s1410 + $0x280] sm:$0xff]
  %v1492 = vld [vmem:[%s1410 + $0x288] sm:$0xff]
  %v1493 = vld [vmem:[%s1410 + $0x290] sm:$0xff]
  %v1494 = vld [vmem:[%s1410 + $0x298] sm:$0xff]
  %v1495 = vld [vmem:[%s1410 + $0x2a0] sm:$0xff]
  %v1496 = vld [vmem:[%s1410 + $0x2a8] sm:$0xff]
  %v1497 = vld [vmem:[%s1410 + $0x2b0] sm:$0xff]
  %v1498 = vld [vmem:[%s1410 + $0x2b8] sm:$0xff]
  %v1499 = vld [vmem:[%s1410 + $0x2c0] sm:$0xff]
  %v1500 = vld [vmem:[%s1410 + $0x2c8] sm:$0xff]
  %v1501 = vld [vmem:[%s1410 + $0x2d0] sm:$0xff]
  %v1502 = vld [vmem:[%s1410 + $0x2d8] sm:$0xff]
  %v1503 = vld [vmem:[%s1410 + $0x2e0] sm:$0xff]
  %v1504 = vld [vmem:[%s1410 + $0x2e8] sm:$0xff]
  %v1505 = vld [vmem:[%s1410 + $0x2f0] sm:$0xff]
  %v1506 = vld [vmem:[%s1410 + $0x2f8] sm:$0xff]
  %v1507 = vld [vmem:[%s1410 + $0x300] sm:$0xff]
  %v1508 = vld [vmem:[%s1410 + $0x308] sm:$0xff]
  %v1509 = vld [vmem:[%s1410 + $0x310] sm:$0xff]
  %v1510 = vld [vmem:[%s1410 + $0x318] sm:$0xff]
  %v1511 = vld [vmem:[%s1410 + $0x320] sm:$0xff]
  %v1512 = vld [vmem:[%s1410 + $0x328] sm:$0xff]
  %v1513 = vld [vmem:[%s1410 + $0x330] sm:$0xff]
  %v1514 = vld [vmem:[%s1410 + $0x338] sm:$0xff]
  %v1515 = vld [vmem:[%s1410 + $0x340] sm:$0xff]
  %v1516 = vld [vmem:[%s1410 + $0x348] sm:$0xff]
  %v1517 = vld [vmem:[%s1410 + $0x350] sm:$0xff]
  %v1518 = vld [vmem:[%s1410 + $0x358] sm:$0xff]
  %v1519 = vld [vmem:[%s1410 + $0x360] sm:$0xff]
  %v1520 = vld [vmem:[%s1410 + $0x368] sm:$0xff]
  %v1521 = vld [vmem:[%s1410 + $0x370] sm:$0xff]
  %v1522 = vld [vmem:[%s1410 + $0x378] sm:$0xff]
  %v1523 = vld [vmem:[%s1410 + $0x380] sm:$0xff]
  %v1524 = vld [vmem:[%s1410 + $0x388] sm:$0xff]
  %v1525 = vld [vmem:[%s1410 + $0x390] sm:$0xff]
  %v1526 = vld [vmem:[%s1410 + $0x398] sm:$0xff]
  %v1527 = vld [vmem:[%s1410 + $0x3a0] sm:$0xff]
  %v1528 = vld [vmem:[%s1410 + $0x3a8] sm:$0xff]
  %v1529 = vld [vmem:[%s1410 + $0x3b0] sm:$0xff]
  %v1530 = vld [vmem:[%s1410 + $0x3b8] sm:$0xff]
  %v1531 = vld [vmem:[%s1410 + $0x3c0] sm:$0xff]
  %v1532 = vld [vmem:[%s1410 + $0x3c8] sm:$0xff]
  %v1533 = vld [vmem:[%s1410 + $0x3d0] sm:$0xff]
  %v1534 = vld [vmem:[%s1410 + $0x3d8] sm:$0xff]
  %v1535 = vld [vmem:[%s1410 + $0x3e0] sm:$0xff]
  %v1536 = vld [vmem:[%s1410 + $0x3e8] sm:$0xff]
  %v1537 = vld [vmem:[%s1410 + $0x3f0] sm:$0xff]
  %v1538 = vld [vmem:[%s1410 + $0x3f8] sm:$0xff]
  %s1539 = scalar_lea.vmem %s3, 2048
  %v1540 = vld [vmem:[%s1539] sm:$0xff]
  %v1541 = vld [vmem:[%s1539 + $0x8] sm:$0xff]
  %v1542 = vld [vmem:[%s1539 + $0x10] sm:$0xff]
  %v1543 = vld [vmem:[%s1539 + $0x18] sm:$0xff]
  %v1544 = vld [vmem:[%s1539 + $0x20] sm:$0xff]
  %v1545 = vld [vmem:[%s1539 + $0x28] sm:$0xff]
  %v1546 = vld [vmem:[%s1539 + $0x30] sm:$0xff]
  %v1547 = vld [vmem:[%s1539 + $0x38] sm:$0xff]
  %v1548 = vld [vmem:[%s1539 + $0x40] sm:$0xff]
  %v1549 = vld [vmem:[%s1539 + $0x48] sm:$0xff]
  %v1550 = vld [vmem:[%s1539 + $0x50] sm:$0xff]
  %v1551 = vld [vmem:[%s1539 + $0x58] sm:$0xff]
  %v1552 = vld [vmem:[%s1539 + $0x60] sm:$0xff]
  %v1553 = vld [vmem:[%s1539 + $0x68] sm:$0xff]
  %v1554 = vld [vmem:[%s1539 + $0x70] sm:$0xff]
  %v1555 = vld [vmem:[%s1539 + $0x78] sm:$0xff]
  %v1556 = vld [vmem:[%s1539 + $0x80] sm:$0xff]
  %v1557 = vld [vmem:[%s1539 + $0x88] sm:$0xff]
  %v1558 = vld [vmem:[%s1539 + $0x90] sm:$0xff]
  %v1559 = vld [vmem:[%s1539 + $0x98] sm:$0xff]
  %v1560 = vld [vmem:[%s1539 + $0xa0] sm:$0xff]
  %v1561 = vld [vmem:[%s1539 + $0xa8] sm:$0xff]
  %v1562 = vld [vmem:[%s1539 + $0xb0] sm:$0xff]
  %v1563 = vld [vmem:[%s1539 + $0xb8] sm:$0xff]
  %v1564 = vld [vmem:[%s1539 + $0xc0] sm:$0xff]
  %v1565 = vld [vmem:[%s1539 + $0xc8] sm:$0xff]
  %v1566 = vld [vmem:[%s1539 + $0xd0] sm:$0xff]
  %v1567 = vld [vmem:[%s1539 + $0xd8] sm:$0xff]
  %v1568 = vld [vmem:[%s1539 + $0xe0] sm:$0xff]
  %v1569 = vld [vmem:[%s1539 + $0xe8] sm:$0xff]
  %v1570 = vld [vmem:[%s1539 + $0xf0] sm:$0xff]
  %v1571 = vld [vmem:[%s1539 + $0xf8] sm:$0xff]
  %v1572 = vld [vmem:[%s1539 + $0x100] sm:$0xff]
  %v1573 = vld [vmem:[%s1539 + $0x108] sm:$0xff]
  %v1574 = vld [vmem:[%s1539 + $0x110] sm:$0xff]
  %v1575 = vld [vmem:[%s1539 + $0x118] sm:$0xff]
  %v1576 = vld [vmem:[%s1539 + $0x120] sm:$0xff]
  %v1577 = vld [vmem:[%s1539 + $0x128] sm:$0xff]
  %v1578 = vld [vmem:[%s1539 + $0x130] sm:$0xff]
  %v1579 = vld [vmem:[%s1539 + $0x138] sm:$0xff]
  %v1580 = vld [vmem:[%s1539 + $0x140] sm:$0xff]
  %v1581 = vld [vmem:[%s1539 + $0x148] sm:$0xff]
  %v1582 = vld [vmem:[%s1539 + $0x150] sm:$0xff]
  %v1583 = vld [vmem:[%s1539 + $0x158] sm:$0xff]
  %v1584 = vld [vmem:[%s1539 + $0x160] sm:$0xff]
  %v1585 = vld [vmem:[%s1539 + $0x168] sm:$0xff]
  %v1586 = vld [vmem:[%s1539 + $0x170] sm:$0xff]
  %v1587 = vld [vmem:[%s1539 + $0x178] sm:$0xff]
  %v1588 = vld [vmem:[%s1539 + $0x180] sm:$0xff]
  %v1589 = vld [vmem:[%s1539 + $0x188] sm:$0xff]
  %v1590 = vld [vmem:[%s1539 + $0x190] sm:$0xff]
  %v1591 = vld [vmem:[%s1539 + $0x198] sm:$0xff]
  %v1592 = vld [vmem:[%s1539 + $0x1a0] sm:$0xff]
  %v1593 = vld [vmem:[%s1539 + $0x1a8] sm:$0xff]
  %v1594 = vld [vmem:[%s1539 + $0x1b0] sm:$0xff]
  %v1595 = vld [vmem:[%s1539 + $0x1b8] sm:$0xff]
  %v1596 = vld [vmem:[%s1539 + $0x1c0] sm:$0xff]
  %v1597 = vld [vmem:[%s1539 + $0x1c8] sm:$0xff]
  %v1598 = vld [vmem:[%s1539 + $0x1d0] sm:$0xff]
  %v1599 = vld [vmem:[%s1539 + $0x1d8] sm:$0xff]
  %v1600 = vld [vmem:[%s1539 + $0x1e0] sm:$0xff]
  %v1601 = vld [vmem:[%s1539 + $0x1e8] sm:$0xff]
  %v1602 = vld [vmem:[%s1539 + $0x1f0] sm:$0xff]
  %v1603 = vld [vmem:[%s1539 + $0x1f8] sm:$0xff]
  %v1604 = vld [vmem:[%s1539 + $0x200] sm:$0xff]
  %v1605 = vld [vmem:[%s1539 + $0x208] sm:$0xff]
  %v1606 = vld [vmem:[%s1539 + $0x210] sm:$0xff]
  %v1607 = vld [vmem:[%s1539 + $0x218] sm:$0xff]
  %v1608 = vld [vmem:[%s1539 + $0x220] sm:$0xff]
  %v1609 = vld [vmem:[%s1539 + $0x228] sm:$0xff]
  %v1610 = vld [vmem:[%s1539 + $0x230] sm:$0xff]
  %v1611 = vld [vmem:[%s1539 + $0x238] sm:$0xff]
  %v1612 = vld [vmem:[%s1539 + $0x240] sm:$0xff]
  %v1613 = vld [vmem:[%s1539 + $0x248] sm:$0xff]
  %v1614 = vld [vmem:[%s1539 + $0x250] sm:$0xff]
  %v1615 = vld [vmem:[%s1539 + $0x258] sm:$0xff]
  %v1616 = vld [vmem:[%s1539 + $0x260] sm:$0xff]
  %v1617 = vld [vmem:[%s1539 + $0x268] sm:$0xff]
  %v1618 = vld [vmem:[%s1539 + $0x270] sm:$0xff]
  %v1619 = vld [vmem:[%s1539 + $0x278] sm:$0xff]
  %v1620 = vld [vmem:[%s1539 + $0x280] sm:$0xff]
  %v1621 = vld [vmem:[%s1539 + $0x288] sm:$0xff]
  %v1622 = vld [vmem:[%s1539 + $0x290] sm:$0xff]
  %v1623 = vld [vmem:[%s1539 + $0x298] sm:$0xff]
  %v1624 = vld [vmem:[%s1539 + $0x2a0] sm:$0xff]
  %v1625 = vld [vmem:[%s1539 + $0x2a8] sm:$0xff]
  %v1626 = vld [vmem:[%s1539 + $0x2b0] sm:$0xff]
  %v1627 = vld [vmem:[%s1539 + $0x2b8] sm:$0xff]
  %v1628 = vld [vmem:[%s1539 + $0x2c0] sm:$0xff]
  %v1629 = vld [vmem:[%s1539 + $0x2c8] sm:$0xff]
  %v1630 = vld [vmem:[%s1539 + $0x2d0] sm:$0xff]
  %v1631 = vld [vmem:[%s1539 + $0x2d8] sm:$0xff]
  %v1632 = vld [vmem:[%s1539 + $0x2e0] sm:$0xff]
  %v1633 = vld [vmem:[%s1539 + $0x2e8] sm:$0xff]
  %v1634 = vld [vmem:[%s1539 + $0x2f0] sm:$0xff]
  %v1635 = vld [vmem:[%s1539 + $0x2f8] sm:$0xff]
  %v1636 = vld [vmem:[%s1539 + $0x300] sm:$0xff]
  %v1637 = vld [vmem:[%s1539 + $0x308] sm:$0xff]
  %v1638 = vld [vmem:[%s1539 + $0x310] sm:$0xff]
  %v1639 = vld [vmem:[%s1539 + $0x318] sm:$0xff]
  %v1640 = vld [vmem:[%s1539 + $0x320] sm:$0xff]
  %v1641 = vld [vmem:[%s1539 + $0x328] sm:$0xff]
  %v1642 = vld [vmem:[%s1539 + $0x330] sm:$0xff]
  %v1643 = vld [vmem:[%s1539 + $0x338] sm:$0xff]
  %v1644 = vld [vmem:[%s1539 + $0x340] sm:$0xff]
  %v1645 = vld [vmem:[%s1539 + $0x348] sm:$0xff]
  %v1646 = vld [vmem:[%s1539 + $0x350] sm:$0xff]
  %v1647 = vld [vmem:[%s1539 + $0x358] sm:$0xff]
  %v1648 = vld [vmem:[%s1539 + $0x360] sm:$0xff]
  %v1649 = vld [vmem:[%s1539 + $0x368] sm:$0xff]
  %v1650 = vld [vmem:[%s1539 + $0x370] sm:$0xff]
  %v1651 = vld [vmem:[%s1539 + $0x378] sm:$0xff]
  %v1652 = vld [vmem:[%s1539 + $0x380] sm:$0xff]
  %v1653 = vld [vmem:[%s1539 + $0x388] sm:$0xff]
  %v1654 = vld [vmem:[%s1539 + $0x390] sm:$0xff]
  %v1655 = vld [vmem:[%s1539 + $0x398] sm:$0xff]
  %v1656 = vld [vmem:[%s1539 + $0x3a0] sm:$0xff]
  %v1657 = vld [vmem:[%s1539 + $0x3a8] sm:$0xff]
  %v1658 = vld [vmem:[%s1539 + $0x3b0] sm:$0xff]
  %v1659 = vld [vmem:[%s1539 + $0x3b8] sm:$0xff]
  %v1660 = vld [vmem:[%s1539 + $0x3c0] sm:$0xff]
  %v1661 = vld [vmem:[%s1539 + $0x3c8] sm:$0xff]
  %v1662 = vld [vmem:[%s1539 + $0x3d0] sm:$0xff]
  %v1663 = vld [vmem:[%s1539 + $0x3d8] sm:$0xff]
  %v1664 = vld [vmem:[%s1539 + $0x3e0] sm:$0xff]
  %v1665 = vld [vmem:[%s1539 + $0x3e8] sm:$0xff]
  %v1666 = vld [vmem:[%s1539 + $0x3f0] sm:$0xff]
  %v1667 = vld [vmem:[%s1539 + $0x3f8] sm:$0xff]
  %v1668 = vld [vmem:[%s5] sm:$0xff]
  %v1669 = vld [vmem:[%s5 + $0x8] sm:$0xff]
  %v1670 = vld [vmem:[%s5 + $0x10] sm:$0xff]
  %v1671 = vld [vmem:[%s5 + $0x18] sm:$0xff]
  %v1672 = vld [vmem:[%s5 + $0x20] sm:$0xff]
  %v1673 = vld [vmem:[%s5 + $0x28] sm:$0xff]
  %v1674 = vld [vmem:[%s5 + $0x30] sm:$0xff]
  %v1675 = vld [vmem:[%s5 + $0x38] sm:$0xff]
  %v1676 = vld [vmem:[%s5 + $0x40] sm:$0xff]
  %v1677 = vld [vmem:[%s5 + $0x48] sm:$0xff]
  %v1678 = vld [vmem:[%s5 + $0x50] sm:$0xff]
  %v1679 = vld [vmem:[%s5 + $0x58] sm:$0xff]
  %v1680 = vld [vmem:[%s5 + $0x60] sm:$0xff]
  %v1681 = vld [vmem:[%s5 + $0x68] sm:$0xff]
  %v1682 = vld [vmem:[%s5 + $0x70] sm:$0xff]
  %v1683 = vld [vmem:[%s5 + $0x78] sm:$0xff]
  %v1684 = vld [vmem:[%s5 + $0x80] sm:$0xff]
  %v1685 = vld [vmem:[%s5 + $0x88] sm:$0xff]
  %v1686 = vld [vmem:[%s5 + $0x90] sm:$0xff]
  %v1687 = vld [vmem:[%s5 + $0x98] sm:$0xff]
  %v1688 = vld [vmem:[%s5 + $0xa0] sm:$0xff]
  %v1689 = vld [vmem:[%s5 + $0xa8] sm:$0xff]
  %v1690 = vld [vmem:[%s5 + $0xb0] sm:$0xff]
  %v1691 = vld [vmem:[%s5 + $0xb8] sm:$0xff]
  %v1692 = vld [vmem:[%s5 + $0xc0] sm:$0xff]
  %v1693 = vld [vmem:[%s5 + $0xc8] sm:$0xff]
  %v1694 = vld [vmem:[%s5 + $0xd0] sm:$0xff]
  %v1695 = vld [vmem:[%s5 + $0xd8] sm:$0xff]
  %v1696 = vld [vmem:[%s5 + $0xe0] sm:$0xff]
  %v1697 = vld [vmem:[%s5 + $0xe8] sm:$0xff]
  %v1698 = vld [vmem:[%s5 + $0xf0] sm:$0xff]
  %v1699 = vld [vmem:[%s5 + $0xf8] sm:$0xff]
  %v1700 = vld [vmem:[%s5 + $0x100] sm:$0xff]
  %v1701 = vld [vmem:[%s5 + $0x108] sm:$0xff]
  %v1702 = vld [vmem:[%s5 + $0x110] sm:$0xff]
  %v1703 = vld [vmem:[%s5 + $0x118] sm:$0xff]
  %v1704 = vld [vmem:[%s5 + $0x120] sm:$0xff]
  %v1705 = vld [vmem:[%s5 + $0x128] sm:$0xff]
  %v1706 = vld [vmem:[%s5 + $0x130] sm:$0xff]
  %v1707 = vld [vmem:[%s5 + $0x138] sm:$0xff]
  %v1708 = vld [vmem:[%s5 + $0x140] sm:$0xff]
  %v1709 = vld [vmem:[%s5 + $0x148] sm:$0xff]
  %v1710 = vld [vmem:[%s5 + $0x150] sm:$0xff]
  %v1711 = vld [vmem:[%s5 + $0x158] sm:$0xff]
  %v1712 = vld [vmem:[%s5 + $0x160] sm:$0xff]
  %v1713 = vld [vmem:[%s5 + $0x168] sm:$0xff]
  %v1714 = vld [vmem:[%s5 + $0x170] sm:$0xff]
  %v1715 = vld [vmem:[%s5 + $0x178] sm:$0xff]
  %v1716 = vld [vmem:[%s5 + $0x180] sm:$0xff]
  %v1717 = vld [vmem:[%s5 + $0x188] sm:$0xff]
  %v1718 = vld [vmem:[%s5 + $0x190] sm:$0xff]
  %v1719 = vld [vmem:[%s5 + $0x198] sm:$0xff]
  %v1720 = vld [vmem:[%s5 + $0x1a0] sm:$0xff]
  %v1721 = vld [vmem:[%s5 + $0x1a8] sm:$0xff]
  %v1722 = vld [vmem:[%s5 + $0x1b0] sm:$0xff]
  %v1723 = vld [vmem:[%s5 + $0x1b8] sm:$0xff]
  %v1724 = vld [vmem:[%s5 + $0x1c0] sm:$0xff]
  %v1725 = vld [vmem:[%s5 + $0x1c8] sm:$0xff]
  %v1726 = vld [vmem:[%s5 + $0x1d0] sm:$0xff]
  %v1727 = vld [vmem:[%s5 + $0x1d8] sm:$0xff]
  %v1728 = vld [vmem:[%s5 + $0x1e0] sm:$0xff]
  %v1729 = vld [vmem:[%s5 + $0x1e8] sm:$0xff]
  %v1730 = vld [vmem:[%s5 + $0x1f0] sm:$0xff]
  %v1731 = vld [vmem:[%s5 + $0x1f8] sm:$0xff]
  %v1732 = vld [vmem:[%s5 + $0x200] sm:$0xff]
  %v1733 = vld [vmem:[%s5 + $0x208] sm:$0xff]
  %v1734 = vld [vmem:[%s5 + $0x210] sm:$0xff]
  %v1735 = vld [vmem:[%s5 + $0x218] sm:$0xff]
  %v1736 = vld [vmem:[%s5 + $0x220] sm:$0xff]
  %v1737 = vld [vmem:[%s5 + $0x228] sm:$0xff]
  %v1738 = vld [vmem:[%s5 + $0x230] sm:$0xff]
  %v1739 = vld [vmem:[%s5 + $0x238] sm:$0xff]
  %v1740 = vld [vmem:[%s5 + $0x240] sm:$0xff]
  %v1741 = vld [vmem:[%s5 + $0x248] sm:$0xff]
  %v1742 = vld [vmem:[%s5 + $0x250] sm:$0xff]
  %v1743 = vld [vmem:[%s5 + $0x258] sm:$0xff]
  %v1744 = vld [vmem:[%s5 + $0x260] sm:$0xff]
  %v1745 = vld [vmem:[%s5 + $0x268] sm:$0xff]
  %v1746 = vld [vmem:[%s5 + $0x270] sm:$0xff]
  %v1747 = vld [vmem:[%s5 + $0x278] sm:$0xff]
  %v1748 = vld [vmem:[%s5 + $0x280] sm:$0xff]
  %v1749 = vld [vmem:[%s5 + $0x288] sm:$0xff]
  %v1750 = vld [vmem:[%s5 + $0x290] sm:$0xff]
  %v1751 = vld [vmem:[%s5 + $0x298] sm:$0xff]
  %v1752 = vld [vmem:[%s5 + $0x2a0] sm:$0xff]
  %v1753 = vld [vmem:[%s5 + $0x2a8] sm:$0xff]
  %v1754 = vld [vmem:[%s5 + $0x2b0] sm:$0xff]
  %v1755 = vld [vmem:[%s5 + $0x2b8] sm:$0xff]
  %v1756 = vld [vmem:[%s5 + $0x2c0] sm:$0xff]
  %v1757 = vld [vmem:[%s5 + $0x2c8] sm:$0xff]
  %v1758 = vld [vmem:[%s5 + $0x2d0] sm:$0xff]
  %v1759 = vld [vmem:[%s5 + $0x2d8] sm:$0xff]
  %v1760 = vld [vmem:[%s5 + $0x2e0] sm:$0xff]
  %v1761 = vld [vmem:[%s5 + $0x2e8] sm:$0xff]
  %v1762 = vld [vmem:[%s5 + $0x2f0] sm:$0xff]
  %v1763 = vld [vmem:[%s5 + $0x2f8] sm:$0xff]
  %v1764 = vld [vmem:[%s5 + $0x300] sm:$0xff]
  %v1765 = vld [vmem:[%s5 + $0x308] sm:$0xff]
  %v1766 = vld [vmem:[%s5 + $0x310] sm:$0xff]
  %v1767 = vld [vmem:[%s5 + $0x318] sm:$0xff]
  %v1768 = vld [vmem:[%s5 + $0x320] sm:$0xff]
  %v1769 = vld [vmem:[%s5 + $0x328] sm:$0xff]
  %v1770 = vld [vmem:[%s5 + $0x330] sm:$0xff]
  %v1771 = vld [vmem:[%s5 + $0x338] sm:$0xff]
  %v1772 = vld [vmem:[%s5 + $0x340] sm:$0xff]
  %v1773 = vld [vmem:[%s5 + $0x348] sm:$0xff]
  %v1774 = vld [vmem:[%s5 + $0x350] sm:$0xff]
  %v1775 = vld [vmem:[%s5 + $0x358] sm:$0xff]
  %v1776 = vld [vmem:[%s5 + $0x360] sm:$0xff]
  %v1777 = vld [vmem:[%s5 + $0x368] sm:$0xff]
  %v1778 = vld [vmem:[%s5 + $0x370] sm:$0xff]
  %v1779 = vld [vmem:[%s5 + $0x378] sm:$0xff]
  %v1780 = vld [vmem:[%s5 + $0x380] sm:$0xff]
  %v1781 = vld [vmem:[%s5 + $0x388] sm:$0xff]
  %v1782 = vld [vmem:[%s5 + $0x390] sm:$0xff]
  %v1783 = vld [vmem:[%s5 + $0x398] sm:$0xff]
  %v1784 = vld [vmem:[%s5 + $0x3a0] sm:$0xff]
  %v1785 = vld [vmem:[%s5 + $0x3a8] sm:$0xff]
  %v1786 = vld [vmem:[%s5 + $0x3b0] sm:$0xff]
  %v1787 = vld [vmem:[%s5 + $0x3b8] sm:$0xff]
  %v1788 = vld [vmem:[%s5 + $0x3c0] sm:$0xff]
  %v1789 = vld [vmem:[%s5 + $0x3c8] sm:$0xff]
  %v1790 = vld [vmem:[%s5 + $0x3d0] sm:$0xff]
  %v1791 = vld [vmem:[%s5 + $0x3d8] sm:$0xff]
  %v1792 = vld [vmem:[%s5 + $0x3e0] sm:$0xff]
  %v1793 = vld [vmem:[%s5 + $0x3e8] sm:$0xff]
  %v1794 = vld [vmem:[%s5 + $0x3f0] sm:$0xff]
  %v1795 = vld [vmem:[%s5 + $0x3f8] sm:$0xff]
  %v1796 = vld [vmem:[%s5 + $0x400] sm:$0xff]
  %v1797 = vld [vmem:[%s5 + $0x408] sm:$0xff]
  %v1798 = vld [vmem:[%s5 + $0x410] sm:$0xff]
  %v1799 = vld [vmem:[%s5 + $0x418] sm:$0xff]
  %v1800 = vld [vmem:[%s5 + $0x420] sm:$0xff]
  %v1801 = vld [vmem:[%s5 + $0x428] sm:$0xff]
  %v1802 = vld [vmem:[%s5 + $0x430] sm:$0xff]
  %v1803 = vld [vmem:[%s5 + $0x438] sm:$0xff]
  %v1804 = vld [vmem:[%s5 + $0x440] sm:$0xff]
  %v1805 = vld [vmem:[%s5 + $0x448] sm:$0xff]
  %v1806 = vld [vmem:[%s5 + $0x450] sm:$0xff]
  %v1807 = vld [vmem:[%s5 + $0x458] sm:$0xff]
  %v1808 = vld [vmem:[%s5 + $0x460] sm:$0xff]
  %v1809 = vld [vmem:[%s5 + $0x468] sm:$0xff]
  %v1810 = vld [vmem:[%s5 + $0x470] sm:$0xff]
  %v1811 = vld [vmem:[%s5 + $0x478] sm:$0xff]
  %v1812 = vld [vmem:[%s5 + $0x480] sm:$0xff]
  %v1813 = vld [vmem:[%s5 + $0x488] sm:$0xff]
  %v1814 = vld [vmem:[%s5 + $0x490] sm:$0xff]
  %v1815 = vld [vmem:[%s5 + $0x498] sm:$0xff]
  %v1816 = vld [vmem:[%s5 + $0x4a0] sm:$0xff]
  %v1817 = vld [vmem:[%s5 + $0x4a8] sm:$0xff]
  %v1818 = vld [vmem:[%s5 + $0x4b0] sm:$0xff]
  %v1819 = vld [vmem:[%s5 + $0x4b8] sm:$0xff]
  %v1820 = vld [vmem:[%s5 + $0x4c0] sm:$0xff]
  %v1821 = vld [vmem:[%s5 + $0x4c8] sm:$0xff]
  %v1822 = vld [vmem:[%s5 + $0x4d0] sm:$0xff]
  %v1823 = vld [vmem:[%s5 + $0x4d8] sm:$0xff]
  %v1824 = vld [vmem:[%s5 + $0x4e0] sm:$0xff]
  %v1825 = vld [vmem:[%s5 + $0x4e8] sm:$0xff]
  %v1826 = vld [vmem:[%s5 + $0x4f0] sm:$0xff]
  %v1827 = vld [vmem:[%s5 + $0x4f8] sm:$0xff]
  %v1828 = vld [vmem:[%s5 + $0x500] sm:$0xff]
  %v1829 = vld [vmem:[%s5 + $0x508] sm:$0xff]
  %v1830 = vld [vmem:[%s5 + $0x510] sm:$0xff]
  %v1831 = vld [vmem:[%s5 + $0x518] sm:$0xff]
  %v1832 = vld [vmem:[%s5 + $0x520] sm:$0xff]
  %v1833 = vld [vmem:[%s5 + $0x528] sm:$0xff]
  %v1834 = vld [vmem:[%s5 + $0x530] sm:$0xff]
  %v1835 = vld [vmem:[%s5 + $0x538] sm:$0xff]
  %v1836 = vld [vmem:[%s5 + $0x540] sm:$0xff]
  %v1837 = vld [vmem:[%s5 + $0x548] sm:$0xff]
  %v1838 = vld [vmem:[%s5 + $0x550] sm:$0xff]
  %v1839 = vld [vmem:[%s5 + $0x558] sm:$0xff]
  %v1840 = vld [vmem:[%s5 + $0x560] sm:$0xff]
  %v1841 = vld [vmem:[%s5 + $0x568] sm:$0xff]
  %v1842 = vld [vmem:[%s5 + $0x570] sm:$0xff]
  %v1843 = vld [vmem:[%s5 + $0x578] sm:$0xff]
  %v1844 = vld [vmem:[%s5 + $0x580] sm:$0xff]
  %v1845 = vld [vmem:[%s5 + $0x588] sm:$0xff]
  %v1846 = vld [vmem:[%s5 + $0x590] sm:$0xff]
  %v1847 = vld [vmem:[%s5 + $0x598] sm:$0xff]
  %v1848 = vld [vmem:[%s5 + $0x5a0] sm:$0xff]
  %v1849 = vld [vmem:[%s5 + $0x5a8] sm:$0xff]
  %v1850 = vld [vmem:[%s5 + $0x5b0] sm:$0xff]
  %v1851 = vld [vmem:[%s5 + $0x5b8] sm:$0xff]
  %v1852 = vld [vmem:[%s5 + $0x5c0] sm:$0xff]
  %v1853 = vld [vmem:[%s5 + $0x5c8] sm:$0xff]
  %v1854 = vld [vmem:[%s5 + $0x5d0] sm:$0xff]
  %v1855 = vld [vmem:[%s5 + $0x5d8] sm:$0xff]
  %v1856 = vld [vmem:[%s5 + $0x5e0] sm:$0xff]
  %v1857 = vld [vmem:[%s5 + $0x5e8] sm:$0xff]
  %v1858 = vld [vmem:[%s5 + $0x5f0] sm:$0xff]
  %v1859 = vld [vmem:[%s5 + $0x5f8] sm:$0xff]
  %v1860 = vld [vmem:[%s5 + $0x600] sm:$0xff]
  %v1861 = vld [vmem:[%s5 + $0x608] sm:$0xff]
  %v1862 = vld [vmem:[%s5 + $0x610] sm:$0xff]
  %v1863 = vld [vmem:[%s5 + $0x618] sm:$0xff]
  %v1864 = vld [vmem:[%s5 + $0x620] sm:$0xff]
  %v1865 = vld [vmem:[%s5 + $0x628] sm:$0xff]
  %v1866 = vld [vmem:[%s5 + $0x630] sm:$0xff]
  %v1867 = vld [vmem:[%s5 + $0x638] sm:$0xff]
  %v1868 = vld [vmem:[%s5 + $0x640] sm:$0xff]
  %v1869 = vld [vmem:[%s5 + $0x648] sm:$0xff]
  %v1870 = vld [vmem:[%s5 + $0x650] sm:$0xff]
  %v1871 = vld [vmem:[%s5 + $0x658] sm:$0xff]
  %v1872 = vld [vmem:[%s5 + $0x660] sm:$0xff]
  %v1873 = vld [vmem:[%s5 + $0x668] sm:$0xff]
  %v1874 = vld [vmem:[%s5 + $0x670] sm:$0xff]
  %v1875 = vld [vmem:[%s5 + $0x678] sm:$0xff]
  %v1876 = vld [vmem:[%s5 + $0x680] sm:$0xff]
  %v1877 = vld [vmem:[%s5 + $0x688] sm:$0xff]
  %v1878 = vld [vmem:[%s5 + $0x690] sm:$0xff]
  %v1879 = vld [vmem:[%s5 + $0x698] sm:$0xff]
  %v1880 = vld [vmem:[%s5 + $0x6a0] sm:$0xff]
  %v1881 = vld [vmem:[%s5 + $0x6a8] sm:$0xff]
  %v1882 = vld [vmem:[%s5 + $0x6b0] sm:$0xff]
  %v1883 = vld [vmem:[%s5 + $0x6b8] sm:$0xff]
  %v1884 = vld [vmem:[%s5 + $0x6c0] sm:$0xff]
  %v1885 = vld [vmem:[%s5 + $0x6c8] sm:$0xff]
  %v1886 = vld [vmem:[%s5 + $0x6d0] sm:$0xff]
  %v1887 = vld [vmem:[%s5 + $0x6d8] sm:$0xff]
  %v1888 = vld [vmem:[%s5 + $0x6e0] sm:$0xff]
  %v1889 = vld [vmem:[%s5 + $0x6e8] sm:$0xff]
  %v1890 = vld [vmem:[%s5 + $0x6f0] sm:$0xff]
  %v1891 = vld [vmem:[%s5 + $0x6f8] sm:$0xff]
  %v1892 = vld [vmem:[%s5 + $0x700] sm:$0xff]
  %v1893 = vld [vmem:[%s5 + $0x708] sm:$0xff]
  %v1894 = vld [vmem:[%s5 + $0x710] sm:$0xff]
  %v1895 = vld [vmem:[%s5 + $0x718] sm:$0xff]
  %v1896 = vld [vmem:[%s5 + $0x720] sm:$0xff]
  %v1897 = vld [vmem:[%s5 + $0x728] sm:$0xff]
  %v1898 = vld [vmem:[%s5 + $0x730] sm:$0xff]
  %v1899 = vld [vmem:[%s5 + $0x738] sm:$0xff]
  %v1900 = vld [vmem:[%s5 + $0x740] sm:$0xff]
  %v1901 = vld [vmem:[%s5 + $0x748] sm:$0xff]
  %v1902 = vld [vmem:[%s5 + $0x750] sm:$0xff]
  %v1903 = vld [vmem:[%s5 + $0x758] sm:$0xff]
  %v1904 = vld [vmem:[%s5 + $0x760] sm:$0xff]
  %v1905 = vld [vmem:[%s5 + $0x768] sm:$0xff]
  %v1906 = vld [vmem:[%s5 + $0x770] sm:$0xff]
  %v1907 = vld [vmem:[%s5 + $0x778] sm:$0xff]
  %s1908 = scalar_lea.vmem %s5, 1920
  %v1909 = vld [vmem:[%s1908] sm:$0xff]
  %v1910 = vld [vmem:[%s1908 + $0x8] sm:$0xff]
  %v1911 = vld [vmem:[%s1908 + $0x10] sm:$0xff]
  %v1912 = vld [vmem:[%s1908 + $0x18] sm:$0xff]
  %v1913 = vld [vmem:[%s1908 + $0x20] sm:$0xff]
  %v1914 = vld [vmem:[%s1908 + $0x28] sm:$0xff]
  %v1915 = vld [vmem:[%s1908 + $0x30] sm:$0xff]
  %v1916 = vld [vmem:[%s1908 + $0x38] sm:$0xff]
  %v1917 = vld [vmem:[%s1908 + $0x40] sm:$0xff]
  %v1918 = vld [vmem:[%s1908 + $0x48] sm:$0xff]
  %v1919 = vld [vmem:[%s1908 + $0x50] sm:$0xff]
  %v1920 = vld [vmem:[%s1908 + $0x58] sm:$0xff]
  %v1921 = vld [vmem:[%s1908 + $0x60] sm:$0xff]
  %v1922 = vld [vmem:[%s1908 + $0x68] sm:$0xff]
  %v1923 = vld [vmem:[%s1908 + $0x70] sm:$0xff]
  %v1924 = vld [vmem:[%s1908 + $0x78] sm:$0xff]
  %v1925 = vld [vmem:[%s1908 + $0x80] sm:$0xff]
  %v1926 = vld [vmem:[%s1908 + $0x88] sm:$0xff]
  %v1927 = vld [vmem:[%s1908 + $0x90] sm:$0xff]
  %v1928 = vld [vmem:[%s1908 + $0x98] sm:$0xff]
  %v1929 = vld [vmem:[%s1908 + $0xa0] sm:$0xff]
  %v1930 = vld [vmem:[%s1908 + $0xa8] sm:$0xff]
  %v1931 = vld [vmem:[%s1908 + $0xb0] sm:$0xff]
  %v1932 = vld [vmem:[%s1908 + $0xb8] sm:$0xff]
  %v1933 = vld [vmem:[%s1908 + $0xc0] sm:$0xff]
  %v1934 = vld [vmem:[%s1908 + $0xc8] sm:$0xff]
  %v1935 = vld [vmem:[%s1908 + $0xd0] sm:$0xff]
  %v1936 = vld [vmem:[%s1908 + $0xd8] sm:$0xff]
  %v1937 = vld [vmem:[%s1908 + $0xe0] sm:$0xff]
  %v1938 = vld [vmem:[%s1908 + $0xe8] sm:$0xff]
  %v1939 = vld [vmem:[%s1908 + $0xf0] sm:$0xff]
  %v1940 = vld [vmem:[%s1908 + $0xf8] sm:$0xff]
  %v1941 = vld [vmem:[%s1908 + $0x100] sm:$0xff]
  %v1942 = vld [vmem:[%s1908 + $0x108] sm:$0xff]
  %v1943 = vld [vmem:[%s1908 + $0x110] sm:$0xff]
  %v1944 = vld [vmem:[%s1908 + $0x118] sm:$0xff]
  %v1945 = vld [vmem:[%s1908 + $0x120] sm:$0xff]
  %v1946 = vld [vmem:[%s1908 + $0x128] sm:$0xff]
  %v1947 = vld [vmem:[%s1908 + $0x130] sm:$0xff]
  %v1948 = vld [vmem:[%s1908 + $0x138] sm:$0xff]
  %v1949 = vld [vmem:[%s1908 + $0x140] sm:$0xff]
  %v1950 = vld [vmem:[%s1908 + $0x148] sm:$0xff]
  %v1951 = vld [vmem:[%s1908 + $0x150] sm:$0xff]
  %v1952 = vld [vmem:[%s1908 + $0x158] sm:$0xff]
  %v1953 = vld [vmem:[%s1908 + $0x160] sm:$0xff]
  %v1954 = vld [vmem:[%s1908 + $0x168] sm:$0xff]
  %v1955 = vld [vmem:[%s1908 + $0x170] sm:$0xff]
  %v1956 = vld [vmem:[%s1908 + $0x178] sm:$0xff]
  %v1957 = vld [vmem:[%s1908 + $0x180] sm:$0xff]
  %v1958 = vld [vmem:[%s1908 + $0x188] sm:$0xff]
  %v1959 = vld [vmem:[%s1908 + $0x190] sm:$0xff]
  %v1960 = vld [vmem:[%s1908 + $0x198] sm:$0xff]
  %v1961 = vld [vmem:[%s1908 + $0x1a0] sm:$0xff]
  %v1962 = vld [vmem:[%s1908 + $0x1a8] sm:$0xff]
  %v1963 = vld [vmem:[%s1908 + $0x1b0] sm:$0xff]
  %v1964 = vld [vmem:[%s1908 + $0x1b8] sm:$0xff]
  %v1965 = vld [vmem:[%s1908 + $0x1c0] sm:$0xff]
  %v1966 = vld [vmem:[%s1908 + $0x1c8] sm:$0xff]
  %v1967 = vld [vmem:[%s1908 + $0x1d0] sm:$0xff]
  %v1968 = vld [vmem:[%s1908 + $0x1d8] sm:$0xff]
  %v1969 = vld [vmem:[%s1908 + $0x1e0] sm:$0xff]
  %v1970 = vld [vmem:[%s1908 + $0x1e8] sm:$0xff]
  %v1971 = vld [vmem:[%s1908 + $0x1f0] sm:$0xff]
  %v1972 = vld [vmem:[%s1908 + $0x1f8] sm:$0xff]
  %v1973 = vld [vmem:[%s1908 + $0x200] sm:$0xff]
  %v1974 = vld [vmem:[%s1908 + $0x208] sm:$0xff]
  %v1975 = vld [vmem:[%s1908 + $0x210] sm:$0xff]
  %v1976 = vld [vmem:[%s1908 + $0x218] sm:$0xff]
  %v1977 = vld [vmem:[%s1908 + $0x220] sm:$0xff]
  %v1978 = vld [vmem:[%s1908 + $0x228] sm:$0xff]
  %v1979 = vld [vmem:[%s1908 + $0x230] sm:$0xff]
  %v1980 = vld [vmem:[%s1908 + $0x238] sm:$0xff]
  %v1981 = vld [vmem:[%s1908 + $0x240] sm:$0xff]
  %v1982 = vld [vmem:[%s1908 + $0x248] sm:$0xff]
  %v1983 = vld [vmem:[%s1908 + $0x250] sm:$0xff]
  %v1984 = vld [vmem:[%s1908 + $0x258] sm:$0xff]
  %v1985 = vld [vmem:[%s1908 + $0x260] sm:$0xff]
  %v1986 = vld [vmem:[%s1908 + $0x268] sm:$0xff]
  %v1987 = vld [vmem:[%s1908 + $0x270] sm:$0xff]
  %v1988 = vld [vmem:[%s1908 + $0x278] sm:$0xff]
  %v1989 = vld [vmem:[%s1908 + $0x280] sm:$0xff]
  %v1990 = vld [vmem:[%s1908 + $0x288] sm:$0xff]
  %v1991 = vld [vmem:[%s1908 + $0x290] sm:$0xff]
  %v1992 = vld [vmem:[%s1908 + $0x298] sm:$0xff]
  %v1993 = vld [vmem:[%s1908 + $0x2a0] sm:$0xff]
  %v1994 = vld [vmem:[%s1908 + $0x2a8] sm:$0xff]
  %v1995 = vld [vmem:[%s1908 + $0x2b0] sm:$0xff]
  %v1996 = vld [vmem:[%s1908 + $0x2b8] sm:$0xff]
  %v1997 = vld [vmem:[%s1908 + $0x2c0] sm:$0xff]
  %v1998 = vld [vmem:[%s1908 + $0x2c8] sm:$0xff]
  %v1999 = vld [vmem:[%s1908 + $0x2d0] sm:$0xff]
  %v2000 = vld [vmem:[%s1908 + $0x2d8] sm:$0xff]
  %v2001 = vld [vmem:[%s1908 + $0x2e0] sm:$0xff]
  %v2002 = vld [vmem:[%s1908 + $0x2e8] sm:$0xff]
  %v2003 = vld [vmem:[%s1908 + $0x2f0] sm:$0xff]
  %v2004 = vld [vmem:[%s1908 + $0x2f8] sm:$0xff]
  %v2005 = vld [vmem:[%s1908 + $0x300] sm:$0xff]
  %v2006 = vld [vmem:[%s1908 + $0x308] sm:$0xff]
  %v2007 = vld [vmem:[%s1908 + $0x310] sm:$0xff]
  %v2008 = vld [vmem:[%s1908 + $0x318] sm:$0xff]
  %v2009 = vld [vmem:[%s1908 + $0x320] sm:$0xff]
  %v2010 = vld [vmem:[%s1908 + $0x328] sm:$0xff]
  %v2011 = vld [vmem:[%s1908 + $0x330] sm:$0xff]
  %v2012 = vld [vmem:[%s1908 + $0x338] sm:$0xff]
  %v2013 = vld [vmem:[%s1908 + $0x340] sm:$0xff]
  %v2014 = vld [vmem:[%s1908 + $0x348] sm:$0xff]
  %v2015 = vld [vmem:[%s1908 + $0x350] sm:$0xff]
  %v2016 = vld [vmem:[%s1908 + $0x358] sm:$0xff]
  %v2017 = vld [vmem:[%s1908 + $0x360] sm:$0xff]
  %v2018 = vld [vmem:[%s1908 + $0x368] sm:$0xff]
  %v2019 = vld [vmem:[%s1908 + $0x370] sm:$0xff]
  %v2020 = vld [vmem:[%s1908 + $0x378] sm:$0xff]
  %v2021 = vld [vmem:[%s1908 + $0x380] sm:$0xff]
  %v2022 = vld [vmem:[%s1908 + $0x388] sm:$0xff]
  %v2023 = vld [vmem:[%s1908 + $0x390] sm:$0xff]
  %v2024 = vld [vmem:[%s1908 + $0x398] sm:$0xff]
  %v2025 = vld [vmem:[%s1908 + $0x3a0] sm:$0xff]
  %v2026 = vld [vmem:[%s1908 + $0x3a8] sm:$0xff]
  %v2027 = vld [vmem:[%s1908 + $0x3b0] sm:$0xff]
  %v2028 = vld [vmem:[%s1908 + $0x3b8] sm:$0xff]
  %v2029 = vld [vmem:[%s1908 + $0x3c0] sm:$0xff]
  %v2030 = vld [vmem:[%s1908 + $0x3c8] sm:$0xff]
  %v2031 = vld [vmem:[%s1908 + $0x3d0] sm:$0xff]
  %v2032 = vld [vmem:[%s1908 + $0x3d8] sm:$0xff]
  %v2033 = vld [vmem:[%s1908 + $0x3e0] sm:$0xff]
  %v2034 = vld [vmem:[%s1908 + $0x3e8] sm:$0xff]
  %v2035 = vld [vmem:[%s1908 + $0x3f0] sm:$0xff]
  %v2036 = vld [vmem:[%s1908 + $0x3f8] sm:$0xff]
  %v2037 = vld [vmem:[%s1908 + $0x400] sm:$0xff]
  %v2038 = vld [vmem:[%s1908 + $0x408] sm:$0xff]
  %v2039 = vld [vmem:[%s1908 + $0x410] sm:$0xff]
  %v2040 = vld [vmem:[%s1908 + $0x418] sm:$0xff]
  %v2041 = vld [vmem:[%s1908 + $0x420] sm:$0xff]
  %v2042 = vld [vmem:[%s1908 + $0x428] sm:$0xff]
  %v2043 = vld [vmem:[%s1908 + $0x430] sm:$0xff]
  %v2044 = vld [vmem:[%s1908 + $0x438] sm:$0xff]
  %v2045 = vld [vmem:[%s1908 + $0x440] sm:$0xff]
  %v2046 = vld [vmem:[%s1908 + $0x448] sm:$0xff]
  %v2047 = vld [vmem:[%s1908 + $0x450] sm:$0xff]
  %v2048 = vld [vmem:[%s1908 + $0x458] sm:$0xff]
  %v2049 = vld [vmem:[%s1908 + $0x460] sm:$0xff]
  %v2050 = vld [vmem:[%s1908 + $0x468] sm:$0xff]
  %v2051 = vld [vmem:[%s1908 + $0x470] sm:$0xff]
  %v2052 = vld [vmem:[%s1908 + $0x478] sm:$0xff]
  %v2053 = vld [vmem:[%s1908 + $0x480] sm:$0xff]
  %v2054 = vld [vmem:[%s1908 + $0x488] sm:$0xff]
  %v2055 = vld [vmem:[%s1908 + $0x490] sm:$0xff]
  %v2056 = vld [vmem:[%s1908 + $0x498] sm:$0xff]
  %v2057 = vld [vmem:[%s1908 + $0x4a0] sm:$0xff]
  %v2058 = vld [vmem:[%s1908 + $0x4a8] sm:$0xff]
  %v2059 = vld [vmem:[%s1908 + $0x4b0] sm:$0xff]
  %v2060 = vld [vmem:[%s1908 + $0x4b8] sm:$0xff]
  %v2061 = vld [vmem:[%s1908 + $0x4c0] sm:$0xff]
  %v2062 = vld [vmem:[%s1908 + $0x4c8] sm:$0xff]
  %v2063 = vld [vmem:[%s1908 + $0x4d0] sm:$0xff]
  %v2064 = vld [vmem:[%s1908 + $0x4d8] sm:$0xff]
  %v2065 = vld [vmem:[%s1908 + $0x4e0] sm:$0xff]
  %v2066 = vld [vmem:[%s1908 + $0x4e8] sm:$0xff]
  %v2067 = vld [vmem:[%s1908 + $0x4f0] sm:$0xff]
  %v2068 = vld [vmem:[%s1908 + $0x4f8] sm:$0xff]
  %v2069 = vld [vmem:[%s1908 + $0x500] sm:$0xff]
  %v2070 = vld [vmem:[%s1908 + $0x508] sm:$0xff]
  %v2071 = vld [vmem:[%s1908 + $0x510] sm:$0xff]
  %v2072 = vld [vmem:[%s1908 + $0x518] sm:$0xff]
  %v2073 = vld [vmem:[%s1908 + $0x520] sm:$0xff]
  %v2074 = vld [vmem:[%s1908 + $0x528] sm:$0xff]
  %v2075 = vld [vmem:[%s1908 + $0x530] sm:$0xff]
  %v2076 = vld [vmem:[%s1908 + $0x538] sm:$0xff]
  %v2077 = vld [vmem:[%s1908 + $0x540] sm:$0xff]
  %v2078 = vld [vmem:[%s1908 + $0x548] sm:$0xff]
  %v2079 = vld [vmem:[%s1908 + $0x550] sm:$0xff]
  %v2080 = vld [vmem:[%s1908 + $0x558] sm:$0xff]
  %v2081 = vld [vmem:[%s1908 + $0x560] sm:$0xff]
  %v2082 = vld [vmem:[%s1908 + $0x568] sm:$0xff]
  %v2083 = vld [vmem:[%s1908 + $0x570] sm:$0xff]
  %v2084 = vld [vmem:[%s1908 + $0x578] sm:$0xff]
  %v2085 = vld [vmem:[%s1908 + $0x580] sm:$0xff]
  %v2086 = vld [vmem:[%s1908 + $0x588] sm:$0xff]
  %v2087 = vld [vmem:[%s1908 + $0x590] sm:$0xff]
  %v2088 = vld [vmem:[%s1908 + $0x598] sm:$0xff]
  %v2089 = vld [vmem:[%s1908 + $0x5a0] sm:$0xff]
  %v2090 = vld [vmem:[%s1908 + $0x5a8] sm:$0xff]
  %v2091 = vld [vmem:[%s1908 + $0x5b0] sm:$0xff]
  %v2092 = vld [vmem:[%s1908 + $0x5b8] sm:$0xff]
  %v2093 = vld [vmem:[%s1908 + $0x5c0] sm:$0xff]
  %v2094 = vld [vmem:[%s1908 + $0x5c8] sm:$0xff]
  %v2095 = vld [vmem:[%s1908 + $0x5d0] sm:$0xff]
  %v2096 = vld [vmem:[%s1908 + $0x5d8] sm:$0xff]
  %v2097 = vld [vmem:[%s1908 + $0x5e0] sm:$0xff]
  %v2098 = vld [vmem:[%s1908 + $0x5e8] sm:$0xff]
  %v2099 = vld [vmem:[%s1908 + $0x5f0] sm:$0xff]
  %v2100 = vld [vmem:[%s1908 + $0x5f8] sm:$0xff]
  %v2101 = vld [vmem:[%s1908 + $0x600] sm:$0xff]
  %v2102 = vld [vmem:[%s1908 + $0x608] sm:$0xff]
  %v2103 = vld [vmem:[%s1908 + $0x610] sm:$0xff]
  %v2104 = vld [vmem:[%s1908 + $0x618] sm:$0xff]
  %v2105 = vld [vmem:[%s1908 + $0x620] sm:$0xff]
  %v2106 = vld [vmem:[%s1908 + $0x628] sm:$0xff]
  %v2107 = vld [vmem:[%s1908 + $0x630] sm:$0xff]
  %v2108 = vld [vmem:[%s1908 + $0x638] sm:$0xff]
  %v2109 = vld [vmem:[%s1908 + $0x640] sm:$0xff]
  %v2110 = vld [vmem:[%s1908 + $0x648] sm:$0xff]
  %v2111 = vld [vmem:[%s1908 + $0x650] sm:$0xff]
  %v2112 = vld [vmem:[%s1908 + $0x658] sm:$0xff]
  %v2113 = vld [vmem:[%s1908 + $0x660] sm:$0xff]
  %v2114 = vld [vmem:[%s1908 + $0x668] sm:$0xff]
  %v2115 = vld [vmem:[%s1908 + $0x670] sm:$0xff]
  %v2116 = vld [vmem:[%s1908 + $0x678] sm:$0xff]
  %v2117 = vld [vmem:[%s1908 + $0x680] sm:$0xff]
  %v2118 = vld [vmem:[%s1908 + $0x688] sm:$0xff]
  %v2119 = vld [vmem:[%s1908 + $0x690] sm:$0xff]
  %v2120 = vld [vmem:[%s1908 + $0x698] sm:$0xff]
  %v2121 = vld [vmem:[%s1908 + $0x6a0] sm:$0xff]
  %v2122 = vld [vmem:[%s1908 + $0x6a8] sm:$0xff]
  %v2123 = vld [vmem:[%s1908 + $0x6b0] sm:$0xff]
  %v2124 = vld [vmem:[%s1908 + $0x6b8] sm:$0xff]
  %v2125 = vld [vmem:[%s1908 + $0x6c0] sm:$0xff]
  %v2126 = vld [vmem:[%s1908 + $0x6c8] sm:$0xff]
  %v2127 = vld [vmem:[%s1908 + $0x6d0] sm:$0xff]
  %v2128 = vld [vmem:[%s1908 + $0x6d8] sm:$0xff]
  %v2129 = vld [vmem:[%s1908 + $0x6e0] sm:$0xff]
  %v2130 = vld [vmem:[%s1908 + $0x6e8] sm:$0xff]
  %v2131 = vld [vmem:[%s1908 + $0x6f0] sm:$0xff]
  %v2132 = vld [vmem:[%s1908 + $0x6f8] sm:$0xff]
  %v2133 = vld [vmem:[%s1908 + $0x700] sm:$0xff]
  %v2134 = vld [vmem:[%s1908 + $0x708] sm:$0xff]
  %v2135 = vld [vmem:[%s1908 + $0x710] sm:$0xff]
  %v2136 = vld [vmem:[%s1908 + $0x718] sm:$0xff]
  %v2137 = vld [vmem:[%s1908 + $0x720] sm:$0xff]
  %v2138 = vld [vmem:[%s1908 + $0x728] sm:$0xff]
  %v2139 = vld [vmem:[%s1908 + $0x730] sm:$0xff]
  %v2140 = vld [vmem:[%s1908 + $0x738] sm:$0xff]
  %v2141 = vld [vmem:[%s1908 + $0x740] sm:$0xff]
  %v2142 = vld [vmem:[%s1908 + $0x748] sm:$0xff]
  %v2143 = vld [vmem:[%s1908 + $0x750] sm:$0xff]
  %v2144 = vld [vmem:[%s1908 + $0x758] sm:$0xff]
  %v2145 = vld [vmem:[%s1908 + $0x760] sm:$0xff]
  %v2146 = vld [vmem:[%s1908 + $0x768] sm:$0xff]
  %v2147 = vld [vmem:[%s1908 + $0x770] sm:$0xff]
  %v2148 = vld [vmem:[%s1908 + $0x778] sm:$0xff]
  %s2149 = scalar_lea.vmem %s5, 3840
  %v2150 = vld [vmem:[%s2149] sm:$0xff]
  %v2151 = vld [vmem:[%s2149 + $0x8] sm:$0xff]
  %v2152 = vld [vmem:[%s2149 + $0x10] sm:$0xff]
  %v2153 = vld [vmem:[%s2149 + $0x18] sm:$0xff]
  %v2154 = vld [vmem:[%s2149 + $0x20] sm:$0xff]
  %v2155 = vld [vmem:[%s2149 + $0x28] sm:$0xff]
  %v2156 = vld [vmem:[%s2149 + $0x30] sm:$0xff]
  %v2157 = vld [vmem:[%s2149 + $0x38] sm:$0xff]
  %v2158 = vld [vmem:[%s2149 + $0x40] sm:$0xff]
  %v2159 = vld [vmem:[%s2149 + $0x48] sm:$0xff]
  %v2160 = vld [vmem:[%s2149 + $0x50] sm:$0xff]
  %v2161 = vld [vmem:[%s2149 + $0x58] sm:$0xff]
  %v2162 = vld [vmem:[%s2149 + $0x60] sm:$0xff]
  %v2163 = vld [vmem:[%s2149 + $0x68] sm:$0xff]
  %v2164 = vld [vmem:[%s2149 + $0x70] sm:$0xff]
  %v2165 = vld [vmem:[%s2149 + $0x78] sm:$0xff]
  %v2166 = vld [vmem:[%s2149 + $0x80] sm:$0xff]
  %v2167 = vld [vmem:[%s2149 + $0x88] sm:$0xff]
  %v2168 = vld [vmem:[%s2149 + $0x90] sm:$0xff]
  %v2169 = vld [vmem:[%s2149 + $0x98] sm:$0xff]
  %v2170 = vld [vmem:[%s2149 + $0xa0] sm:$0xff]
  %v2171 = vld [vmem:[%s2149 + $0xa8] sm:$0xff]
  %v2172 = vld [vmem:[%s2149 + $0xb0] sm:$0xff]
  %v2173 = vld [vmem:[%s2149 + $0xb8] sm:$0xff]
  %v2174 = vld [vmem:[%s2149 + $0xc0] sm:$0xff]
  %v2175 = vld [vmem:[%s2149 + $0xc8] sm:$0xff]
  %v2176 = vld [vmem:[%s2149 + $0xd0] sm:$0xff]
  %v2177 = vld [vmem:[%s2149 + $0xd8] sm:$0xff]
  %v2178 = vld [vmem:[%s2149 + $0xe0] sm:$0xff]
  %v2179 = vld [vmem:[%s2149 + $0xe8] sm:$0xff]
  %v2180 = vld [vmem:[%s2149 + $0xf0] sm:$0xff]
  %v2181 = vld [vmem:[%s2149 + $0xf8] sm:$0xff]
  %v2182 = vld [vmem:[%s2149 + $0x100] sm:$0xff]
  %v2183 = vld [vmem:[%s2149 + $0x108] sm:$0xff]
  %v2184 = vld [vmem:[%s2149 + $0x110] sm:$0xff]
  %v2185 = vld [vmem:[%s2149 + $0x118] sm:$0xff]
  %v2186 = vld [vmem:[%s2149 + $0x120] sm:$0xff]
  %v2187 = vld [vmem:[%s2149 + $0x128] sm:$0xff]
  %v2188 = vld [vmem:[%s2149 + $0x130] sm:$0xff]
  %v2189 = vld [vmem:[%s2149 + $0x138] sm:$0xff]
  %v2190 = vld [vmem:[%s2149 + $0x140] sm:$0xff]
  %v2191 = vld [vmem:[%s2149 + $0x148] sm:$0xff]
  %v2192 = vld [vmem:[%s2149 + $0x150] sm:$0xff]
  %v2193 = vld [vmem:[%s2149 + $0x158] sm:$0xff]
  %v2194 = vld [vmem:[%s2149 + $0x160] sm:$0xff]
  %v2195 = vld [vmem:[%s2149 + $0x168] sm:$0xff]
  %v2196 = vld [vmem:[%s2149 + $0x170] sm:$0xff]
  %v2197 = vld [vmem:[%s2149 + $0x178] sm:$0xff]
  %v2198 = vld [vmem:[%s2149 + $0x180] sm:$0xff]
  %v2199 = vld [vmem:[%s2149 + $0x188] sm:$0xff]
  %v2200 = vld [vmem:[%s2149 + $0x190] sm:$0xff]
  %v2201 = vld [vmem:[%s2149 + $0x198] sm:$0xff]
  %v2202 = vld [vmem:[%s2149 + $0x1a0] sm:$0xff]
  %v2203 = vld [vmem:[%s2149 + $0x1a8] sm:$0xff]
  %v2204 = vld [vmem:[%s2149 + $0x1b0] sm:$0xff]
  %v2205 = vld [vmem:[%s2149 + $0x1b8] sm:$0xff]
  %v2206 = vld [vmem:[%s2149 + $0x1c0] sm:$0xff]
  %v2207 = vld [vmem:[%s2149 + $0x1c8] sm:$0xff]
  %v2208 = vld [vmem:[%s2149 + $0x1d0] sm:$0xff]
  %v2209 = vld [vmem:[%s2149 + $0x1d8] sm:$0xff]
  %v2210 = vld [vmem:[%s2149 + $0x1e0] sm:$0xff]
  %v2211 = vld [vmem:[%s2149 + $0x1e8] sm:$0xff]
  %v2212 = vld [vmem:[%s2149 + $0x1f0] sm:$0xff]
  %v2213 = vld [vmem:[%s2149 + $0x1f8] sm:$0xff]
  %v2214 = vld [vmem:[%s2149 + $0x200] sm:$0xff]
  %v2215 = vld [vmem:[%s2149 + $0x208] sm:$0xff]
  %v2216 = vld [vmem:[%s2149 + $0x210] sm:$0xff]
  %v2217 = vld [vmem:[%s2149 + $0x218] sm:$0xff]
  %v2218 = vld [vmem:[%s2149 + $0x220] sm:$0xff]
  %v2219 = vld [vmem:[%s2149 + $0x228] sm:$0xff]
  %v2220 = vld [vmem:[%s2149 + $0x230] sm:$0xff]
  %v2221 = vld [vmem:[%s2149 + $0x238] sm:$0xff]
  %v2222 = vld [vmem:[%s2149 + $0x240] sm:$0xff]
  %v2223 = vld [vmem:[%s2149 + $0x248] sm:$0xff]
  %v2224 = vld [vmem:[%s2149 + $0x250] sm:$0xff]
  %v2225 = vld [vmem:[%s2149 + $0x258] sm:$0xff]
  %v2226 = vld [vmem:[%s2149 + $0x260] sm:$0xff]
  %v2227 = vld [vmem:[%s2149 + $0x268] sm:$0xff]
  %v2228 = vld [vmem:[%s2149 + $0x270] sm:$0xff]
  %v2229 = vld [vmem:[%s2149 + $0x278] sm:$0xff]
  %v2230 = vld [vmem:[%s2149 + $0x280] sm:$0xff]
  %v2231 = vld [vmem:[%s2149 + $0x288] sm:$0xff]
  %v2232 = vld [vmem:[%s2149 + $0x290] sm:$0xff]
  %v2233 = vld [vmem:[%s2149 + $0x298] sm:$0xff]
  %v2234 = vld [vmem:[%s2149 + $0x2a0] sm:$0xff]
  %v2235 = vld [vmem:[%s2149 + $0x2a8] sm:$0xff]
  %v2236 = vld [vmem:[%s2149 + $0x2b0] sm:$0xff]
  %v2237 = vld [vmem:[%s2149 + $0x2b8] sm:$0xff]
  %v2238 = vld [vmem:[%s2149 + $0x2c0] sm:$0xff]
  %v2239 = vld [vmem:[%s2149 + $0x2c8] sm:$0xff]
  %v2240 = vld [vmem:[%s2149 + $0x2d0] sm:$0xff]
  %v2241 = vld [vmem:[%s2149 + $0x2d8] sm:$0xff]
  %v2242 = vld [vmem:[%s2149 + $0x2e0] sm:$0xff]
  %v2243 = vld [vmem:[%s2149 + $0x2e8] sm:$0xff]
  %v2244 = vld [vmem:[%s2149 + $0x2f0] sm:$0xff]
  %v2245 = vld [vmem:[%s2149 + $0x2f8] sm:$0xff]
  %v2246 = vld [vmem:[%s2149 + $0x300] sm:$0xff]
  %v2247 = vld [vmem:[%s2149 + $0x308] sm:$0xff]
  %v2248 = vld [vmem:[%s2149 + $0x310] sm:$0xff]
  %v2249 = vld [vmem:[%s2149 + $0x318] sm:$0xff]
  %v2250 = vld [vmem:[%s2149 + $0x320] sm:$0xff]
  %v2251 = vld [vmem:[%s2149 + $0x328] sm:$0xff]
  %v2252 = vld [vmem:[%s2149 + $0x330] sm:$0xff]
  %v2253 = vld [vmem:[%s2149 + $0x338] sm:$0xff]
  %v2254 = vld [vmem:[%s2149 + $0x340] sm:$0xff]
  %v2255 = vld [vmem:[%s2149 + $0x348] sm:$0xff]
  %v2256 = vld [vmem:[%s2149 + $0x350] sm:$0xff]
  %v2257 = vld [vmem:[%s2149 + $0x358] sm:$0xff]
  %v2258 = vld [vmem:[%s2149 + $0x360] sm:$0xff]
  %v2259 = vld [vmem:[%s2149 + $0x368] sm:$0xff]
  %v2260 = vld [vmem:[%s2149 + $0x370] sm:$0xff]
  %v2261 = vld [vmem:[%s2149 + $0x378] sm:$0xff]
  %v2262 = vld [vmem:[%s2149 + $0x380] sm:$0xff]
  %v2263 = vld [vmem:[%s2149 + $0x388] sm:$0xff]
  %v2264 = vld [vmem:[%s2149 + $0x390] sm:$0xff]
  %v2265 = vld [vmem:[%s2149 + $0x398] sm:$0xff]
  %v2266 = vld [vmem:[%s2149 + $0x3a0] sm:$0xff]
  %v2267 = vld [vmem:[%s2149 + $0x3a8] sm:$0xff]
  %v2268 = vld [vmem:[%s2149 + $0x3b0] sm:$0xff]
  %v2269 = vld [vmem:[%s2149 + $0x3b8] sm:$0xff]
  %v2270 = vld [vmem:[%s2149 + $0x3c0] sm:$0xff]
  %v2271 = vld [vmem:[%s2149 + $0x3c8] sm:$0xff]
  %v2272 = vld [vmem:[%s2149 + $0x3d0] sm:$0xff]
  %v2273 = vld [vmem:[%s2149 + $0x3d8] sm:$0xff]
  %v2274 = vld [vmem:[%s2149 + $0x3e0] sm:$0xff]
  %v2275 = vld [vmem:[%s2149 + $0x3e8] sm:$0xff]
  %v2276 = vld [vmem:[%s2149 + $0x3f0] sm:$0xff]
  %v2277 = vld [vmem:[%s2149 + $0x3f8] sm:$0xff]
  %v2278 = vld [vmem:[%s2149 + $0x400] sm:$0xff]
  %v2279 = vld [vmem:[%s2149 + $0x408] sm:$0xff]
  %v2280 = vld [vmem:[%s2149 + $0x410] sm:$0xff]
  %v2281 = vld [vmem:[%s2149 + $0x418] sm:$0xff]
  %v2282 = vld [vmem:[%s2149 + $0x420] sm:$0xff]
  %v2283 = vld [vmem:[%s2149 + $0x428] sm:$0xff]
  %v2284 = vld [vmem:[%s2149 + $0x430] sm:$0xff]
  %v2285 = vld [vmem:[%s2149 + $0x438] sm:$0xff]
  %v2286 = vld [vmem:[%s2149 + $0x440] sm:$0xff]
  %v2287 = vld [vmem:[%s2149 + $0x448] sm:$0xff]
  %v2288 = vld [vmem:[%s2149 + $0x450] sm:$0xff]
  %v2289 = vld [vmem:[%s2149 + $0x458] sm:$0xff]
  %v2290 = vld [vmem:[%s2149 + $0x460] sm:$0xff]
  %v2291 = vld [vmem:[%s2149 + $0x468] sm:$0xff]
  %v2292 = vld [vmem:[%s2149 + $0x470] sm:$0xff]
  %v2293 = vld [vmem:[%s2149 + $0x478] sm:$0xff]
  %v2294 = vld [vmem:[%s2149 + $0x480] sm:$0xff]
  %v2295 = vld [vmem:[%s2149 + $0x488] sm:$0xff]
  %v2296 = vld [vmem:[%s2149 + $0x490] sm:$0xff]
  %v2297 = vld [vmem:[%s2149 + $0x498] sm:$0xff]
  %v2298 = vld [vmem:[%s2149 + $0x4a0] sm:$0xff]
  %v2299 = vld [vmem:[%s2149 + $0x4a8] sm:$0xff]
  %v2300 = vld [vmem:[%s2149 + $0x4b0] sm:$0xff]
  %v2301 = vld [vmem:[%s2149 + $0x4b8] sm:$0xff]
  %v2302 = vld [vmem:[%s2149 + $0x4c0] sm:$0xff]
  %v2303 = vld [vmem:[%s2149 + $0x4c8] sm:$0xff]
  %v2304 = vld [vmem:[%s2149 + $0x4d0] sm:$0xff]
  %v2305 = vld [vmem:[%s2149 + $0x4d8] sm:$0xff]
  %v2306 = vld [vmem:[%s2149 + $0x4e0] sm:$0xff]
  %v2307 = vld [vmem:[%s2149 + $0x4e8] sm:$0xff]
  %v2308 = vld [vmem:[%s2149 + $0x4f0] sm:$0xff]
  %v2309 = vld [vmem:[%s2149 + $0x4f8] sm:$0xff]
  %v2310 = vld [vmem:[%s2149 + $0x500] sm:$0xff]
  %v2311 = vld [vmem:[%s2149 + $0x508] sm:$0xff]
  %v2312 = vld [vmem:[%s2149 + $0x510] sm:$0xff]
  %v2313 = vld [vmem:[%s2149 + $0x518] sm:$0xff]
  %v2314 = vld [vmem:[%s2149 + $0x520] sm:$0xff]
  %v2315 = vld [vmem:[%s2149 + $0x528] sm:$0xff]
  %v2316 = vld [vmem:[%s2149 + $0x530] sm:$0xff]
  %v2317 = vld [vmem:[%s2149 + $0x538] sm:$0xff]
  %v2318 = vld [vmem:[%s2149 + $0x540] sm:$0xff]
  %v2319 = vld [vmem:[%s2149 + $0x548] sm:$0xff]
  %v2320 = vld [vmem:[%s2149 + $0x550] sm:$0xff]
  %v2321 = vld [vmem:[%s2149 + $0x558] sm:$0xff]
  %v2322 = vld [vmem:[%s2149 + $0x560] sm:$0xff]
  %v2323 = vld [vmem:[%s2149 + $0x568] sm:$0xff]
  %v2324 = vld [vmem:[%s2149 + $0x570] sm:$0xff]
  %v2325 = vld [vmem:[%s2149 + $0x578] sm:$0xff]
  %v2326 = vld [vmem:[%s2149 + $0x580] sm:$0xff]
  %v2327 = vld [vmem:[%s2149 + $0x588] sm:$0xff]
  %v2328 = vld [vmem:[%s2149 + $0x590] sm:$0xff]
  %v2329 = vld [vmem:[%s2149 + $0x598] sm:$0xff]
  %v2330 = vld [vmem:[%s2149 + $0x5a0] sm:$0xff]
  %v2331 = vld [vmem:[%s2149 + $0x5a8] sm:$0xff]
  %v2332 = vld [vmem:[%s2149 + $0x5b0] sm:$0xff]
  %v2333 = vld [vmem:[%s2149 + $0x5b8] sm:$0xff]
  %v2334 = vld [vmem:[%s2149 + $0x5c0] sm:$0xff]
  %v2335 = vld [vmem:[%s2149 + $0x5c8] sm:$0xff]
  %v2336 = vld [vmem:[%s2149 + $0x5d0] sm:$0xff]
  %v2337 = vld [vmem:[%s2149 + $0x5d8] sm:$0xff]
  %v2338 = vld [vmem:[%s2149 + $0x5e0] sm:$0xff]
  %v2339 = vld [vmem:[%s2149 + $0x5e8] sm:$0xff]
  %v2340 = vld [vmem:[%s2149 + $0x5f0] sm:$0xff]
  %v2341 = vld [vmem:[%s2149 + $0x5f8] sm:$0xff]
  %v2342 = vld [vmem:[%s2149 + $0x600] sm:$0xff]
  %v2343 = vld [vmem:[%s2149 + $0x608] sm:$0xff]
  %v2344 = vld [vmem:[%s2149 + $0x610] sm:$0xff]
  %v2345 = vld [vmem:[%s2149 + $0x618] sm:$0xff]
  %v2346 = vld [vmem:[%s2149 + $0x620] sm:$0xff]
  %v2347 = vld [vmem:[%s2149 + $0x628] sm:$0xff]
  %v2348 = vld [vmem:[%s2149 + $0x630] sm:$0xff]
  %v2349 = vld [vmem:[%s2149 + $0x638] sm:$0xff]
  %v2350 = vld [vmem:[%s2149 + $0x640] sm:$0xff]
  %v2351 = vld [vmem:[%s2149 + $0x648] sm:$0xff]
  %v2352 = vld [vmem:[%s2149 + $0x650] sm:$0xff]
  %v2353 = vld [vmem:[%s2149 + $0x658] sm:$0xff]
  %v2354 = vld [vmem:[%s2149 + $0x660] sm:$0xff]
  %v2355 = vld [vmem:[%s2149 + $0x668] sm:$0xff]
  %v2356 = vld [vmem:[%s2149 + $0x670] sm:$0xff]
  %v2357 = vld [vmem:[%s2149 + $0x678] sm:$0xff]
  %v2358 = vld [vmem:[%s2149 + $0x680] sm:$0xff]
  %v2359 = vld [vmem:[%s2149 + $0x688] sm:$0xff]
  %v2360 = vld [vmem:[%s2149 + $0x690] sm:$0xff]
  %v2361 = vld [vmem:[%s2149 + $0x698] sm:$0xff]
  %v2362 = vld [vmem:[%s2149 + $0x6a0] sm:$0xff]
  %v2363 = vld [vmem:[%s2149 + $0x6a8] sm:$0xff]
  %v2364 = vld [vmem:[%s2149 + $0x6b0] sm:$0xff]
  %v2365 = vld [vmem:[%s2149 + $0x6b8] sm:$0xff]
  %v2366 = vld [vmem:[%s2149 + $0x6c0] sm:$0xff]
  %v2367 = vld [vmem:[%s2149 + $0x6c8] sm:$0xff]
  %v2368 = vld [vmem:[%s2149 + $0x6d0] sm:$0xff]
  %v2369 = vld [vmem:[%s2149 + $0x6d8] sm:$0xff]
  %v2370 = vld [vmem:[%s2149 + $0x6e0] sm:$0xff]
  %v2371 = vld [vmem:[%s2149 + $0x6e8] sm:$0xff]
  %v2372 = vld [vmem:[%s2149 + $0x6f0] sm:$0xff]
  %v2373 = vld [vmem:[%s2149 + $0x6f8] sm:$0xff]
  %v2374 = vld [vmem:[%s2149 + $0x700] sm:$0xff]
  %v2375 = vld [vmem:[%s2149 + $0x708] sm:$0xff]
  %v2376 = vld [vmem:[%s2149 + $0x710] sm:$0xff]
  %v2377 = vld [vmem:[%s2149 + $0x718] sm:$0xff]
  %v2378 = vld [vmem:[%s2149 + $0x720] sm:$0xff]
  %v2379 = vld [vmem:[%s2149 + $0x728] sm:$0xff]
  %v2380 = vld [vmem:[%s2149 + $0x730] sm:$0xff]
  %v2381 = vld [vmem:[%s2149 + $0x738] sm:$0xff]
  %v2382 = vld [vmem:[%s2149 + $0x740] sm:$0xff]
  %v2383 = vld [vmem:[%s2149 + $0x748] sm:$0xff]
  %v2384 = vld [vmem:[%s2149 + $0x750] sm:$0xff]
  %v2385 = vld [vmem:[%s2149 + $0x758] sm:$0xff]
  %v2386 = vld [vmem:[%s2149 + $0x760] sm:$0xff]
  %v2387 = vld [vmem:[%s2149 + $0x768] sm:$0xff]
  %v2388 = vld [vmem:[%s2149 + $0x770] sm:$0xff]
  %v2389 = vld [vmem:[%s2149 + $0x778] sm:$0xff]
  %v2390 = vld [vmem:[%s4] sm:$0xf]
  %v2391 = vld [vmem:[%s6] sm:$0xf]
  %v2392 = vld [vmem:[%s7] sm:$0xff]
  %v2393 = vld [vmem:[%s7 + $0x8] sm:$0xff]
  %v2394 = vld [vmem:[%s7 + $0x10] sm:$0xff]
  %v2395 = vld [vmem:[%s7 + $0x18] sm:$0xff]
  %v2396 = vld [vmem:[%s7 + $0x20] sm:$0xff]
  %v2397 = vld [vmem:[%s7 + $0x28] sm:$0xff]
  %v2398 = vld [vmem:[%s7 + $0x30] sm:$0xff]
  %v2399 = vld [vmem:[%s7 + $0x38] sm:$0xff]
  %v2400 = vld [vmem:[%s7 + $0x40] sm:$0xff]
  %v2401 = vld [vmem:[%s7 + $0x48] sm:$0xff]
  %v2402 = vld [vmem:[%s7 + $0x50] sm:$0xff]
  %v2403 = vld [vmem:[%s7 + $0x58] sm:$0xff]
  %v2404 = vld [vmem:[%s7 + $0x60] sm:$0xff]
  %v2405 = vld [vmem:[%s7 + $0x68] sm:$0xff]
  %v2406 = vld [vmem:[%s7 + $0x70] sm:$0xff]
  %v2407 = vld [vmem:[%s7 + $0x78] sm:$0xff]
  %v2408 = vld [vmem:[%s7 + $0x80] sm:$0xff]
  %v2409 = vld [vmem:[%s7 + $0x88] sm:$0xff]
  %v2410 = vld [vmem:[%s7 + $0x90] sm:$0xff]
  %v2411 = vld [vmem:[%s7 + $0x98] sm:$0xff]
  %v2412 = vld [vmem:[%s7 + $0xa0] sm:$0xff]
  %v2413 = vld [vmem:[%s7 + $0xa8] sm:$0xff]
  %v2414 = vld [vmem:[%s7 + $0xb0] sm:$0xff]
  %v2415 = vld [vmem:[%s7 + $0xb8] sm:$0xff]
  %v2416 = vld [vmem:[%s7 + $0xc0] sm:$0xff]
  %v2417 = vld [vmem:[%s7 + $0xc8] sm:$0xff]
  %v2418 = vld [vmem:[%s7 + $0xd0] sm:$0xff]
  %v2419 = vld [vmem:[%s7 + $0xd8] sm:$0xff]
  %v2420 = vld [vmem:[%s7 + $0xe0] sm:$0xff]
  %v2421 = vld [vmem:[%s7 + $0xe8] sm:$0xff]
  %v2422 = vld [vmem:[%s7 + $0xf0] sm:$0xff]
  %v2423 = vld [vmem:[%s7 + $0xf8] sm:$0xff]
  %v2424 = vld [vmem:[%s7 + $0x100] sm:$0xff]
  %v2425 = vld [vmem:[%s7 + $0x108] sm:$0xff]
  %v2426 = vld [vmem:[%s7 + $0x110] sm:$0xff]
  %v2427 = vld [vmem:[%s7 + $0x118] sm:$0xff]
  %v2428 = vld [vmem:[%s7 + $0x120] sm:$0xff]
  %v2429 = vld [vmem:[%s7 + $0x128] sm:$0xff]
  %v2430 = vld [vmem:[%s7 + $0x130] sm:$0xff]
  %v2431 = vld [vmem:[%s7 + $0x138] sm:$0xff]
  %v2432 = vld [vmem:[%s7 + $0x140] sm:$0xff]
  %v2433 = vld [vmem:[%s7 + $0x148] sm:$0xff]
  %v2434 = vld [vmem:[%s7 + $0x150] sm:$0xff]
  %v2435 = vld [vmem:[%s7 + $0x158] sm:$0xff]
  %v2436 = vld [vmem:[%s7 + $0x160] sm:$0xff]
  %v2437 = vld [vmem:[%s7 + $0x168] sm:$0xff]
  %v2438 = vld [vmem:[%s7 + $0x170] sm:$0xff]
  %v2439 = vld [vmem:[%s7 + $0x178] sm:$0xff]
  %v2440 = vld [vmem:[%s7 + $0x180] sm:$0xff]
  %v2441 = vld [vmem:[%s7 + $0x188] sm:$0xff]
  %v2442 = vld [vmem:[%s7 + $0x190] sm:$0xff]
  %v2443 = vld [vmem:[%s7 + $0x198] sm:$0xff]
  %v2444 = vld [vmem:[%s7 + $0x1a0] sm:$0xff]
  %v2445 = vld [vmem:[%s7 + $0x1a8] sm:$0xff]
  %v2446 = vld [vmem:[%s7 + $0x1b0] sm:$0xff]
  %v2447 = vld [vmem:[%s7 + $0x1b8] sm:$0xff]
  %v2448 = vld [vmem:[%s8] sm:$0x1]
  %vm2457 = vcmask 1046528
  %v2458 = vrot.slane %v1266, 1
  %v2459 = vrot.slane %v1268, 1
  %v2460 = vsel %vm2457, %v2458, %v2459
  %v2461 = vrot.slane %v1267, 1
  %v2462 = vrot.slane %v1269, 1
  %v2463 = vsel %vm2457, %v2461, %v2462
  %v2464 = vrot.slane %v1270, 1
  %v2465 = vsel %vm2457, %v2459, %v2464
  %v2466 = vrot.slane %v1271, 1
  %v2467 = vsel %vm2457, %v2462, %v2466
  %v2468 = vrot.slane %v1272, 1
  %v2469 = vsel %vm2457, %v2464, %v2468
  %v2470 = vrot.slane %v1273, 1
  %v2471 = vsel %vm2457, %v2466, %v2470
  %2480 = vmatpush.msra.mxu0 %v1471
  %2481 = vmatpush.msra.mxu0 %v1467
  %2482 = vmatpush.msra.mxu0 %v1463
  %2483 = vmatpush.msra.mxu0 %v1459
  %2484 = vmatpush.msra.mxu0 %v1455
  %2485 = vmatpush.msra.mxu0 %v1451
  %2486 = vmatpush.msra.mxu0 %v1447
  %2487 = vmatpush.msra.mxu0 %v1443
  %2488 = vmatpush.msra.mxu0 %v1439
  %2489 = vmatpush.msra.mxu0 %v1435
  %2490 = vmatpush.msra.mxu0 %v1431
  %2491 = vmatpush.msra.mxu0 %v1427
  %2492 = vmatpush.msra.mxu0 %v1423
  %2493 = vmatpush.msra.mxu0 %v1419
  %2494 = vmatpush.msra.mxu0 %v1415
  %2495 = vmatpush.msra.mxu0 %v1411
  %2496 = vmatmul.f32.gmra.mxu0 %v2460
  %v2497 = vpop.f32.mrf.mxu0
  %v2498 = vadd.f32 0.0, %v2497
  %2499 = vmatmul.f32.gmra.mxu0 %v2465
  %v2500 = vpop.f32.mrf.mxu0
  %v2501 = vadd.f32 0.0, %v2500
  %2502 = vmatmul.f32.gmra.mxu0 %v2469
  %v2503 = vpop.f32.mrf.mxu0
  %v2504 = vadd.f32 0.0, %v2503
  %2505 = vmatmul.f32.gmra.mxu0 %v2468
  %v2506 = vpop.f32.mrf.mxu0
  %v2507 = vadd.f32 0.0, %v2506
  %2508 = vdwg.mxu0
  %2509 = vmatpush.msra.mxu0 %v1535
  %2510 = vmatpush.msra.mxu0 %v1531
  %2511 = vmatpush.msra.mxu0 %v1527
  %2512 = vmatpush.msra.mxu0 %v1523
  %2513 = vmatpush.msra.mxu0 %v1519
  %2514 = vmatpush.msra.mxu0 %v1515
  %2515 = vmatpush.msra.mxu0 %v1511
  %2516 = vmatpush.msra.mxu0 %v1507
  %2517 = vmatpush.msra.mxu0 %v1503
  %2518 = vmatpush.msra.mxu0 %v1499
  %2519 = vmatpush.msra.mxu0 %v1495
  %2520 = vmatpush.msra.mxu0 %v1491
  %2521 = vmatpush.msra.mxu0 %v1487
  %2522 = vmatpush.msra.mxu0 %v1483
  %2523 = vmatpush.msra.mxu0 %v1479
  %2524 = vmatpush.msra.mxu0 %v1475
  %2525 = vmatmul.f32.gmra.mxu0 %v2463
  %v2526 = vpop.f32.mrf.mxu0
  %v2527 = vadd.f32 %v2498, %v2526
  %2528 = vmatmul.f32.gmra.mxu0 %v2467
  %v2529 = vpop.f32.mrf.mxu0
  %v2530 = vadd.f32 %v2501, %v2529
  %2531 = vmatmul.f32.gmra.mxu0 %v2471
  %v2532 = vpop.f32.mrf.mxu0
  %v2533 = vadd.f32 %v2504, %v2532
  %2534 = vmatmul.f32.gmra.mxu0 %v2470
  %v2535 = vpop.f32.mrf.mxu0
  %v2536 = vadd.f32 %v2507, %v2535
  %2537 = vdwg.mxu0
  %2538 = vmatpush.msra.mxu0 %v1472
  %2539 = vmatpush.msra.mxu0 %v1468
  %2540 = vmatpush.msra.mxu0 %v1464
  %2541 = vmatpush.msra.mxu0 %v1460
  %2542 = vmatpush.msra.mxu0 %v1456
  %2543 = vmatpush.msra.mxu0 %v1452
  %2544 = vmatpush.msra.mxu0 %v1448
  %2545 = vmatpush.msra.mxu0 %v1444
  %2546 = vmatpush.msra.mxu0 %v1440
  %2547 = vmatpush.msra.mxu0 %v1436
  %2548 = vmatpush.msra.mxu0 %v1432
  %2549 = vmatpush.msra.mxu0 %v1428
  %2550 = vmatpush.msra.mxu0 %v1424
  %2551 = vmatpush.msra.mxu0 %v1420
  %2552 = vmatpush.msra.mxu0 %v1416
  %2553 = vmatpush.msra.mxu0 %v1412
  %2554 = vmatmul.f32.gmra.mxu0 %v2460
  %v2555 = vpop.f32.mrf.mxu0
  %v2556 = vadd.f32 0.0, %v2555
  %2557 = vmatmul.f32.gmra.mxu0 %v2465
  %v2558 = vpop.f32.mrf.mxu0
  %v2559 = vadd.f32 0.0, %v2558
  %2560 = vmatmul.f32.gmra.mxu0 %v2469
  %v2561 = vpop.f32.mrf.mxu0
  %v2562 = vadd.f32 0.0, %v2561
  %2563 = vmatmul.f32.gmra.mxu0 %v2468
  %v2564 = vpop.f32.mrf.mxu0
  %v2565 = vadd.f32 0.0, %v2564
  %2566 = vdwg.mxu0
  %2567 = vmatpush.msra.mxu0 %v1536
  %2568 = vmatpush.msra.mxu0 %v1532
  %2569 = vmatpush.msra.mxu0 %v1528
  %2570 = vmatpush.msra.mxu0 %v1524
  %2571 = vmatpush.msra.mxu0 %v1520
  %2572 = vmatpush.msra.mxu0 %v1516
  %2573 = vmatpush.msra.mxu0 %v1512
  %2574 = vmatpush.msra.mxu0 %v1508
  %2575 = vmatpush.msra.mxu0 %v1504
  %2576 = vmatpush.msra.mxu0 %v1500
  %2577 = vmatpush.msra.mxu0 %v1496
  %2578 = vmatpush.msra.mxu0 %v1492
  %2579 = vmatpush.msra.mxu0 %v1488
  %2580 = vmatpush.msra.mxu0 %v1484
  %2581 = vmatpush.msra.mxu0 %v1480
  %2582 = vmatpush.msra.mxu0 %v1476
  %2583 = vmatmul.f32.gmra.mxu0 %v2463
  %v2584 = vpop.f32.mrf.mxu0
  %v2585 = vadd.f32 %v2556, %v2584
  %2586 = vmatmul.f32.gmra.mxu0 %v2467
  %v2587 = vpop.f32.mrf.mxu0
  %v2588 = vadd.f32 %v2559, %v2587
  %2589 = vmatmul.f32.gmra.mxu0 %v2471
  %v2590 = vpop.f32.mrf.mxu0
  %v2591 = vadd.f32 %v2562, %v2590
  %2592 = vmatmul.f32.gmra.mxu0 %v2470
  %v2593 = vpop.f32.mrf.mxu0
  %v2594 = vadd.f32 %v2565, %v2593
  %2595 = vdwg.mxu0
  %2596 = vmatpush.msra.mxu0 %v1473
  %2597 = vmatpush.msra.mxu0 %v1469
  %2598 = vmatpush.msra.mxu0 %v1465
  %2599 = vmatpush.msra.mxu0 %v1461
  %2600 = vmatpush.msra.mxu0 %v1457
  %2601 = vmatpush.msra.mxu0 %v1453
  %2602 = vmatpush.msra.mxu0 %v1449
  %2603 = vmatpush.msra.mxu0 %v1445
  %2604 = vmatpush.msra.mxu0 %v1441
  %2605 = vmatpush.msra.mxu0 %v1437
  %2606 = vmatpush.msra.mxu0 %v1433
  %2607 = vmatpush.msra.mxu0 %v1429
  %2608 = vmatpush.msra.mxu0 %v1425
  %2609 = vmatpush.msra.mxu0 %v1421
  %2610 = vmatpush.msra.mxu0 %v1417
  %2611 = vmatpush.msra.mxu0 %v1413
  %2612 = vmatmul.f32.gmra.mxu0 %v2460
  %v2613 = vpop.f32.mrf.mxu0
  %v2614 = vadd.f32 0.0, %v2613
  %2615 = vmatmul.f32.gmra.mxu0 %v2465
  %v2616 = vpop.f32.mrf.mxu0
  %v2617 = vadd.f32 0.0, %v2616
  %2618 = vmatmul.f32.gmra.mxu0 %v2469
  %v2619 = vpop.f32.mrf.mxu0
  %v2620 = vadd.f32 0.0, %v2619
  %2621 = vmatmul.f32.gmra.mxu0 %v2468
  %v2622 = vpop.f32.mrf.mxu0
  %v2623 = vadd.f32 0.0, %v2622
  %2624 = vdwg.mxu0
  %2625 = vmatpush.msra.mxu0 %v1537
  %2626 = vmatpush.msra.mxu0 %v1533
  %2627 = vmatpush.msra.mxu0 %v1529
  %2628 = vmatpush.msra.mxu0 %v1525
  %2629 = vmatpush.msra.mxu0 %v1521
  %2630 = vmatpush.msra.mxu0 %v1517
  %2631 = vmatpush.msra.mxu0 %v1513
  %2632 = vmatpush.msra.mxu0 %v1509
  %2633 = vmatpush.msra.mxu0 %v1505
  %2634 = vmatpush.msra.mxu0 %v1501
  %2635 = vmatpush.msra.mxu0 %v1497
  %2636 = vmatpush.msra.mxu0 %v1493
  %2637 = vmatpush.msra.mxu0 %v1489
  %2638 = vmatpush.msra.mxu0 %v1485
  %2639 = vmatpush.msra.mxu0 %v1481
  %2640 = vmatpush.msra.mxu0 %v1477
  %2641 = vmatmul.f32.gmra.mxu0 %v2463
  %v2642 = vpop.f32.mrf.mxu0
  %v2643 = vadd.f32 %v2614, %v2642
  %2644 = vmatmul.f32.gmra.mxu0 %v2467
  %v2645 = vpop.f32.mrf.mxu0
  %v2646 = vadd.f32 %v2617, %v2645
  %2647 = vmatmul.f32.gmra.mxu0 %v2471
  %v2648 = vpop.f32.mrf.mxu0
  %v2649 = vadd.f32 %v2620, %v2648
  %2650 = vmatmul.f32.gmra.mxu0 %v2470
  %v2651 = vpop.f32.mrf.mxu0
  %v2652 = vadd.f32 %v2623, %v2651
  %2653 = vdwg.mxu0
  %2654 = vmatpush.msra.mxu0 %v1474
  %2655 = vmatpush.msra.mxu0 %v1470
  %2656 = vmatpush.msra.mxu0 %v1466
  %2657 = vmatpush.msra.mxu0 %v1462
  %2658 = vmatpush.msra.mxu0 %v1458
  %2659 = vmatpush.msra.mxu0 %v1454
  %2660 = vmatpush.msra.mxu0 %v1450
  %2661 = vmatpush.msra.mxu0 %v1446
  %2662 = vmatpush.msra.mxu0 %v1442
  %2663 = vmatpush.msra.mxu0 %v1438
  %2664 = vmatpush.msra.mxu0 %v1434
  %2665 = vmatpush.msra.mxu0 %v1430
  %2666 = vmatpush.msra.mxu0 %v1426
  %2667 = vmatpush.msra.mxu0 %v1422
  %2668 = vmatpush.msra.mxu0 %v1418
  %2669 = vmatpush.msra.mxu0 %v1414
  %2670 = vmatmul.f32.gmra.mxu0 %v2460
  %v2671 = vpop.f32.mrf.mxu0
  %v2672 = vadd.f32 0.0, %v2671
  %2673 = vmatmul.f32.gmra.mxu0 %v2465
  %v2674 = vpop.f32.mrf.mxu0
  %v2675 = vadd.f32 0.0, %v2674
  %2676 = vmatmul.f32.gmra.mxu0 %v2469
  %v2677 = vpop.f32.mrf.mxu0
  %v2678 = vadd.f32 0.0, %v2677
  %2679 = vmatmul.f32.gmra.mxu0 %v2468
  %v2680 = vpop.f32.mrf.mxu0
  %v2681 = vadd.f32 0.0, %v2680
  %2682 = vdwg.mxu0
  %2683 = vmatpush.msra.mxu0 %v1538
  %2684 = vmatpush.msra.mxu0 %v1534
  %2685 = vmatpush.msra.mxu0 %v1530
  %2686 = vmatpush.msra.mxu0 %v1526
  %2687 = vmatpush.msra.mxu0 %v1522
  %2688 = vmatpush.msra.mxu0 %v1518
  %2689 = vmatpush.msra.mxu0 %v1514
  %2690 = vmatpush.msra.mxu0 %v1510
  %2691 = vmatpush.msra.mxu0 %v1506
  %2692 = vmatpush.msra.mxu0 %v1502
  %2693 = vmatpush.msra.mxu0 %v1498
  %2694 = vmatpush.msra.mxu0 %v1494
  %2695 = vmatpush.msra.mxu0 %v1490
  %2696 = vmatpush.msra.mxu0 %v1486
  %2697 = vmatpush.msra.mxu0 %v1482
  %2698 = vmatpush.msra.mxu0 %v1478
  %2699 = vmatmul.f32.gmra.mxu0 %v2463
  %v2700 = vpop.f32.mrf.mxu0
  %v2701 = vadd.f32 %v2672, %v2700
  %2702 = vmatmul.f32.gmra.mxu0 %v2467
  %v2703 = vpop.f32.mrf.mxu0
  %v2704 = vadd.f32 %v2675, %v2703
  %2705 = vmatmul.f32.gmra.mxu0 %v2471
  %v2706 = vpop.f32.mrf.mxu0
  %v2707 = vadd.f32 %v2678, %v2706
  %2708 = vmatmul.f32.gmra.mxu0 %v2470
  %v2709 = vpop.f32.mrf.mxu0
  %v2710 = vadd.f32 %v2681, %v2709
  %2711 = vdwg.mxu0
  %2712 = vmatpush.msra.mxu0 %v1342
  %2713 = vmatpush.msra.mxu0 %v1338
  %2714 = vmatpush.msra.mxu0 %v1334
  %2715 = vmatpush.msra.mxu0 %v1330
  %2716 = vmatpush.msra.mxu0 %v1326
  %2717 = vmatpush.msra.mxu0 %v1322
  %2718 = vmatpush.msra.mxu0 %v1318
  %2719 = vmatpush.msra.mxu0 %v1314
  %2720 = vmatpush.msra.mxu0 %v1310
  %2721 = vmatpush.msra.mxu0 %v1306
  %2722 = vmatpush.msra.mxu0 %v1302
  %2723 = vmatpush.msra.mxu0 %v1298
  %2724 = vmatpush.msra.mxu0 %v1294
  %2725 = vmatpush.msra.mxu0 %v1290
  %2726 = vmatpush.msra.mxu0 %v1286
  %2727 = vmatpush.msra.mxu0 %v1282
  %2728 = vmatmul.f32.gmra.mxu0 %v1266
  %v2729 = vpop.f32.mrf.mxu0
  %v2730 = vadd.f32 %v2527, %v2729
  %2731 = vmatmul.f32.gmra.mxu0 %v1268
  %v2732 = vpop.f32.mrf.mxu0
  %v2733 = vadd.f32 %v2530, %v2732
  %2734 = vmatmul.f32.gmra.mxu0 %v1270
  %v2735 = vpop.f32.mrf.mxu0
  %v2736 = vadd.f32 %v2533, %v2735
  %2737 = vmatmul.f32.gmra.mxu0 %v1272
  %v2738 = vpop.f32.mrf.mxu0
  %v2739 = vadd.f32 %v2536, %v2738
  %2740 = vdwg.mxu0
  %2741 = vmatpush.msra.mxu0 %v1406
  %2742 = vmatpush.msra.mxu0 %v1402
  %2743 = vmatpush.msra.mxu0 %v1398
  %2744 = vmatpush.msra.mxu0 %v1394
  %2745 = vmatpush.msra.mxu0 %v1390
  %2746 = vmatpush.msra.mxu0 %v1386
  %2747 = vmatpush.msra.mxu0 %v1382
  %2748 = vmatpush.msra.mxu0 %v1378
  %2749 = vmatpush.msra.mxu0 %v1374
  %2750 = vmatpush.msra.mxu0 %v1370
  %2751 = vmatpush.msra.mxu0 %v1366
  %2752 = vmatpush.msra.mxu0 %v1362
  %2753 = vmatpush.msra.mxu0 %v1358
  %2754 = vmatpush.msra.mxu0 %v1354
  %2755 = vmatpush.msra.mxu0 %v1350
  %2756 = vmatpush.msra.mxu0 %v1346
  %2757 = vmatmul.f32.gmra.mxu0 %v1267
  %v2758 = vpop.f32.mrf.mxu0
  %v2759 = vadd.f32 %v2730, %v2758
  %2760 = vmatmul.f32.gmra.mxu0 %v1269
  %v2761 = vpop.f32.mrf.mxu0
  %v2762 = vadd.f32 %v2733, %v2761
  %2763 = vmatmul.f32.gmra.mxu0 %v1271
  %v2764 = vpop.f32.mrf.mxu0
  %v2765 = vadd.f32 %v2736, %v2764
  %2766 = vmatmul.f32.gmra.mxu0 %v1273
  %v2767 = vpop.f32.mrf.mxu0
  %v2768 = vadd.f32 %v2739, %v2767
  %2769 = vdwg.mxu0
  %2770 = vmatpush.msra.mxu0 %v1343
  %2771 = vmatpush.msra.mxu0 %v1339
  %2772 = vmatpush.msra.mxu0 %v1335
  %2773 = vmatpush.msra.mxu0 %v1331
  %2774 = vmatpush.msra.mxu0 %v1327
  %2775 = vmatpush.msra.mxu0 %v1323
  %2776 = vmatpush.msra.mxu0 %v1319
  %2777 = vmatpush.msra.mxu0 %v1315
  %2778 = vmatpush.msra.mxu0 %v1311
  %2779 = vmatpush.msra.mxu0 %v1307
  %2780 = vmatpush.msra.mxu0 %v1303
  %2781 = vmatpush.msra.mxu0 %v1299
  %2782 = vmatpush.msra.mxu0 %v1295
  %2783 = vmatpush.msra.mxu0 %v1291
  %2784 = vmatpush.msra.mxu0 %v1287
  %2785 = vmatpush.msra.mxu0 %v1283
  %2786 = vmatmul.f32.gmra.mxu0 %v1266
  %v2787 = vpop.f32.mrf.mxu0
  %v2788 = vadd.f32 %v2585, %v2787
  %2789 = vmatmul.f32.gmra.mxu0 %v1268
  %v2790 = vpop.f32.mrf.mxu0
  %v2791 = vadd.f32 %v2588, %v2790
  %2792 = vmatmul.f32.gmra.mxu0 %v1270
  %v2793 = vpop.f32.mrf.mxu0
  %v2794 = vadd.f32 %v2591, %v2793
  %2795 = vmatmul.f32.gmra.mxu0 %v1272
  %v2796 = vpop.f32.mrf.mxu0
  %v2797 = vadd.f32 %v2594, %v2796
  %2798 = vdwg.mxu0
  %2799 = vmatpush.msra.mxu0 %v1407
  %2800 = vmatpush.msra.mxu0 %v1403
  %2801 = vmatpush.msra.mxu0 %v1399
  %2802 = vmatpush.msra.mxu0 %v1395
  %2803 = vmatpush.msra.mxu0 %v1391
  %2804 = vmatpush.msra.mxu0 %v1387
  %2805 = vmatpush.msra.mxu0 %v1383
  %2806 = vmatpush.msra.mxu0 %v1379
  %2807 = vmatpush.msra.mxu0 %v1375
  %2808 = vmatpush.msra.mxu0 %v1371
  %2809 = vmatpush.msra.mxu0 %v1367
  %2810 = vmatpush.msra.mxu0 %v1363
  %2811 = vmatpush.msra.mxu0 %v1359
  %2812 = vmatpush.msra.mxu0 %v1355
  %2813 = vmatpush.msra.mxu0 %v1351
  %2814 = vmatpush.msra.mxu0 %v1347
  %2815 = vmatmul.f32.gmra.mxu0 %v1267
  %v2816 = vpop.f32.mrf.mxu0
  %v2817 = vadd.f32 %v2788, %v2816
  %2818 = vmatmul.f32.gmra.mxu0 %v1269
  %v2819 = vpop.f32.mrf.mxu0
  %v2820 = vadd.f32 %v2791, %v2819
  %2821 = vmatmul.f32.gmra.mxu0 %v1271
  %v2822 = vpop.f32.mrf.mxu0
  %v2823 = vadd.f32 %v2794, %v2822
  %2824 = vmatmul.f32.gmra.mxu0 %v1273
  %v2825 = vpop.f32.mrf.mxu0
  %v2826 = vadd.f32 %v2797, %v2825
  %2827 = vdwg.mxu0
  %2828 = vmatpush.msra.mxu0 %v1344
  %2829 = vmatpush.msra.mxu0 %v1340
  %2830 = vmatpush.msra.mxu0 %v1336
  %2831 = vmatpush.msra.mxu0 %v1332
  %2832 = vmatpush.msra.mxu0 %v1328
  %2833 = vmatpush.msra.mxu0 %v1324
  %2834 = vmatpush.msra.mxu0 %v1320
  %2835 = vmatpush.msra.mxu0 %v1316
  %2836 = vmatpush.msra.mxu0 %v1312
  %2837 = vmatpush.msra.mxu0 %v1308
  %2838 = vmatpush.msra.mxu0 %v1304
  %2839 = vmatpush.msra.mxu0 %v1300
  %2840 = vmatpush.msra.mxu0 %v1296
  %2841 = vmatpush.msra.mxu0 %v1292
  %2842 = vmatpush.msra.mxu0 %v1288
  %2843 = vmatpush.msra.mxu0 %v1284
  %2844 = vmatmul.f32.gmra.mxu0 %v1266
  %v2845 = vpop.f32.mrf.mxu0
  %v2846 = vadd.f32 %v2643, %v2845
  %2847 = vmatmul.f32.gmra.mxu0 %v1268
  %v2848 = vpop.f32.mrf.mxu0
  %v2849 = vadd.f32 %v2646, %v2848
  %2850 = vmatmul.f32.gmra.mxu0 %v1270
  %v2851 = vpop.f32.mrf.mxu0
  %v2852 = vadd.f32 %v2649, %v2851
  %2853 = vmatmul.f32.gmra.mxu0 %v1272
  %v2854 = vpop.f32.mrf.mxu0
  %v2855 = vadd.f32 %v2652, %v2854
  %2856 = vdwg.mxu0
  %2857 = vmatpush.msra.mxu0 %v1408
  %2858 = vmatpush.msra.mxu0 %v1404
  %2859 = vmatpush.msra.mxu0 %v1400
  %2860 = vmatpush.msra.mxu0 %v1396
  %2861 = vmatpush.msra.mxu0 %v1392
  %2862 = vmatpush.msra.mxu0 %v1388
  %2863 = vmatpush.msra.mxu0 %v1384
  %2864 = vmatpush.msra.mxu0 %v1380
  %2865 = vmatpush.msra.mxu0 %v1376
  %2866 = vmatpush.msra.mxu0 %v1372
  %2867 = vmatpush.msra.mxu0 %v1368
  %2868 = vmatpush.msra.mxu0 %v1364
  %2869 = vmatpush.msra.mxu0 %v1360
  %2870 = vmatpush.msra.mxu0 %v1356
  %2871 = vmatpush.msra.mxu0 %v1352
  %2872 = vmatpush.msra.mxu0 %v1348
  %2873 = vmatmul.f32.gmra.mxu0 %v1267
  %v2874 = vpop.f32.mrf.mxu0
  %v2875 = vadd.f32 %v2846, %v2874
  %2876 = vmatmul.f32.gmra.mxu0 %v1269
  %v2877 = vpop.f32.mrf.mxu0
  %v2878 = vadd.f32 %v2849, %v2877
  %2879 = vmatmul.f32.gmra.mxu0 %v1271
  %v2880 = vpop.f32.mrf.mxu0
  %v2881 = vadd.f32 %v2852, %v2880
  %2882 = vmatmul.f32.gmra.mxu0 %v1273
  %v2883 = vpop.f32.mrf.mxu0
  %v2884 = vadd.f32 %v2855, %v2883
  %2885 = vdwg.mxu0
  %2886 = vmatpush.msra.mxu0 %v1345
  %2887 = vmatpush.msra.mxu0 %v1341
  %2888 = vmatpush.msra.mxu0 %v1337
  %2889 = vmatpush.msra.mxu0 %v1333
  %2890 = vmatpush.msra.mxu0 %v1329
  %2891 = vmatpush.msra.mxu0 %v1325
  %2892 = vmatpush.msra.mxu0 %v1321
  %2893 = vmatpush.msra.mxu0 %v1317
  %2894 = vmatpush.msra.mxu0 %v1313
  %2895 = vmatpush.msra.mxu0 %v1309
  %2896 = vmatpush.msra.mxu0 %v1305
  %2897 = vmatpush.msra.mxu0 %v1301
  %2898 = vmatpush.msra.mxu0 %v1297
  %2899 = vmatpush.msra.mxu0 %v1293
  %2900 = vmatpush.msra.mxu0 %v1289
  %2901 = vmatpush.msra.mxu0 %v1285
  %2902 = vmatmul.f32.gmra.mxu0 %v1266
  %v2903 = vpop.f32.mrf.mxu0
  %v2904 = vadd.f32 %v2701, %v2903
  %2905 = vmatmul.f32.gmra.mxu0 %v1268
  %v2906 = vpop.f32.mrf.mxu0
  %v2907 = vadd.f32 %v2704, %v2906
  %2908 = vmatmul.f32.gmra.mxu0 %v1270
  %v2909 = vpop.f32.mrf.mxu0
  %v2910 = vadd.f32 %v2707, %v2909
  %2911 = vmatmul.f32.gmra.mxu0 %v1272
  %v2912 = vpop.f32.mrf.mxu0
  %v2913 = vadd.f32 %v2710, %v2912
  %2914 = vdwg.mxu0
  %2915 = vmatpush.msra.mxu0 %v1409
  %2916 = vmatpush.msra.mxu0 %v1405
  %2917 = vmatpush.msra.mxu0 %v1401
  %2918 = vmatpush.msra.mxu0 %v1397
  %2919 = vmatpush.msra.mxu0 %v1393
  %2920 = vmatpush.msra.mxu0 %v1389
  %2921 = vmatpush.msra.mxu0 %v1385
  %2922 = vmatpush.msra.mxu0 %v1381
  %2923 = vmatpush.msra.mxu0 %v1377
  %2924 = vmatpush.msra.mxu0 %v1373
  %2925 = vmatpush.msra.mxu0 %v1369
  %2926 = vmatpush.msra.mxu0 %v1365
  %2927 = vmatpush.msra.mxu0 %v1361
  %2928 = vmatpush.msra.mxu0 %v1357
  %2929 = vmatpush.msra.mxu0 %v1353
  %2930 = vmatpush.msra.mxu0 %v1349
  %2931 = vmatmul.f32.gmra.mxu0 %v1267
  %v2932 = vpop.f32.mrf.mxu0
  %v2933 = vadd.f32 %v2904, %v2932
  %2934 = vmatmul.f32.gmra.mxu0 %v1269
  %v2935 = vpop.f32.mrf.mxu0
  %v2936 = vadd.f32 %v2907, %v2935
  %2937 = vmatmul.f32.gmra.mxu0 %v1271
  %v2938 = vpop.f32.mrf.mxu0
  %v2939 = vadd.f32 %v2910, %v2938
  %2940 = vmatmul.f32.gmra.mxu0 %v1273
  %v2941 = vpop.f32.mrf.mxu0
  %v2942 = vadd.f32 %v2913, %v2941
  %2943 = vdwg.mxu0
  %vm2944 = vcmask 1045504
  %v2945 = vrot.slane %v1266, 2
  %v2946 = vrot.slane %v1268, 2
  %v2947 = vsel %vm2944, %v2945, %v2946
  %v2948 = vrot.slane %v1267, 2
  %v2949 = vrot.slane %v1269, 2
  %v2950 = vsel %vm2944, %v2948, %v2949
  %v2951 = vrot.slane %v1270, 2
  %v2952 = vsel %vm2944, %v2946, %v2951
  %v2953 = vrot.slane %v1271, 2
  %v2954 = vsel %vm2944, %v2949, %v2953
  %v2955 = vrot.slane %v1272, 2
  %v2956 = vsel %vm2944, %v2951, %v2955
  %v2957 = vrot.slane %v1273, 2
  %v2958 = vsel %vm2944, %v2953, %v2957
  %2967 = vmatpush.msra.mxu0 %v1600
  %2968 = vmatpush.msra.mxu0 %v1596
  %2969 = vmatpush.msra.mxu0 %v1592
  %2970 = vmatpush.msra.mxu0 %v1588
  %2971 = vmatpush.msra.mxu0 %v1584
  %2972 = vmatpush.msra.mxu0 %v1580
  %2973 = vmatpush.msra.mxu0 %v1576
  %2974 = vmatpush.msra.mxu0 %v1572
  %2975 = vmatpush.msra.mxu0 %v1568
  %2976 = vmatpush.msra.mxu0 %v1564
  %2977 = vmatpush.msra.mxu0 %v1560
  %2978 = vmatpush.msra.mxu0 %v1556
  %2979 = vmatpush.msra.mxu0 %v1552
  %2980 = vmatpush.msra.mxu0 %v1548
  %2981 = vmatpush.msra.mxu0 %v1544
  %2982 = vmatpush.msra.mxu0 %v1540
  %2983 = vmatmul.f32.gmra.mxu0 %v2947
  %v2984 = vpop.f32.mrf.mxu0
  %v2985 = vadd.f32 0.0, %v2984
  %2986 = vmatmul.f32.gmra.mxu0 %v2952
  %v2987 = vpop.f32.mrf.mxu0
  %v2988 = vadd.f32 0.0, %v2987
  %2989 = vmatmul.f32.gmra.mxu0 %v2956
  %v2990 = vpop.f32.mrf.mxu0
  %v2991 = vadd.f32 0.0, %v2990
  %2992 = vmatmul.f32.gmra.mxu0 %v2955
  %v2993 = vpop.f32.mrf.mxu0
  %v2994 = vadd.f32 0.0, %v2993
  %2995 = vdwg.mxu0
  %2996 = vmatpush.msra.mxu0 %v1664
  %2997 = vmatpush.msra.mxu0 %v1660
  %2998 = vmatpush.msra.mxu0 %v1656
  %2999 = vmatpush.msra.mxu0 %v1652
  %3000 = vmatpush.msra.mxu0 %v1648
  %3001 = vmatpush.msra.mxu0 %v1644
  %3002 = vmatpush.msra.mxu0 %v1640
  %3003 = vmatpush.msra.mxu0 %v1636
  %3004 = vmatpush.msra.mxu0 %v1632
  %3005 = vmatpush.msra.mxu0 %v1628
  %3006 = vmatpush.msra.mxu0 %v1624
  %3007 = vmatpush.msra.mxu0 %v1620
  %3008 = vmatpush.msra.mxu0 %v1616
  %3009 = vmatpush.msra.mxu0 %v1612
  %3010 = vmatpush.msra.mxu0 %v1608
  %3011 = vmatpush.msra.mxu0 %v1604
  %3012 = vmatmul.f32.gmra.mxu0 %v2950
  %v3013 = vpop.f32.mrf.mxu0
  %v3014 = vadd.f32 %v2985, %v3013
  %3015 = vmatmul.f32.gmra.mxu0 %v2954
  %v3016 = vpop.f32.mrf.mxu0
  %v3017 = vadd.f32 %v2988, %v3016
  %3018 = vmatmul.f32.gmra.mxu0 %v2958
  %v3019 = vpop.f32.mrf.mxu0
  %v3020 = vadd.f32 %v2991, %v3019
  %3021 = vmatmul.f32.gmra.mxu0 %v2957
  %v3022 = vpop.f32.mrf.mxu0
  %v3023 = vadd.f32 %v2994, %v3022
  %3024 = vdwg.mxu0
  %3025 = vmatpush.msra.mxu0 %v1601
  %3026 = vmatpush.msra.mxu0 %v1597
  %3027 = vmatpush.msra.mxu0 %v1593
  %3028 = vmatpush.msra.mxu0 %v1589
  %3029 = vmatpush.msra.mxu0 %v1585
  %3030 = vmatpush.msra.mxu0 %v1581
  %3031 = vmatpush.msra.mxu0 %v1577
  %3032 = vmatpush.msra.mxu0 %v1573
  %3033 = vmatpush.msra.mxu0 %v1569
  %3034 = vmatpush.msra.mxu0 %v1565
  %3035 = vmatpush.msra.mxu0 %v1561
  %3036 = vmatpush.msra.mxu0 %v1557
  %3037 = vmatpush.msra.mxu0 %v1553
  %3038 = vmatpush.msra.mxu0 %v1549
  %3039 = vmatpush.msra.mxu0 %v1545
  %3040 = vmatpush.msra.mxu0 %v1541
  %3041 = vmatmul.f32.gmra.mxu0 %v2947
  %v3042 = vpop.f32.mrf.mxu0
  %v3043 = vadd.f32 0.0, %v3042
  %3044 = vmatmul.f32.gmra.mxu0 %v2952
  %v3045 = vpop.f32.mrf.mxu0
  %v3046 = vadd.f32 0.0, %v3045
  %3047 = vmatmul.f32.gmra.mxu0 %v2956
  %v3048 = vpop.f32.mrf.mxu0
  %v3049 = vadd.f32 0.0, %v3048
  %3050 = vmatmul.f32.gmra.mxu0 %v2955
  %v3051 = vpop.f32.mrf.mxu0
  %v3052 = vadd.f32 0.0, %v3051
  %3053 = vdwg.mxu0
  %3054 = vmatpush.msra.mxu0 %v1665
  %3055 = vmatpush.msra.mxu0 %v1661
  %3056 = vmatpush.msra.mxu0 %v1657
  %3057 = vmatpush.msra.mxu0 %v1653
  %3058 = vmatpush.msra.mxu0 %v1649
  %3059 = vmatpush.msra.mxu0 %v1645
  %3060 = vmatpush.msra.mxu0 %v1641
  %3061 = vmatpush.msra.mxu0 %v1637
  %3062 = vmatpush.msra.mxu0 %v1633
  %3063 = vmatpush.msra.mxu0 %v1629
  %3064 = vmatpush.msra.mxu0 %v1625
  %3065 = vmatpush.msra.mxu0 %v1621
  %3066 = vmatpush.msra.mxu0 %v1617
  %3067 = vmatpush.msra.mxu0 %v1613
  %3068 = vmatpush.msra.mxu0 %v1609
  %3069 = vmatpush.msra.mxu0 %v1605
  %3070 = vmatmul.f32.gmra.mxu0 %v2950
  %v3071 = vpop.f32.mrf.mxu0
  %v3072 = vadd.f32 %v3043, %v3071
  %3073 = vmatmul.f32.gmra.mxu0 %v2954
  %v3074 = vpop.f32.mrf.mxu0
  %v3075 = vadd.f32 %v3046, %v3074
  %3076 = vmatmul.f32.gmra.mxu0 %v2958
  %v3077 = vpop.f32.mrf.mxu0
  %v3078 = vadd.f32 %v3049, %v3077
  %3079 = vmatmul.f32.gmra.mxu0 %v2957
  %v3080 = vpop.f32.mrf.mxu0
  %v3081 = vadd.f32 %v3052, %v3080
  %3082 = vdwg.mxu0
  %3083 = vmatpush.msra.mxu0 %v1602
  %3084 = vmatpush.msra.mxu0 %v1598
  %3085 = vmatpush.msra.mxu0 %v1594
  %3086 = vmatpush.msra.mxu0 %v1590
  %3087 = vmatpush.msra.mxu0 %v1586
  %3088 = vmatpush.msra.mxu0 %v1582
  %3089 = vmatpush.msra.mxu0 %v1578
  %3090 = vmatpush.msra.mxu0 %v1574
  %3091 = vmatpush.msra.mxu0 %v1570
  %3092 = vmatpush.msra.mxu0 %v1566
  %3093 = vmatpush.msra.mxu0 %v1562
  %3094 = vmatpush.msra.mxu0 %v1558
  %3095 = vmatpush.msra.mxu0 %v1554
  %3096 = vmatpush.msra.mxu0 %v1550
  %3097 = vmatpush.msra.mxu0 %v1546
  %3098 = vmatpush.msra.mxu0 %v1542
  %3099 = vmatmul.f32.gmra.mxu0 %v2947
  %v3100 = vpop.f32.mrf.mxu0
  %v3101 = vadd.f32 0.0, %v3100
  %3102 = vmatmul.f32.gmra.mxu0 %v2952
  %v3103 = vpop.f32.mrf.mxu0
  %v3104 = vadd.f32 0.0, %v3103
  %3105 = vmatmul.f32.gmra.mxu0 %v2956
  %v3106 = vpop.f32.mrf.mxu0
  %v3107 = vadd.f32 0.0, %v3106
  %3108 = vmatmul.f32.gmra.mxu0 %v2955
  %v3109 = vpop.f32.mrf.mxu0
  %v3110 = vadd.f32 0.0, %v3109
  %3111 = vdwg.mxu0
  %3112 = vmatpush.msra.mxu0 %v1666
  %3113 = vmatpush.msra.mxu0 %v1662
  %3114 = vmatpush.msra.mxu0 %v1658
  %3115 = vmatpush.msra.mxu0 %v1654
  %3116 = vmatpush.msra.mxu0 %v1650
  %3117 = vmatpush.msra.mxu0 %v1646
  %3118 = vmatpush.msra.mxu0 %v1642
  %3119 = vmatpush.msra.mxu0 %v1638
  %3120 = vmatpush.msra.mxu0 %v1634
  %3121 = vmatpush.msra.mxu0 %v1630
  %3122 = vmatpush.msra.mxu0 %v1626
  %3123 = vmatpush.msra.mxu0 %v1622
  %3124 = vmatpush.msra.mxu0 %v1618
  %3125 = vmatpush.msra.mxu0 %v1614
  %3126 = vmatpush.msra.mxu0 %v1610
  %3127 = vmatpush.msra.mxu0 %v1606
  %3128 = vmatmul.f32.gmra.mxu0 %v2950
  %v3129 = vpop.f32.mrf.mxu0
  %v3130 = vadd.f32 %v3101, %v3129
  %3131 = vmatmul.f32.gmra.mxu0 %v2954
  %v3132 = vpop.f32.mrf.mxu0
  %v3133 = vadd.f32 %v3104, %v3132
  %3134 = vmatmul.f32.gmra.mxu0 %v2958
  %v3135 = vpop.f32.mrf.mxu0
  %v3136 = vadd.f32 %v3107, %v3135
  %3137 = vmatmul.f32.gmra.mxu0 %v2957
  %v3138 = vpop.f32.mrf.mxu0
  %v3139 = vadd.f32 %v3110, %v3138
  %3140 = vdwg.mxu0
  %3141 = vmatpush.msra.mxu0 %v1603
  %3142 = vmatpush.msra.mxu0 %v1599
  %3143 = vmatpush.msra.mxu0 %v1595
  %3144 = vmatpush.msra.mxu0 %v1591
  %3145 = vmatpush.msra.mxu0 %v1587
  %3146 = vmatpush.msra.mxu0 %v1583
  %3147 = vmatpush.msra.mxu0 %v1579
  %3148 = vmatpush.msra.mxu0 %v1575
  %3149 = vmatpush.msra.mxu0 %v1571
  %3150 = vmatpush.msra.mxu0 %v1567
  %3151 = vmatpush.msra.mxu0 %v1563
  %3152 = vmatpush.msra.mxu0 %v1559
  %3153 = vmatpush.msra.mxu0 %v1555
  %3154 = vmatpush.msra.mxu0 %v1551
  %3155 = vmatpush.msra.mxu0 %v1547
  %3156 = vmatpush.msra.mxu0 %v1543
  %3157 = vmatmul.f32.gmra.mxu0 %v2947
  %v3158 = vpop.f32.mrf.mxu0
  %v3159 = vadd.f32 0.0, %v3158
  %3160 = vmatmul.f32.gmra.mxu0 %v2952
  %v3161 = vpop.f32.mrf.mxu0
  %v3162 = vadd.f32 0.0, %v3161
  %3163 = vmatmul.f32.gmra.mxu0 %v2956
  %v3164 = vpop.f32.mrf.mxu0
  %v3165 = vadd.f32 0.0, %v3164
  %3166 = vmatmul.f32.gmra.mxu0 %v2955
  %v3167 = vpop.f32.mrf.mxu0
  %v3168 = vadd.f32 0.0, %v3167
  %3169 = vdwg.mxu0
  %3170 = vmatpush.msra.mxu0 %v1667
  %3171 = vmatpush.msra.mxu0 %v1663
  %3172 = vmatpush.msra.mxu0 %v1659
  %3173 = vmatpush.msra.mxu0 %v1655
  %3174 = vmatpush.msra.mxu0 %v1651
  %3175 = vmatpush.msra.mxu0 %v1647
  %3176 = vmatpush.msra.mxu0 %v1643
  %3177 = vmatpush.msra.mxu0 %v1639
  %3178 = vmatpush.msra.mxu0 %v1635
  %3179 = vmatpush.msra.mxu0 %v1631
  %3180 = vmatpush.msra.mxu0 %v1627
  %3181 = vmatpush.msra.mxu0 %v1623
  %3182 = vmatpush.msra.mxu0 %v1619
  %3183 = vmatpush.msra.mxu0 %v1615
  %3184 = vmatpush.msra.mxu0 %v1611
  %3185 = vmatpush.msra.mxu0 %v1607
  %3186 = vmatmul.f32.gmra.mxu0 %v2950
  %v3187 = vpop.f32.mrf.mxu0
  %v3188 = vadd.f32 %v3159, %v3187
  %3189 = vmatmul.f32.gmra.mxu0 %v2954
  %v3190 = vpop.f32.mrf.mxu0
  %v3191 = vadd.f32 %v3162, %v3190
  %3192 = vmatmul.f32.gmra.mxu0 %v2958
  %v3193 = vpop.f32.mrf.mxu0
  %v3194 = vadd.f32 %v3165, %v3193
  %3195 = vmatmul.f32.gmra.mxu0 %v2957
  %v3196 = vpop.f32.mrf.mxu0
  %v3197 = vadd.f32 %v3168, %v3196
  %3198 = vdwg.mxu0
  %v3199 = vadd.f32 %v2759, %v3014
  %v3200 = vadd.f32 %v2817, %v3072
  %v3201 = vadd.f32 %v2875, %v3130
  %v3202 = vadd.f32 %v2933, %v3188
  %v3203 = vadd.f32 %v2762, %v3017
  %v3204 = vadd.f32 %v2820, %v3075
  %v3205 = vadd.f32 %v2878, %v3133
  %v3206 = vadd.f32 %v2936, %v3191
  %v3207 = vadd.f32 %v2765, %v3020
  %v3208 = vadd.f32 %v2823, %v3078
  %v3209 = vadd.f32 %v2881, %v3136
  %v3210 = vadd.f32 %v2939, %v3194
  %v3211 = vadd.f32 %v2768, %v3023
  %v3212 = vadd.f32 %v2826, %v3081
  %v3213 = vadd.f32 %v2884, %v3139
  %v3214 = vadd.f32 %v2942, %v3197
  %v3216 = vperm.slane %v2390, 0
  %v3217 = vperm.slane %v2390, 1
  %v3218 = vperm.slane %v2390, 2
  %v3219 = vperm.slane %v2390, 3
  %v3224 = vadd.f32 %v3199, %v3216
  %v3225 = vadd.f32 %v3200, %v3217
  %v3226 = vadd.f32 %v3201, %v3218
  %v3227 = vadd.f32 %v3202, %v3219
  %v3228 = vadd.f32 %v3203, %v3216
  %v3229 = vadd.f32 %v3204, %v3217
  %v3230 = vadd.f32 %v3205, %v3218
  %v3231 = vadd.f32 %v3206, %v3219
  %v3232 = vadd.f32 %v3207, %v3216
  %v3233 = vadd.f32 %v3208, %v3217
  %v3234 = vadd.f32 %v3209, %v3218
  %v3235 = vadd.f32 %v3210, %v3219
  %v3236 = vadd.f32 %v3211, %v3216
  %v3237 = vadd.f32 %v3212, %v3217
  %v3238 = vadd.f32 %v3213, %v3218
  %v3239 = vadd.f32 %v3214, %v3219
  %v3240 = vmax.f32 %v3224, 0.0
  %v3241 = vmax.f32 %v3225, 0.0
  %v3242 = vmax.f32 %v3226, 0.0
  %v3243 = vmax.f32 %v3227, 0.0
  %v3244 = vmax.f32 %v3228, 0.0
  %v3245 = vmax.f32 %v3229, 0.0
  %v3246 = vmax.f32 %v3230, 0.0
  %v3247 = vmax.f32 %v3231, 0.0
  %v3248 = vmax.f32 %v3232, 0.0
  %v3249 = vmax.f32 %v3233, 0.0
  %v3250 = vmax.f32 %v3234, 0.0
  %v3251 = vmax.f32 %v3235, 0.0
  %v3252 = vmax.f32 %v3236, 0.0
  %v3253 = vmax.f32 %v3237, 0.0
  %v3254 = vmax.f32 %v3238, 0.0
  %v3255 = vmax.f32 %v3239, 0.0
  %v3272 = vrot.slane %v3240, 1
  %v3273 = vrot.slane %v3244, 1
  %v3274 = vsel %vm2457, %v3272, %v3273
  %v3275 = vrot.slane %v3241, 1
  %v3276 = vrot.slane %v3245, 1
  %v3277 = vsel %vm2457, %v3275, %v3276
  %v3278 = vrot.slane %v3242, 1
  %v3279 = vrot.slane %v3246, 1
  %v3280 = vsel %vm2457, %v3278, %v3279
  %v3281 = vrot.slane %v3243, 1
  %v3282 = vrot.slane %v3247, 1
  %v3283 = vsel %vm2457, %v3281, %v3282
  %v3284 = vrot.slane %v3248, 1
  %v3285 = vsel %vm2457, %v3273, %v3284
  %v3286 = vrot.slane %v3249, 1
  %v3287 = vsel %vm2457, %v3276, %v3286
  %v3288 = vrot.slane %v3250, 1
  %v3289 = vsel %vm2457, %v3279, %v3288
  %v3290 = vrot.slane %v3251, 1
  %v3291 = vsel %vm2457, %v3282, %v3290
  %v3292 = vrot.slane %v3252, 1
  %v3293 = vsel %vm2457, %v3284, %v3292
  %v3294 = vrot.slane %v3253, 1
  %v3295 = vsel %vm2457, %v3286, %v3294
  %v3296 = vrot.slane %v3254, 1
  %v3297 = vsel %vm2457, %v3288, %v3296
  %v3298 = vrot.slane %v3255, 1
  %v3299 = vsel %vm2457, %v3290, %v3298
  %vm3312 = vcmask 785408
  %v3313 = vsel %vm3312, %v3283, 0
  %v3315 = vsel %vm3312, %v3291, 0
  %v3317 = vsel %vm3312, %v3299, 0
  %v3319 = vsel %vm3312, %v3298, 0
  %3321 = vmatpush.msra.mxu0 %v1969
  %3322 = vmatpush.msra.mxu0 %v1965
  %3323 = vmatpush.msra.mxu0 %v1961
  %3324 = vmatpush.msra.mxu0 %v1957
  %3325 = vmatpush.msra.mxu0 %v1953
  %3326 = vmatpush.msra.mxu0 %v1949
  %3327 = vmatpush.msra.mxu0 %v1945
  %3328 = vmatpush.msra.mxu0 %v1941
  %3329 = vmatpush.msra.mxu0 %v1937
  %3330 = vmatpush.msra.mxu0 %v1933
  %3331 = vmatpush.msra.mxu0 %v1929
  %3332 = vmatpush.msra.mxu0 %v1925
  %3333 = vmatpush.msra.mxu0 %v1921
  %3334 = vmatpush.msra.mxu0 %v1917
  %3335 = vmatpush.msra.mxu0 %v1913
  %3336 = vmatpush.msra.mxu0 %v1909
  %3337 = vmatmul.f32.gmra.mxu0 %v3274
  %v3338 = vpop.f32.mrf.mxu0
  %v3339 = vadd.f32 0.0, %v3338
  %3340 = vmatmul.f32.gmra.mxu0 %v3285
  %v3341 = vpop.f32.mrf.mxu0
  %v3342 = vadd.f32 0.0, %v3341
  %3343 = vmatmul.f32.gmra.mxu0 %v3293
  %v3344 = vpop.f32.mrf.mxu0
  %v3345 = vadd.f32 0.0, %v3344
  %3346 = vmatmul.f32.gmra.mxu0 %v3292
  %v3347 = vpop.f32.mrf.mxu0
  %v3348 = vadd.f32 0.0, %v3347
  %3349 = vdwg.mxu0
  %3350 = vmatpush.msra.mxu0 %v2033
  %3351 = vmatpush.msra.mxu0 %v2029
  %3352 = vmatpush.msra.mxu0 %v2025
  %3353 = vmatpush.msra.mxu0 %v2021
  %3354 = vmatpush.msra.mxu0 %v2017
  %3355 = vmatpush.msra.mxu0 %v2013
  %3356 = vmatpush.msra.mxu0 %v2009
  %3357 = vmatpush.msra.mxu0 %v2005
  %3358 = vmatpush.msra.mxu0 %v2001
  %3359 = vmatpush.msra.mxu0 %v1997
  %3360 = vmatpush.msra.mxu0 %v1993
  %3361 = vmatpush.msra.mxu0 %v1989
  %3362 = vmatpush.msra.mxu0 %v1985
  %3363 = vmatpush.msra.mxu0 %v1981
  %3364 = vmatpush.msra.mxu0 %v1977
  %3365 = vmatpush.msra.mxu0 %v1973
  %3366 = vmatmul.f32.gmra.mxu0 %v3277
  %v3367 = vpop.f32.mrf.mxu0
  %v3368 = vadd.f32 %v3339, %v3367
  %3369 = vmatmul.f32.gmra.mxu0 %v3287
  %v3370 = vpop.f32.mrf.mxu0
  %v3371 = vadd.f32 %v3342, %v3370
  %3372 = vmatmul.f32.gmra.mxu0 %v3295
  %v3373 = vpop.f32.mrf.mxu0
  %v3374 = vadd.f32 %v3345, %v3373
  %3375 = vmatmul.f32.gmra.mxu0 %v3294
  %v3376 = vpop.f32.mrf.mxu0
  %v3377 = vadd.f32 %v3348, %v3376
  %3378 = vdwg.mxu0
  %3379 = vmatpush.msra.mxu0 %v2097
  %3380 = vmatpush.msra.mxu0 %v2093
  %3381 = vmatpush.msra.mxu0 %v2089
  %3382 = vmatpush.msra.mxu0 %v2085
  %3383 = vmatpush.msra.mxu0 %v2081
  %3384 = vmatpush.msra.mxu0 %v2077
  %3385 = vmatpush.msra.mxu0 %v2073
  %3386 = vmatpush.msra.mxu0 %v2069
  %3387 = vmatpush.msra.mxu0 %v2065
  %3388 = vmatpush.msra.mxu0 %v2061
  %3389 = vmatpush.msra.mxu0 %v2057
  %3390 = vmatpush.msra.mxu0 %v2053
  %3391 = vmatpush.msra.mxu0 %v2049
  %3392 = vmatpush.msra.mxu0 %v2045
  %3393 = vmatpush.msra.mxu0 %v2041
  %3394 = vmatpush.msra.mxu0 %v2037
  %3395 = vmatmul.f32.gmra.mxu0 %v3280
  %v3396 = vpop.f32.mrf.mxu0
  %v3397 = vadd.f32 %v3368, %v3396
  %3398 = vmatmul.f32.gmra.mxu0 %v3289
  %v3399 = vpop.f32.mrf.mxu0
  %v3400 = vadd.f32 %v3371, %v3399
  %3401 = vmatmul.f32.gmra.mxu0 %v3297
  %v3402 = vpop.f32.mrf.mxu0
  %v3403 = vadd.f32 %v3374, %v3402
  %3404 = vmatmul.f32.gmra.mxu0 %v3296
  %v3405 = vpop.f32.mrf.mxu0
  %v3406 = vadd.f32 %v3377, %v3405
  %3407 = vdwg.mxu0
  %3408 = vmatpush.msra.mxu0 0.0
  %3409 = vmatpush.msra.mxu0 0.0
  %3410 = vmatpush.msra.mxu0 0.0
  %3411 = vmatpush.msra.mxu0 0.0
  %3412 = vmatpush.msra.mxu0 %v2145
  %3413 = vmatpush.msra.mxu0 %v2141
  %3414 = vmatpush.msra.mxu0 %v2137
  %3415 = vmatpush.msra.mxu0 %v2133
  %3416 = vmatpush.msra.mxu0 %v2129
  %3417 = vmatpush.msra.mxu0 %v2125
  %3418 = vmatpush.msra.mxu0 %v2121
  %3419 = vmatpush.msra.mxu0 %v2117
  %3420 = vmatpush.msra.mxu0 %v2113
  %3421 = vmatpush.msra.mxu0 %v2109
  %3422 = vmatpush.msra.mxu0 %v2105
  %3423 = vmatpush.msra.mxu0 %v2101
  %3424 = vmatmul.f32.gmra.mxu0 %v3313
  %v3425 = vpop.f32.mrf.mxu0
  %v3426 = vadd.f32 %v3397, %v3425
  %3427 = vmatmul.f32.gmra.mxu0 %v3315
  %v3428 = vpop.f32.mrf.mxu0
  %v3429 = vadd.f32 %v3400, %v3428
  %3430 = vmatmul.f32.gmra.mxu0 %v3317
  %v3431 = vpop.f32.mrf.mxu0
  %v3432 = vadd.f32 %v3403, %v3431
  %3433 = vmatmul.f32.gmra.mxu0 %v3319
  %v3434 = vpop.f32.mrf.mxu0
  %v3435 = vadd.f32 %v3406, %v3434
  %3436 = vdwg.mxu0
  %3437 = vmatpush.msra.mxu0 %v1970
  %3438 = vmatpush.msra.mxu0 %v1966
  %3439 = vmatpush.msra.mxu0 %v1962
  %3440 = vmatpush.msra.mxu0 %v1958
  %3441 = vmatpush.msra.mxu0 %v1954
  %3442 = vmatpush.msra.mxu0 %v1950
  %3443 = vmatpush.msra.mxu0 %v1946
  %3444 = vmatpush.msra.mxu0 %v1942
  %3445 = vmatpush.msra.mxu0 %v1938
  %3446 = vmatpush.msra.mxu0 %v1934
  %3447 = vmatpush.msra.mxu0 %v1930
  %3448 = vmatpush.msra.mxu0 %v1926
  %3449 = vmatpush.msra.mxu0 %v1922
  %3450 = vmatpush.msra.mxu0 %v1918
  %3451 = vmatpush.msra.mxu0 %v1914
  %3452 = vmatpush.msra.mxu0 %v1910
  %3453 = vmatmul.f32.gmra.mxu0 %v3274
  %v3454 = vpop.f32.mrf.mxu0
  %v3455 = vadd.f32 0.0, %v3454
  %3456 = vmatmul.f32.gmra.mxu0 %v3285
  %v3457 = vpop.f32.mrf.mxu0
  %v3458 = vadd.f32 0.0, %v3457
  %3459 = vmatmul.f32.gmra.mxu0 %v3293
  %v3460 = vpop.f32.mrf.mxu0
  %v3461 = vadd.f32 0.0, %v3460
  %3462 = vmatmul.f32.gmra.mxu0 %v3292
  %v3463 = vpop.f32.mrf.mxu0
  %v3464 = vadd.f32 0.0, %v3463
  %3465 = vdwg.mxu0
  %3466 = vmatpush.msra.mxu0 %v2034
  %3467 = vmatpush.msra.mxu0 %v2030
  %3468 = vmatpush.msra.mxu0 %v2026
  %3469 = vmatpush.msra.mxu0 %v2022
  %3470 = vmatpush.msra.mxu0 %v2018
  %3471 = vmatpush.msra.mxu0 %v2014
  %3472 = vmatpush.msra.mxu0 %v2010
  %3473 = vmatpush.msra.mxu0 %v2006
  %3474 = vmatpush.msra.mxu0 %v2002
  %3475 = vmatpush.msra.mxu0 %v1998
  %3476 = vmatpush.msra.mxu0 %v1994
  %3477 = vmatpush.msra.mxu0 %v1990
  %3478 = vmatpush.msra.mxu0 %v1986
  %3479 = vmatpush.msra.mxu0 %v1982
  %3480 = vmatpush.msra.mxu0 %v1978
  %3481 = vmatpush.msra.mxu0 %v1974
  %3482 = vmatmul.f32.gmra.mxu0 %v3277
  %v3483 = vpop.f32.mrf.mxu0
  %v3484 = vadd.f32 %v3455, %v3483
  %3485 = vmatmul.f32.gmra.mxu0 %v3287
  %v3486 = vpop.f32.mrf.mxu0
  %v3487 = vadd.f32 %v3458, %v3486
  %3488 = vmatmul.f32.gmra.mxu0 %v3295
  %v3489 = vpop.f32.mrf.mxu0
  %v3490 = vadd.f32 %v3461, %v3489
  %3491 = vmatmul.f32.gmra.mxu0 %v3294
  %v3492 = vpop.f32.mrf.mxu0
  %v3493 = vadd.f32 %v3464, %v3492
  %3494 = vdwg.mxu0
  %3495 = vmatpush.msra.mxu0 %v2098
  %3496 = vmatpush.msra.mxu0 %v2094
  %3497 = vmatpush.msra.mxu0 %v2090
  %3498 = vmatpush.msra.mxu0 %v2086
  %3499 = vmatpush.msra.mxu0 %v2082
  %3500 = vmatpush.msra.mxu0 %v2078
  %3501 = vmatpush.msra.mxu0 %v2074
  %3502 = vmatpush.msra.mxu0 %v2070
  %3503 = vmatpush.msra.mxu0 %v2066
  %3504 = vmatpush.msra.mxu0 %v2062
  %3505 = vmatpush.msra.mxu0 %v2058
  %3506 = vmatpush.msra.mxu0 %v2054
  %3507 = vmatpush.msra.mxu0 %v2050
  %3508 = vmatpush.msra.mxu0 %v2046
  %3509 = vmatpush.msra.mxu0 %v2042
  %3510 = vmatpush.msra.mxu0 %v2038
  %3511 = vmatmul.f32.gmra.mxu0 %v3280
  %v3512 = vpop.f32.mrf.mxu0
  %v3513 = vadd.f32 %v3484, %v3512
  %3514 = vmatmul.f32.gmra.mxu0 %v3289
  %v3515 = vpop.f32.mrf.mxu0
  %v3516 = vadd.f32 %v3487, %v3515
  %3517 = vmatmul.f32.gmra.mxu0 %v3297
  %v3518 = vpop.f32.mrf.mxu0
  %v3519 = vadd.f32 %v3490, %v3518
  %3520 = vmatmul.f32.gmra.mxu0 %v3296
  %v3521 = vpop.f32.mrf.mxu0
  %v3522 = vadd.f32 %v3493, %v3521
  %3523 = vdwg.mxu0
  %3524 = vmatpush.msra.mxu0 0.0
  %3525 = vmatpush.msra.mxu0 0.0
  %3526 = vmatpush.msra.mxu0 0.0
  %3527 = vmatpush.msra.mxu0 0.0
  %3528 = vmatpush.msra.mxu0 %v2146
  %3529 = vmatpush.msra.mxu0 %v2142
  %3530 = vmatpush.msra.mxu0 %v2138
  %3531 = vmatpush.msra.mxu0 %v2134
  %3532 = vmatpush.msra.mxu0 %v2130
  %3533 = vmatpush.msra.mxu0 %v2126
  %3534 = vmatpush.msra.mxu0 %v2122
  %3535 = vmatpush.msra.mxu0 %v2118
  %3536 = vmatpush.msra.mxu0 %v2114
  %3537 = vmatpush.msra.mxu0 %v2110
  %3538 = vmatpush.msra.mxu0 %v2106
  %3539 = vmatpush.msra.mxu0 %v2102
  %3540 = vmatmul.f32.gmra.mxu0 %v3313
  %v3541 = vpop.f32.mrf.mxu0
  %v3542 = vadd.f32 %v3513, %v3541
  %3543 = vmatmul.f32.gmra.mxu0 %v3315
  %v3544 = vpop.f32.mrf.mxu0
  %v3545 = vadd.f32 %v3516, %v3544
  %3546 = vmatmul.f32.gmra.mxu0 %v3317
  %v3547 = vpop.f32.mrf.mxu0
  %v3548 = vadd.f32 %v3519, %v3547
  %3549 = vmatmul.f32.gmra.mxu0 %v3319
  %v3550 = vpop.f32.mrf.mxu0
  %v3551 = vadd.f32 %v3522, %v3550
  %3552 = vdwg.mxu0
  %3553 = vmatpush.msra.mxu0 %v1971
  %3554 = vmatpush.msra.mxu0 %v1967
  %3555 = vmatpush.msra.mxu0 %v1963
  %3556 = vmatpush.msra.mxu0 %v1959
  %3557 = vmatpush.msra.mxu0 %v1955
  %3558 = vmatpush.msra.mxu0 %v1951
  %3559 = vmatpush.msra.mxu0 %v1947
  %3560 = vmatpush.msra.mxu0 %v1943
  %3561 = vmatpush.msra.mxu0 %v1939
  %3562 = vmatpush.msra.mxu0 %v1935
  %3563 = vmatpush.msra.mxu0 %v1931
  %3564 = vmatpush.msra.mxu0 %v1927
  %3565 = vmatpush.msra.mxu0 %v1923
  %3566 = vmatpush.msra.mxu0 %v1919
  %3567 = vmatpush.msra.mxu0 %v1915
  %3568 = vmatpush.msra.mxu0 %v1911
  %3569 = vmatmul.f32.gmra.mxu0 %v3274
  %v3570 = vpop.f32.mrf.mxu0
  %v3571 = vadd.f32 0.0, %v3570
  %3572 = vmatmul.f32.gmra.mxu0 %v3285
  %v3573 = vpop.f32.mrf.mxu0
  %v3574 = vadd.f32 0.0, %v3573
  %3575 = vmatmul.f32.gmra.mxu0 %v3293
  %v3576 = vpop.f32.mrf.mxu0
  %v3577 = vadd.f32 0.0, %v3576
  %3578 = vmatmul.f32.gmra.mxu0 %v3292
  %v3579 = vpop.f32.mrf.mxu0
  %v3580 = vadd.f32 0.0, %v3579
  %3581 = vdwg.mxu0
  %3582 = vmatpush.msra.mxu0 %v2035
  %3583 = vmatpush.msra.mxu0 %v2031
  %3584 = vmatpush.msra.mxu0 %v2027
  %3585 = vmatpush.msra.mxu0 %v2023
  %3586 = vmatpush.msra.mxu0 %v2019
  %3587 = vmatpush.msra.mxu0 %v2015
  %3588 = vmatpush.msra.mxu0 %v2011
  %3589 = vmatpush.msra.mxu0 %v2007
  %3590 = vmatpush.msra.mxu0 %v2003
  %3591 = vmatpush.msra.mxu0 %v1999
  %3592 = vmatpush.msra.mxu0 %v1995
  %3593 = vmatpush.msra.mxu0 %v1991
  %3594 = vmatpush.msra.mxu0 %v1987
  %3595 = vmatpush.msra.mxu0 %v1983
  %3596 = vmatpush.msra.mxu0 %v1979
  %3597 = vmatpush.msra.mxu0 %v1975
  %3598 = vmatmul.f32.gmra.mxu0 %v3277
  %v3599 = vpop.f32.mrf.mxu0
  %v3600 = vadd.f32 %v3571, %v3599
  %3601 = vmatmul.f32.gmra.mxu0 %v3287
  %v3602 = vpop.f32.mrf.mxu0
  %v3603 = vadd.f32 %v3574, %v3602
  %3604 = vmatmul.f32.gmra.mxu0 %v3295
  %v3605 = vpop.f32.mrf.mxu0
  %v3606 = vadd.f32 %v3577, %v3605
  %3607 = vmatmul.f32.gmra.mxu0 %v3294
  %v3608 = vpop.f32.mrf.mxu0
  %v3609 = vadd.f32 %v3580, %v3608
  %3610 = vdwg.mxu0
  %3611 = vmatpush.msra.mxu0 %v2099
  %3612 = vmatpush.msra.mxu0 %v2095
  %3613 = vmatpush.msra.mxu0 %v2091
  %3614 = vmatpush.msra.mxu0 %v2087
  %3615 = vmatpush.msra.mxu0 %v2083
  %3616 = vmatpush.msra.mxu0 %v2079
  %3617 = vmatpush.msra.mxu0 %v2075
  %3618 = vmatpush.msra.mxu0 %v2071
  %3619 = vmatpush.msra.mxu0 %v2067
  %3620 = vmatpush.msra.mxu0 %v2063
  %3621 = vmatpush.msra.mxu0 %v2059
  %3622 = vmatpush.msra.mxu0 %v2055
  %3623 = vmatpush.msra.mxu0 %v2051
  %3624 = vmatpush.msra.mxu0 %v2047
  %3625 = vmatpush.msra.mxu0 %v2043
  %3626 = vmatpush.msra.mxu0 %v2039
  %3627 = vmatmul.f32.gmra.mxu0 %v3280
  %v3628 = vpop.f32.mrf.mxu0
  %v3629 = vadd.f32 %v3600, %v3628
  %3630 = vmatmul.f32.gmra.mxu0 %v3289
  %v3631 = vpop.f32.mrf.mxu0
  %v3632 = vadd.f32 %v3603, %v3631
  %3633 = vmatmul.f32.gmra.mxu0 %v3297
  %v3634 = vpop.f32.mrf.mxu0
  %v3635 = vadd.f32 %v3606, %v3634
  %3636 = vmatmul.f32.gmra.mxu0 %v3296
  %v3637 = vpop.f32.mrf.mxu0
  %v3638 = vadd.f32 %v3609, %v3637
  %3639 = vdwg.mxu0
  %3640 = vmatpush.msra.mxu0 0.0
  %3641 = vmatpush.msra.mxu0 0.0
  %3642 = vmatpush.msra.mxu0 0.0
  %3643 = vmatpush.msra.mxu0 0.0
  %3644 = vmatpush.msra.mxu0 %v2147
  %3645 = vmatpush.msra.mxu0 %v2143
  %3646 = vmatpush.msra.mxu0 %v2139
  %3647 = vmatpush.msra.mxu0 %v2135
  %3648 = vmatpush.msra.mxu0 %v2131
  %3649 = vmatpush.msra.mxu0 %v2127
  %3650 = vmatpush.msra.mxu0 %v2123
  %3651 = vmatpush.msra.mxu0 %v2119
  %3652 = vmatpush.msra.mxu0 %v2115
  %3653 = vmatpush.msra.mxu0 %v2111
  %3654 = vmatpush.msra.mxu0 %v2107
  %3655 = vmatpush.msra.mxu0 %v2103
  %3656 = vmatmul.f32.gmra.mxu0 %v3313
  %v3657 = vpop.f32.mrf.mxu0
  %v3658 = vadd.f32 %v3629, %v3657
  %3659 = vmatmul.f32.gmra.mxu0 %v3315
  %v3660 = vpop.f32.mrf.mxu0
  %v3661 = vadd.f32 %v3632, %v3660
  %3662 = vmatmul.f32.gmra.mxu0 %v3317
  %v3663 = vpop.f32.mrf.mxu0
  %v3664 = vadd.f32 %v3635, %v3663
  %3665 = vmatmul.f32.gmra.mxu0 %v3319
  %v3666 = vpop.f32.mrf.mxu0
  %v3667 = vadd.f32 %v3638, %v3666
  %3668 = vdwg.mxu0
  %3669 = vmatpush.msra.mxu0 %v1972
  %3670 = vmatpush.msra.mxu0 %v1968
  %3671 = vmatpush.msra.mxu0 %v1964
  %3672 = vmatpush.msra.mxu0 %v1960
  %3673 = vmatpush.msra.mxu0 %v1956
  %3674 = vmatpush.msra.mxu0 %v1952
  %3675 = vmatpush.msra.mxu0 %v1948
  %3676 = vmatpush.msra.mxu0 %v1944
  %3677 = vmatpush.msra.mxu0 %v1940
  %3678 = vmatpush.msra.mxu0 %v1936
  %3679 = vmatpush.msra.mxu0 %v1932
  %3680 = vmatpush.msra.mxu0 %v1928
  %3681 = vmatpush.msra.mxu0 %v1924
  %3682 = vmatpush.msra.mxu0 %v1920
  %3683 = vmatpush.msra.mxu0 %v1916
  %3684 = vmatpush.msra.mxu0 %v1912
  %3685 = vmatmul.f32.gmra.mxu0 %v3274
  %v3686 = vpop.f32.mrf.mxu0
  %v3687 = vadd.f32 0.0, %v3686
  %3688 = vmatmul.f32.gmra.mxu0 %v3285
  %v3689 = vpop.f32.mrf.mxu0
  %v3690 = vadd.f32 0.0, %v3689
  %3691 = vmatmul.f32.gmra.mxu0 %v3293
  %v3692 = vpop.f32.mrf.mxu0
  %v3693 = vadd.f32 0.0, %v3692
  %3694 = vmatmul.f32.gmra.mxu0 %v3292
  %v3695 = vpop.f32.mrf.mxu0
  %v3696 = vadd.f32 0.0, %v3695
  %3697 = vdwg.mxu0
  %3698 = vmatpush.msra.mxu0 %v2036
  %3699 = vmatpush.msra.mxu0 %v2032
  %3700 = vmatpush.msra.mxu0 %v2028
  %3701 = vmatpush.msra.mxu0 %v2024
  %3702 = vmatpush.msra.mxu0 %v2020
  %3703 = vmatpush.msra.mxu0 %v2016
  %3704 = vmatpush.msra.mxu0 %v2012
  %3705 = vmatpush.msra.mxu0 %v2008
  %3706 = vmatpush.msra.mxu0 %v2004
  %3707 = vmatpush.msra.mxu0 %v2000
  %3708 = vmatpush.msra.mxu0 %v1996
  %3709 = vmatpush.msra.mxu0 %v1992
  %3710 = vmatpush.msra.mxu0 %v1988
  %3711 = vmatpush.msra.mxu0 %v1984
  %3712 = vmatpush.msra.mxu0 %v1980
  %3713 = vmatpush.msra.mxu0 %v1976
  %3714 = vmatmul.f32.gmra.mxu0 %v3277
  %v3715 = vpop.f32.mrf.mxu0
  %v3716 = vadd.f32 %v3687, %v3715
  %3717 = vmatmul.f32.gmra.mxu0 %v3287
  %v3718 = vpop.f32.mrf.mxu0
  %v3719 = vadd.f32 %v3690, %v3718
  %3720 = vmatmul.f32.gmra.mxu0 %v3295
  %v3721 = vpop.f32.mrf.mxu0
  %v3722 = vadd.f32 %v3693, %v3721
  %3723 = vmatmul.f32.gmra.mxu0 %v3294
  %v3724 = vpop.f32.mrf.mxu0
  %v3725 = vadd.f32 %v3696, %v3724
  %3726 = vdwg.mxu0
  %3727 = vmatpush.msra.mxu0 %v2100
  %3728 = vmatpush.msra.mxu0 %v2096
  %3729 = vmatpush.msra.mxu0 %v2092
  %3730 = vmatpush.msra.mxu0 %v2088
  %3731 = vmatpush.msra.mxu0 %v2084
  %3732 = vmatpush.msra.mxu0 %v2080
  %3733 = vmatpush.msra.mxu0 %v2076
  %3734 = vmatpush.msra.mxu0 %v2072
  %3735 = vmatpush.msra.mxu0 %v2068
  %3736 = vmatpush.msra.mxu0 %v2064
  %3737 = vmatpush.msra.mxu0 %v2060
  %3738 = vmatpush.msra.mxu0 %v2056
  %3739 = vmatpush.msra.mxu0 %v2052
  %3740 = vmatpush.msra.mxu0 %v2048
  %3741 = vmatpush.msra.mxu0 %v2044
  %3742 = vmatpush.msra.mxu0 %v2040
  %3743 = vmatmul.f32.gmra.mxu0 %v3280
  %v3744 = vpop.f32.mrf.mxu0
  %v3745 = vadd.f32 %v3716, %v3744
  %3746 = vmatmul.f32.gmra.mxu0 %v3289
  %v3747 = vpop.f32.mrf.mxu0
  %v3748 = vadd.f32 %v3719, %v3747
  %3749 = vmatmul.f32.gmra.mxu0 %v3297
  %v3750 = vpop.f32.mrf.mxu0
  %v3751 = vadd.f32 %v3722, %v3750
  %3752 = vmatmul.f32.gmra.mxu0 %v3296
  %v3753 = vpop.f32.mrf.mxu0
  %v3754 = vadd.f32 %v3725, %v3753
  %3755 = vdwg.mxu0
  %3756 = vmatpush.msra.mxu0 0.0
  %3757 = vmatpush.msra.mxu0 0.0
  %3758 = vmatpush.msra.mxu0 0.0
  %3759 = vmatpush.msra.mxu0 0.0
  %3760 = vmatpush.msra.mxu0 %v2148
  %3761 = vmatpush.msra.mxu0 %v2144
  %3762 = vmatpush.msra.mxu0 %v2140
  %3763 = vmatpush.msra.mxu0 %v2136
  %3764 = vmatpush.msra.mxu0 %v2132
  %3765 = vmatpush.msra.mxu0 %v2128
  %3766 = vmatpush.msra.mxu0 %v2124
  %3767 = vmatpush.msra.mxu0 %v2120
  %3768 = vmatpush.msra.mxu0 %v2116
  %3769 = vmatpush.msra.mxu0 %v2112
  %3770 = vmatpush.msra.mxu0 %v2108
  %3771 = vmatpush.msra.mxu0 %v2104
  %3772 = vmatmul.f32.gmra.mxu0 %v3313
  %v3773 = vpop.f32.mrf.mxu0
  %v3774 = vadd.f32 %v3745, %v3773
  %3775 = vmatmul.f32.gmra.mxu0 %v3315
  %v3776 = vpop.f32.mrf.mxu0
  %v3777 = vadd.f32 %v3748, %v3776
  %3778 = vmatmul.f32.gmra.mxu0 %v3317
  %v3779 = vpop.f32.mrf.mxu0
  %v3780 = vadd.f32 %v3751, %v3779
  %3781 = vmatmul.f32.gmra.mxu0 %v3319
  %v3782 = vpop.f32.mrf.mxu0
  %v3783 = vadd.f32 %v3754, %v3782
  %3784 = vdwg.mxu0
  %v3785 = vsel %vm3312, %v3243, 0
  %v3787 = vsel %vm3312, %v3247, 0
  %v3789 = vsel %vm3312, %v3251, 0
  %v3791 = vsel %vm3312, %v3255, 0
  %3793 = vmatpush.msra.mxu0 %v1728
  %3794 = vmatpush.msra.mxu0 %v1724
  %3795 = vmatpush.msra.mxu0 %v1720
  %3796 = vmatpush.msra.mxu0 %v1716
  %3797 = vmatpush.msra.mxu0 %v1712
  %3798 = vmatpush.msra.mxu0 %v1708
  %3799 = vmatpush.msra.mxu0 %v1704
  %3800 = vmatpush.msra.mxu0 %v1700
  %3801 = vmatpush.msra.mxu0 %v1696
  %3802 = vmatpush.msra.mxu0 %v1692
  %3803 = vmatpush.msra.mxu0 %v1688
  %3804 = vmatpush.msra.mxu0 %v1684
  %3805 = vmatpush.msra.mxu0 %v1680
  %3806 = vmatpush.msra.mxu0 %v1676
  %3807 = vmatpush.msra.mxu0 %v1672
  %3808 = vmatpush.msra.mxu0 %v1668
  %3809 = vmatmul.f32.gmra.mxu0 %v3240
  %v3810 = vpop.f32.mrf.mxu0
  %v3811 = vadd.f32 %v3426, %v3810
  %3812 = vmatmul.f32.gmra.mxu0 %v3244
  %v3813 = vpop.f32.mrf.mxu0
  %v3814 = vadd.f32 %v3429, %v3813
  %3815 = vmatmul.f32.gmra.mxu0 %v3248
  %v3816 = vpop.f32.mrf.mxu0
  %v3817 = vadd.f32 %v3432, %v3816
  %3818 = vmatmul.f32.gmra.mxu0 %v3252
  %v3819 = vpop.f32.mrf.mxu0
  %v3820 = vadd.f32 %v3435, %v3819
  %3821 = vdwg.mxu0
  %3822 = vmatpush.msra.mxu0 %v1792
  %3823 = vmatpush.msra.mxu0 %v1788
  %3824 = vmatpush.msra.mxu0 %v1784
  %3825 = vmatpush.msra.mxu0 %v1780
  %3826 = vmatpush.msra.mxu0 %v1776
  %3827 = vmatpush.msra.mxu0 %v1772
  %3828 = vmatpush.msra.mxu0 %v1768
  %3829 = vmatpush.msra.mxu0 %v1764
  %3830 = vmatpush.msra.mxu0 %v1760
  %3831 = vmatpush.msra.mxu0 %v1756
  %3832 = vmatpush.msra.mxu0 %v1752
  %3833 = vmatpush.msra.mxu0 %v1748
  %3834 = vmatpush.msra.mxu0 %v1744
  %3835 = vmatpush.msra.mxu0 %v1740
  %3836 = vmatpush.msra.mxu0 %v1736
  %3837 = vmatpush.msra.mxu0 %v1732
  %3838 = vmatmul.f32.gmra.mxu0 %v3241
  %v3839 = vpop.f32.mrf.mxu0
  %v3840 = vadd.f32 %v3811, %v3839
  %3841 = vmatmul.f32.gmra.mxu0 %v3245
  %v3842 = vpop.f32.mrf.mxu0
  %v3843 = vadd.f32 %v3814, %v3842
  %3844 = vmatmul.f32.gmra.mxu0 %v3249
  %v3845 = vpop.f32.mrf.mxu0
  %v3846 = vadd.f32 %v3817, %v3845
  %3847 = vmatmul.f32.gmra.mxu0 %v3253
  %v3848 = vpop.f32.mrf.mxu0
  %v3849 = vadd.f32 %v3820, %v3848
  %3850 = vdwg.mxu0
  %3851 = vmatpush.msra.mxu0 %v1856
  %3852 = vmatpush.msra.mxu0 %v1852
  %3853 = vmatpush.msra.mxu0 %v1848
  %3854 = vmatpush.msra.mxu0 %v1844
  %3855 = vmatpush.msra.mxu0 %v1840
  %3856 = vmatpush.msra.mxu0 %v1836
  %3857 = vmatpush.msra.mxu0 %v1832
  %3858 = vmatpush.msra.mxu0 %v1828
  %3859 = vmatpush.msra.mxu0 %v1824
  %3860 = vmatpush.msra.mxu0 %v1820
  %3861 = vmatpush.msra.mxu0 %v1816
  %3862 = vmatpush.msra.mxu0 %v1812
  %3863 = vmatpush.msra.mxu0 %v1808
  %3864 = vmatpush.msra.mxu0 %v1804
  %3865 = vmatpush.msra.mxu0 %v1800
  %3866 = vmatpush.msra.mxu0 %v1796
  %3867 = vmatmul.f32.gmra.mxu0 %v3242
  %v3868 = vpop.f32.mrf.mxu0
  %v3869 = vadd.f32 %v3840, %v3868
  %3870 = vmatmul.f32.gmra.mxu0 %v3246
  %v3871 = vpop.f32.mrf.mxu0
  %v3872 = vadd.f32 %v3843, %v3871
  %3873 = vmatmul.f32.gmra.mxu0 %v3250
  %v3874 = vpop.f32.mrf.mxu0
  %v3875 = vadd.f32 %v3846, %v3874
  %3876 = vmatmul.f32.gmra.mxu0 %v3254
  %v3877 = vpop.f32.mrf.mxu0
  %v3878 = vadd.f32 %v3849, %v3877
  %3879 = vdwg.mxu0
  %3880 = vmatpush.msra.mxu0 0.0
  %3881 = vmatpush.msra.mxu0 0.0
  %3882 = vmatpush.msra.mxu0 0.0
  %3883 = vmatpush.msra.mxu0 0.0
  %3884 = vmatpush.msra.mxu0 %v1904
  %3885 = vmatpush.msra.mxu0 %v1900
  %3886 = vmatpush.msra.mxu0 %v1896
  %3887 = vmatpush.msra.mxu0 %v1892
  %3888 = vmatpush.msra.mxu0 %v1888
  %3889 = vmatpush.msra.mxu0 %v1884
  %3890 = vmatpush.msra.mxu0 %v1880
  %3891 = vmatpush.msra.mxu0 %v1876
  %3892 = vmatpush.msra.mxu0 %v1872
  %3893 = vmatpush.msra.mxu0 %v1868
  %3894 = vmatpush.msra.mxu0 %v1864
  %3895 = vmatpush.msra.mxu0 %v1860
  %3896 = vmatmul.f32.gmra.mxu0 %v3785
  %v3897 = vpop.f32.mrf.mxu0
  %v3898 = vadd.f32 %v3869, %v3897
  %3899 = vmatmul.f32.gmra.mxu0 %v3787
  %v3900 = vpop.f32.mrf.mxu0
  %v3901 = vadd.f32 %v3872, %v3900
  %3902 = vmatmul.f32.gmra.mxu0 %v3789
  %v3903 = vpop.f32.mrf.mxu0
  %v3904 = vadd.f32 %v3875, %v3903
  %3905 = vmatmul.f32.gmra.mxu0 %v3791
  %v3906 = vpop.f32.mrf.mxu0
  %v3907 = vadd.f32 %v3878, %v3906
  %3908 = vdwg.mxu0
  %3909 = vmatpush.msra.mxu0 %v1729
  %3910 = vmatpush.msra.mxu0 %v1725
  %3911 = vmatpush.msra.mxu0 %v1721
  %3912 = vmatpush.msra.mxu0 %v1717
  %3913 = vmatpush.msra.mxu0 %v1713
  %3914 = vmatpush.msra.mxu0 %v1709
  %3915 = vmatpush.msra.mxu0 %v1705
  %3916 = vmatpush.msra.mxu0 %v1701
  %3917 = vmatpush.msra.mxu0 %v1697
  %3918 = vmatpush.msra.mxu0 %v1693
  %3919 = vmatpush.msra.mxu0 %v1689
  %3920 = vmatpush.msra.mxu0 %v1685
  %3921 = vmatpush.msra.mxu0 %v1681
  %3922 = vmatpush.msra.mxu0 %v1677
  %3923 = vmatpush.msra.mxu0 %v1673
  %3924 = vmatpush.msra.mxu0 %v1669
  %3925 = vmatmul.f32.gmra.mxu0 %v3240
  %v3926 = vpop.f32.mrf.mxu0
  %v3927 = vadd.f32 %v3542, %v3926
  %3928 = vmatmul.f32.gmra.mxu0 %v3244
  %v3929 = vpop.f32.mrf.mxu0
  %v3930 = vadd.f32 %v3545, %v3929
  %3931 = vmatmul.f32.gmra.mxu0 %v3248
  %v3932 = vpop.f32.mrf.mxu0
  %v3933 = vadd.f32 %v3548, %v3932
  %3934 = vmatmul.f32.gmra.mxu0 %v3252
  %v3935 = vpop.f32.mrf.mxu0
  %v3936 = vadd.f32 %v3551, %v3935
  %3937 = vdwg.mxu0
  %3938 = vmatpush.msra.mxu0 %v1793
  %3939 = vmatpush.msra.mxu0 %v1789
  %3940 = vmatpush.msra.mxu0 %v1785
  %3941 = vmatpush.msra.mxu0 %v1781
  %3942 = vmatpush.msra.mxu0 %v1777
  %3943 = vmatpush.msra.mxu0 %v1773
  %3944 = vmatpush.msra.mxu0 %v1769
  %3945 = vmatpush.msra.mxu0 %v1765
  %3946 = vmatpush.msra.mxu0 %v1761
  %3947 = vmatpush.msra.mxu0 %v1757
  %3948 = vmatpush.msra.mxu0 %v1753
  %3949 = vmatpush.msra.mxu0 %v1749
  %3950 = vmatpush.msra.mxu0 %v1745
  %3951 = vmatpush.msra.mxu0 %v1741
  %3952 = vmatpush.msra.mxu0 %v1737
  %3953 = vmatpush.msra.mxu0 %v1733
  %3954 = vmatmul.f32.gmra.mxu0 %v3241
  %v3955 = vpop.f32.mrf.mxu0
  %v3956 = vadd.f32 %v3927, %v3955
  %3957 = vmatmul.f32.gmra.mxu0 %v3245
  %v3958 = vpop.f32.mrf.mxu0
  %v3959 = vadd.f32 %v3930, %v3958
  %3960 = vmatmul.f32.gmra.mxu0 %v3249
  %v3961 = vpop.f32.mrf.mxu0
  %v3962 = vadd.f32 %v3933, %v3961
  %3963 = vmatmul.f32.gmra.mxu0 %v3253
  %v3964 = vpop.f32.mrf.mxu0
  %v3965 = vadd.f32 %v3936, %v3964
  %3966 = vdwg.mxu0
  %3967 = vmatpush.msra.mxu0 %v1857
  %3968 = vmatpush.msra.mxu0 %v1853
  %3969 = vmatpush.msra.mxu0 %v1849
  %3970 = vmatpush.msra.mxu0 %v1845
  %3971 = vmatpush.msra.mxu0 %v1841
  %3972 = vmatpush.msra.mxu0 %v1837
  %3973 = vmatpush.msra.mxu0 %v1833
  %3974 = vmatpush.msra.mxu0 %v1829
  %3975 = vmatpush.msra.mxu0 %v1825
  %3976 = vmatpush.msra.mxu0 %v1821
  %3977 = vmatpush.msra.mxu0 %v1817
  %3978 = vmatpush.msra.mxu0 %v1813
  %3979 = vmatpush.msra.mxu0 %v1809
  %3980 = vmatpush.msra.mxu0 %v1805
  %3981 = vmatpush.msra.mxu0 %v1801
  %3982 = vmatpush.msra.mxu0 %v1797
  %3983 = vmatmul.f32.gmra.mxu0 %v3242
  %v3984 = vpop.f32.mrf.mxu0
  %v3985 = vadd.f32 %v3956, %v3984
  %3986 = vmatmul.f32.gmra.mxu0 %v3246
  %v3987 = vpop.f32.mrf.mxu0
  %v3988 = vadd.f32 %v3959, %v3987
  %3989 = vmatmul.f32.gmra.mxu0 %v3250
  %v3990 = vpop.f32.mrf.mxu0
  %v3991 = vadd.f32 %v3962, %v3990
  %3992 = vmatmul.f32.gmra.mxu0 %v3254
  %v3993 = vpop.f32.mrf.mxu0
  %v3994 = vadd.f32 %v3965, %v3993
  %3995 = vdwg.mxu0
  %3996 = vmatpush.msra.mxu0 0.0
  %3997 = vmatpush.msra.mxu0 0.0
  %3998 = vmatpush.msra.mxu0 0.0
  %3999 = vmatpush.msra.mxu0 0.0
  %4000 = vmatpush.msra.mxu0 %v1905
  %4001 = vmatpush.msra.mxu0 %v1901
  %4002 = vmatpush.msra.mxu0 %v1897
  %4003 = vmatpush.msra.mxu0 %v1893
  %4004 = vmatpush.msra.mxu0 %v1889
  %4005 = vmatpush.msra.mxu0 %v1885
  %4006 = vmatpush.msra.mxu0 %v1881
  %4007 = vmatpush.msra.mxu0 %v1877
  %4008 = vmatpush.msra.mxu0 %v1873
  %4009 = vmatpush.msra.mxu0 %v1869
  %4010 = vmatpush.msra.mxu0 %v1865
  %4011 = vmatpush.msra.mxu0 %v1861
  %4012 = vmatmul.f32.gmra.mxu0 %v3785
  %v4013 = vpop.f32.mrf.mxu0
  %v4014 = vadd.f32 %v3985, %v4013
  %4015 = vmatmul.f32.gmra.mxu0 %v3787
  %v4016 = vpop.f32.mrf.mxu0
  %v4017 = vadd.f32 %v3988, %v4016
  %4018 = vmatmul.f32.gmra.mxu0 %v3789
  %v4019 = vpop.f32.mrf.mxu0
  %v4020 = vadd.f32 %v3991, %v4019
  %4021 = vmatmul.f32.gmra.mxu0 %v3791
  %v4022 = vpop.f32.mrf.mxu0
  %v4023 = vadd.f32 %v3994, %v4022
  %4024 = vdwg.mxu0
  %4025 = vmatpush.msra.mxu0 %v1730
  %4026 = vmatpush.msra.mxu0 %v1726
  %4027 = vmatpush.msra.mxu0 %v1722
  %4028 = vmatpush.msra.mxu0 %v1718
  %4029 = vmatpush.msra.mxu0 %v1714
  %4030 = vmatpush.msra.mxu0 %v1710
  %4031 = vmatpush.msra.mxu0 %v1706
  %4032 = vmatpush.msra.mxu0 %v1702
  %4033 = vmatpush.msra.mxu0 %v1698
  %4034 = vmatpush.msra.mxu0 %v1694
  %4035 = vmatpush.msra.mxu0 %v1690
  %4036 = vmatpush.msra.mxu0 %v1686
  %4037 = vmatpush.msra.mxu0 %v1682
  %4038 = vmatpush.msra.mxu0 %v1678
  %4039 = vmatpush.msra.mxu0 %v1674
  %4040 = vmatpush.msra.mxu0 %v1670
  %4041 = vmatmul.f32.gmra.mxu0 %v3240
  %v4042 = vpop.f32.mrf.mxu0
  %v4043 = vadd.f32 %v3658, %v4042
  %4044 = vmatmul.f32.gmra.mxu0 %v3244
  %v4045 = vpop.f32.mrf.mxu0
  %v4046 = vadd.f32 %v3661, %v4045
  %4047 = vmatmul.f32.gmra.mxu0 %v3248
  %v4048 = vpop.f32.mrf.mxu0
  %v4049 = vadd.f32 %v3664, %v4048
  %4050 = vmatmul.f32.gmra.mxu0 %v3252
  %v4051 = vpop.f32.mrf.mxu0
  %v4052 = vadd.f32 %v3667, %v4051
  %4053 = vdwg.mxu0
  %4054 = vmatpush.msra.mxu0 %v1794
  %4055 = vmatpush.msra.mxu0 %v1790
  %4056 = vmatpush.msra.mxu0 %v1786
  %4057 = vmatpush.msra.mxu0 %v1782
  %4058 = vmatpush.msra.mxu0 %v1778
  %4059 = vmatpush.msra.mxu0 %v1774
  %4060 = vmatpush.msra.mxu0 %v1770
  %4061 = vmatpush.msra.mxu0 %v1766
  %4062 = vmatpush.msra.mxu0 %v1762
  %4063 = vmatpush.msra.mxu0 %v1758
  %4064 = vmatpush.msra.mxu0 %v1754
  %4065 = vmatpush.msra.mxu0 %v1750
  %4066 = vmatpush.msra.mxu0 %v1746
  %4067 = vmatpush.msra.mxu0 %v1742
  %4068 = vmatpush.msra.mxu0 %v1738
  %4069 = vmatpush.msra.mxu0 %v1734
  %4070 = vmatmul.f32.gmra.mxu0 %v3241
  %v4071 = vpop.f32.mrf.mxu0
  %v4072 = vadd.f32 %v4043, %v4071
  %4073 = vmatmul.f32.gmra.mxu0 %v3245
  %v4074 = vpop.f32.mrf.mxu0
  %v4075 = vadd.f32 %v4046, %v4074
  %4076 = vmatmul.f32.gmra.mxu0 %v3249
  %v4077 = vpop.f32.mrf.mxu0
  %v4078 = vadd.f32 %v4049, %v4077
  %4079 = vmatmul.f32.gmra.mxu0 %v3253
  %v4080 = vpop.f32.mrf.mxu0
  %v4081 = vadd.f32 %v4052, %v4080
  %4082 = vdwg.mxu0
  %4083 = vmatpush.msra.mxu0 %v1858
  %4084 = vmatpush.msra.mxu0 %v1854
  %4085 = vmatpush.msra.mxu0 %v1850
  %4086 = vmatpush.msra.mxu0 %v1846
  %4087 = vmatpush.msra.mxu0 %v1842
  %4088 = vmatpush.msra.mxu0 %v1838
  %4089 = vmatpush.msra.mxu0 %v1834
  %4090 = vmatpush.msra.mxu0 %v1830
  %4091 = vmatpush.msra.mxu0 %v1826
  %4092 = vmatpush.msra.mxu0 %v1822
  %4093 = vmatpush.msra.mxu0 %v1818
  %4094 = vmatpush.msra.mxu0 %v1814
  %4095 = vmatpush.msra.mxu0 %v1810
  %4096 = vmatpush.msra.mxu0 %v1806
  %4097 = vmatpush.msra.mxu0 %v1802
  %4098 = vmatpush.msra.mxu0 %v1798
  %4099 = vmatmul.f32.gmra.mxu0 %v3242
  %v4100 = vpop.f32.mrf.mxu0
  %v4101 = vadd.f32 %v4072, %v4100
  %4102 = vmatmul.f32.gmra.mxu0 %v3246
  %v4103 = vpop.f32.mrf.mxu0
  %v4104 = vadd.f32 %v4075, %v4103
  %4105 = vmatmul.f32.gmra.mxu0 %v3250
  %v4106 = vpop.f32.mrf.mxu0
  %v4107 = vadd.f32 %v4078, %v4106
  %4108 = vmatmul.f32.gmra.mxu0 %v3254
  %v4109 = vpop.f32.mrf.mxu0
  %v4110 = vadd.f32 %v4081, %v4109
  %4111 = vdwg.mxu0
  %4112 = vmatpush.msra.mxu0 0.0
  %4113 = vmatpush.msra.mxu0 0.0
  %4114 = vmatpush.msra.mxu0 0.0
  %4115 = vmatpush.msra.mxu0 0.0
  %4116 = vmatpush.msra.mxu0 %v1906
  %4117 = vmatpush.msra.mxu0 %v1902
  %4118 = vmatpush.msra.mxu0 %v1898
  %4119 = vmatpush.msra.mxu0 %v1894
  %4120 = vmatpush.msra.mxu0 %v1890
  %4121 = vmatpush.msra.mxu0 %v1886
  %4122 = vmatpush.msra.mxu0 %v1882
  %4123 = vmatpush.msra.mxu0 %v1878
  %4124 = vmatpush.msra.mxu0 %v1874
  %4125 = vmatpush.msra.mxu0 %v1870
  %4126 = vmatpush.msra.mxu0 %v1866
  %4127 = vmatpush.msra.mxu0 %v1862
  %4128 = vmatmul.f32.gmra.mxu0 %v3785
  %v4129 = vpop.f32.mrf.mxu0
  %v4130 = vadd.f32 %v4101, %v4129
  %4131 = vmatmul.f32.gmra.mxu0 %v3787
  %v4132 = vpop.f32.mrf.mxu0
  %v4133 = vadd.f32 %v4104, %v4132
  %4134 = vmatmul.f32.gmra.mxu0 %v3789
  %v4135 = vpop.f32.mrf.mxu0
  %v4136 = vadd.f32 %v4107, %v4135
  %4137 = vmatmul.f32.gmra.mxu0 %v3791
  %v4138 = vpop.f32.mrf.mxu0
  %v4139 = vadd.f32 %v4110, %v4138
  %4140 = vdwg.mxu0
  %4141 = vmatpush.msra.mxu0 %v1731
  %4142 = vmatpush.msra.mxu0 %v1727
  %4143 = vmatpush.msra.mxu0 %v1723
  %4144 = vmatpush.msra.mxu0 %v1719
  %4145 = vmatpush.msra.mxu0 %v1715
  %4146 = vmatpush.msra.mxu0 %v1711
  %4147 = vmatpush.msra.mxu0 %v1707
  %4148 = vmatpush.msra.mxu0 %v1703
  %4149 = vmatpush.msra.mxu0 %v1699
  %4150 = vmatpush.msra.mxu0 %v1695
  %4151 = vmatpush.msra.mxu0 %v1691
  %4152 = vmatpush.msra.mxu0 %v1687
  %4153 = vmatpush.msra.mxu0 %v1683
  %4154 = vmatpush.msra.mxu0 %v1679
  %4155 = vmatpush.msra.mxu0 %v1675
  %4156 = vmatpush.msra.mxu0 %v1671
  %4157 = vmatmul.f32.gmra.mxu0 %v3240
  %v4158 = vpop.f32.mrf.mxu0
  %v4159 = vadd.f32 %v3774, %v4158
  %4160 = vmatmul.f32.gmra.mxu0 %v3244
  %v4161 = vpop.f32.mrf.mxu0
  %v4162 = vadd.f32 %v3777, %v4161
  %4163 = vmatmul.f32.gmra.mxu0 %v3248
  %v4164 = vpop.f32.mrf.mxu0
  %v4165 = vadd.f32 %v3780, %v4164
  %4166 = vmatmul.f32.gmra.mxu0 %v3252
  %v4167 = vpop.f32.mrf.mxu0
  %v4168 = vadd.f32 %v3783, %v4167
  %4169 = vdwg.mxu0
  %4170 = vmatpush.msra.mxu0 %v1795
  %4171 = vmatpush.msra.mxu0 %v1791
  %4172 = vmatpush.msra.mxu0 %v1787
  %4173 = vmatpush.msra.mxu0 %v1783
  %4174 = vmatpush.msra.mxu0 %v1779
  %4175 = vmatpush.msra.mxu0 %v1775
  %4176 = vmatpush.msra.mxu0 %v1771
  %4177 = vmatpush.msra.mxu0 %v1767
  %4178 = vmatpush.msra.mxu0 %v1763
  %4179 = vmatpush.msra.mxu0 %v1759
  %4180 = vmatpush.msra.mxu0 %v1755
  %4181 = vmatpush.msra.mxu0 %v1751
  %4182 = vmatpush.msra.mxu0 %v1747
  %4183 = vmatpush.msra.mxu0 %v1743
  %4184 = vmatpush.msra.mxu0 %v1739
  %4185 = vmatpush.msra.mxu0 %v1735
  %4186 = vmatmul.f32.gmra.mxu0 %v3241
  %v4187 = vpop.f32.mrf.mxu0
  %v4188 = vadd.f32 %v4159, %v4187
  %4189 = vmatmul.f32.gmra.mxu0 %v3245
  %v4190 = vpop.f32.mrf.mxu0
  %v4191 = vadd.f32 %v4162, %v4190
  %4192 = vmatmul.f32.gmra.mxu0 %v3249
  %v4193 = vpop.f32.mrf.mxu0
  %v4194 = vadd.f32 %v4165, %v4193
  %4195 = vmatmul.f32.gmra.mxu0 %v3253
  %v4196 = vpop.f32.mrf.mxu0
  %v4197 = vadd.f32 %v4168, %v4196
  %4198 = vdwg.mxu0
  %4199 = vmatpush.msra.mxu0 %v1859
  %4200 = vmatpush.msra.mxu0 %v1855
  %4201 = vmatpush.msra.mxu0 %v1851
  %4202 = vmatpush.msra.mxu0 %v1847
  %4203 = vmatpush.msra.mxu0 %v1843
  %4204 = vmatpush.msra.mxu0 %v1839
  %4205 = vmatpush.msra.mxu0 %v1835
  %4206 = vmatpush.msra.mxu0 %v1831
  %4207 = vmatpush.msra.mxu0 %v1827
  %4208 = vmatpush.msra.mxu0 %v1823
  %4209 = vmatpush.msra.mxu0 %v1819
  %4210 = vmatpush.msra.mxu0 %v1815
  %4211 = vmatpush.msra.mxu0 %v1811
  %4212 = vmatpush.msra.mxu0 %v1807
  %4213 = vmatpush.msra.mxu0 %v1803
  %4214 = vmatpush.msra.mxu0 %v1799
  %4215 = vmatmul.f32.gmra.mxu0 %v3242
  %v4216 = vpop.f32.mrf.mxu0
  %v4217 = vadd.f32 %v4188, %v4216
  %4218 = vmatmul.f32.gmra.mxu0 %v3246
  %v4219 = vpop.f32.mrf.mxu0
  %v4220 = vadd.f32 %v4191, %v4219
  %4221 = vmatmul.f32.gmra.mxu0 %v3250
  %v4222 = vpop.f32.mrf.mxu0
  %v4223 = vadd.f32 %v4194, %v4222
  %4224 = vmatmul.f32.gmra.mxu0 %v3254
  %v4225 = vpop.f32.mrf.mxu0
  %v4226 = vadd.f32 %v4197, %v4225
  %4227 = vdwg.mxu0
  %4228 = vmatpush.msra.mxu0 0.0
  %4229 = vmatpush.msra.mxu0 0.0
  %4230 = vmatpush.msra.mxu0 0.0
  %4231 = vmatpush.msra.mxu0 0.0
  %4232 = vmatpush.msra.mxu0 %v1907
  %4233 = vmatpush.msra.mxu0 %v1903
  %4234 = vmatpush.msra.mxu0 %v1899
  %4235 = vmatpush.msra.mxu0 %v1895
  %4236 = vmatpush.msra.mxu0 %v1891
  %4237 = vmatpush.msra.mxu0 %v1887
  %4238 = vmatpush.msra.mxu0 %v1883
  %4239 = vmatpush.msra.mxu0 %v1879
  %4240 = vmatpush.msra.mxu0 %v1875
  %4241 = vmatpush.msra.mxu0 %v1871
  %4242 = vmatpush.msra.mxu0 %v1867
  %4243 = vmatpush.msra.mxu0 %v1863
  %4244 = vmatmul.f32.gmra.mxu0 %v3785
  %v4245 = vpop.f32.mrf.mxu0
  %v4246 = vadd.f32 %v4217, %v4245
  %4247 = vmatmul.f32.gmra.mxu0 %v3787
  %v4248 = vpop.f32.mrf.mxu0
  %v4249 = vadd.f32 %v4220, %v4248
  %4250 = vmatmul.f32.gmra.mxu0 %v3789
  %v4251 = vpop.f32.mrf.mxu0
  %v4252 = vadd.f32 %v4223, %v4251
  %4253 = vmatmul.f32.gmra.mxu0 %v3791
  %v4254 = vpop.f32.mrf.mxu0
  %v4255 = vadd.f32 %v4226, %v4254
  %4256 = vdwg.mxu0
  %v4257 = vrot.slane %v3240, 2
  %v4258 = vrot.slane %v3244, 2
  %v4259 = vsel %vm2944, %v4257, %v4258
  %v4260 = vrot.slane %v3241, 2
  %v4261 = vrot.slane %v3245, 2
  %v4262 = vsel %vm2944, %v4260, %v4261
  %v4263 = vrot.slane %v3242, 2
  %v4264 = vrot.slane %v3246, 2
  %v4265 = vsel %vm2944, %v4263, %v4264
  %v4266 = vrot.slane %v3243, 2
  %v4267 = vrot.slane %v3247, 2
  %v4268 = vsel %vm2944, %v4266, %v4267
  %v4269 = vrot.slane %v3248, 2
  %v4270 = vsel %vm2944, %v4258, %v4269
  %v4271 = vrot.slane %v3249, 2
  %v4272 = vsel %vm2944, %v4261, %v4271
  %v4273 = vrot.slane %v3250, 2
  %v4274 = vsel %vm2944, %v4264, %v4273
  %v4275 = vrot.slane %v3251, 2
  %v4276 = vsel %vm2944, %v4267, %v4275
  %v4277 = vrot.slane %v3252, 2
  %v4278 = vsel %vm2944, %v4269, %v4277
  %v4279 = vrot.slane %v3253, 2
  %v4280 = vsel %vm2944, %v4271, %v4279
  %v4281 = vrot.slane %v3254, 2
  %v4282 = vsel %vm2944, %v4273, %v4281
  %v4283 = vrot.slane %v3255, 2
  %v4284 = vsel %vm2944, %v4275, %v4283
  %v4297 = vsel %vm3312, %v4268, 0
  %v4299 = vsel %vm3312, %v4276, 0
  %v4301 = vsel %vm3312, %v4284, 0
  %v4303 = vsel %vm3312, %v4283, 0
  %4305 = vmatpush.msra.mxu0 %v2210
  %4306 = vmatpush.msra.mxu0 %v2206
  %4307 = vmatpush.msra.mxu0 %v2202
  %4308 = vmatpush.msra.mxu0 %v2198
  %4309 = vmatpush.msra.mxu0 %v2194
  %4310 = vmatpush.msra.mxu0 %v2190
  %4311 = vmatpush.msra.mxu0 %v2186
  %4312 = vmatpush.msra.mxu0 %v2182
  %4313 = vmatpush.msra.mxu0 %v2178
  %4314 = vmatpush.msra.mxu0 %v2174
  %4315 = vmatpush.msra.mxu0 %v2170
  %4316 = vmatpush.msra.mxu0 %v2166
  %4317 = vmatpush.msra.mxu0 %v2162
  %4318 = vmatpush.msra.mxu0 %v2158
  %4319 = vmatpush.msra.mxu0 %v2154
  %4320 = vmatpush.msra.mxu0 %v2150
  %4321 = vmatmul.f32.gmra.mxu0 %v4259
  %v4322 = vpop.f32.mrf.mxu0
  %v4323 = vadd.f32 0.0, %v4322
  %4324 = vmatmul.f32.gmra.mxu0 %v4270
  %v4325 = vpop.f32.mrf.mxu0
  %v4326 = vadd.f32 0.0, %v4325
  %4327 = vmatmul.f32.gmra.mxu0 %v4278
  %v4328 = vpop.f32.mrf.mxu0
  %v4329 = vadd.f32 0.0, %v4328
  %4330 = vmatmul.f32.gmra.mxu0 %v4277
  %v4331 = vpop.f32.mrf.mxu0
  %v4332 = vadd.f32 0.0, %v4331
  %4333 = vdwg.mxu0
  %4334 = vmatpush.msra.mxu0 %v2274
  %4335 = vmatpush.msra.mxu0 %v2270
  %4336 = vmatpush.msra.mxu0 %v2266
  %4337 = vmatpush.msra.mxu0 %v2262
  %4338 = vmatpush.msra.mxu0 %v2258
  %4339 = vmatpush.msra.mxu0 %v2254
  %4340 = vmatpush.msra.mxu0 %v2250
  %4341 = vmatpush.msra.mxu0 %v2246
  %4342 = vmatpush.msra.mxu0 %v2242
  %4343 = vmatpush.msra.mxu0 %v2238
  %4344 = vmatpush.msra.mxu0 %v2234
  %4345 = vmatpush.msra.mxu0 %v2230
  %4346 = vmatpush.msra.mxu0 %v2226
  %4347 = vmatpush.msra.mxu0 %v2222
  %4348 = vmatpush.msra.mxu0 %v2218
  %4349 = vmatpush.msra.mxu0 %v2214
  %4350 = vmatmul.f32.gmra.mxu0 %v4262
  %v4351 = vpop.f32.mrf.mxu0
  %v4352 = vadd.f32 %v4323, %v4351
  %4353 = vmatmul.f32.gmra.mxu0 %v4272
  %v4354 = vpop.f32.mrf.mxu0
  %v4355 = vadd.f32 %v4326, %v4354
  %4356 = vmatmul.f32.gmra.mxu0 %v4280
  %v4357 = vpop.f32.mrf.mxu0
  %v4358 = vadd.f32 %v4329, %v4357
  %4359 = vmatmul.f32.gmra.mxu0 %v4279
  %v4360 = vpop.f32.mrf.mxu0
  %v4361 = vadd.f32 %v4332, %v4360
  %4362 = vdwg.mxu0
  %4363 = vmatpush.msra.mxu0 %v2338
  %4364 = vmatpush.msra.mxu0 %v2334
  %4365 = vmatpush.msra.mxu0 %v2330
  %4366 = vmatpush.msra.mxu0 %v2326
  %4367 = vmatpush.msra.mxu0 %v2322
  %4368 = vmatpush.msra.mxu0 %v2318
  %4369 = vmatpush.msra.mxu0 %v2314
  %4370 = vmatpush.msra.mxu0 %v2310
  %4371 = vmatpush.msra.mxu0 %v2306
  %4372 = vmatpush.msra.mxu0 %v2302
  %4373 = vmatpush.msra.mxu0 %v2298
  %4374 = vmatpush.msra.mxu0 %v2294
  %4375 = vmatpush.msra.mxu0 %v2290
  %4376 = vmatpush.msra.mxu0 %v2286
  %4377 = vmatpush.msra.mxu0 %v2282
  %4378 = vmatpush.msra.mxu0 %v2278
  %4379 = vmatmul.f32.gmra.mxu0 %v4265
  %v4380 = vpop.f32.mrf.mxu0
  %v4381 = vadd.f32 %v4352, %v4380
  %4382 = vmatmul.f32.gmra.mxu0 %v4274
  %v4383 = vpop.f32.mrf.mxu0
  %v4384 = vadd.f32 %v4355, %v4383
  %4385 = vmatmul.f32.gmra.mxu0 %v4282
  %v4386 = vpop.f32.mrf.mxu0
  %v4387 = vadd.f32 %v4358, %v4386
  %4388 = vmatmul.f32.gmra.mxu0 %v4281
  %v4389 = vpop.f32.mrf.mxu0
  %v4390 = vadd.f32 %v4361, %v4389
  %4391 = vdwg.mxu0
  %4392 = vmatpush.msra.mxu0 0.0
  %4393 = vmatpush.msra.mxu0 0.0
  %4394 = vmatpush.msra.mxu0 0.0
  %4395 = vmatpush.msra.mxu0 0.0
  %4396 = vmatpush.msra.mxu0 %v2386
  %4397 = vmatpush.msra.mxu0 %v2382
  %4398 = vmatpush.msra.mxu0 %v2378
  %4399 = vmatpush.msra.mxu0 %v2374
  %4400 = vmatpush.msra.mxu0 %v2370
  %4401 = vmatpush.msra.mxu0 %v2366
  %4402 = vmatpush.msra.mxu0 %v2362
  %4403 = vmatpush.msra.mxu0 %v2358
  %4404 = vmatpush.msra.mxu0 %v2354
  %4405 = vmatpush.msra.mxu0 %v2350
  %4406 = vmatpush.msra.mxu0 %v2346
  %4407 = vmatpush.msra.mxu0 %v2342
  %4408 = vmatmul.f32.gmra.mxu0 %v4297
  %v4409 = vpop.f32.mrf.mxu0
  %v4410 = vadd.f32 %v4381, %v4409
  %4411 = vmatmul.f32.gmra.mxu0 %v4299
  %v4412 = vpop.f32.mrf.mxu0
  %v4413 = vadd.f32 %v4384, %v4412
  %4414 = vmatmul.f32.gmra.mxu0 %v4301
  %v4415 = vpop.f32.mrf.mxu0
  %v4416 = vadd.f32 %v4387, %v4415
  %4417 = vmatmul.f32.gmra.mxu0 %v4303
  %v4418 = vpop.f32.mrf.mxu0
  %v4419 = vadd.f32 %v4390, %v4418
  %4420 = vdwg.mxu0
  %4421 = vmatpush.msra.mxu0 %v2211
  %4422 = vmatpush.msra.mxu0 %v2207
  %4423 = vmatpush.msra.mxu0 %v2203
  %4424 = vmatpush.msra.mxu0 %v2199
  %4425 = vmatpush.msra.mxu0 %v2195
  %4426 = vmatpush.msra.mxu0 %v2191
  %4427 = vmatpush.msra.mxu0 %v2187
  %4428 = vmatpush.msra.mxu0 %v2183
  %4429 = vmatpush.msra.mxu0 %v2179
  %4430 = vmatpush.msra.mxu0 %v2175
  %4431 = vmatpush.msra.mxu0 %v2171
  %4432 = vmatpush.msra.mxu0 %v2167
  %4433 = vmatpush.msra.mxu0 %v2163
  %4434 = vmatpush.msra.mxu0 %v2159
  %4435 = vmatpush.msra.mxu0 %v2155
  %4436 = vmatpush.msra.mxu0 %v2151
  %4437 = vmatmul.f32.gmra.mxu0 %v4259
  %v4438 = vpop.f32.mrf.mxu0
  %v4439 = vadd.f32 0.0, %v4438
  %4440 = vmatmul.f32.gmra.mxu0 %v4270
  %v4441 = vpop.f32.mrf.mxu0
  %v4442 = vadd.f32 0.0, %v4441
  %4443 = vmatmul.f32.gmra.mxu0 %v4278
  %v4444 = vpop.f32.mrf.mxu0
  %v4445 = vadd.f32 0.0, %v4444
  %4446 = vmatmul.f32.gmra.mxu0 %v4277
  %v4447 = vpop.f32.mrf.mxu0
  %v4448 = vadd.f32 0.0, %v4447
  %4449 = vdwg.mxu0
  %4450 = vmatpush.msra.mxu0 %v2275
  %4451 = vmatpush.msra.mxu0 %v2271
  %4452 = vmatpush.msra.mxu0 %v2267
  %4453 = vmatpush.msra.mxu0 %v2263
  %4454 = vmatpush.msra.mxu0 %v2259
  %4455 = vmatpush.msra.mxu0 %v2255
  %4456 = vmatpush.msra.mxu0 %v2251
  %4457 = vmatpush.msra.mxu0 %v2247
  %4458 = vmatpush.msra.mxu0 %v2243
  %4459 = vmatpush.msra.mxu0 %v2239
  %4460 = vmatpush.msra.mxu0 %v2235
  %4461 = vmatpush.msra.mxu0 %v2231
  %4462 = vmatpush.msra.mxu0 %v2227
  %4463 = vmatpush.msra.mxu0 %v2223
  %4464 = vmatpush.msra.mxu0 %v2219
  %4465 = vmatpush.msra.mxu0 %v2215
  %4466 = vmatmul.f32.gmra.mxu0 %v4262
  %v4467 = vpop.f32.mrf.mxu0
  %v4468 = vadd.f32 %v4439, %v4467
  %4469 = vmatmul.f32.gmra.mxu0 %v4272
  %v4470 = vpop.f32.mrf.mxu0
  %v4471 = vadd.f32 %v4442, %v4470
  %4472 = vmatmul.f32.gmra.mxu0 %v4280
  %v4473 = vpop.f32.mrf.mxu0
  %v4474 = vadd.f32 %v4445, %v4473
  %4475 = vmatmul.f32.gmra.mxu0 %v4279
  %v4476 = vpop.f32.mrf.mxu0
  %v4477 = vadd.f32 %v4448, %v4476
  %4478 = vdwg.mxu0
  %4479 = vmatpush.msra.mxu0 %v2339
  %4480 = vmatpush.msra.mxu0 %v2335
  %4481 = vmatpush.msra.mxu0 %v2331
  %4482 = vmatpush.msra.mxu0 %v2327
  %4483 = vmatpush.msra.mxu0 %v2323
  %4484 = vmatpush.msra.mxu0 %v2319
  %4485 = vmatpush.msra.mxu0 %v2315
  %4486 = vmatpush.msra.mxu0 %v2311
  %4487 = vmatpush.msra.mxu0 %v2307
  %4488 = vmatpush.msra.mxu0 %v2303
  %4489 = vmatpush.msra.mxu0 %v2299
  %4490 = vmatpush.msra.mxu0 %v2295
  %4491 = vmatpush.msra.mxu0 %v2291
  %4492 = vmatpush.msra.mxu0 %v2287
  %4493 = vmatpush.msra.mxu0 %v2283
  %4494 = vmatpush.msra.mxu0 %v2279
  %4495 = vmatmul.f32.gmra.mxu0 %v4265
  %v4496 = vpop.f32.mrf.mxu0
  %v4497 = vadd.f32 %v4468, %v4496
  %4498 = vmatmul.f32.gmra.mxu0 %v4274
  %v4499 = vpop.f32.mrf.mxu0
  %v4500 = vadd.f32 %v4471, %v4499
  %4501 = vmatmul.f32.gmra.mxu0 %v4282
  %v4502 = vpop.f32.mrf.mxu0
  %v4503 = vadd.f32 %v4474, %v4502
  %4504 = vmatmul.f32.gmra.mxu0 %v4281
  %v4505 = vpop.f32.mrf.mxu0
  %v4506 = vadd.f32 %v4477, %v4505
  %4507 = vdwg.mxu0
  %4508 = vmatpush.msra.mxu0 0.0
  %4509 = vmatpush.msra.mxu0 0.0
  %4510 = vmatpush.msra.mxu0 0.0
  %4511 = vmatpush.msra.mxu0 0.0
  %4512 = vmatpush.msra.mxu0 %v2387
  %4513 = vmatpush.msra.mxu0 %v2383
  %4514 = vmatpush.msra.mxu0 %v2379
  %4515 = vmatpush.msra.mxu0 %v2375
  %4516 = vmatpush.msra.mxu0 %v2371
  %4517 = vmatpush.msra.mxu0 %v2367
  %4518 = vmatpush.msra.mxu0 %v2363
  %4519 = vmatpush.msra.mxu0 %v2359
  %4520 = vmatpush.msra.mxu0 %v2355
  %4521 = vmatpush.msra.mxu0 %v2351
  %4522 = vmatpush.msra.mxu0 %v2347
  %4523 = vmatpush.msra.mxu0 %v2343
  %4524 = vmatmul.f32.gmra.mxu0 %v4297
  %v4525 = vpop.f32.mrf.mxu0
  %v4526 = vadd.f32 %v4497, %v4525
  %4527 = vmatmul.f32.gmra.mxu0 %v4299
  %v4528 = vpop.f32.mrf.mxu0
  %v4529 = vadd.f32 %v4500, %v4528
  %4530 = vmatmul.f32.gmra.mxu0 %v4301
  %v4531 = vpop.f32.mrf.mxu0
  %v4532 = vadd.f32 %v4503, %v4531
  %4533 = vmatmul.f32.gmra.mxu0 %v4303
  %v4534 = vpop.f32.mrf.mxu0
  %v4535 = vadd.f32 %v4506, %v4534
  %4536 = vdwg.mxu0
  %4537 = vmatpush.msra.mxu0 %v2212
  %4538 = vmatpush.msra.mxu0 %v2208
  %4539 = vmatpush.msra.mxu0 %v2204
  %4540 = vmatpush.msra.mxu0 %v2200
  %4541 = vmatpush.msra.mxu0 %v2196
  %4542 = vmatpush.msra.mxu0 %v2192
  %4543 = vmatpush.msra.mxu0 %v2188
  %4544 = vmatpush.msra.mxu0 %v2184
  %4545 = vmatpush.msra.mxu0 %v2180
  %4546 = vmatpush.msra.mxu0 %v2176
  %4547 = vmatpush.msra.mxu0 %v2172
  %4548 = vmatpush.msra.mxu0 %v2168
  %4549 = vmatpush.msra.mxu0 %v2164
  %4550 = vmatpush.msra.mxu0 %v2160
  %4551 = vmatpush.msra.mxu0 %v2156
  %4552 = vmatpush.msra.mxu0 %v2152
  %4553 = vmatmul.f32.gmra.mxu0 %v4259
  %v4554 = vpop.f32.mrf.mxu0
  %v4555 = vadd.f32 0.0, %v4554
  %4556 = vmatmul.f32.gmra.mxu0 %v4270
  %v4557 = vpop.f32.mrf.mxu0
  %v4558 = vadd.f32 0.0, %v4557
  %4559 = vmatmul.f32.gmra.mxu0 %v4278
  %v4560 = vpop.f32.mrf.mxu0
  %v4561 = vadd.f32 0.0, %v4560
  %4562 = vmatmul.f32.gmra.mxu0 %v4277
  %v4563 = vpop.f32.mrf.mxu0
  %v4564 = vadd.f32 0.0, %v4563
  %4565 = vdwg.mxu0
  %4566 = vmatpush.msra.mxu0 %v2276
  %4567 = vmatpush.msra.mxu0 %v2272
  %4568 = vmatpush.msra.mxu0 %v2268
  %4569 = vmatpush.msra.mxu0 %v2264
  %4570 = vmatpush.msra.mxu0 %v2260
  %4571 = vmatpush.msra.mxu0 %v2256
  %4572 = vmatpush.msra.mxu0 %v2252
  %4573 = vmatpush.msra.mxu0 %v2248
  %4574 = vmatpush.msra.mxu0 %v2244
  %4575 = vmatpush.msra.mxu0 %v2240
  %4576 = vmatpush.msra.mxu0 %v2236
  %4577 = vmatpush.msra.mxu0 %v2232
  %4578 = vmatpush.msra.mxu0 %v2228
  %4579 = vmatpush.msra.mxu0 %v2224
  %4580 = vmatpush.msra.mxu0 %v2220
  %4581 = vmatpush.msra.mxu0 %v2216
  %4582 = vmatmul.f32.gmra.mxu0 %v4262
  %v4583 = vpop.f32.mrf.mxu0
  %v4584 = vadd.f32 %v4555, %v4583
  %4585 = vmatmul.f32.gmra.mxu0 %v4272
  %v4586 = vpop.f32.mrf.mxu0
  %v4587 = vadd.f32 %v4558, %v4586
  %4588 = vmatmul.f32.gmra.mxu0 %v4280
  %v4589 = vpop.f32.mrf.mxu0
  %v4590 = vadd.f32 %v4561, %v4589
  %4591 = vmatmul.f32.gmra.mxu0 %v4279
  %v4592 = vpop.f32.mrf.mxu0
  %v4593 = vadd.f32 %v4564, %v4592
  %4594 = vdwg.mxu0
  %4595 = vmatpush.msra.mxu0 %v2340
  %4596 = vmatpush.msra.mxu0 %v2336
  %4597 = vmatpush.msra.mxu0 %v2332
  %4598 = vmatpush.msra.mxu0 %v2328
  %4599 = vmatpush.msra.mxu0 %v2324
  %4600 = vmatpush.msra.mxu0 %v2320
  %4601 = vmatpush.msra.mxu0 %v2316
  %4602 = vmatpush.msra.mxu0 %v2312
  %4603 = vmatpush.msra.mxu0 %v2308
  %4604 = vmatpush.msra.mxu0 %v2304
  %4605 = vmatpush.msra.mxu0 %v2300
  %4606 = vmatpush.msra.mxu0 %v2296
  %4607 = vmatpush.msra.mxu0 %v2292
  %4608 = vmatpush.msra.mxu0 %v2288
  %4609 = vmatpush.msra.mxu0 %v2284
  %4610 = vmatpush.msra.mxu0 %v2280
  %4611 = vmatmul.f32.gmra.mxu0 %v4265
  %v4612 = vpop.f32.mrf.mxu0
  %v4613 = vadd.f32 %v4584, %v4612
  %4614 = vmatmul.f32.gmra.mxu0 %v4274
  %v4615 = vpop.f32.mrf.mxu0
  %v4616 = vadd.f32 %v4587, %v4615
  %4617 = vmatmul.f32.gmra.mxu0 %v4282
  %v4618 = vpop.f32.mrf.mxu0
  %v4619 = vadd.f32 %v4590, %v4618
  %4620 = vmatmul.f32.gmra.mxu0 %v4281
  %v4621 = vpop.f32.mrf.mxu0
  %v4622 = vadd.f32 %v4593, %v4621
  %4623 = vdwg.mxu0
  %4624 = vmatpush.msra.mxu0 0.0
  %4625 = vmatpush.msra.mxu0 0.0
  %4626 = vmatpush.msra.mxu0 0.0
  %4627 = vmatpush.msra.mxu0 0.0
  %4628 = vmatpush.msra.mxu0 %v2388
  %4629 = vmatpush.msra.mxu0 %v2384
  %4630 = vmatpush.msra.mxu0 %v2380
  %4631 = vmatpush.msra.mxu0 %v2376
  %4632 = vmatpush.msra.mxu0 %v2372
  %4633 = vmatpush.msra.mxu0 %v2368
  %4634 = vmatpush.msra.mxu0 %v2364
  %4635 = vmatpush.msra.mxu0 %v2360
  %4636 = vmatpush.msra.mxu0 %v2356
  %4637 = vmatpush.msra.mxu0 %v2352
  %4638 = vmatpush.msra.mxu0 %v2348
  %4639 = vmatpush.msra.mxu0 %v2344
  %4640 = vmatmul.f32.gmra.mxu0 %v4297
  %v4641 = vpop.f32.mrf.mxu0
  %v4642 = vadd.f32 %v4613, %v4641
  %4643 = vmatmul.f32.gmra.mxu0 %v4299
  %v4644 = vpop.f32.mrf.mxu0
  %v4645 = vadd.f32 %v4616, %v4644
  %4646 = vmatmul.f32.gmra.mxu0 %v4301
  %v4647 = vpop.f32.mrf.mxu0
  %v4648 = vadd.f32 %v4619, %v4647
  %4649 = vmatmul.f32.gmra.mxu0 %v4303
  %v4650 = vpop.f32.mrf.mxu0
  %v4651 = vadd.f32 %v4622, %v4650
  %4652 = vdwg.mxu0
  %4653 = vmatpush.msra.mxu0 %v2213
  %4654 = vmatpush.msra.mxu0 %v2209
  %4655 = vmatpush.msra.mxu0 %v2205
  %4656 = vmatpush.msra.mxu0 %v2201
  %4657 = vmatpush.msra.mxu0 %v2197
  %4658 = vmatpush.msra.mxu0 %v2193
  %4659 = vmatpush.msra.mxu0 %v2189
  %4660 = vmatpush.msra.mxu0 %v2185
  %4661 = vmatpush.msra.mxu0 %v2181
  %4662 = vmatpush.msra.mxu0 %v2177
  %4663 = vmatpush.msra.mxu0 %v2173
  %4664 = vmatpush.msra.mxu0 %v2169
  %4665 = vmatpush.msra.mxu0 %v2165
  %4666 = vmatpush.msra.mxu0 %v2161
  %4667 = vmatpush.msra.mxu0 %v2157
  %4668 = vmatpush.msra.mxu0 %v2153
  %4669 = vmatmul.f32.gmra.mxu0 %v4259
  %v4670 = vpop.f32.mrf.mxu0
  %v4671 = vadd.f32 0.0, %v4670
  %4672 = vmatmul.f32.gmra.mxu0 %v4270
  %v4673 = vpop.f32.mrf.mxu0
  %v4674 = vadd.f32 0.0, %v4673
  %4675 = vmatmul.f32.gmra.mxu0 %v4278
  %v4676 = vpop.f32.mrf.mxu0
  %v4677 = vadd.f32 0.0, %v4676
  %4678 = vmatmul.f32.gmra.mxu0 %v4277
  %v4679 = vpop.f32.mrf.mxu0
  %v4680 = vadd.f32 0.0, %v4679
  %4681 = vdwg.mxu0
  %4682 = vmatpush.msra.mxu0 %v2277
  %4683 = vmatpush.msra.mxu0 %v2273
  %4684 = vmatpush.msra.mxu0 %v2269
  %4685 = vmatpush.msra.mxu0 %v2265
  %4686 = vmatpush.msra.mxu0 %v2261
  %4687 = vmatpush.msra.mxu0 %v2257
  %4688 = vmatpush.msra.mxu0 %v2253
  %4689 = vmatpush.msra.mxu0 %v2249
  %4690 = vmatpush.msra.mxu0 %v2245
  %4691 = vmatpush.msra.mxu0 %v2241
  %4692 = vmatpush.msra.mxu0 %v2237
  %4693 = vmatpush.msra.mxu0 %v2233
  %4694 = vmatpush.msra.mxu0 %v2229
  %4695 = vmatpush.msra.mxu0 %v2225
  %4696 = vmatpush.msra.mxu0 %v2221
  %4697 = vmatpush.msra.mxu0 %v2217
  %4698 = vmatmul.f32.gmra.mxu0 %v4262
  %v4699 = vpop.f32.mrf.mxu0
  %v4700 = vadd.f32 %v4671, %v4699
  %4701 = vmatmul.f32.gmra.mxu0 %v4272
  %v4702 = vpop.f32.mrf.mxu0
  %v4703 = vadd.f32 %v4674, %v4702
  %4704 = vmatmul.f32.gmra.mxu0 %v4280
  %v4705 = vpop.f32.mrf.mxu0
  %v4706 = vadd.f32 %v4677, %v4705
  %4707 = vmatmul.f32.gmra.mxu0 %v4279
  %v4708 = vpop.f32.mrf.mxu0
  %v4709 = vadd.f32 %v4680, %v4708
  %4710 = vdwg.mxu0
  %4711 = vmatpush.msra.mxu0 %v2341
  %4712 = vmatpush.msra.mxu0 %v2337
  %4713 = vmatpush.msra.mxu0 %v2333
  %4714 = vmatpush.msra.mxu0 %v2329
  %4715 = vmatpush.msra.mxu0 %v2325
  %4716 = vmatpush.msra.mxu0 %v2321
  %4717 = vmatpush.msra.mxu0 %v2317
  %4718 = vmatpush.msra.mxu0 %v2313
  %4719 = vmatpush.msra.mxu0 %v2309
  %4720 = vmatpush.msra.mxu0 %v2305
  %4721 = vmatpush.msra.mxu0 %v2301
  %4722 = vmatpush.msra.mxu0 %v2297
  %4723 = vmatpush.msra.mxu0 %v2293
  %4724 = vmatpush.msra.mxu0 %v2289
  %4725 = vmatpush.msra.mxu0 %v2285
  %4726 = vmatpush.msra.mxu0 %v2281
  %4727 = vmatmul.f32.gmra.mxu0 %v4265
  %v4728 = vpop.f32.mrf.mxu0
  %v4729 = vadd.f32 %v4700, %v4728
  %4730 = vmatmul.f32.gmra.mxu0 %v4274
  %v4731 = vpop.f32.mrf.mxu0
  %v4732 = vadd.f32 %v4703, %v4731
  %4733 = vmatmul.f32.gmra.mxu0 %v4282
  %v4734 = vpop.f32.mrf.mxu0
  %v4735 = vadd.f32 %v4706, %v4734
  %4736 = vmatmul.f32.gmra.mxu0 %v4281
  %v4737 = vpop.f32.mrf.mxu0
  %v4738 = vadd.f32 %v4709, %v4737
  %4739 = vdwg.mxu0
  %4740 = vmatpush.msra.mxu0 0.0
  %4741 = vmatpush.msra.mxu0 0.0
  %4742 = vmatpush.msra.mxu0 0.0
  %4743 = vmatpush.msra.mxu0 0.0
  %4744 = vmatpush.msra.mxu0 %v2389
  %4745 = vmatpush.msra.mxu0 %v2385
  %4746 = vmatpush.msra.mxu0 %v2381
  %4747 = vmatpush.msra.mxu0 %v2377
  %4748 = vmatpush.msra.mxu0 %v2373
  %4749 = vmatpush.msra.mxu0 %v2369
  %4750 = vmatpush.msra.mxu0 %v2365
  %4751 = vmatpush.msra.mxu0 %v2361
  %4752 = vmatpush.msra.mxu0 %v2357
  %4753 = vmatpush.msra.mxu0 %v2353
  %4754 = vmatpush.msra.mxu0 %v2349
  %4755 = vmatpush.msra.mxu0 %v2345
  %4756 = vmatmul.f32.gmra.mxu0 %v4297
  %v4757 = vpop.f32.mrf.mxu0
  %v4758 = vadd.f32 %v4729, %v4757
  %4759 = vmatmul.f32.gmra.mxu0 %v4299
  %v4760 = vpop.f32.mrf.mxu0
  %v4761 = vadd.f32 %v4732, %v4760
  %4762 = vmatmul.f32.gmra.mxu0 %v4301
  %v4763 = vpop.f32.mrf.mxu0
  %v4764 = vadd.f32 %v4735, %v4763
  %4765 = vmatmul.f32.gmra.mxu0 %v4303
  %v4766 = vpop.f32.mrf.mxu0
  %v4767 = vadd.f32 %v4738, %v4766
  %4768 = vdwg.mxu0
  %v4769 = vadd.f32 %v3898, %v4410
  %v4770 = vadd.f32 %v4014, %v4526
  %v4771 = vadd.f32 %v4130, %v4642
  %v4772 = vadd.f32 %v4246, %v4758
  %v4773 = vadd.f32 %v3901, %v4413
  %v4774 = vadd.f32 %v4017, %v4529
  %v4775 = vadd.f32 %v4133, %v4645
  %v4776 = vadd.f32 %v4249, %v4761
  %v4777 = vadd.f32 %v3904, %v4416
  %v4778 = vadd.f32 %v4020, %v4532
  %v4779 = vadd.f32 %v4136, %v4648
  %v4780 = vadd.f32 %v4252, %v4764
  %v4781 = vadd.f32 %v3907, %v4419
  %v4782 = vadd.f32 %v4023, %v4535
  %v4783 = vadd.f32 %v4139, %v4651
  %v4784 = vadd.f32 %v4255, %v4767
  %v4786 = vperm.slane %v2391, 0
  %v4787 = vperm.slane %v2391, 1
  %v4788 = vperm.slane %v2391, 2
  %v4789 = vperm.slane %v2391, 3
  %v4794 = vadd.f32 %v4769, %v4786
  %v4795 = vadd.f32 %v4770, %v4787
  %v4796 = vadd.f32 %v4771, %v4788
  %v4797 = vadd.f32 %v4772, %v4789
  %v4798 = vadd.f32 %v4773, %v4786
  %v4799 = vadd.f32 %v4774, %v4787
  %v4800 = vadd.f32 %v4775, %v4788
  %v4801 = vadd.f32 %v4776, %v4789
  %v4802 = vadd.f32 %v4777, %v4786
  %v4803 = vadd.f32 %v4778, %v4787
  %v4804 = vadd.f32 %v4779, %v4788
  %v4805 = vadd.f32 %v4780, %v4789
  %v4806 = vadd.f32 %v4781, %v4786
  %v4807 = vadd.f32 %v4782, %v4787
  %v4808 = vadd.f32 %v4783, %v4788
  %v4809 = vadd.f32 %v4784, %v4789
  %v4810 = vmax.f32 %v4794, 0.0
  %v4811 = vmax.f32 %v4795, 0.0
  %v4812 = vmax.f32 %v4796, 0.0
  %v4813 = vmax.f32 %v4797, 0.0
  %v4814 = vmax.f32 %v4798, 0.0
  %v4815 = vmax.f32 %v4799, 0.0
  %v4816 = vmax.f32 %v4800, 0.0
  %v4817 = vmax.f32 %v4801, 0.0
  %v4818 = vmax.f32 %v4802, 0.0
  %v4819 = vmax.f32 %v4803, 0.0
  %v4820 = vmax.f32 %v4804, 0.0
  %v4821 = vmax.f32 %v4805, 0.0
  %v4822 = vmax.f32 %v4806, 0.0
  %v4823 = vmax.f32 %v4807, 0.0
  %v4824 = vmax.f32 %v4808, 0.0
  %v4825 = vmax.f32 %v4809, 0.0
  %v4827 = vperm.slane %v2448, 0
  %vm4829 = vcmask 523264
  %v4831 = vsel %vm4829, %v4813, 0
  %v4834 = vsel %vm4829, %v4817, 0
  %v4837 = vsel %vm4829, %v4821, 0
  %v4840 = vsel %vm4829, %v4825, 0
  %4842 = vmatpush.msra.mxu0 %v2407
  %4843 = vmatpush.msra.mxu0 %v2406
  %4844 = vmatpush.msra.mxu0 %v2405
  %4845 = vmatpush.msra.mxu0 %v2404
  %4846 = vmatpush.msra.mxu0 %v2403
  %4847 = vmatpush.msra.mxu0 %v2402
  %4848 = vmatpush.msra.mxu0 %v2401
  %4849 = vmatpush.msra.mxu0 %v2400
  %4850 = vmatpush.msra.mxu0 %v2399
  %4851 = vmatpush.msra.mxu0 %v2398
  %4852 = vmatpush.msra.mxu0 %v2397
  %4853 = vmatpush.msra.mxu0 %v2396
  %4854 = vmatpush.msra.mxu0 %v2395
  %4855 = vmatpush.msra.mxu0 %v2394
  %4856 = vmatpush.msra.mxu0 %v2393
  %4857 = vmatpush.msra.mxu0 %v2392
  %4858 = vmatmul.f32.gmra.mxu0 %v4810
  %v4859 = vpop.f32.mrf.mxu0
  %v4860 = vadd.f32 %v4827, %v4859
  %4861 = vmatmul.f32.gmra.mxu0 %v4814
  %v4862 = vpop.f32.mrf.mxu0
  %v4863 = vadd.f32 %v4827, %v4862
  %4864 = vmatmul.f32.gmra.mxu0 %v4818
  %v4865 = vpop.f32.mrf.mxu0
  %v4866 = vadd.f32 %v4827, %v4865
  %4867 = vmatmul.f32.gmra.mxu0 %v4822
  %v4868 = vpop.f32.mrf.mxu0
  %v4869 = vadd.f32 %v4827, %v4868
  %4870 = vdwg.mxu0
  %4871 = vmatpush.msra.mxu0 %v2423
  %4872 = vmatpush.msra.mxu0 %v2422
  %4873 = vmatpush.msra.mxu0 %v2421
  %4874 = vmatpush.msra.mxu0 %v2420
  %4875 = vmatpush.msra.mxu0 %v2419
  %4876 = vmatpush.msra.mxu0 %v2418
  %4877 = vmatpush.msra.mxu0 %v2417
  %4878 = vmatpush.msra.mxu0 %v2416
  %4879 = vmatpush.msra.mxu0 %v2415
  %4880 = vmatpush.msra.mxu0 %v2414
  %4881 = vmatpush.msra.mxu0 %v2413
  %4882 = vmatpush.msra.mxu0 %v2412
  %4883 = vmatpush.msra.mxu0 %v2411
  %4884 = vmatpush.msra.mxu0 %v2410
  %4885 = vmatpush.msra.mxu0 %v2409
  %4886 = vmatpush.msra.mxu0 %v2408
  %4887 = vmatmul.f32.gmra.mxu0 %v4811
  %v4888 = vpop.f32.mrf.mxu0
  %v4889 = vadd.f32 %v4860, %v4888
  %4890 = vmatmul.f32.gmra.mxu0 %v4815
  %v4891 = vpop.f32.mrf.mxu0
  %v4892 = vadd.f32 %v4863, %v4891
  %4893 = vmatmul.f32.gmra.mxu0 %v4819
  %v4894 = vpop.f32.mrf.mxu0
  %v4895 = vadd.f32 %v4866, %v4894
  %4896 = vmatmul.f32.gmra.mxu0 %v4823
  %v4897 = vpop.f32.mrf.mxu0
  %v4898 = vadd.f32 %v4869, %v4897
  %4899 = vdwg.mxu0
  %4900 = vmatpush.msra.mxu0 %v2439
  %4901 = vmatpush.msra.mxu0 %v2438
  %4902 = vmatpush.msra.mxu0 %v2437
  %4903 = vmatpush.msra.mxu0 %v2436
  %4904 = vmatpush.msra.mxu0 %v2435
  %4905 = vmatpush.msra.mxu0 %v2434
  %4906 = vmatpush.msra.mxu0 %v2433
  %4907 = vmatpush.msra.mxu0 %v2432
  %4908 = vmatpush.msra.mxu0 %v2431
  %4909 = vmatpush.msra.mxu0 %v2430
  %4910 = vmatpush.msra.mxu0 %v2429
  %4911 = vmatpush.msra.mxu0 %v2428
  %4912 = vmatpush.msra.mxu0 %v2427
  %4913 = vmatpush.msra.mxu0 %v2426
  %4914 = vmatpush.msra.mxu0 %v2425
  %4915 = vmatpush.msra.mxu0 %v2424
  %4916 = vmatmul.f32.gmra.mxu0 %v4812
  %v4917 = vpop.f32.mrf.mxu0
  %v4918 = vadd.f32 %v4889, %v4917
  %4919 = vmatmul.f32.gmra.mxu0 %v4816
  %v4920 = vpop.f32.mrf.mxu0
  %v4921 = vadd.f32 %v4892, %v4920
  %4922 = vmatmul.f32.gmra.mxu0 %v4820
  %v4923 = vpop.f32.mrf.mxu0
  %v4924 = vadd.f32 %v4895, %v4923
  %4925 = vmatmul.f32.gmra.mxu0 %v4824
  %v4926 = vpop.f32.mrf.mxu0
  %v4927 = vadd.f32 %v4898, %v4926
  %4928 = vdwg.mxu0
  %4929 = vmatpush.msra.mxu0 0.0
  %4930 = vmatpush.msra.mxu0 0.0
  %4931 = vmatpush.msra.mxu0 0.0
  %4932 = vmatpush.msra.mxu0 0.0
  %4933 = vmatpush.msra.mxu0 0.0
  %4934 = vmatpush.msra.mxu0 0.0
  %4935 = vmatpush.msra.mxu0 0.0
  %4936 = vmatpush.msra.mxu0 0.0
  %4937 = vmatpush.msra.mxu0 %v2447
  %4938 = vmatpush.msra.mxu0 %v2446
  %4939 = vmatpush.msra.mxu0 %v2445
  %4940 = vmatpush.msra.mxu0 %v2444
  %4941 = vmatpush.msra.mxu0 %v2443
  %4942 = vmatpush.msra.mxu0 %v2442
  %4943 = vmatpush.msra.mxu0 %v2441
  %4944 = vmatpush.msra.mxu0 %v2440
  %4945 = vmatmul.f32.gmra.mxu0 %v4831
  %v4946 = vpop.f32.mrf.mxu0
  %v4947 = vadd.f32 %v4918, %v4946
  %4948 = vmatmul.f32.gmra.mxu0 %v4834
  %v4949 = vpop.f32.mrf.mxu0
  %v4950 = vadd.f32 %v4921, %v4949
  %4951 = vmatmul.f32.gmra.mxu0 %v4837
  %v4952 = vpop.f32.mrf.mxu0
  %v4953 = vadd.f32 %v4924, %v4952
  %4954 = vmatmul.f32.gmra.mxu0 %v4840
  %v4955 = vpop.f32.mrf.mxu0
  %v4956 = vadd.f32 %v4927, %v4955
  %4957 = vdwg.mxu0
  %v4958 = vmul.f32 %v4947, 0.5
  %v4959 = vmul.f32 %v4950, 0.5
  %v4960 = vmul.f32 %v4953, 0.5
  %v4961 = vmul.f32 %v4956, 0.5
  %v4962 = vtanh.pop %v4958
  %v4963 = vtanh.pop %v4959
  %v4964 = vtanh.pop %v4960
  %v4965 = vtanh.pop %v4961
  %v4966 = vmul.f32 %v4962, 0.5
  %v4967 = vmul.f32 %v4963, 0.5
  %v4968 = vmul.f32 %v4964, 0.5
  %v4969 = vmul.f32 %v4965, 0.5
  %v4970 = vadd.f32 %v4966, 0.5
  %v4971 = vadd.f32 %v4967, 0.5
  %v4972 = vadd.f32 %v4968, 0.5
  %v4973 = vadd.f32 %v4969, 0.5
  %vm4974 = vcmask 228352
  %4975 = vst.msk [vmem:[%s9] sm:$0xff] %vm4974, %v4970
  %4976 = vst.msk [vmem:[%s9 + $0x8] sm:$0xff] %vm4974, %v4971
  %4977 = vst.msk [vmem:[%s9 + $0x10] sm:$0xff] %vm4974, %v4972
  %vm4978 = vcmask 224256
  %4979 = vst.msk [vmem:[%s9 + $0x18] sm:$0xf] %vm4978, %v4973
  %v4988 = vrot.slane %v1274, 1
  %v4989 = vrot.slane %v1276, 1
  %v4990 = vsel %vm2457, %v4988, %v4989
  %v4991 = vrot.slane %v1275, 1
  %v4992 = vrot.slane %v1277, 1
  %v4993 = vsel %vm2457, %v4991, %v4992
  %v4994 = vrot.slane %v1278, 1
  %v4995 = vsel %vm2457, %v4989, %v4994
  %v4996 = vrot.slane %v1279, 1
  %v4997 = vsel %vm2457, %v4992, %v4996
  %v4998 = vrot.slane %v1280, 1
  %v4999 = vsel %vm2457, %v4994, %v4998
  %v5000 = vrot.slane %v1281, 1
  %v5001 = vsel %vm2457, %v4996, %v5000
  %5010 = vmatpush.msra.mxu0 %v1471
  %5011 = vmatpush.msra.mxu0 %v1467
  %5012 = vmatpush.msra.mxu0 %v1463
  %5013 = vmatpush.msra.mxu0 %v1459
  %5014 = vmatpush.msra.mxu0 %v1455
  %5015 = vmatpush.msra.mxu0 %v1451
  %5016 = vmatpush.msra.mxu0 %v1447
  %5017 = vmatpush.msra.mxu0 %v1443
  %5018 = vmatpush.msra.mxu0 %v1439
  %5019 = vmatpush.msra.mxu0 %v1435
  %5020 = vmatpush.msra.mxu0 %v1431
  %5021 = vmatpush.msra.mxu0 %v1427
  %5022 = vmatpush.msra.mxu0 %v1423
  %5023 = vmatpush.msra.mxu0 %v1419
  %5024 = vmatpush.msra.mxu0 %v1415
  %5025 = vmatpush.msra.mxu0 %v1411
  %5026 = vmatmul.f32.gmra.mxu0 %v4990
  %v5027 = vpop.f32.mrf.mxu0
  %v5028 = vadd.f32 0.0, %v5027
  %5029 = vmatmul.f32.gmra.mxu0 %v4995
  %v5030 = vpop.f32.mrf.mxu0
  %v5031 = vadd.f32 0.0, %v5030
  %5032 = vmatmul.f32.gmra.mxu0 %v4999
  %v5033 = vpop.f32.mrf.mxu0
  %v5034 = vadd.f32 0.0, %v5033
  %5035 = vmatmul.f32.gmra.mxu0 %v4998
  %v5036 = vpop.f32.mrf.mxu0
  %v5037 = vadd.f32 0.0, %v5036
  %5038 = vdwg.mxu0
  %5039 = vmatpush.msra.mxu0 %v1535
  %5040 = vmatpush.msra.mxu0 %v1531
  %5041 = vmatpush.msra.mxu0 %v1527
  %5042 = vmatpush.msra.mxu0 %v1523
  %5043 = vmatpush.msra.mxu0 %v1519
  %5044 = vmatpush.msra.mxu0 %v1515
  %5045 = vmatpush.msra.mxu0 %v1511
  %5046 = vmatpush.msra.mxu0 %v1507
  %5047 = vmatpush.msra.mxu0 %v1503
  %5048 = vmatpush.msra.mxu0 %v1499
  %5049 = vmatpush.msra.mxu0 %v1495
  %5050 = vmatpush.msra.mxu0 %v1491
  %5051 = vmatpush.msra.mxu0 %v1487
  %5052 = vmatpush.msra.mxu0 %v1483
  %5053 = vmatpush.msra.mxu0 %v1479
  %5054 = vmatpush.msra.mxu0 %v1475
  %5055 = vmatmul.f32.gmra.mxu0 %v4993
  %v5056 = vpop.f32.mrf.mxu0
  %v5057 = vadd.f32 %v5028, %v5056
  %5058 = vmatmul.f32.gmra.mxu0 %v4997
  %v5059 = vpop.f32.mrf.mxu0
  %v5060 = vadd.f32 %v5031, %v5059
  %5061 = vmatmul.f32.gmra.mxu0 %v5001
  %v5062 = vpop.f32.mrf.mxu0
  %v5063 = vadd.f32 %v5034, %v5062
  %5064 = vmatmul.f32.gmra.mxu0 %v5000
  %v5065 = vpop.f32.mrf.mxu0
  %v5066 = vadd.f32 %v5037, %v5065
  %5067 = vdwg.mxu0
  %5068 = vmatpush.msra.mxu0 %v1472
  %5069 = vmatpush.msra.mxu0 %v1468
  %5070 = vmatpush.msra.mxu0 %v1464
  %5071 = vmatpush.msra.mxu0 %v1460
  %5072 = vmatpush.msra.mxu0 %v1456
  %5073 = vmatpush.msra.mxu0 %v1452
  %5074 = vmatpush.msra.mxu0 %v1448
  %5075 = vmatpush.msra.mxu0 %v1444
  %5076 = vmatpush.msra.mxu0 %v1440
  %5077 = vmatpush.msra.mxu0 %v1436
  %5078 = vmatpush.msra.mxu0 %v1432
  %5079 = vmatpush.msra.mxu0 %v1428
  %5080 = vmatpush.msra.mxu0 %v1424
  %5081 = vmatpush.msra.mxu0 %v1420
  %5082 = vmatpush.msra.mxu0 %v1416
  %5083 = vmatpush.msra.mxu0 %v1412
  %5084 = vmatmul.f32.gmra.mxu0 %v4990
  %v5085 = vpop.f32.mrf.mxu0
  %v5086 = vadd.f32 0.0, %v5085
  %5087 = vmatmul.f32.gmra.mxu0 %v4995
  %v5088 = vpop.f32.mrf.mxu0
  %v5089 = vadd.f32 0.0, %v5088
  %5090 = vmatmul.f32.gmra.mxu0 %v4999
  %v5091 = vpop.f32.mrf.mxu0
  %v5092 = vadd.f32 0.0, %v5091
  %5093 = vmatmul.f32.gmra.mxu0 %v4998
  %v5094 = vpop.f32.mrf.mxu0
  %v5095 = vadd.f32 0.0, %v5094
  %5096 = vdwg.mxu0
  %5097 = vmatpush.msra.mxu0 %v1536
  %5098 = vmatpush.msra.mxu0 %v1532
  %5099 = vmatpush.msra.mxu0 %v1528
  %5100 = vmatpush.msra.mxu0 %v1524
  %5101 = vmatpush.msra.mxu0 %v1520
  %5102 = vmatpush.msra.mxu0 %v1516
  %5103 = vmatpush.msra.mxu0 %v1512
  %5104 = vmatpush.msra.mxu0 %v1508
  %5105 = vmatpush.msra.mxu0 %v1504
  %5106 = vmatpush.msra.mxu0 %v1500
  %5107 = vmatpush.msra.mxu0 %v1496
  %5108 = vmatpush.msra.mxu0 %v1492
  %5109 = vmatpush.msra.mxu0 %v1488
  %5110 = vmatpush.msra.mxu0 %v1484
  %5111 = vmatpush.msra.mxu0 %v1480
  %5112 = vmatpush.msra.mxu0 %v1476
  %5113 = vmatmul.f32.gmra.mxu0 %v4993
  %v5114 = vpop.f32.mrf.mxu0
  %v5115 = vadd.f32 %v5086, %v5114
  %5116 = vmatmul.f32.gmra.mxu0 %v4997
  %v5117 = vpop.f32.mrf.mxu0
  %v5118 = vadd.f32 %v5089, %v5117
  %5119 = vmatmul.f32.gmra.mxu0 %v5001
  %v5120 = vpop.f32.mrf.mxu0
  %v5121 = vadd.f32 %v5092, %v5120
  %5122 = vmatmul.f32.gmra.mxu0 %v5000
  %v5123 = vpop.f32.mrf.mxu0
  %v5124 = vadd.f32 %v5095, %v5123
  %5125 = vdwg.mxu0
  %5126 = vmatpush.msra.mxu0 %v1473
  %5127 = vmatpush.msra.mxu0 %v1469
  %5128 = vmatpush.msra.mxu0 %v1465
  %5129 = vmatpush.msra.mxu0 %v1461
  %5130 = vmatpush.msra.mxu0 %v1457
  %5131 = vmatpush.msra.mxu0 %v1453
  %5132 = vmatpush.msra.mxu0 %v1449
  %5133 = vmatpush.msra.mxu0 %v1445
  %5134 = vmatpush.msra.mxu0 %v1441
  %5135 = vmatpush.msra.mxu0 %v1437
  %5136 = vmatpush.msra.mxu0 %v1433
  %5137 = vmatpush.msra.mxu0 %v1429
  %5138 = vmatpush.msra.mxu0 %v1425
  %5139 = vmatpush.msra.mxu0 %v1421
  %5140 = vmatpush.msra.mxu0 %v1417
  %5141 = vmatpush.msra.mxu0 %v1413
  %5142 = vmatmul.f32.gmra.mxu0 %v4990
  %v5143 = vpop.f32.mrf.mxu0
  %v5144 = vadd.f32 0.0, %v5143
  %5145 = vmatmul.f32.gmra.mxu0 %v4995
  %v5146 = vpop.f32.mrf.mxu0
  %v5147 = vadd.f32 0.0, %v5146
  %5148 = vmatmul.f32.gmra.mxu0 %v4999
  %v5149 = vpop.f32.mrf.mxu0
  %v5150 = vadd.f32 0.0, %v5149
  %5151 = vmatmul.f32.gmra.mxu0 %v4998
  %v5152 = vpop.f32.mrf.mxu0
  %v5153 = vadd.f32 0.0, %v5152
  %5154 = vdwg.mxu0
  %5155 = vmatpush.msra.mxu0 %v1537
  %5156 = vmatpush.msra.mxu0 %v1533
  %5157 = vmatpush.msra.mxu0 %v1529
  %5158 = vmatpush.msra.mxu0 %v1525
  %5159 = vmatpush.msra.mxu0 %v1521
  %5160 = vmatpush.msra.mxu0 %v1517
  %5161 = vmatpush.msra.mxu0 %v1513
  %5162 = vmatpush.msra.mxu0 %v1509
  %5163 = vmatpush.msra.mxu0 %v1505
  %5164 = vmatpush.msra.mxu0 %v1501
  %5165 = vmatpush.msra.mxu0 %v1497
  %5166 = vmatpush.msra.mxu0 %v1493
  %5167 = vmatpush.msra.mxu0 %v1489
  %5168 = vmatpush.msra.mxu0 %v1485
  %5169 = vmatpush.msra.mxu0 %v1481
  %5170 = vmatpush.msra.mxu0 %v1477
  %5171 = vmatmul.f32.gmra.mxu0 %v4993
  %v5172 = vpop.f32.mrf.mxu0
  %v5173 = vadd.f32 %v5144, %v5172
  %5174 = vmatmul.f32.gmra.mxu0 %v4997
  %v5175 = vpop.f32.mrf.mxu0
  %v5176 = vadd.f32 %v5147, %v5175
  %5177 = vmatmul.f32.gmra.mxu0 %v5001
  %v5178 = vpop.f32.mrf.mxu0
  %v5179 = vadd.f32 %v5150, %v5178
  %5180 = vmatmul.f32.gmra.mxu0 %v5000
  %v5181 = vpop.f32.mrf.mxu0
  %v5182 = vadd.f32 %v5153, %v5181
  %5183 = vdwg.mxu0
  %5184 = vmatpush.msra.mxu0 %v1474
  %5185 = vmatpush.msra.mxu0 %v1470
  %5186 = vmatpush.msra.mxu0 %v1466
  %5187 = vmatpush.msra.mxu0 %v1462
  %5188 = vmatpush.msra.mxu0 %v1458
  %5189 = vmatpush.msra.mxu0 %v1454
  %5190 = vmatpush.msra.mxu0 %v1450
  %5191 = vmatpush.msra.mxu0 %v1446
  %5192 = vmatpush.msra.mxu0 %v1442
  %5193 = vmatpush.msra.mxu0 %v1438
  %5194 = vmatpush.msra.mxu0 %v1434
  %5195 = vmatpush.msra.mxu0 %v1430
  %5196 = vmatpush.msra.mxu0 %v1426
  %5197 = vmatpush.msra.mxu0 %v1422
  %5198 = vmatpush.msra.mxu0 %v1418
  %5199 = vmatpush.msra.mxu0 %v1414
  %5200 = vmatmul.f32.gmra.mxu0 %v4990
  %v5201 = vpop.f32.mrf.mxu0
  %v5202 = vadd.f32 0.0, %v5201
  %5203 = vmatmul.f32.gmra.mxu0 %v4995
  %v5204 = vpop.f32.mrf.mxu0
  %v5205 = vadd.f32 0.0, %v5204
  %5206 = vmatmul.f32.gmra.mxu0 %v4999
  %v5207 = vpop.f32.mrf.mxu0
  %v5208 = vadd.f32 0.0, %v5207
  %5209 = vmatmul.f32.gmra.mxu0 %v4998
  %v5210 = vpop.f32.mrf.mxu0
  %v5211 = vadd.f32 0.0, %v5210
  %5212 = vdwg.mxu0
  %5213 = vmatpush.msra.mxu0 %v1538
  %5214 = vmatpush.msra.mxu0 %v1534
  %5215 = vmatpush.msra.mxu0 %v1530
  %5216 = vmatpush.msra.mxu0 %v1526
  %5217 = vmatpush.msra.mxu0 %v1522
  %5218 = vmatpush.msra.mxu0 %v1518
  %5219 = vmatpush.msra.mxu0 %v1514
  %5220 = vmatpush.msra.mxu0 %v1510
  %5221 = vmatpush.msra.mxu0 %v1506
  %5222 = vmatpush.msra.mxu0 %v1502
  %5223 = vmatpush.msra.mxu0 %v1498
  %5224 = vmatpush.msra.mxu0 %v1494
  %5225 = vmatpush.msra.mxu0 %v1490
  %5226 = vmatpush.msra.mxu0 %v1486
  %5227 = vmatpush.msra.mxu0 %v1482
  %5228 = vmatpush.msra.mxu0 %v1478
  %5229 = vmatmul.f32.gmra.mxu0 %v4993
  %v5230 = vpop.f32.mrf.mxu0
  %v5231 = vadd.f32 %v5202, %v5230
  %5232 = vmatmul.f32.gmra.mxu0 %v4997
  %v5233 = vpop.f32.mrf.mxu0
  %v5234 = vadd.f32 %v5205, %v5233
  %5235 = vmatmul.f32.gmra.mxu0 %v5001
  %v5236 = vpop.f32.mrf.mxu0
  %v5237 = vadd.f32 %v5208, %v5236
  %5238 = vmatmul.f32.gmra.mxu0 %v5000
  %v5239 = vpop.f32.mrf.mxu0
  %v5240 = vadd.f32 %v5211, %v5239
  %5241 = vdwg.mxu0
  %5242 = vmatpush.msra.mxu0 %v1342
  %5243 = vmatpush.msra.mxu0 %v1338
  %5244 = vmatpush.msra.mxu0 %v1334
  %5245 = vmatpush.msra.mxu0 %v1330
  %5246 = vmatpush.msra.mxu0 %v1326
  %5247 = vmatpush.msra.mxu0 %v1322
  %5248 = vmatpush.msra.mxu0 %v1318
  %5249 = vmatpush.msra.mxu0 %v1314
  %5250 = vmatpush.msra.mxu0 %v1310
  %5251 = vmatpush.msra.mxu0 %v1306
  %5252 = vmatpush.msra.mxu0 %v1302
  %5253 = vmatpush.msra.mxu0 %v1298
  %5254 = vmatpush.msra.mxu0 %v1294
  %5255 = vmatpush.msra.mxu0 %v1290
  %5256 = vmatpush.msra.mxu0 %v1286
  %5257 = vmatpush.msra.mxu0 %v1282
  %5258 = vmatmul.f32.gmra.mxu0 %v1274
  %v5259 = vpop.f32.mrf.mxu0
  %v5260 = vadd.f32 %v5057, %v5259
  %5261 = vmatmul.f32.gmra.mxu0 %v1276
  %v5262 = vpop.f32.mrf.mxu0
  %v5263 = vadd.f32 %v5060, %v5262
  %5264 = vmatmul.f32.gmra.mxu0 %v1278
  %v5265 = vpop.f32.mrf.mxu0
  %v5266 = vadd.f32 %v5063, %v5265
  %5267 = vmatmul.f32.gmra.mxu0 %v1280
  %v5268 = vpop.f32.mrf.mxu0
  %v5269 = vadd.f32 %v5066, %v5268
  %5270 = vdwg.mxu0
  %5271 = vmatpush.msra.mxu0 %v1406
  %5272 = vmatpush.msra.mxu0 %v1402
  %5273 = vmatpush.msra.mxu0 %v1398
  %5274 = vmatpush.msra.mxu0 %v1394
  %5275 = vmatpush.msra.mxu0 %v1390
  %5276 = vmatpush.msra.mxu0 %v1386
  %5277 = vmatpush.msra.mxu0 %v1382
  %5278 = vmatpush.msra.mxu0 %v1378
  %5279 = vmatpush.msra.mxu0 %v1374
  %5280 = vmatpush.msra.mxu0 %v1370
  %5281 = vmatpush.msra.mxu0 %v1366
  %5282 = vmatpush.msra.mxu0 %v1362
  %5283 = vmatpush.msra.mxu0 %v1358
  %5284 = vmatpush.msra.mxu0 %v1354
  %5285 = vmatpush.msra.mxu0 %v1350
  %5286 = vmatpush.msra.mxu0 %v1346
  %5287 = vmatmul.f32.gmra.mxu0 %v1275
  %v5288 = vpop.f32.mrf.mxu0
  %v5289 = vadd.f32 %v5260, %v5288
  %5290 = vmatmul.f32.gmra.mxu0 %v1277
  %v5291 = vpop.f32.mrf.mxu0
  %v5292 = vadd.f32 %v5263, %v5291
  %5293 = vmatmul.f32.gmra.mxu0 %v1279
  %v5294 = vpop.f32.mrf.mxu0
  %v5295 = vadd.f32 %v5266, %v5294
  %5296 = vmatmul.f32.gmra.mxu0 %v1281
  %v5297 = vpop.f32.mrf.mxu0
  %v5298 = vadd.f32 %v5269, %v5297
  %5299 = vdwg.mxu0
  %5300 = vmatpush.msra.mxu0 %v1343
  %5301 = vmatpush.msra.mxu0 %v1339
  %5302 = vmatpush.msra.mxu0 %v1335
  %5303 = vmatpush.msra.mxu0 %v1331
  %5304 = vmatpush.msra.mxu0 %v1327
  %5305 = vmatpush.msra.mxu0 %v1323
  %5306 = vmatpush.msra.mxu0 %v1319
  %5307 = vmatpush.msra.mxu0 %v1315
  %5308 = vmatpush.msra.mxu0 %v1311
  %5309 = vmatpush.msra.mxu0 %v1307
  %5310 = vmatpush.msra.mxu0 %v1303
  %5311 = vmatpush.msra.mxu0 %v1299
  %5312 = vmatpush.msra.mxu0 %v1295
  %5313 = vmatpush.msra.mxu0 %v1291
  %5314 = vmatpush.msra.mxu0 %v1287
  %5315 = vmatpush.msra.mxu0 %v1283
  %5316 = vmatmul.f32.gmra.mxu0 %v1274
  %v5317 = vpop.f32.mrf.mxu0
  %v5318 = vadd.f32 %v5115, %v5317
  %5319 = vmatmul.f32.gmra.mxu0 %v1276
  %v5320 = vpop.f32.mrf.mxu0
  %v5321 = vadd.f32 %v5118, %v5320
  %5322 = vmatmul.f32.gmra.mxu0 %v1278
  %v5323 = vpop.f32.mrf.mxu0
  %v5324 = vadd.f32 %v5121, %v5323
  %5325 = vmatmul.f32.gmra.mxu0 %v1280
  %v5326 = vpop.f32.mrf.mxu0
  %v5327 = vadd.f32 %v5124, %v5326
  %5328 = vdwg.mxu0
  %5329 = vmatpush.msra.mxu0 %v1407
  %5330 = vmatpush.msra.mxu0 %v1403
  %5331 = vmatpush.msra.mxu0 %v1399
  %5332 = vmatpush.msra.mxu0 %v1395
  %5333 = vmatpush.msra.mxu0 %v1391
  %5334 = vmatpush.msra.mxu0 %v1387
  %5335 = vmatpush.msra.mxu0 %v1383
  %5336 = vmatpush.msra.mxu0 %v1379
  %5337 = vmatpush.msra.mxu0 %v1375
  %5338 = vmatpush.msra.mxu0 %v1371
  %5339 = vmatpush.msra.mxu0 %v1367
  %5340 = vmatpush.msra.mxu0 %v1363
  %5341 = vmatpush.msra.mxu0 %v1359
  %5342 = vmatpush.msra.mxu0 %v1355
  %5343 = vmatpush.msra.mxu0 %v1351
  %5344 = vmatpush.msra.mxu0 %v1347
  %5345 = vmatmul.f32.gmra.mxu0 %v1275
  %v5346 = vpop.f32.mrf.mxu0
  %v5347 = vadd.f32 %v5318, %v5346
  %5348 = vmatmul.f32.gmra.mxu0 %v1277
  %v5349 = vpop.f32.mrf.mxu0
  %v5350 = vadd.f32 %v5321, %v5349
  %5351 = vmatmul.f32.gmra.mxu0 %v1279
  %v5352 = vpop.f32.mrf.mxu0
  %v5353 = vadd.f32 %v5324, %v5352
  %5354 = vmatmul.f32.gmra.mxu0 %v1281
  %v5355 = vpop.f32.mrf.mxu0
  %v5356 = vadd.f32 %v5327, %v5355
  %5357 = vdwg.mxu0
  %5358 = vmatpush.msra.mxu0 %v1344
  %5359 = vmatpush.msra.mxu0 %v1340
  %5360 = vmatpush.msra.mxu0 %v1336
  %5361 = vmatpush.msra.mxu0 %v1332
  %5362 = vmatpush.msra.mxu0 %v1328
  %5363 = vmatpush.msra.mxu0 %v1324
  %5364 = vmatpush.msra.mxu0 %v1320
  %5365 = vmatpush.msra.mxu0 %v1316
  %5366 = vmatpush.msra.mxu0 %v1312
  %5367 = vmatpush.msra.mxu0 %v1308
  %5368 = vmatpush.msra.mxu0 %v1304
  %5369 = vmatpush.msra.mxu0 %v1300
  %5370 = vmatpush.msra.mxu0 %v1296
  %5371 = vmatpush.msra.mxu0 %v1292
  %5372 = vmatpush.msra.mxu0 %v1288
  %5373 = vmatpush.msra.mxu0 %v1284
  %5374 = vmatmul.f32.gmra.mxu0 %v1274
  %v5375 = vpop.f32.mrf.mxu0
  %v5376 = vadd.f32 %v5173, %v5375
  %5377 = vmatmul.f32.gmra.mxu0 %v1276
  %v5378 = vpop.f32.mrf.mxu0
  %v5379 = vadd.f32 %v5176, %v5378
  %5380 = vmatmul.f32.gmra.mxu0 %v1278
  %v5381 = vpop.f32.mrf.mxu0
  %v5382 = vadd.f32 %v5179, %v5381
  %5383 = vmatmul.f32.gmra.mxu0 %v1280
  %v5384 = vpop.f32.mrf.mxu0
  %v5385 = vadd.f32 %v5182, %v5384
  %5386 = vdwg.mxu0
  %5387 = vmatpush.msra.mxu0 %v1408
  %5388 = vmatpush.msra.mxu0 %v1404
  %5389 = vmatpush.msra.mxu0 %v1400
  %5390 = vmatpush.msra.mxu0 %v1396
  %5391 = vmatpush.msra.mxu0 %v1392
  %5392 = vmatpush.msra.mxu0 %v1388
  %5393 = vmatpush.msra.mxu0 %v1384
  %5394 = vmatpush.msra.mxu0 %v1380
  %5395 = vmatpush.msra.mxu0 %v1376
  %5396 = vmatpush.msra.mxu0 %v1372
  %5397 = vmatpush.msra.mxu0 %v1368
  %5398 = vmatpush.msra.mxu0 %v1364
  %5399 = vmatpush.msra.mxu0 %v1360
  %5400 = vmatpush.msra.mxu0 %v1356
  %5401 = vmatpush.msra.mxu0 %v1352
  %5402 = vmatpush.msra.mxu0 %v1348
  %5403 = vmatmul.f32.gmra.mxu0 %v1275
  %v5404 = vpop.f32.mrf.mxu0
  %v5405 = vadd.f32 %v5376, %v5404
  %5406 = vmatmul.f32.gmra.mxu0 %v1277
  %v5407 = vpop.f32.mrf.mxu0
  %v5408 = vadd.f32 %v5379, %v5407
  %5409 = vmatmul.f32.gmra.mxu0 %v1279
  %v5410 = vpop.f32.mrf.mxu0
  %v5411 = vadd.f32 %v5382, %v5410
  %5412 = vmatmul.f32.gmra.mxu0 %v1281
  %v5413 = vpop.f32.mrf.mxu0
  %v5414 = vadd.f32 %v5385, %v5413
  %5415 = vdwg.mxu0
  %5416 = vmatpush.msra.mxu0 %v1345
  %5417 = vmatpush.msra.mxu0 %v1341
  %5418 = vmatpush.msra.mxu0 %v1337
  %5419 = vmatpush.msra.mxu0 %v1333
  %5420 = vmatpush.msra.mxu0 %v1329
  %5421 = vmatpush.msra.mxu0 %v1325
  %5422 = vmatpush.msra.mxu0 %v1321
  %5423 = vmatpush.msra.mxu0 %v1317
  %5424 = vmatpush.msra.mxu0 %v1313
  %5425 = vmatpush.msra.mxu0 %v1309
  %5426 = vmatpush.msra.mxu0 %v1305
  %5427 = vmatpush.msra.mxu0 %v1301
  %5428 = vmatpush.msra.mxu0 %v1297
  %5429 = vmatpush.msra.mxu0 %v1293
  %5430 = vmatpush.msra.mxu0 %v1289
  %5431 = vmatpush.msra.mxu0 %v1285
  %5432 = vmatmul.f32.gmra.mxu0 %v1274
  %v5433 = vpop.f32.mrf.mxu0
  %v5434 = vadd.f32 %v5231, %v5433
  %5435 = vmatmul.f32.gmra.mxu0 %v1276
  %v5436 = vpop.f32.mrf.mxu0
  %v5437 = vadd.f32 %v5234, %v5436
  %5438 = vmatmul.f32.gmra.mxu0 %v1278
  %v5439 = vpop.f32.mrf.mxu0
  %v5440 = vadd.f32 %v5237, %v5439
  %5441 = vmatmul.f32.gmra.mxu0 %v1280
  %v5442 = vpop.f32.mrf.mxu0
  %v5443 = vadd.f32 %v5240, %v5442
  %5444 = vdwg.mxu0
  %5445 = vmatpush.msra.mxu0 %v1409
  %5446 = vmatpush.msra.mxu0 %v1405
  %5447 = vmatpush.msra.mxu0 %v1401
  %5448 = vmatpush.msra.mxu0 %v1397
  %5449 = vmatpush.msra.mxu0 %v1393
  %5450 = vmatpush.msra.mxu0 %v1389
  %5451 = vmatpush.msra.mxu0 %v1385
  %5452 = vmatpush.msra.mxu0 %v1381
  %5453 = vmatpush.msra.mxu0 %v1377
  %5454 = vmatpush.msra.mxu0 %v1373
  %5455 = vmatpush.msra.mxu0 %v1369
  %5456 = vmatpush.msra.mxu0 %v1365
  %5457 = vmatpush.msra.mxu0 %v1361
  %5458 = vmatpush.msra.mxu0 %v1357
  %5459 = vmatpush.msra.mxu0 %v1353
  %5460 = vmatpush.msra.mxu0 %v1349
  %5461 = vmatmul.f32.gmra.mxu0 %v1275
  %v5462 = vpop.f32.mrf.mxu0
  %v5463 = vadd.f32 %v5434, %v5462
  %5464 = vmatmul.f32.gmra.mxu0 %v1277
  %v5465 = vpop.f32.mrf.mxu0
  %v5466 = vadd.f32 %v5437, %v5465
  %5467 = vmatmul.f32.gmra.mxu0 %v1279
  %v5468 = vpop.f32.mrf.mxu0
  %v5469 = vadd.f32 %v5440, %v5468
  %5470 = vmatmul.f32.gmra.mxu0 %v1281
  %v5471 = vpop.f32.mrf.mxu0
  %v5472 = vadd.f32 %v5443, %v5471
  %5473 = vdwg.mxu0
  %v5474 = vrot.slane %v1274, 2
  %v5475 = vrot.slane %v1276, 2
  %v5476 = vsel %vm2944, %v5474, %v5475
  %v5477 = vrot.slane %v1275, 2
  %v5478 = vrot.slane %v1277, 2
  %v5479 = vsel %vm2944, %v5477, %v5478
  %v5480 = vrot.slane %v1278, 2
  %v5481 = vsel %vm2944, %v5475, %v5480
  %v5482 = vrot.slane %v1279, 2
  %v5483 = vsel %vm2944, %v5478, %v5482
  %v5484 = vrot.slane %v1280, 2
  %v5485 = vsel %vm2944, %v5480, %v5484
  %v5486 = vrot.slane %v1281, 2
  %v5487 = vsel %vm2944, %v5482, %v5486
  %5496 = vmatpush.msra.mxu0 %v1600
  %5497 = vmatpush.msra.mxu0 %v1596
  %5498 = vmatpush.msra.mxu0 %v1592
  %5499 = vmatpush.msra.mxu0 %v1588
  %5500 = vmatpush.msra.mxu0 %v1584
  %5501 = vmatpush.msra.mxu0 %v1580
  %5502 = vmatpush.msra.mxu0 %v1576
  %5503 = vmatpush.msra.mxu0 %v1572
  %5504 = vmatpush.msra.mxu0 %v1568
  %5505 = vmatpush.msra.mxu0 %v1564
  %5506 = vmatpush.msra.mxu0 %v1560
  %5507 = vmatpush.msra.mxu0 %v1556
  %5508 = vmatpush.msra.mxu0 %v1552
  %5509 = vmatpush.msra.mxu0 %v1548
  %5510 = vmatpush.msra.mxu0 %v1544
  %5511 = vmatpush.msra.mxu0 %v1540
  %5512 = vmatmul.f32.gmra.mxu0 %v5476
  %v5513 = vpop.f32.mrf.mxu0
  %v5514 = vadd.f32 0.0, %v5513
  %5515 = vmatmul.f32.gmra.mxu0 %v5481
  %v5516 = vpop.f32.mrf.mxu0
  %v5517 = vadd.f32 0.0, %v5516
  %5518 = vmatmul.f32.gmra.mxu0 %v5485
  %v5519 = vpop.f32.mrf.mxu0
  %v5520 = vadd.f32 0.0, %v5519
  %5521 = vmatmul.f32.gmra.mxu0 %v5484
  %v5522 = vpop.f32.mrf.mxu0
  %v5523 = vadd.f32 0.0, %v5522
  %5524 = vdwg.mxu0
  %5525 = vmatpush.msra.mxu0 %v1664
  %5526 = vmatpush.msra.mxu0 %v1660
  %5527 = vmatpush.msra.mxu0 %v1656
  %5528 = vmatpush.msra.mxu0 %v1652
  %5529 = vmatpush.msra.mxu0 %v1648
  %5530 = vmatpush.msra.mxu0 %v1644
  %5531 = vmatpush.msra.mxu0 %v1640
  %5532 = vmatpush.msra.mxu0 %v1636
  %5533 = vmatpush.msra.mxu0 %v1632
  %5534 = vmatpush.msra.mxu0 %v1628
  %5535 = vmatpush.msra.mxu0 %v1624
  %5536 = vmatpush.msra.mxu0 %v1620
  %5537 = vmatpush.msra.mxu0 %v1616
  %5538 = vmatpush.msra.mxu0 %v1612
  %5539 = vmatpush.msra.mxu0 %v1608
  %5540 = vmatpush.msra.mxu0 %v1604
  %5541 = vmatmul.f32.gmra.mxu0 %v5479
  %v5542 = vpop.f32.mrf.mxu0
  %v5543 = vadd.f32 %v5514, %v5542
  %5544 = vmatmul.f32.gmra.mxu0 %v5483
  %v5545 = vpop.f32.mrf.mxu0
  %v5546 = vadd.f32 %v5517, %v5545
  %5547 = vmatmul.f32.gmra.mxu0 %v5487
  %v5548 = vpop.f32.mrf.mxu0
  %v5549 = vadd.f32 %v5520, %v5548
  %5550 = vmatmul.f32.gmra.mxu0 %v5486
  %v5551 = vpop.f32.mrf.mxu0
  %v5552 = vadd.f32 %v5523, %v5551
  %5553 = vdwg.mxu0
  %5554 = vmatpush.msra.mxu0 %v1601
  %5555 = vmatpush.msra.mxu0 %v1597
  %5556 = vmatpush.msra.mxu0 %v1593
  %5557 = vmatpush.msra.mxu0 %v1589
  %5558 = vmatpush.msra.mxu0 %v1585
  %5559 = vmatpush.msra.mxu0 %v1581
  %5560 = vmatpush.msra.mxu0 %v1577
  %5561 = vmatpush.msra.mxu0 %v1573
  %5562 = vmatpush.msra.mxu0 %v1569
  %5563 = vmatpush.msra.mxu0 %v1565
  %5564 = vmatpush.msra.mxu0 %v1561
  %5565 = vmatpush.msra.mxu0 %v1557
  %5566 = vmatpush.msra.mxu0 %v1553
  %5567 = vmatpush.msra.mxu0 %v1549
  %5568 = vmatpush.msra.mxu0 %v1545
  %5569 = vmatpush.msra.mxu0 %v1541
  %5570 = vmatmul.f32.gmra.mxu0 %v5476
  %v5571 = vpop.f32.mrf.mxu0
  %v5572 = vadd.f32 0.0, %v5571
  %5573 = vmatmul.f32.gmra.mxu0 %v5481
  %v5574 = vpop.f32.mrf.mxu0
  %v5575 = vadd.f32 0.0, %v5574
  %5576 = vmatmul.f32.gmra.mxu0 %v5485
  %v5577 = vpop.f32.mrf.mxu0
  %v5578 = vadd.f32 0.0, %v5577
  %5579 = vmatmul.f32.gmra.mxu0 %v5484
  %v5580 = vpop.f32.mrf.mxu0
  %v5581 = vadd.f32 0.0, %v5580
  %5582 = vdwg.mxu0
  %5583 = vmatpush.msra.mxu0 %v1665
  %5584 = vmatpush.msra.mxu0 %v1661
  %5585 = vmatpush.msra.mxu0 %v1657
  %5586 = vmatpush.msra.mxu0 %v1653
  %5587 = vmatpush.msra.mxu0 %v1649
  %5588 = vmatpush.msra.mxu0 %v1645
  %5589 = vmatpush.msra.mxu0 %v1641
  %5590 = vmatpush.msra.mxu0 %v1637
  %5591 = vmatpush.msra.mxu0 %v1633
  %5592 = vmatpush.msra.mxu0 %v1629
  %5593 = vmatpush.msra.mxu0 %v1625
  %5594 = vmatpush.msra.mxu0 %v1621
  %5595 = vmatpush.msra.mxu0 %v1617
  %5596 = vmatpush.msra.mxu0 %v1613
  %5597 = vmatpush.msra.mxu0 %v1609
  %5598 = vmatpush.msra.mxu0 %v1605
  %5599 = vmatmul.f32.gmra.mxu0 %v5479
  %v5600 = vpop.f32.mrf.mxu0
  %v5601 = vadd.f32 %v5572, %v5600
  %5602 = vmatmul.f32.gmra.mxu0 %v5483
  %v5603 = vpop.f32.mrf.mxu0
  %v5604 = vadd.f32 %v5575, %v5603
  %5605 = vmatmul.f32.gmra.mxu0 %v5487
  %v5606 = vpop.f32.mrf.mxu0
  %v5607 = vadd.f32 %v5578, %v5606
  %5608 = vmatmul.f32.gmra.mxu0 %v5486
  %v5609 = vpop.f32.mrf.mxu0
  %v5610 = vadd.f32 %v5581, %v5609
  %5611 = vdwg.mxu0
  %5612 = vmatpush.msra.mxu0 %v1602
  %5613 = vmatpush.msra.mxu0 %v1598
  %5614 = vmatpush.msra.mxu0 %v1594
  %5615 = vmatpush.msra.mxu0 %v1590
  %5616 = vmatpush.msra.mxu0 %v1586
  %5617 = vmatpush.msra.mxu0 %v1582
  %5618 = vmatpush.msra.mxu0 %v1578
  %5619 = vmatpush.msra.mxu0 %v1574
  %5620 = vmatpush.msra.mxu0 %v1570
  %5621 = vmatpush.msra.mxu0 %v1566
  %5622 = vmatpush.msra.mxu0 %v1562
  %5623 = vmatpush.msra.mxu0 %v1558
  %5624 = vmatpush.msra.mxu0 %v1554
  %5625 = vmatpush.msra.mxu0 %v1550
  %5626 = vmatpush.msra.mxu0 %v1546
  %5627 = vmatpush.msra.mxu0 %v1542
  %5628 = vmatmul.f32.gmra.mxu0 %v5476
  %v5629 = vpop.f32.mrf.mxu0
  %v5630 = vadd.f32 0.0, %v5629
  %5631 = vmatmul.f32.gmra.mxu0 %v5481
  %v5632 = vpop.f32.mrf.mxu0
  %v5633 = vadd.f32 0.0, %v5632
  %5634 = vmatmul.f32.gmra.mxu0 %v5485
  %v5635 = vpop.f32.mrf.mxu0
  %v5636 = vadd.f32 0.0, %v5635
  %5637 = vmatmul.f32.gmra.mxu0 %v5484
  %v5638 = vpop.f32.mrf.mxu0
  %v5639 = vadd.f32 0.0, %v5638
  %5640 = vdwg.mxu0
  %5641 = vmatpush.msra.mxu0 %v1666
  %5642 = vmatpush.msra.mxu0 %v1662
  %5643 = vmatpush.msra.mxu0 %v1658
  %5644 = vmatpush.msra.mxu0 %v1654
  %5645 = vmatpush.msra.mxu0 %v1650
  %5646 = vmatpush.msra.mxu0 %v1646
  %5647 = vmatpush.msra.mxu0 %v1642
  %5648 = vmatpush.msra.mxu0 %v1638
  %5649 = vmatpush.msra.mxu0 %v1634
  %5650 = vmatpush.msra.mxu0 %v1630
  %5651 = vmatpush.msra.mxu0 %v1626
  %5652 = vmatpush.msra.mxu0 %v1622
  %5653 = vmatpush.msra.mxu0 %v1618
  %5654 = vmatpush.msra.mxu0 %v1614
  %5655 = vmatpush.msra.mxu0 %v1610
  %5656 = vmatpush.msra.mxu0 %v1606
  %5657 = vmatmul.f32.gmra.mxu0 %v5479
  %v5658 = vpop.f32.mrf.mxu0
  %v5659 = vadd.f32 %v5630, %v5658
  %5660 = vmatmul.f32.gmra.mxu0 %v5483
  %v5661 = vpop.f32.mrf.mxu0
  %v5662 = vadd.f32 %v5633, %v5661
  %5663 = vmatmul.f32.gmra.mxu0 %v5487
  %v5664 = vpop.f32.mrf.mxu0
  %v5665 = vadd.f32 %v5636, %v5664
  %5666 = vmatmul.f32.gmra.mxu0 %v5486
  %v5667 = vpop.f32.mrf.mxu0
  %v5668 = vadd.f32 %v5639, %v5667
  %5669 = vdwg.mxu0
  %5670 = vmatpush.msra.mxu0 %v1603
  %5671 = vmatpush.msra.mxu0 %v1599
  %5672 = vmatpush.msra.mxu0 %v1595
  %5673 = vmatpush.msra.mxu0 %v1591
  %5674 = vmatpush.msra.mxu0 %v1587
  %5675 = vmatpush.msra.mxu0 %v1583
  %5676 = vmatpush.msra.mxu0 %v1579
  %5677 = vmatpush.msra.mxu0 %v1575
  %5678 = vmatpush.msra.mxu0 %v1571
  %5679 = vmatpush.msra.mxu0 %v1567
  %5680 = vmatpush.msra.mxu0 %v1563
  %5681 = vmatpush.msra.mxu0 %v1559
  %5682 = vmatpush.msra.mxu0 %v1555
  %5683 = vmatpush.msra.mxu0 %v1551
  %5684 = vmatpush.msra.mxu0 %v1547
  %5685 = vmatpush.msra.mxu0 %v1543
  %5686 = vmatmul.f32.gmra.mxu0 %v5476
  %v5687 = vpop.f32.mrf.mxu0
  %v5688 = vadd.f32 0.0, %v5687
  %5689 = vmatmul.f32.gmra.mxu0 %v5481
  %v5690 = vpop.f32.mrf.mxu0
  %v5691 = vadd.f32 0.0, %v5690
  %5692 = vmatmul.f32.gmra.mxu0 %v5485
  %v5693 = vpop.f32.mrf.mxu0
  %v5694 = vadd.f32 0.0, %v5693
  %5695 = vmatmul.f32.gmra.mxu0 %v5484
  %v5696 = vpop.f32.mrf.mxu0
  %v5697 = vadd.f32 0.0, %v5696
  %5698 = vdwg.mxu0
  %5699 = vmatpush.msra.mxu0 %v1667
  %5700 = vmatpush.msra.mxu0 %v1663
  %5701 = vmatpush.msra.mxu0 %v1659
  %5702 = vmatpush.msra.mxu0 %v1655
  %5703 = vmatpush.msra.mxu0 %v1651
  %5704 = vmatpush.msra.mxu0 %v1647
  %5705 = vmatpush.msra.mxu0 %v1643
  %5706 = vmatpush.msra.mxu0 %v1639
  %5707 = vmatpush.msra.mxu0 %v1635
  %5708 = vmatpush.msra.mxu0 %v1631
  %5709 = vmatpush.msra.mxu0 %v1627
  %5710 = vmatpush.msra.mxu0 %v1623
  %5711 = vmatpush.msra.mxu0 %v1619
  %5712 = vmatpush.msra.mxu0 %v1615
  %5713 = vmatpush.msra.mxu0 %v1611
  %5714 = vmatpush.msra.mxu0 %v1607
  %5715 = vmatmul.f32.gmra.mxu0 %v5479
  %v5716 = vpop.f32.mrf.mxu0
  %v5717 = vadd.f32 %v5688, %v5716
  %5718 = vmatmul.f32.gmra.mxu0 %v5483
  %v5719 = vpop.f32.mrf.mxu0
  %v5720 = vadd.f32 %v5691, %v5719
  %5721 = vmatmul.f32.gmra.mxu0 %v5487
  %v5722 = vpop.f32.mrf.mxu0
  %v5723 = vadd.f32 %v5694, %v5722
  %5724 = vmatmul.f32.gmra.mxu0 %v5486
  %v5725 = vpop.f32.mrf.mxu0
  %v5726 = vadd.f32 %v5697, %v5725
  %5727 = vdwg.mxu0
  %v5728 = vadd.f32 %v5289, %v5543
  %v5729 = vadd.f32 %v5347, %v5601
  %v5730 = vadd.f32 %v5405, %v5659
  %v5731 = vadd.f32 %v5463, %v5717
  %v5732 = vadd.f32 %v5292, %v5546
  %v5733 = vadd.f32 %v5350, %v5604
  %v5734 = vadd.f32 %v5408, %v5662
  %v5735 = vadd.f32 %v5466, %v5720
  %v5736 = vadd.f32 %v5295, %v5549
  %v5737 = vadd.f32 %v5353, %v5607
  %v5738 = vadd.f32 %v5411, %v5665
  %v5739 = vadd.f32 %v5469, %v5723
  %v5740 = vadd.f32 %v5298, %v5552
  %v5741 = vadd.f32 %v5356, %v5610
  %v5742 = vadd.f32 %v5414, %v5668
  %v5743 = vadd.f32 %v5472, %v5726
  %v5744 = vadd.f32 %v5728, %v3216
  %v5745 = vadd.f32 %v5729, %v3217
  %v5746 = vadd.f32 %v5730, %v3218
  %v5747 = vadd.f32 %v5731, %v3219
  %v5748 = vadd.f32 %v5732, %v3216
  %v5749 = vadd.f32 %v5733, %v3217
  %v5750 = vadd.f32 %v5734, %v3218
  %v5751 = vadd.f32 %v5735, %v3219
  %v5752 = vadd.f32 %v5736, %v3216
  %v5753 = vadd.f32 %v5737, %v3217
  %v5754 = vadd.f32 %v5738, %v3218
  %v5755 = vadd.f32 %v5739, %v3219
  %v5756 = vadd.f32 %v5740, %v3216
  %v5757 = vadd.f32 %v5741, %v3217
  %v5758 = vadd.f32 %v5742, %v3218
  %v5759 = vadd.f32 %v5743, %v3219
  %v5760 = vmax.f32 %v5744, 0.0
  %v5761 = vmax.f32 %v5745, 0.0
  %v5762 = vmax.f32 %v5746, 0.0
  %v5763 = vmax.f32 %v5747, 0.0
  %v5764 = vmax.f32 %v5748, 0.0
  %v5765 = vmax.f32 %v5749, 0.0
  %v5766 = vmax.f32 %v5750, 0.0
  %v5767 = vmax.f32 %v5751, 0.0
  %v5768 = vmax.f32 %v5752, 0.0
  %v5769 = vmax.f32 %v5753, 0.0
  %v5770 = vmax.f32 %v5754, 0.0
  %v5771 = vmax.f32 %v5755, 0.0
  %v5772 = vmax.f32 %v5756, 0.0
  %v5773 = vmax.f32 %v5757, 0.0
  %v5774 = vmax.f32 %v5758, 0.0
  %v5775 = vmax.f32 %v5759, 0.0
  %v5792 = vrot.slane %v5760, 1
  %v5793 = vrot.slane %v5764, 1
  %v5794 = vsel %vm2457, %v5792, %v5793
  %v5795 = vrot.slane %v5761, 1
  %v5796 = vrot.slane %v5765, 1
  %v5797 = vsel %vm2457, %v5795, %v5796
  %v5798 = vrot.slane %v5762, 1
  %v5799 = vrot.slane %v5766, 1
  %v5800 = vsel %vm2457, %v5798, %v5799
  %v5801 = vrot.slane %v5763, 1
  %v5802 = vrot.slane %v5767, 1
  %v5803 = vsel %vm2457, %v5801, %v5802
  %v5804 = vrot.slane %v5768, 1
  %v5805 = vsel %vm2457, %v5793, %v5804
  %v5806 = vrot.slane %v5769, 1
  %v5807 = vsel %vm2457, %v5796, %v5806
  %v5808 = vrot.slane %v5770, 1
  %v5809 = vsel %vm2457, %v5799, %v5808
  %v5810 = vrot.slane %v5771, 1
  %v5811 = vsel %vm2457, %v5802, %v5810
  %v5812 = vrot.slane %v5772, 1
  %v5813 = vsel %vm2457, %v5804, %v5812
  %v5814 = vrot.slane %v5773, 1
  %v5815 = vsel %vm2457, %v5806, %v5814
  %v5816 = vrot.slane %v5774, 1
  %v5817 = vsel %vm2457, %v5808, %v5816
  %v5818 = vrot.slane %v5775, 1
  %v5819 = vsel %vm2457, %v5810, %v5818
  %v5832 = vsel %vm3312, %v5803, 0
  %v5834 = vsel %vm3312, %v5811, 0
  %v5836 = vsel %vm3312, %v5819, 0
  %v5838 = vsel %vm3312, %v5818, 0
  %5840 = vmatpush.msra.mxu0 %v1969
  %5841 = vmatpush.msra.mxu0 %v1965
  %5842 = vmatpush.msra.mxu0 %v1961
  %5843 = vmatpush.msra.mxu0 %v1957
  %5844 = vmatpush.msra.mxu0 %v1953
  %5845 = vmatpush.msra.mxu0 %v1949
  %5846 = vmatpush.msra.mxu0 %v1945
  %5847 = vmatpush.msra.mxu0 %v1941
  %5848 = vmatpush.msra.mxu0 %v1937
  %5849 = vmatpush.msra.mxu0 %v1933
  %5850 = vmatpush.msra.mxu0 %v1929
  %5851 = vmatpush.msra.mxu0 %v1925
  %5852 = vmatpush.msra.mxu0 %v1921
  %5853 = vmatpush.msra.mxu0 %v1917
  %5854 = vmatpush.msra.mxu0 %v1913
  %5855 = vmatpush.msra.mxu0 %v1909
  %5856 = vmatmul.f32.gmra.mxu0 %v5794
  %v5857 = vpop.f32.mrf.mxu0
  %v5858 = vadd.f32 0.0, %v5857
  %5859 = vmatmul.f32.gmra.mxu0 %v5805
  %v5860 = vpop.f32.mrf.mxu0
  %v5861 = vadd.f32 0.0, %v5860
  %5862 = vmatmul.f32.gmra.mxu0 %v5813
  %v5863 = vpop.f32.mrf.mxu0
  %v5864 = vadd.f32 0.0, %v5863
  %5865 = vmatmul.f32.gmra.mxu0 %v5812
  %v5866 = vpop.f32.mrf.mxu0
  %v5867 = vadd.f32 0.0, %v5866
  %5868 = vdwg.mxu0
  %5869 = vmatpush.msra.mxu0 %v2033
  %5870 = vmatpush.msra.mxu0 %v2029
  %5871 = vmatpush.msra.mxu0 %v2025
  %5872 = vmatpush.msra.mxu0 %v2021
  %5873 = vmatpush.msra.mxu0 %v2017
  %5874 = vmatpush.msra.mxu0 %v2013
  %5875 = vmatpush.msra.mxu0 %v2009
  %5876 = vmatpush.msra.mxu0 %v2005
  %5877 = vmatpush.msra.mxu0 %v2001
  %5878 = vmatpush.msra.mxu0 %v1997
  %5879 = vmatpush.msra.mxu0 %v1993
  %5880 = vmatpush.msra.mxu0 %v1989
  %5881 = vmatpush.msra.mxu0 %v1985
  %5882 = vmatpush.msra.mxu0 %v1981
  %5883 = vmatpush.msra.mxu0 %v1977
  %5884 = vmatpush.msra.mxu0 %v1973
  %5885 = vmatmul.f32.gmra.mxu0 %v5797
  %v5886 = vpop.f32.mrf.mxu0
  %v5887 = vadd.f32 %v5858, %v5886
  %5888 = vmatmul.f32.gmra.mxu0 %v5807
  %v5889 = vpop.f32.mrf.mxu0
  %v5890 = vadd.f32 %v5861, %v5889
  %5891 = vmatmul.f32.gmra.mxu0 %v5815
  %v5892 = vpop.f32.mrf.mxu0
  %v5893 = vadd.f32 %v5864, %v5892
  %5894 = vmatmul.f32.gmra.mxu0 %v5814
  %v5895 = vpop.f32.mrf.mxu0
  %v5896 = vadd.f32 %v5867, %v5895
  %5897 = vdwg.mxu0
  %5898 = vmatpush.msra.mxu0 %v2097
  %5899 = vmatpush.msra.mxu0 %v2093
  %5900 = vmatpush.msra.mxu0 %v2089
  %5901 = vmatpush.msra.mxu0 %v2085
  %5902 = vmatpush.msra.mxu0 %v2081
  %5903 = vmatpush.msra.mxu0 %v2077
  %5904 = vmatpush.msra.mxu0 %v2073
  %5905 = vmatpush.msra.mxu0 %v2069
  %5906 = vmatpush.msra.mxu0 %v2065
  %5907 = vmatpush.msra.mxu0 %v2061
  %5908 = vmatpush.msra.mxu0 %v2057
  %5909 = vmatpush.msra.mxu0 %v2053
  %5910 = vmatpush.msra.mxu0 %v2049
  %5911 = vmatpush.msra.mxu0 %v2045
  %5912 = vmatpush.msra.mxu0 %v2041
  %5913 = vmatpush.msra.mxu0 %v2037
  %5914 = vmatmul.f32.gmra.mxu0 %v5800
  %v5915 = vpop.f32.mrf.mxu0
  %v5916 = vadd.f32 %v5887, %v5915
  %5917 = vmatmul.f32.gmra.mxu0 %v5809
  %v5918 = vpop.f32.mrf.mxu0
  %v5919 = vadd.f32 %v5890, %v5918
  %5920 = vmatmul.f32.gmra.mxu0 %v5817
  %v5921 = vpop.f32.mrf.mxu0
  %v5922 = vadd.f32 %v5893, %v5921
  %5923 = vmatmul.f32.gmra.mxu0 %v5816
  %v5924 = vpop.f32.mrf.mxu0
  %v5925 = vadd.f32 %v5896, %v5924
  %5926 = vdwg.mxu0
  %5927 = vmatpush.msra.mxu0 0.0
  %5928 = vmatpush.msra.mxu0 0.0
  %5929 = vmatpush.msra.mxu0 0.0
  %5930 = vmatpush.msra.mxu0 0.0
  %5931 = vmatpush.msra.mxu0 %v2145
  %5932 = vmatpush.msra.mxu0 %v2141
  %5933 = vmatpush.msra.mxu0 %v2137
  %5934 = vmatpush.msra.mxu0 %v2133
  %5935 = vmatpush.msra.mxu0 %v2129
  %5936 = vmatpush.msra.mxu0 %v2125
  %5937 = vmatpush.msra.mxu0 %v2121
  %5938 = vmatpush.msra.mxu0 %v2117
  %5939 = vmatpush.msra.mxu0 %v2113
  %5940 = vmatpush.msra.mxu0 %v2109
  %5941 = vmatpush.msra.mxu0 %v2105
  %5942 = vmatpush.msra.mxu0 %v2101
  %5943 = vmatmul.f32.gmra.mxu0 %v5832
  %v5944 = vpop.f32.mrf.mxu0
  %v5945 = vadd.f32 %v5916, %v5944
  %5946 = vmatmul.f32.gmra.mxu0 %v5834
  %v5947 = vpop.f32.mrf.mxu0
  %v5948 = vadd.f32 %v5919, %v5947
  %5949 = vmatmul.f32.gmra.mxu0 %v5836
  %v5950 = vpop.f32.mrf.mxu0
  %v5951 = vadd.f32 %v5922, %v5950
  %5952 = vmatmul.f32.gmra.mxu0 %v5838
  %v5953 = vpop.f32.mrf.mxu0
  %v5954 = vadd.f32 %v5925, %v5953
  %5955 = vdwg.mxu0
  %5956 = vmatpush.msra.mxu0 %v1970
  %5957 = vmatpush.msra.mxu0 %v1966
  %5958 = vmatpush.msra.mxu0 %v1962
  %5959 = vmatpush.msra.mxu0 %v1958
  %5960 = vmatpush.msra.mxu0 %v1954
  %5961 = vmatpush.msra.mxu0 %v1950
  %5962 = vmatpush.msra.mxu0 %v1946
  %5963 = vmatpush.msra.mxu0 %v1942
  %5964 = vmatpush.msra.mxu0 %v1938
  %5965 = vmatpush.msra.mxu0 %v1934
  %5966 = vmatpush.msra.mxu0 %v1930
  %5967 = vmatpush.msra.mxu0 %v1926
  %5968 = vmatpush.msra.mxu0 %v1922
  %5969 = vmatpush.msra.mxu0 %v1918
  %5970 = vmatpush.msra.mxu0 %v1914
  %5971 = vmatpush.msra.mxu0 %v1910
  %5972 = vmatmul.f32.gmra.mxu0 %v5794
  %v5973 = vpop.f32.mrf.mxu0
  %v5974 = vadd.f32 0.0, %v5973
  %5975 = vmatmul.f32.gmra.mxu0 %v5805
  %v5976 = vpop.f32.mrf.mxu0
  %v5977 = vadd.f32 0.0, %v5976
  %5978 = vmatmul.f32.gmra.mxu0 %v5813
  %v5979 = vpop.f32.mrf.mxu0
  %v5980 = vadd.f32 0.0, %v5979
  %5981 = vmatmul.f32.gmra.mxu0 %v5812
  %v5982 = vpop.f32.mrf.mxu0
  %v5983 = vadd.f32 0.0, %v5982
  %5984 = vdwg.mxu0
  %5985 = vmatpush.msra.mxu0 %v2034
  %5986 = vmatpush.msra.mxu0 %v2030
  %5987 = vmatpush.msra.mxu0 %v2026
  %5988 = vmatpush.msra.mxu0 %v2022
  %5989 = vmatpush.msra.mxu0 %v2018
  %5990 = vmatpush.msra.mxu0 %v2014
  %5991 = vmatpush.msra.mxu0 %v2010
  %5992 = vmatpush.msra.mxu0 %v2006
  %5993 = vmatpush.msra.mxu0 %v2002
  %5994 = vmatpush.msra.mxu0 %v1998
  %5995 = vmatpush.msra.mxu0 %v1994
  %5996 = vmatpush.msra.mxu0 %v1990
  %5997 = vmatpush.msra.mxu0 %v1986
  %5998 = vmatpush.msra.mxu0 %v1982
  %5999 = vmatpush.msra.mxu0 %v1978
  %6000 = vmatpush.msra.mxu0 %v1974
  %6001 = vmatmul.f32.gmra.mxu0 %v5797
  %v6002 = vpop.f32.mrf.mxu0
  %v6003 = vadd.f32 %v5974, %v6002
  %6004 = vmatmul.f32.gmra.mxu0 %v5807
  %v6005 = vpop.f32.mrf.mxu0
  %v6006 = vadd.f32 %v5977, %v6005
  %6007 = vmatmul.f32.gmra.mxu0 %v5815
  %v6008 = vpop.f32.mrf.mxu0
  %v6009 = vadd.f32 %v5980, %v6008
  %6010 = vmatmul.f32.gmra.mxu0 %v5814
  %v6011 = vpop.f32.mrf.mxu0
  %v6012 = vadd.f32 %v5983, %v6011
  %6013 = vdwg.mxu0
  %6014 = vmatpush.msra.mxu0 %v2098
  %6015 = vmatpush.msra.mxu0 %v2094
  %6016 = vmatpush.msra.mxu0 %v2090
  %6017 = vmatpush.msra.mxu0 %v2086
  %6018 = vmatpush.msra.mxu0 %v2082
  %6019 = vmatpush.msra.mxu0 %v2078
  %6020 = vmatpush.msra.mxu0 %v2074
  %6021 = vmatpush.msra.mxu0 %v2070
  %6022 = vmatpush.msra.mxu0 %v2066
  %6023 = vmatpush.msra.mxu0 %v2062
  %6024 = vmatpush.msra.mxu0 %v2058
  %6025 = vmatpush.msra.mxu0 %v2054
  %6026 = vmatpush.msra.mxu0 %v2050
  %6027 = vmatpush.msra.mxu0 %v2046
  %6028 = vmatpush.msra.mxu0 %v2042
  %6029 = vmatpush.msra.mxu0 %v2038
  %6030 = vmatmul.f32.gmra.mxu0 %v5800
  %v6031 = vpop.f32.mrf.mxu0
  %v6032 = vadd.f32 %v6003, %v6031
  %6033 = vmatmul.f32.gmra.mxu0 %v5809
  %v6034 = vpop.f32.mrf.mxu0
  %v6035 = vadd.f32 %v6006, %v6034
  %6036 = vmatmul.f32.gmra.mxu0 %v5817
  %v6037 = vpop.f32.mrf.mxu0
  %v6038 = vadd.f32 %v6009, %v6037
  %6039 = vmatmul.f32.gmra.mxu0 %v5816
  %v6040 = vpop.f32.mrf.mxu0
  %v6041 = vadd.f32 %v6012, %v6040
  %6042 = vdwg.mxu0
  %6043 = vmatpush.msra.mxu0 0.0
  %6044 = vmatpush.msra.mxu0 0.0
  %6045 = vmatpush.msra.mxu0 0.0
  %6046 = vmatpush.msra.mxu0 0.0
  %6047 = vmatpush.msra.mxu0 %v2146
  %6048 = vmatpush.msra.mxu0 %v2142
  %6049 = vmatpush.msra.mxu0 %v2138
  %6050 = vmatpush.msra.mxu0 %v2134
  %6051 = vmatpush.msra.mxu0 %v2130
  %6052 = vmatpush.msra.mxu0 %v2126
  %6053 = vmatpush.msra.mxu0 %v2122
  %6054 = vmatpush.msra.mxu0 %v2118
  %6055 = vmatpush.msra.mxu0 %v2114
  %6056 = vmatpush.msra.mxu0 %v2110
  %6057 = vmatpush.msra.mxu0 %v2106
  %6058 = vmatpush.msra.mxu0 %v2102
  %6059 = vmatmul.f32.gmra.mxu0 %v5832
  %v6060 = vpop.f32.mrf.mxu0
  %v6061 = vadd.f32 %v6032, %v6060
  %6062 = vmatmul.f32.gmra.mxu0 %v5834
  %v6063 = vpop.f32.mrf.mxu0
  %v6064 = vadd.f32 %v6035, %v6063
  %6065 = vmatmul.f32.gmra.mxu0 %v5836
  %v6066 = vpop.f32.mrf.mxu0
  %v6067 = vadd.f32 %v6038, %v6066
  %6068 = vmatmul.f32.gmra.mxu0 %v5838
  %v6069 = vpop.f32.mrf.mxu0
  %v6070 = vadd.f32 %v6041, %v6069
  %6071 = vdwg.mxu0
  %6072 = vmatpush.msra.mxu0 %v1971
  %6073 = vmatpush.msra.mxu0 %v1967
  %6074 = vmatpush.msra.mxu0 %v1963
  %6075 = vmatpush.msra.mxu0 %v1959
  %6076 = vmatpush.msra.mxu0 %v1955
  %6077 = vmatpush.msra.mxu0 %v1951
  %6078 = vmatpush.msra.mxu0 %v1947
  %6079 = vmatpush.msra.mxu0 %v1943
  %6080 = vmatpush.msra.mxu0 %v1939
  %6081 = vmatpush.msra.mxu0 %v1935
  %6082 = vmatpush.msra.mxu0 %v1931
  %6083 = vmatpush.msra.mxu0 %v1927
  %6084 = vmatpush.msra.mxu0 %v1923
  %6085 = vmatpush.msra.mxu0 %v1919
  %6086 = vmatpush.msra.mxu0 %v1915
  %6087 = vmatpush.msra.mxu0 %v1911
  %6088 = vmatmul.f32.gmra.mxu0 %v5794
  %v6089 = vpop.f32.mrf.mxu0
  %v6090 = vadd.f32 0.0, %v6089
  %6091 = vmatmul.f32.gmra.mxu0 %v5805
  %v6092 = vpop.f32.mrf.mxu0
  %v6093 = vadd.f32 0.0, %v6092
  %6094 = vmatmul.f32.gmra.mxu0 %v5813
  %v6095 = vpop.f32.mrf.mxu0
  %v6096 = vadd.f32 0.0, %v6095
  %6097 = vmatmul.f32.gmra.mxu0 %v5812
  %v6098 = vpop.f32.mrf.mxu0
  %v6099 = vadd.f32 0.0, %v6098
  %6100 = vdwg.mxu0
  %6101 = vmatpush.msra.mxu0 %v2035
  %6102 = vmatpush.msra.mxu0 %v2031
  %6103 = vmatpush.msra.mxu0 %v2027
  %6104 = vmatpush.msra.mxu0 %v2023
  %6105 = vmatpush.msra.mxu0 %v2019
  %6106 = vmatpush.msra.mxu0 %v2015
  %6107 = vmatpush.msra.mxu0 %v2011
  %6108 = vmatpush.msra.mxu0 %v2007
  %6109 = vmatpush.msra.mxu0 %v2003
  %6110 = vmatpush.msra.mxu0 %v1999
  %6111 = vmatpush.msra.mxu0 %v1995
  %6112 = vmatpush.msra.mxu0 %v1991
  %6113 = vmatpush.msra.mxu0 %v1987
  %6114 = vmatpush.msra.mxu0 %v1983
  %6115 = vmatpush.msra.mxu0 %v1979
  %6116 = vmatpush.msra.mxu0 %v1975
  %6117 = vmatmul.f32.gmra.mxu0 %v5797
  %v6118 = vpop.f32.mrf.mxu0
  %v6119 = vadd.f32 %v6090, %v6118
  %6120 = vmatmul.f32.gmra.mxu0 %v5807
  %v6121 = vpop.f32.mrf.mxu0
  %v6122 = vadd.f32 %v6093, %v6121
  %6123 = vmatmul.f32.gmra.mxu0 %v5815
  %v6124 = vpop.f32.mrf.mxu0
  %v6125 = vadd.f32 %v6096, %v6124
  %6126 = vmatmul.f32.gmra.mxu0 %v5814
  %v6127 = vpop.f32.mrf.mxu0
  %v6128 = vadd.f32 %v6099, %v6127
  %6129 = vdwg.mxu0
  %6130 = vmatpush.msra.mxu0 %v2099
  %6131 = vmatpush.msra.mxu0 %v2095
  %6132 = vmatpush.msra.mxu0 %v2091
  %6133 = vmatpush.msra.mxu0 %v2087
  %6134 = vmatpush.msra.mxu0 %v2083
  %6135 = vmatpush.msra.mxu0 %v2079
  %6136 = vmatpush.msra.mxu0 %v2075
  %6137 = vmatpush.msra.mxu0 %v2071
  %6138 = vmatpush.msra.mxu0 %v2067
  %6139 = vmatpush.msra.mxu0 %v2063
  %6140 = vmatpush.msra.mxu0 %v2059
  %6141 = vmatpush.msra.mxu0 %v2055
  %6142 = vmatpush.msra.mxu0 %v2051
  %6143 = vmatpush.msra.mxu0 %v2047
  %6144 = vmatpush.msra.mxu0 %v2043
  %6145 = vmatpush.msra.mxu0 %v2039
  %6146 = vmatmul.f32.gmra.mxu0 %v5800
  %v6147 = vpop.f32.mrf.mxu0
  %v6148 = vadd.f32 %v6119, %v6147
  %6149 = vmatmul.f32.gmra.mxu0 %v5809
  %v6150 = vpop.f32.mrf.mxu0
  %v6151 = vadd.f32 %v6122, %v6150
  %6152 = vmatmul.f32.gmra.mxu0 %v5817
  %v6153 = vpop.f32.mrf.mxu0
  %v6154 = vadd.f32 %v6125, %v6153
  %6155 = vmatmul.f32.gmra.mxu0 %v5816
  %v6156 = vpop.f32.mrf.mxu0
  %v6157 = vadd.f32 %v6128, %v6156
  %6158 = vdwg.mxu0
  %6159 = vmatpush.msra.mxu0 0.0
  %6160 = vmatpush.msra.mxu0 0.0
  %6161 = vmatpush.msra.mxu0 0.0
  %6162 = vmatpush.msra.mxu0 0.0
  %6163 = vmatpush.msra.mxu0 %v2147
  %6164 = vmatpush.msra.mxu0 %v2143
  %6165 = vmatpush.msra.mxu0 %v2139
  %6166 = vmatpush.msra.mxu0 %v2135
  %6167 = vmatpush.msra.mxu0 %v2131
  %6168 = vmatpush.msra.mxu0 %v2127
  %6169 = vmatpush.msra.mxu0 %v2123
  %6170 = vmatpush.msra.mxu0 %v2119
  %6171 = vmatpush.msra.mxu0 %v2115
  %6172 = vmatpush.msra.mxu0 %v2111
  %6173 = vmatpush.msra.mxu0 %v2107
  %6174 = vmatpush.msra.mxu0 %v2103
  %6175 = vmatmul.f32.gmra.mxu0 %v5832
  %v6176 = vpop.f32.mrf.mxu0
  %v6177 = vadd.f32 %v6148, %v6176
  %6178 = vmatmul.f32.gmra.mxu0 %v5834
  %v6179 = vpop.f32.mrf.mxu0
  %v6180 = vadd.f32 %v6151, %v6179
  %6181 = vmatmul.f32.gmra.mxu0 %v5836
  %v6182 = vpop.f32.mrf.mxu0
  %v6183 = vadd.f32 %v6154, %v6182
  %6184 = vmatmul.f32.gmra.mxu0 %v5838
  %v6185 = vpop.f32.mrf.mxu0
  %v6186 = vadd.f32 %v6157, %v6185
  %6187 = vdwg.mxu0
  %6188 = vmatpush.msra.mxu0 %v1972
  %6189 = vmatpush.msra.mxu0 %v1968
  %6190 = vmatpush.msra.mxu0 %v1964
  %6191 = vmatpush.msra.mxu0 %v1960
  %6192 = vmatpush.msra.mxu0 %v1956
  %6193 = vmatpush.msra.mxu0 %v1952
  %6194 = vmatpush.msra.mxu0 %v1948
  %6195 = vmatpush.msra.mxu0 %v1944
  %6196 = vmatpush.msra.mxu0 %v1940
  %6197 = vmatpush.msra.mxu0 %v1936
  %6198 = vmatpush.msra.mxu0 %v1932
  %6199 = vmatpush.msra.mxu0 %v1928
  %6200 = vmatpush.msra.mxu0 %v1924
  %6201 = vmatpush.msra.mxu0 %v1920
  %6202 = vmatpush.msra.mxu0 %v1916
  %6203 = vmatpush.msra.mxu0 %v1912
  %6204 = vmatmul.f32.gmra.mxu0 %v5794
  %v6205 = vpop.f32.mrf.mxu0
  %v6206 = vadd.f32 0.0, %v6205
  %6207 = vmatmul.f32.gmra.mxu0 %v5805
  %v6208 = vpop.f32.mrf.mxu0
  %v6209 = vadd.f32 0.0, %v6208
  %6210 = vmatmul.f32.gmra.mxu0 %v5813
  %v6211 = vpop.f32.mrf.mxu0
  %v6212 = vadd.f32 0.0, %v6211
  %6213 = vmatmul.f32.gmra.mxu0 %v5812
  %v6214 = vpop.f32.mrf.mxu0
  %v6215 = vadd.f32 0.0, %v6214
  %6216 = vdwg.mxu0
  %6217 = vmatpush.msra.mxu0 %v2036
  %6218 = vmatpush.msra.mxu0 %v2032
  %6219 = vmatpush.msra.mxu0 %v2028
  %6220 = vmatpush.msra.mxu0 %v2024
  %6221 = vmatpush.msra.mxu0 %v2020
  %6222 = vmatpush.msra.mxu0 %v2016
  %6223 = vmatpush.msra.mxu0 %v2012
  %6224 = vmatpush.msra.mxu0 %v2008
  %6225 = vmatpush.msra.mxu0 %v2004
  %6226 = vmatpush.msra.mxu0 %v2000
  %6227 = vmatpush.msra.mxu0 %v1996
  %6228 = vmatpush.msra.mxu0 %v1992
  %6229 = vmatpush.msra.mxu0 %v1988
  %6230 = vmatpush.msra.mxu0 %v1984
  %6231 = vmatpush.msra.mxu0 %v1980
  %6232 = vmatpush.msra.mxu0 %v1976
  %6233 = vmatmul.f32.gmra.mxu0 %v5797
  %v6234 = vpop.f32.mrf.mxu0
  %v6235 = vadd.f32 %v6206, %v6234
  %6236 = vmatmul.f32.gmra.mxu0 %v5807
  %v6237 = vpop.f32.mrf.mxu0
  %v6238 = vadd.f32 %v6209, %v6237
  %6239 = vmatmul.f32.gmra.mxu0 %v5815
  %v6240 = vpop.f32.mrf.mxu0
  %v6241 = vadd.f32 %v6212, %v6240
  %6242 = vmatmul.f32.gmra.mxu0 %v5814
  %v6243 = vpop.f32.mrf.mxu0
  %v6244 = vadd.f32 %v6215, %v6243
  %6245 = vdwg.mxu0
  %6246 = vmatpush.msra.mxu0 %v2100
  %6247 = vmatpush.msra.mxu0 %v2096
  %6248 = vmatpush.msra.mxu0 %v2092
  %6249 = vmatpush.msra.mxu0 %v2088
  %6250 = vmatpush.msra.mxu0 %v2084
  %6251 = vmatpush.msra.mxu0 %v2080
  %6252 = vmatpush.msra.mxu0 %v2076
  %6253 = vmatpush.msra.mxu0 %v2072
  %6254 = vmatpush.msra.mxu0 %v2068
  %6255 = vmatpush.msra.mxu0 %v2064
  %6256 = vmatpush.msra.mxu0 %v2060
  %6257 = vmatpush.msra.mxu0 %v2056
  %6258 = vmatpush.msra.mxu0 %v2052
  %6259 = vmatpush.msra.mxu0 %v2048
  %6260 = vmatpush.msra.mxu0 %v2044
  %6261 = vmatpush.msra.mxu0 %v2040
  %6262 = vmatmul.f32.gmra.mxu0 %v5800
  %v6263 = vpop.f32.mrf.mxu0
  %v6264 = vadd.f32 %v6235, %v6263
  %6265 = vmatmul.f32.gmra.mxu0 %v5809
  %v6266 = vpop.f32.mrf.mxu0
  %v6267 = vadd.f32 %v6238, %v6266
  %6268 = vmatmul.f32.gmra.mxu0 %v5817
  %v6269 = vpop.f32.mrf.mxu0
  %v6270 = vadd.f32 %v6241, %v6269
  %6271 = vmatmul.f32.gmra.mxu0 %v5816
  %v6272 = vpop.f32.mrf.mxu0
  %v6273 = vadd.f32 %v6244, %v6272
  %6274 = vdwg.mxu0
  %6275 = vmatpush.msra.mxu0 0.0
  %6276 = vmatpush.msra.mxu0 0.0
  %6277 = vmatpush.msra.mxu0 0.0
  %6278 = vmatpush.msra.mxu0 0.0
  %6279 = vmatpush.msra.mxu0 %v2148
  %6280 = vmatpush.msra.mxu0 %v2144
  %6281 = vmatpush.msra.mxu0 %v2140
  %6282 = vmatpush.msra.mxu0 %v2136
  %6283 = vmatpush.msra.mxu0 %v2132
  %6284 = vmatpush.msra.mxu0 %v2128
  %6285 = vmatpush.msra.mxu0 %v2124
  %6286 = vmatpush.msra.mxu0 %v2120
  %6287 = vmatpush.msra.mxu0 %v2116
  %6288 = vmatpush.msra.mxu0 %v2112
  %6289 = vmatpush.msra.mxu0 %v2108
  %6290 = vmatpush.msra.mxu0 %v2104
  %6291 = vmatmul.f32.gmra.mxu0 %v5832
  %v6292 = vpop.f32.mrf.mxu0
  %v6293 = vadd.f32 %v6264, %v6292
  %6294 = vmatmul.f32.gmra.mxu0 %v5834
  %v6295 = vpop.f32.mrf.mxu0
  %v6296 = vadd.f32 %v6267, %v6295
  %6297 = vmatmul.f32.gmra.mxu0 %v5836
  %v6298 = vpop.f32.mrf.mxu0
  %v6299 = vadd.f32 %v6270, %v6298
  %6300 = vmatmul.f32.gmra.mxu0 %v5838
  %v6301 = vpop.f32.mrf.mxu0
  %v6302 = vadd.f32 %v6273, %v6301
  %6303 = vdwg.mxu0
  %v6304 = vsel %vm3312, %v5763, 0
  %v6306 = vsel %vm3312, %v5767, 0
  %v6308 = vsel %vm3312, %v5771, 0
  %v6310 = vsel %vm3312, %v5775, 0
  %6312 = vmatpush.msra.mxu0 %v1728
  %6313 = vmatpush.msra.mxu0 %v1724
  %6314 = vmatpush.msra.mxu0 %v1720
  %6315 = vmatpush.msra.mxu0 %v1716
  %6316 = vmatpush.msra.mxu0 %v1712
  %6317 = vmatpush.msra.mxu0 %v1708
  %6318 = vmatpush.msra.mxu0 %v1704
  %6319 = vmatpush.msra.mxu0 %v1700
  %6320 = vmatpush.msra.mxu0 %v1696
  %6321 = vmatpush.msra.mxu0 %v1692
  %6322 = vmatpush.msra.mxu0 %v1688
  %6323 = vmatpush.msra.mxu0 %v1684
  %6324 = vmatpush.msra.mxu0 %v1680
  %6325 = vmatpush.msra.mxu0 %v1676
  %6326 = vmatpush.msra.mxu0 %v1672
  %6327 = vmatpush.msra.mxu0 %v1668
  %6328 = vmatmul.f32.gmra.mxu0 %v5760
  %v6329 = vpop.f32.mrf.mxu0
  %v6330 = vadd.f32 %v5945, %v6329
  %6331 = vmatmul.f32.gmra.mxu0 %v5764
  %v6332 = vpop.f32.mrf.mxu0
  %v6333 = vadd.f32 %v5948, %v6332
  %6334 = vmatmul.f32.gmra.mxu0 %v5768
  %v6335 = vpop.f32.mrf.mxu0
  %v6336 = vadd.f32 %v5951, %v6335
  %6337 = vmatmul.f32.gmra.mxu0 %v5772
  %v6338 = vpop.f32.mrf.mxu0
  %v6339 = vadd.f32 %v5954, %v6338
  %6340 = vdwg.mxu0
  %6341 = vmatpush.msra.mxu0 %v1792
  %6342 = vmatpush.msra.mxu0 %v1788
  %6343 = vmatpush.msra.mxu0 %v1784
  %6344 = vmatpush.msra.mxu0 %v1780
  %6345 = vmatpush.msra.mxu0 %v1776
  %6346 = vmatpush.msra.mxu0 %v1772
  %6347 = vmatpush.msra.mxu0 %v1768
  %6348 = vmatpush.msra.mxu0 %v1764
  %6349 = vmatpush.msra.mxu0 %v1760
  %6350 = vmatpush.msra.mxu0 %v1756
  %6351 = vmatpush.msra.mxu0 %v1752
  %6352 = vmatpush.msra.mxu0 %v1748
  %6353 = vmatpush.msra.mxu0 %v1744
  %6354 = vmatpush.msra.mxu0 %v1740
  %6355 = vmatpush.msra.mxu0 %v1736
  %6356 = vmatpush.msra.mxu0 %v1732
  %6357 = vmatmul.f32.gmra.mxu0 %v5761
  %v6358 = vpop.f32.mrf.mxu0
  %v6359 = vadd.f32 %v6330, %v6358
  %6360 = vmatmul.f32.gmra.mxu0 %v5765
  %v6361 = vpop.f32.mrf.mxu0
  %v6362 = vadd.f32 %v6333, %v6361
  %6363 = vmatmul.f32.gmra.mxu0 %v5769
  %v6364 = vpop.f32.mrf.mxu0
  %v6365 = vadd.f32 %v6336, %v6364
  %6366 = vmatmul.f32.gmra.mxu0 %v5773
  %v6367 = vpop.f32.mrf.mxu0
  %v6368 = vadd.f32 %v6339, %v6367
  %6369 = vdwg.mxu0
  %6370 = vmatpush.msra.mxu0 %v1856
  %6371 = vmatpush.msra.mxu0 %v1852
  %6372 = vmatpush.msra.mxu0 %v1848
  %6373 = vmatpush.msra.mxu0 %v1844
  %6374 = vmatpush.msra.mxu0 %v1840
  %6375 = vmatpush.msra.mxu0 %v1836
  %6376 = vmatpush.msra.mxu0 %v1832
  %6377 = vmatpush.msra.mxu0 %v1828
  %6378 = vmatpush.msra.mxu0 %v1824
  %6379 = vmatpush.msra.mxu0 %v1820
  %6380 = vmatpush.msra.mxu0 %v1816
  %6381 = vmatpush.msra.mxu0 %v1812
  %6382 = vmatpush.msra.mxu0 %v1808
  %6383 = vmatpush.msra.mxu0 %v1804
  %6384 = vmatpush.msra.mxu0 %v1800
  %6385 = vmatpush.msra.mxu0 %v1796
  %6386 = vmatmul.f32.gmra.mxu0 %v5762
  %v6387 = vpop.f32.mrf.mxu0
  %v6388 = vadd.f32 %v6359, %v6387
  %6389 = vmatmul.f32.gmra.mxu0 %v5766
  %v6390 = vpop.f32.mrf.mxu0
  %v6391 = vadd.f32 %v6362, %v6390
  %6392 = vmatmul.f32.gmra.mxu0 %v5770
  %v6393 = vpop.f32.mrf.mxu0
  %v6394 = vadd.f32 %v6365, %v6393
  %6395 = vmatmul.f32.gmra.mxu0 %v5774
  %v6396 = vpop.f32.mrf.mxu0
  %v6397 = vadd.f32 %v6368, %v6396
  %6398 = vdwg.mxu0
  %6399 = vmatpush.msra.mxu0 0.0
  %6400 = vmatpush.msra.mxu0 0.0
  %6401 = vmatpush.msra.mxu0 0.0
  %6402 = vmatpush.msra.mxu0 0.0
  %6403 = vmatpush.msra.mxu0 %v1904
  %6404 = vmatpush.msra.mxu0 %v1900
  %6405 = vmatpush.msra.mxu0 %v1896
  %6406 = vmatpush.msra.mxu0 %v1892
  %6407 = vmatpush.msra.mxu0 %v1888
  %6408 = vmatpush.msra.mxu0 %v1884
  %6409 = vmatpush.msra.mxu0 %v1880
  %6410 = vmatpush.msra.mxu0 %v1876
  %6411 = vmatpush.msra.mxu0 %v1872
  %6412 = vmatpush.msra.mxu0 %v1868
  %6413 = vmatpush.msra.mxu0 %v1864
  %6414 = vmatpush.msra.mxu0 %v1860
  %6415 = vmatmul.f32.gmra.mxu0 %v6304
  %v6416 = vpop.f32.mrf.mxu0
  %v6417 = vadd.f32 %v6388, %v6416
  %6418 = vmatmul.f32.gmra.mxu0 %v6306
  %v6419 = vpop.f32.mrf.mxu0
  %v6420 = vadd.f32 %v6391, %v6419
  %6421 = vmatmul.f32.gmra.mxu0 %v6308
  %v6422 = vpop.f32.mrf.mxu0
  %v6423 = vadd.f32 %v6394, %v6422
  %6424 = vmatmul.f32.gmra.mxu0 %v6310
  %v6425 = vpop.f32.mrf.mxu0
  %v6426 = vadd.f32 %v6397, %v6425
  %6427 = vdwg.mxu0
  %6428 = vmatpush.msra.mxu0 %v1729
  %6429 = vmatpush.msra.mxu0 %v1725
  %6430 = vmatpush.msra.mxu0 %v1721
  %6431 = vmatpush.msra.mxu0 %v1717
  %6432 = vmatpush.msra.mxu0 %v1713
  %6433 = vmatpush.msra.mxu0 %v1709
  %6434 = vmatpush.msra.mxu0 %v1705
  %6435 = vmatpush.msra.mxu0 %v1701
  %6436 = vmatpush.msra.mxu0 %v1697
  %6437 = vmatpush.msra.mxu0 %v1693
  %6438 = vmatpush.msra.mxu0 %v1689
  %6439 = vmatpush.msra.mxu0 %v1685
  %6440 = vmatpush.msra.mxu0 %v1681
  %6441 = vmatpush.msra.mxu0 %v1677
  %6442 = vmatpush.msra.mxu0 %v1673
  %6443 = vmatpush.msra.mxu0 %v1669
  %6444 = vmatmul.f32.gmra.mxu0 %v5760
  %v6445 = vpop.f32.mrf.mxu0
  %v6446 = vadd.f32 %v6061, %v6445
  %6447 = vmatmul.f32.gmra.mxu0 %v5764
  %v6448 = vpop.f32.mrf.mxu0
  %v6449 = vadd.f32 %v6064, %v6448
  %6450 = vmatmul.f32.gmra.mxu0 %v5768
  %v6451 = vpop.f32.mrf.mxu0
  %v6452 = vadd.f32 %v6067, %v6451
  %6453 = vmatmul.f32.gmra.mxu0 %v5772
  %v6454 = vpop.f32.mrf.mxu0
  %v6455 = vadd.f32 %v6070, %v6454
  %6456 = vdwg.mxu0
  %6457 = vmatpush.msra.mxu0 %v1793
  %6458 = vmatpush.msra.mxu0 %v1789
  %6459 = vmatpush.msra.mxu0 %v1785
  %6460 = vmatpush.msra.mxu0 %v1781
  %6461 = vmatpush.msra.mxu0 %v1777
  %6462 = vmatpush.msra.mxu0 %v1773
  %6463 = vmatpush.msra.mxu0 %v1769
  %6464 = vmatpush.msra.mxu0 %v1765
  %6465 = vmatpush.msra.mxu0 %v1761
  %6466 = vmatpush.msra.mxu0 %v1757
  %6467 = vmatpush.msra.mxu0 %v1753
  %6468 = vmatpush.msra.mxu0 %v1749
  %6469 = vmatpush.msra.mxu0 %v1745
  %6470 = vmatpush.msra.mxu0 %v1741
  %6471 = vmatpush.msra.mxu0 %v1737
  %6472 = vmatpush.msra.mxu0 %v1733
  %6473 = vmatmul.f32.gmra.mxu0 %v5761
  %v6474 = vpop.f32.mrf.mxu0
  %v6475 = vadd.f32 %v6446, %v6474
  %6476 = vmatmul.f32.gmra.mxu0 %v5765
  %v6477 = vpop.f32.mrf.mxu0
  %v6478 = vadd.f32 %v6449, %v6477
  %6479 = vmatmul.f32.gmra.mxu0 %v5769
  %v6480 = vpop.f32.mrf.mxu0
  %v6481 = vadd.f32 %v6452, %v6480
  %6482 = vmatmul.f32.gmra.mxu0 %v5773
  %v6483 = vpop.f32.mrf.mxu0
  %v6484 = vadd.f32 %v6455, %v6483
  %6485 = vdwg.mxu0
  %6486 = vmatpush.msra.mxu0 %v1857
  %6487 = vmatpush.msra.mxu0 %v1853
  %6488 = vmatpush.msra.mxu0 %v1849
  %6489 = vmatpush.msra.mxu0 %v1845
  %6490 = vmatpush.msra.mxu0 %v1841
  %6491 = vmatpush.msra.mxu0 %v1837
  %6492 = vmatpush.msra.mxu0 %v1833
  %6493 = vmatpush.msra.mxu0 %v1829
  %6494 = vmatpush.msra.mxu0 %v1825
  %6495 = vmatpush.msra.mxu0 %v1821
  %6496 = vmatpush.msra.mxu0 %v1817
  %6497 = vmatpush.msra.mxu0 %v1813
  %6498 = vmatpush.msra.mxu0 %v1809
  %6499 = vmatpush.msra.mxu0 %v1805
  %6500 = vmatpush.msra.mxu0 %v1801
  %6501 = vmatpush.msra.mxu0 %v1797
  %6502 = vmatmul.f32.gmra.mxu0 %v5762
  %v6503 = vpop.f32.mrf.mxu0
  %v6504 = vadd.f32 %v6475, %v6503
  %6505 = vmatmul.f32.gmra.mxu0 %v5766
  %v6506 = vpop.f32.mrf.mxu0
  %v6507 = vadd.f32 %v6478, %v6506
  %6508 = vmatmul.f32.gmra.mxu0 %v5770
  %v6509 = vpop.f32.mrf.mxu0
  %v6510 = vadd.f32 %v6481, %v6509
  %6511 = vmatmul.f32.gmra.mxu0 %v5774
  %v6512 = vpop.f32.mrf.mxu0
  %v6513 = vadd.f32 %v6484, %v6512
  %6514 = vdwg.mxu0
  %6515 = vmatpush.msra.mxu0 0.0
  %6516 = vmatpush.msra.mxu0 0.0
  %6517 = vmatpush.msra.mxu0 0.0
  %6518 = vmatpush.msra.mxu0 0.0
  %6519 = vmatpush.msra.mxu0 %v1905
  %6520 = vmatpush.msra.mxu0 %v1901
  %6521 = vmatpush.msra.mxu0 %v1897
  %6522 = vmatpush.msra.mxu0 %v1893
  %6523 = vmatpush.msra.mxu0 %v1889
  %6524 = vmatpush.msra.mxu0 %v1885
  %6525 = vmatpush.msra.mxu0 %v1881
  %6526 = vmatpush.msra.mxu0 %v1877
  %6527 = vmatpush.msra.mxu0 %v1873
  %6528 = vmatpush.msra.mxu0 %v1869
  %6529 = vmatpush.msra.mxu0 %v1865
  %6530 = vmatpush.msra.mxu0 %v1861
  %6531 = vmatmul.f32.gmra.mxu0 %v6304
  %v6532 = vpop.f32.mrf.mxu0
  %v6533 = vadd.f32 %v6504, %v6532
  %6534 = vmatmul.f32.gmra.mxu0 %v6306
  %v6535 = vpop.f32.mrf.mxu0
  %v6536 = vadd.f32 %v6507, %v6535
  %6537 = vmatmul.f32.gmra.mxu0 %v6308
  %v6538 = vpop.f32.mrf.mxu0
  %v6539 = vadd.f32 %v6510, %v6538
  %6540 = vmatmul.f32.gmra.mxu0 %v6310
  %v6541 = vpop.f32.mrf.mxu0
  %v6542 = vadd.f32 %v6513, %v6541
  %6543 = vdwg.mxu0
  %6544 = vmatpush.msra.mxu0 %v1730
  %6545 = vmatpush.msra.mxu0 %v1726
  %6546 = vmatpush.msra.mxu0 %v1722
  %6547 = vmatpush.msra.mxu0 %v1718
  %6548 = vmatpush.msra.mxu0 %v1714
  %6549 = vmatpush.msra.mxu0 %v1710
  %6550 = vmatpush.msra.mxu0 %v1706
  %6551 = vmatpush.msra.mxu0 %v1702
  %6552 = vmatpush.msra.mxu0 %v1698
  %6553 = vmatpush.msra.mxu0 %v1694
  %6554 = vmatpush.msra.mxu0 %v1690
  %6555 = vmatpush.msra.mxu0 %v1686
  %6556 = vmatpush.msra.mxu0 %v1682
  %6557 = vmatpush.msra.mxu0 %v1678
  %6558 = vmatpush.msra.mxu0 %v1674
  %6559 = vmatpush.msra.mxu0 %v1670
  %6560 = vmatmul.f32.gmra.mxu0 %v5760
  %v6561 = vpop.f32.mrf.mxu0
  %v6562 = vadd.f32 %v6177, %v6561
  %6563 = vmatmul.f32.gmra.mxu0 %v5764
  %v6564 = vpop.f32.mrf.mxu0
  %v6565 = vadd.f32 %v6180, %v6564
  %6566 = vmatmul.f32.gmra.mxu0 %v5768
  %v6567 = vpop.f32.mrf.mxu0
  %v6568 = vadd.f32 %v6183, %v6567
  %6569 = vmatmul.f32.gmra.mxu0 %v5772
  %v6570 = vpop.f32.mrf.mxu0
  %v6571 = vadd.f32 %v6186, %v6570
  %6572 = vdwg.mxu0
  %6573 = vmatpush.msra.mxu0 %v1794
  %6574 = vmatpush.msra.mxu0 %v1790
  %6575 = vmatpush.msra.mxu0 %v1786
  %6576 = vmatpush.msra.mxu0 %v1782
  %6577 = vmatpush.msra.mxu0 %v1778
  %6578 = vmatpush.msra.mxu0 %v1774
  %6579 = vmatpush.msra.mxu0 %v1770
  %6580 = vmatpush.msra.mxu0 %v1766
  %6581 = vmatpush.msra.mxu0 %v1762
  %6582 = vmatpush.msra.mxu0 %v1758
  %6583 = vmatpush.msra.mxu0 %v1754
  %6584 = vmatpush.msra.mxu0 %v1750
  %6585 = vmatpush.msra.mxu0 %v1746
  %6586 = vmatpush.msra.mxu0 %v1742
  %6587 = vmatpush.msra.mxu0 %v1738
  %6588 = vmatpush.msra.mxu0 %v1734
  %6589 = vmatmul.f32.gmra.mxu0 %v5761
  %v6590 = vpop.f32.mrf.mxu0
  %v6591 = vadd.f32 %v6562, %v6590
  %6592 = vmatmul.f32.gmra.mxu0 %v5765
  %v6593 = vpop.f32.mrf.mxu0
  %v6594 = vadd.f32 %v6565, %v6593
  %6595 = vmatmul.f32.gmra.mxu0 %v5769
  %v6596 = vpop.f32.mrf.mxu0
  %v6597 = vadd.f32 %v6568, %v6596
  %6598 = vmatmul.f32.gmra.mxu0 %v5773
  %v6599 = vpop.f32.mrf.mxu0
  %v6600 = vadd.f32 %v6571, %v6599
  %6601 = vdwg.mxu0
  %6602 = vmatpush.msra.mxu0 %v1858
  %6603 = vmatpush.msra.mxu0 %v1854
  %6604 = vmatpush.msra.mxu0 %v1850
  %6605 = vmatpush.msra.mxu0 %v1846
  %6606 = vmatpush.msra.mxu0 %v1842
  %6607 = vmatpush.msra.mxu0 %v1838
  %6608 = vmatpush.msra.mxu0 %v1834
  %6609 = vmatpush.msra.mxu0 %v1830
  %6610 = vmatpush.msra.mxu0 %v1826
  %6611 = vmatpush.msra.mxu0 %v1822
  %6612 = vmatpush.msra.mxu0 %v1818
  %6613 = vmatpush.msra.mxu0 %v1814
  %6614 = vmatpush.msra.mxu0 %v1810
  %6615 = vmatpush.msra.mxu0 %v1806
  %6616 = vmatpush.msra.mxu0 %v1802
  %6617 = vmatpush.msra.mxu0 %v1798
  %6618 = vmatmul.f32.gmra.mxu0 %v5762
  %v6619 = vpop.f32.mrf.mxu0
  %v6620 = vadd.f32 %v6591, %v6619
  %6621 = vmatmul.f32.gmra.mxu0 %v5766
  %v6622 = vpop.f32.mrf.mxu0
  %v6623 = vadd.f32 %v6594, %v6622
  %6624 = vmatmul.f32.gmra.mxu0 %v5770
  %v6625 = vpop.f32.mrf.mxu0
  %v6626 = vadd.f32 %v6597, %v6625
  %6627 = vmatmul.f32.gmra.mxu0 %v5774
  %v6628 = vpop.f32.mrf.mxu0
  %v6629 = vadd.f32 %v6600, %v6628
  %6630 = vdwg.mxu0
  %6631 = vmatpush.msra.mxu0 0.0
  %6632 = vmatpush.msra.mxu0 0.0
  %6633 = vmatpush.msra.mxu0 0.0
  %6634 = vmatpush.msra.mxu0 0.0
  %6635 = vmatpush.msra.mxu0 %v1906
  %6636 = vmatpush.msra.mxu0 %v1902
  %6637 = vmatpush.msra.mxu0 %v1898
  %6638 = vmatpush.msra.mxu0 %v1894
  %6639 = vmatpush.msra.mxu0 %v1890
  %6640 = vmatpush.msra.mxu0 %v1886
  %6641 = vmatpush.msra.mxu0 %v1882
  %6642 = vmatpush.msra.mxu0 %v1878
  %6643 = vmatpush.msra.mxu0 %v1874
  %6644 = vmatpush.msra.mxu0 %v1870
  %6645 = vmatpush.msra.mxu0 %v1866
  %6646 = vmatpush.msra.mxu0 %v1862
  %6647 = vmatmul.f32.gmra.mxu0 %v6304
  %v6648 = vpop.f32.mrf.mxu0
  %v6649 = vadd.f32 %v6620, %v6648
  %6650 = vmatmul.f32.gmra.mxu0 %v6306
  %v6651 = vpop.f32.mrf.mxu0
  %v6652 = vadd.f32 %v6623, %v6651
  %6653 = vmatmul.f32.gmra.mxu0 %v6308
  %v6654 = vpop.f32.mrf.mxu0
  %v6655 = vadd.f32 %v6626, %v6654
  %6656 = vmatmul.f32.gmra.mxu0 %v6310
  %v6657 = vpop.f32.mrf.mxu0
  %v6658 = vadd.f32 %v6629, %v6657
  %6659 = vdwg.mxu0
  %6660 = vmatpush.msra.mxu0 %v1731
  %6661 = vmatpush.msra.mxu0 %v1727
  %6662 = vmatpush.msra.mxu0 %v1723
  %6663 = vmatpush.msra.mxu0 %v1719
  %6664 = vmatpush.msra.mxu0 %v1715
  %6665 = vmatpush.msra.mxu0 %v1711
  %6666 = vmatpush.msra.mxu0 %v1707
  %6667 = vmatpush.msra.mxu0 %v1703
  %6668 = vmatpush.msra.mxu0 %v1699
  %6669 = vmatpush.msra.mxu0 %v1695
  %6670 = vmatpush.msra.mxu0 %v1691
  %6671 = vmatpush.msra.mxu0 %v1687
  %6672 = vmatpush.msra.mxu0 %v1683
  %6673 = vmatpush.msra.mxu0 %v1679
  %6674 = vmatpush.msra.mxu0 %v1675
  %6675 = vmatpush.msra.mxu0 %v1671
  %6676 = vmatmul.f32.gmra.mxu0 %v5760
  %v6677 = vpop.f32.mrf.mxu0
  %v6678 = vadd.f32 %v6293, %v6677
  %6679 = vmatmul.f32.gmra.mxu0 %v5764
  %v6680 = vpop.f32.mrf.mxu0
  %v6681 = vadd.f32 %v6296, %v6680
  %6682 = vmatmul.f32.gmra.mxu0 %v5768
  %v6683 = vpop.f32.mrf.mxu0
  %v6684 = vadd.f32 %v6299, %v6683
  %6685 = vmatmul.f32.gmra.mxu0 %v5772
  %v6686 = vpop.f32.mrf.mxu0
  %v6687 = vadd.f32 %v6302, %v6686
  %6688 = vdwg.mxu0
  %6689 = vmatpush.msra.mxu0 %v1795
  %6690 = vmatpush.msra.mxu0 %v1791
  %6691 = vmatpush.msra.mxu0 %v1787
  %6692 = vmatpush.msra.mxu0 %v1783
  %6693 = vmatpush.msra.mxu0 %v1779
  %6694 = vmatpush.msra.mxu0 %v1775
  %6695 = vmatpush.msra.mxu0 %v1771
  %6696 = vmatpush.msra.mxu0 %v1767
  %6697 = vmatpush.msra.mxu0 %v1763
  %6698 = vmatpush.msra.mxu0 %v1759
  %6699 = vmatpush.msra.mxu0 %v1755
  %6700 = vmatpush.msra.mxu0 %v1751
  %6701 = vmatpush.msra.mxu0 %v1747
  %6702 = vmatpush.msra.mxu0 %v1743
  %6703 = vmatpush.msra.mxu0 %v1739
  %6704 = vmatpush.msra.mxu0 %v1735
  %6705 = vmatmul.f32.gmra.mxu0 %v5761
  %v6706 = vpop.f32.mrf.mxu0
  %v6707 = vadd.f32 %v6678, %v6706
  %6708 = vmatmul.f32.gmra.mxu0 %v5765
  %v6709 = vpop.f32.mrf.mxu0
  %v6710 = vadd.f32 %v6681, %v6709
  %6711 = vmatmul.f32.gmra.mxu0 %v5769
  %v6712 = vpop.f32.mrf.mxu0
  %v6713 = vadd.f32 %v6684, %v6712
  %6714 = vmatmul.f32.gmra.mxu0 %v5773
  %v6715 = vpop.f32.mrf.mxu0
  %v6716 = vadd.f32 %v6687, %v6715
  %6717 = vdwg.mxu0
  %6718 = vmatpush.msra.mxu0 %v1859
  %6719 = vmatpush.msra.mxu0 %v1855
  %6720 = vmatpush.msra.mxu0 %v1851
  %6721 = vmatpush.msra.mxu0 %v1847
  %6722 = vmatpush.msra.mxu0 %v1843
  %6723 = vmatpush.msra.mxu0 %v1839
  %6724 = vmatpush.msra.mxu0 %v1835
  %6725 = vmatpush.msra.mxu0 %v1831
  %6726 = vmatpush.msra.mxu0 %v1827
  %6727 = vmatpush.msra.mxu0 %v1823
  %6728 = vmatpush.msra.mxu0 %v1819
  %6729 = vmatpush.msra.mxu0 %v1815
  %6730 = vmatpush.msra.mxu0 %v1811
  %6731 = vmatpush.msra.mxu0 %v1807
  %6732 = vmatpush.msra.mxu0 %v1803
  %6733 = vmatpush.msra.mxu0 %v1799
  %6734 = vmatmul.f32.gmra.mxu0 %v5762
  %v6735 = vpop.f32.mrf.mxu0
  %v6736 = vadd.f32 %v6707, %v6735
  %6737 = vmatmul.f32.gmra.mxu0 %v5766
  %v6738 = vpop.f32.mrf.mxu0
  %v6739 = vadd.f32 %v6710, %v6738
  %6740 = vmatmul.f32.gmra.mxu0 %v5770
  %v6741 = vpop.f32.mrf.mxu0
  %v6742 = vadd.f32 %v6713, %v6741
  %6743 = vmatmul.f32.gmra.mxu0 %v5774
  %v6744 = vpop.f32.mrf.mxu0
  %v6745 = vadd.f32 %v6716, %v6744
  %6746 = vdwg.mxu0
  %6747 = vmatpush.msra.mxu0 0.0
  %6748 = vmatpush.msra.mxu0 0.0
  %6749 = vmatpush.msra.mxu0 0.0
  %6750 = vmatpush.msra.mxu0 0.0
  %6751 = vmatpush.msra.mxu0 %v1907
  %6752 = vmatpush.msra.mxu0 %v1903
  %6753 = vmatpush.msra.mxu0 %v1899
  %6754 = vmatpush.msra.mxu0 %v1895
  %6755 = vmatpush.msra.mxu0 %v1891
  %6756 = vmatpush.msra.mxu0 %v1887
  %6757 = vmatpush.msra.mxu0 %v1883
  %6758 = vmatpush.msra.mxu0 %v1879
  %6759 = vmatpush.msra.mxu0 %v1875
  %6760 = vmatpush.msra.mxu0 %v1871
  %6761 = vmatpush.msra.mxu0 %v1867
  %6762 = vmatpush.msra.mxu0 %v1863
  %6763 = vmatmul.f32.gmra.mxu0 %v6304
  %v6764 = vpop.f32.mrf.mxu0
  %v6765 = vadd.f32 %v6736, %v6764
  %6766 = vmatmul.f32.gmra.mxu0 %v6306
  %v6767 = vpop.f32.mrf.mxu0
  %v6768 = vadd.f32 %v6739, %v6767
  %6769 = vmatmul.f32.gmra.mxu0 %v6308
  %v6770 = vpop.f32.mrf.mxu0
  %v6771 = vadd.f32 %v6742, %v6770
  %6772 = vmatmul.f32.gmra.mxu0 %v6310
  %v6773 = vpop.f32.mrf.mxu0
  %v6774 = vadd.f32 %v6745, %v6773
  %6775 = vdwg.mxu0
  %v6776 = vrot.slane %v5760, 2
  %v6777 = vrot.slane %v5764, 2
  %v6778 = vsel %vm2944, %v6776, %v6777
  %v6779 = vrot.slane %v5761, 2
  %v6780 = vrot.slane %v5765, 2
  %v6781 = vsel %vm2944, %v6779, %v6780
  %v6782 = vrot.slane %v5762, 2
  %v6783 = vrot.slane %v5766, 2
  %v6784 = vsel %vm2944, %v6782, %v6783
  %v6785 = vrot.slane %v5763, 2
  %v6786 = vrot.slane %v5767, 2
  %v6787 = vsel %vm2944, %v6785, %v6786
  %v6788 = vrot.slane %v5768, 2
  %v6789 = vsel %vm2944, %v6777, %v6788
  %v6790 = vrot.slane %v5769, 2
  %v6791 = vsel %vm2944, %v6780, %v6790
  %v6792 = vrot.slane %v5770, 2
  %v6793 = vsel %vm2944, %v6783, %v6792
  %v6794 = vrot.slane %v5771, 2
  %v6795 = vsel %vm2944, %v6786, %v6794
  %v6796 = vrot.slane %v5772, 2
  %v6797 = vsel %vm2944, %v6788, %v6796
  %v6798 = vrot.slane %v5773, 2
  %v6799 = vsel %vm2944, %v6790, %v6798
  %v6800 = vrot.slane %v5774, 2
  %v6801 = vsel %vm2944, %v6792, %v6800
  %v6802 = vrot.slane %v5775, 2
  %v6803 = vsel %vm2944, %v6794, %v6802
  %v6816 = vsel %vm3312, %v6787, 0
  %v6818 = vsel %vm3312, %v6795, 0
  %v6820 = vsel %vm3312, %v6803, 0
  %v6822 = vsel %vm3312, %v6802, 0
  %6824 = vmatpush.msra.mxu0 %v2210
  %6825 = vmatpush.msra.mxu0 %v2206
  %6826 = vmatpush.msra.mxu0 %v2202
  %6827 = vmatpush.msra.mxu0 %v2198
  %6828 = vmatpush.msra.mxu0 %v2194
  %6829 = vmatpush.msra.mxu0 %v2190
  %6830 = vmatpush.msra.mxu0 %v2186
  %6831 = vmatpush.msra.mxu0 %v2182
  %6832 = vmatpush.msra.mxu0 %v2178
  %6833 = vmatpush.msra.mxu0 %v2174
  %6834 = vmatpush.msra.mxu0 %v2170
  %6835 = vmatpush.msra.mxu0 %v2166
  %6836 = vmatpush.msra.mxu0 %v2162
  %6837 = vmatpush.msra.mxu0 %v2158
  %6838 = vmatpush.msra.mxu0 %v2154
  %6839 = vmatpush.msra.mxu0 %v2150
  %6840 = vmatmul.f32.gmra.mxu0 %v6778
  %v6841 = vpop.f32.mrf.mxu0
  %v6842 = vadd.f32 0.0, %v6841
  %6843 = vmatmul.f32.gmra.mxu0 %v6789
  %v6844 = vpop.f32.mrf.mxu0
  %v6845 = vadd.f32 0.0, %v6844
  %6846 = vmatmul.f32.gmra.mxu0 %v6797
  %v6847 = vpop.f32.mrf.mxu0
  %v6848 = vadd.f32 0.0, %v6847
  %6849 = vmatmul.f32.gmra.mxu0 %v6796
  %v6850 = vpop.f32.mrf.mxu0
  %v6851 = vadd.f32 0.0, %v6850
  %6852 = vdwg.mxu0
  %6853 = vmatpush.msra.mxu0 %v2274
  %6854 = vmatpush.msra.mxu0 %v2270
  %6855 = vmatpush.msra.mxu0 %v2266
  %6856 = vmatpush.msra.mxu0 %v2262
  %6857 = vmatpush.msra.mxu0 %v2258
  %6858 = vmatpush.msra.mxu0 %v2254
  %6859 = vmatpush.msra.mxu0 %v2250
  %6860 = vmatpush.msra.mxu0 %v2246
  %6861 = vmatpush.msra.mxu0 %v2242
  %6862 = vmatpush.msra.mxu0 %v2238
  %6863 = vmatpush.msra.mxu0 %v2234
  %6864 = vmatpush.msra.mxu0 %v2230
  %6865 = vmatpush.msra.mxu0 %v2226
  %6866 = vmatpush.msra.mxu0 %v2222
  %6867 = vmatpush.msra.mxu0 %v2218
  %6868 = vmatpush.msra.mxu0 %v2214
  %6869 = vmatmul.f32.gmra.mxu0 %v6781
  %v6870 = vpop.f32.mrf.mxu0
  %v6871 = vadd.f32 %v6842, %v6870
  %6872 = vmatmul.f32.gmra.mxu0 %v6791
  %v6873 = vpop.f32.mrf.mxu0
  %v6874 = vadd.f32 %v6845, %v6873
  %6875 = vmatmul.f32.gmra.mxu0 %v6799
  %v6876 = vpop.f32.mrf.mxu0
  %v6877 = vadd.f32 %v6848, %v6876
  %6878 = vmatmul.f32.gmra.mxu0 %v6798
  %v6879 = vpop.f32.mrf.mxu0
  %v6880 = vadd.f32 %v6851, %v6879
  %6881 = vdwg.mxu0
  %6882 = vmatpush.msra.mxu0 %v2338
  %6883 = vmatpush.msra.mxu0 %v2334
  %6884 = vmatpush.msra.mxu0 %v2330
  %6885 = vmatpush.msra.mxu0 %v2326
  %6886 = vmatpush.msra.mxu0 %v2322
  %6887 = vmatpush.msra.mxu0 %v2318
  %6888 = vmatpush.msra.mxu0 %v2314
  %6889 = vmatpush.msra.mxu0 %v2310
  %6890 = vmatpush.msra.mxu0 %v2306
  %6891 = vmatpush.msra.mxu0 %v2302
  %6892 = vmatpush.msra.mxu0 %v2298
  %6893 = vmatpush.msra.mxu0 %v2294
  %6894 = vmatpush.msra.mxu0 %v2290
  %6895 = vmatpush.msra.mxu0 %v2286
  %6896 = vmatpush.msra.mxu0 %v2282
  %6897 = vmatpush.msra.mxu0 %v2278
  %6898 = vmatmul.f32.gmra.mxu0 %v6784
  %v6899 = vpop.f32.mrf.mxu0
  %v6900 = vadd.f32 %v6871, %v6899
  %6901 = vmatmul.f32.gmra.mxu0 %v6793
  %v6902 = vpop.f32.mrf.mxu0
  %v6903 = vadd.f32 %v6874, %v6902
  %6904 = vmatmul.f32.gmra.mxu0 %v6801
  %v6905 = vpop.f32.mrf.mxu0
  %v6906 = vadd.f32 %v6877, %v6905
  %6907 = vmatmul.f32.gmra.mxu0 %v6800
  %v6908 = vpop.f32.mrf.mxu0
  %v6909 = vadd.f32 %v6880, %v6908
  %6910 = vdwg.mxu0
  %6911 = vmatpush.msra.mxu0 0.0
  %6912 = vmatpush.msra.mxu0 0.0
  %6913 = vmatpush.msra.mxu0 0.0
  %6914 = vmatpush.msra.mxu0 0.0
  %6915 = vmatpush.msra.mxu0 %v2386
  %6916 = vmatpush.msra.mxu0 %v2382
  %6917 = vmatpush.msra.mxu0 %v2378
  %6918 = vmatpush.msra.mxu0 %v2374
  %6919 = vmatpush.msra.mxu0 %v2370
  %6920 = vmatpush.msra.mxu0 %v2366
  %6921 = vmatpush.msra.mxu0 %v2362
  %6922 = vmatpush.msra.mxu0 %v2358
  %6923 = vmatpush.msra.mxu0 %v2354
  %6924 = vmatpush.msra.mxu0 %v2350
  %6925 = vmatpush.msra.mxu0 %v2346
  %6926 = vmatpush.msra.mxu0 %v2342
  %6927 = vmatmul.f32.gmra.mxu0 %v6816
  %v6928 = vpop.f32.mrf.mxu0
  %v6929 = vadd.f32 %v6900, %v6928
  %6930 = vmatmul.f32.gmra.mxu0 %v6818
  %v6931 = vpop.f32.mrf.mxu0
  %v6932 = vadd.f32 %v6903, %v6931
  %6933 = vmatmul.f32.gmra.mxu0 %v6820
  %v6934 = vpop.f32.mrf.mxu0
  %v6935 = vadd.f32 %v6906, %v6934
  %6936 = vmatmul.f32.gmra.mxu0 %v6822
  %v6937 = vpop.f32.mrf.mxu0
  %v6938 = vadd.f32 %v6909, %v6937
  %6939 = vdwg.mxu0
  %6940 = vmatpush.msra.mxu0 %v2211
  %6941 = vmatpush.msra.mxu0 %v2207
  %6942 = vmatpush.msra.mxu0 %v2203
  %6943 = vmatpush.msra.mxu0 %v2199
  %6944 = vmatpush.msra.mxu0 %v2195
  %6945 = vmatpush.msra.mxu0 %v2191
  %6946 = vmatpush.msra.mxu0 %v2187
  %6947 = vmatpush.msra.mxu0 %v2183
  %6948 = vmatpush.msra.mxu0 %v2179
  %6949 = vmatpush.msra.mxu0 %v2175
  %6950 = vmatpush.msra.mxu0 %v2171
  %6951 = vmatpush.msra.mxu0 %v2167
  %6952 = vmatpush.msra.mxu0 %v2163
  %6953 = vmatpush.msra.mxu0 %v2159
  %6954 = vmatpush.msra.mxu0 %v2155
  %6955 = vmatpush.msra.mxu0 %v2151
  %6956 = vmatmul.f32.gmra.mxu0 %v6778
  %v6957 = vpop.f32.mrf.mxu0
  %v6958 = vadd.f32 0.0, %v6957
  %6959 = vmatmul.f32.gmra.mxu0 %v6789
  %v6960 = vpop.f32.mrf.mxu0
  %v6961 = vadd.f32 0.0, %v6960
  %6962 = vmatmul.f32.gmra.mxu0 %v6797
  %v6963 = vpop.f32.mrf.mxu0
  %v6964 = vadd.f32 0.0, %v6963
  %6965 = vmatmul.f32.gmra.mxu0 %v6796
  %v6966 = vpop.f32.mrf.mxu0
  %v6967 = vadd.f32 0.0, %v6966
  %6968 = vdwg.mxu0
  %6969 = vmatpush.msra.mxu0 %v2275
  %6970 = vmatpush.msra.mxu0 %v2271
  %6971 = vmatpush.msra.mxu0 %v2267
  %6972 = vmatpush.msra.mxu0 %v2263
  %6973 = vmatpush.msra.mxu0 %v2259
  %6974 = vmatpush.msra.mxu0 %v2255
  %6975 = vmatpush.msra.mxu0 %v2251
  %6976 = vmatpush.msra.mxu0 %v2247
  %6977 = vmatpush.msra.mxu0 %v2243
  %6978 = vmatpush.msra.mxu0 %v2239
  %6979 = vmatpush.msra.mxu0 %v2235
  %6980 = vmatpush.msra.mxu0 %v2231
  %6981 = vmatpush.msra.mxu0 %v2227
  %6982 = vmatpush.msra.mxu0 %v2223
  %6983 = vmatpush.msra.mxu0 %v2219
  %6984 = vmatpush.msra.mxu0 %v2215
  %6985 = vmatmul.f32.gmra.mxu0 %v6781
  %v6986 = vpop.f32.mrf.mxu0
  %v6987 = vadd.f32 %v6958, %v6986
  %6988 = vmatmul.f32.gmra.mxu0 %v6791
  %v6989 = vpop.f32.mrf.mxu0
  %v6990 = vadd.f32 %v6961, %v6989
  %6991 = vmatmul.f32.gmra.mxu0 %v6799
  %v6992 = vpop.f32.mrf.mxu0
  %v6993 = vadd.f32 %v6964, %v6992
  %6994 = vmatmul.f32.gmra.mxu0 %v6798
  %v6995 = vpop.f32.mrf.mxu0
  %v6996 = vadd.f32 %v6967, %v6995
  %6997 = vdwg.mxu0
  %6998 = vmatpush.msra.mxu0 %v2339
  %6999 = vmatpush.msra.mxu0 %v2335
  %7000 = vmatpush.msra.mxu0 %v2331
  %7001 = vmatpush.msra.mxu0 %v2327
  %7002 = vmatpush.msra.mxu0 %v2323
  %7003 = vmatpush.msra.mxu0 %v2319
  %7004 = vmatpush.msra.mxu0 %v2315
  %7005 = vmatpush.msra.mxu0 %v2311
  %7006 = vmatpush.msra.mxu0 %v2307
  %7007 = vmatpush.msra.mxu0 %v2303
  %7008 = vmatpush.msra.mxu0 %v2299
  %7009 = vmatpush.msra.mxu0 %v2295
  %7010 = vmatpush.msra.mxu0 %v2291
  %7011 = vmatpush.msra.mxu0 %v2287
  %7012 = vmatpush.msra.mxu0 %v2283
  %7013 = vmatpush.msra.mxu0 %v2279
  %7014 = vmatmul.f32.gmra.mxu0 %v6784
  %v7015 = vpop.f32.mrf.mxu0
  %v7016 = vadd.f32 %v6987, %v7015
  %7017 = vmatmul.f32.gmra.mxu0 %v6793
  %v7018 = vpop.f32.mrf.mxu0
  %v7019 = vadd.f32 %v6990, %v7018
  %7020 = vmatmul.f32.gmra.mxu0 %v6801
  %v7021 = vpop.f32.mrf.mxu0
  %v7022 = vadd.f32 %v6993, %v7021
  %7023 = vmatmul.f32.gmra.mxu0 %v6800
  %v7024 = vpop.f32.mrf.mxu0
  %v7025 = vadd.f32 %v6996, %v7024
  %7026 = vdwg.mxu0
  %7027 = vmatpush.msra.mxu0 0.0
  %7028 = vmatpush.msra.mxu0 0.0
  %7029 = vmatpush.msra.mxu0 0.0
  %7030 = vmatpush.msra.mxu0 0.0
  %7031 = vmatpush.msra.mxu0 %v2387
  %7032 = vmatpush.msra.mxu0 %v2383
  %7033 = vmatpush.msra.mxu0 %v2379
  %7034 = vmatpush.msra.mxu0 %v2375
  %7035 = vmatpush.msra.mxu0 %v2371
  %7036 = vmatpush.msra.mxu0 %v2367
  %7037 = vmatpush.msra.mxu0 %v2363
  %7038 = vmatpush.msra.mxu0 %v2359
  %7039 = vmatpush.msra.mxu0 %v2355
  %7040 = vmatpush.msra.mxu0 %v2351
  %7041 = vmatpush.msra.mxu0 %v2347
  %7042 = vmatpush.msra.mxu0 %v2343
  %7043 = vmatmul.f32.gmra.mxu0 %v6816
  %v7044 = vpop.f32.mrf.mxu0
  %v7045 = vadd.f32 %v7016, %v7044
  %7046 = vmatmul.f32.gmra.mxu0 %v6818
  %v7047 = vpop.f32.mrf.mxu0
  %v7048 = vadd.f32 %v7019, %v7047
  %7049 = vmatmul.f32.gmra.mxu0 %v6820
  %v7050 = vpop.f32.mrf.mxu0
  %v7051 = vadd.f32 %v7022, %v7050
  %7052 = vmatmul.f32.gmra.mxu0 %v6822
  %v7053 = vpop.f32.mrf.mxu0
  %v7054 = vadd.f32 %v7025, %v7053
  %7055 = vdwg.mxu0
  %7056 = vmatpush.msra.mxu0 %v2212
  %7057 = vmatpush.msra.mxu0 %v2208
  %7058 = vmatpush.msra.mxu0 %v2204
  %7059 = vmatpush.msra.mxu0 %v2200
  %7060 = vmatpush.msra.mxu0 %v2196
  %7061 = vmatpush.msra.mxu0 %v2192
  %7062 = vmatpush.msra.mxu0 %v2188
  %7063 = vmatpush.msra.mxu0 %v2184
  %7064 = vmatpush.msra.mxu0 %v2180
  %7065 = vmatpush.msra.mxu0 %v2176
  %7066 = vmatpush.msra.mxu0 %v2172
  %7067 = vmatpush.msra.mxu0 %v2168
  %7068 = vmatpush.msra.mxu0 %v2164
  %7069 = vmatpush.msra.mxu0 %v2160
  %7070 = vmatpush.msra.mxu0 %v2156
  %7071 = vmatpush.msra.mxu0 %v2152
  %7072 = vmatmul.f32.gmra.mxu0 %v6778
  %v7073 = vpop.f32.mrf.mxu0
  %v7074 = vadd.f32 0.0, %v7073
  %7075 = vmatmul.f32.gmra.mxu0 %v6789
  %v7076 = vpop.f32.mrf.mxu0
  %v7077 = vadd.f32 0.0, %v7076
  %7078 = vmatmul.f32.gmra.mxu0 %v6797
  %v7079 = vpop.f32.mrf.mxu0
  %v7080 = vadd.f32 0.0, %v7079
  %7081 = vmatmul.f32.gmra.mxu0 %v6796
  %v7082 = vpop.f32.mrf.mxu0
  %v7083 = vadd.f32 0.0, %v7082
  %7084 = vdwg.mxu0
  %7085 = vmatpush.msra.mxu0 %v2276
  %7086 = vmatpush.msra.mxu0 %v2272
  %7087 = vmatpush.msra.mxu0 %v2268
  %7088 = vmatpush.msra.mxu0 %v2264
  %7089 = vmatpush.msra.mxu0 %v2260
  %7090 = vmatpush.msra.mxu0 %v2256
  %7091 = vmatpush.msra.mxu0 %v2252
  %7092 = vmatpush.msra.mxu0 %v2248
  %7093 = vmatpush.msra.mxu0 %v2244
  %7094 = vmatpush.msra.mxu0 %v2240
  %7095 = vmatpush.msra.mxu0 %v2236
  %7096 = vmatpush.msra.mxu0 %v2232
  %7097 = vmatpush.msra.mxu0 %v2228
  %7098 = vmatpush.msra.mxu0 %v2224
  %7099 = vmatpush.msra.mxu0 %v2220
  %7100 = vmatpush.msra.mxu0 %v2216
  %7101 = vmatmul.f32.gmra.mxu0 %v6781
  %v7102 = vpop.f32.mrf.mxu0
  %v7103 = vadd.f32 %v7074, %v7102
  %7104 = vmatmul.f32.gmra.mxu0 %v6791
  %v7105 = vpop.f32.mrf.mxu0
  %v7106 = vadd.f32 %v7077, %v7105
  %7107 = vmatmul.f32.gmra.mxu0 %v6799
  %v7108 = vpop.f32.mrf.mxu0
  %v7109 = vadd.f32 %v7080, %v7108
  %7110 = vmatmul.f32.gmra.mxu0 %v6798
  %v7111 = vpop.f32.mrf.mxu0
  %v7112 = vadd.f32 %v7083, %v7111
  %7113 = vdwg.mxu0
  %7114 = vmatpush.msra.mxu0 %v2340
  %7115 = vmatpush.msra.mxu0 %v2336
  %7116 = vmatpush.msra.mxu0 %v2332
  %7117 = vmatpush.msra.mxu0 %v2328
  %7118 = vmatpush.msra.mxu0 %v2324
  %7119 = vmatpush.msra.mxu0 %v2320
  %7120 = vmatpush.msra.mxu0 %v2316
  %7121 = vmatpush.msra.mxu0 %v2312
  %7122 = vmatpush.msra.mxu0 %v2308
  %7123 = vmatpush.msra.mxu0 %v2304
  %7124 = vmatpush.msra.mxu0 %v2300
  %7125 = vmatpush.msra.mxu0 %v2296
  %7126 = vmatpush.msra.mxu0 %v2292
  %7127 = vmatpush.msra.mxu0 %v2288
  %7128 = vmatpush.msra.mxu0 %v2284
  %7129 = vmatpush.msra.mxu0 %v2280
  %7130 = vmatmul.f32.gmra.mxu0 %v6784
  %v7131 = vpop.f32.mrf.mxu0
  %v7132 = vadd.f32 %v7103, %v7131
  %7133 = vmatmul.f32.gmra.mxu0 %v6793
  %v7134 = vpop.f32.mrf.mxu0
  %v7135 = vadd.f32 %v7106, %v7134
  %7136 = vmatmul.f32.gmra.mxu0 %v6801
  %v7137 = vpop.f32.mrf.mxu0
  %v7138 = vadd.f32 %v7109, %v7137
  %7139 = vmatmul.f32.gmra.mxu0 %v6800
  %v7140 = vpop.f32.mrf.mxu0
  %v7141 = vadd.f32 %v7112, %v7140
  %7142 = vdwg.mxu0
  %7143 = vmatpush.msra.mxu0 0.0
  %7144 = vmatpush.msra.mxu0 0.0
  %7145 = vmatpush.msra.mxu0 0.0
  %7146 = vmatpush.msra.mxu0 0.0
  %7147 = vmatpush.msra.mxu0 %v2388
  %7148 = vmatpush.msra.mxu0 %v2384
  %7149 = vmatpush.msra.mxu0 %v2380
  %7150 = vmatpush.msra.mxu0 %v2376
  %7151 = vmatpush.msra.mxu0 %v2372
  %7152 = vmatpush.msra.mxu0 %v2368
  %7153 = vmatpush.msra.mxu0 %v2364
  %7154 = vmatpush.msra.mxu0 %v2360
  %7155 = vmatpush.msra.mxu0 %v2356
  %7156 = vmatpush.msra.mxu0 %v2352
  %7157 = vmatpush.msra.mxu0 %v2348
  %7158 = vmatpush.msra.mxu0 %v2344
  %7159 = vmatmul.f32.gmra.mxu0 %v6816
  %v7160 = vpop.f32.mrf.mxu0
  %v7161 = vadd.f32 %v7132, %v7160
  %7162 = vmatmul.f32.gmra.mxu0 %v6818
  %v7163 = vpop.f32.mrf.mxu0
  %v7164 = vadd.f32 %v7135, %v7163
  %7165 = vmatmul.f32.gmra.mxu0 %v6820
  %v7166 = vpop.f32.mrf.mxu0
  %v7167 = vadd.f32 %v7138, %v7166
  %7168 = vmatmul.f32.gmra.mxu0 %v6822
  %v7169 = vpop.f32.mrf.mxu0
  %v7170 = vadd.f32 %v7141, %v7169
  %7171 = vdwg.mxu0
  %7172 = vmatpush.msra.mxu0 %v2213
  %7173 = vmatpush.msra.mxu0 %v2209
  %7174 = vmatpush.msra.mxu0 %v2205
  %7175 = vmatpush.msra.mxu0 %v2201
  %7176 = vmatpush.msra.mxu0 %v2197
  %7177 = vmatpush.msra.mxu0 %v2193
  %7178 = vmatpush.msra.mxu0 %v2189
  %7179 = vmatpush.msra.mxu0 %v2185
  %7180 = vmatpush.msra.mxu0 %v2181
  %7181 = vmatpush.msra.mxu0 %v2177
  %7182 = vmatpush.msra.mxu0 %v2173
  %7183 = vmatpush.msra.mxu0 %v2169
  %7184 = vmatpush.msra.mxu0 %v2165
  %7185 = vmatpush.msra.mxu0 %v2161
  %7186 = vmatpush.msra.mxu0 %v2157
  %7187 = vmatpush.msra.mxu0 %v2153
  %7188 = vmatmul.f32.gmra.mxu0 %v6778
  %v7189 = vpop.f32.mrf.mxu0
  %v7190 = vadd.f32 0.0, %v7189
  %7191 = vmatmul.f32.gmra.mxu0 %v6789
  %v7192 = vpop.f32.mrf.mxu0
  %v7193 = vadd.f32 0.0, %v7192
  %7194 = vmatmul.f32.gmra.mxu0 %v6797
  %v7195 = vpop.f32.mrf.mxu0
  %v7196 = vadd.f32 0.0, %v7195
  %7197 = vmatmul.f32.gmra.mxu0 %v6796
  %v7198 = vpop.f32.mrf.mxu0
  %v7199 = vadd.f32 0.0, %v7198
  %7200 = vdwg.mxu0
  %7201 = vmatpush.msra.mxu0 %v2277
  %7202 = vmatpush.msra.mxu0 %v2273
  %7203 = vmatpush.msra.mxu0 %v2269
  %7204 = vmatpush.msra.mxu0 %v2265
  %7205 = vmatpush.msra.mxu0 %v2261
  %7206 = vmatpush.msra.mxu0 %v2257
  %7207 = vmatpush.msra.mxu0 %v2253
  %7208 = vmatpush.msra.mxu0 %v2249
  %7209 = vmatpush.msra.mxu0 %v2245
  %7210 = vmatpush.msra.mxu0 %v2241
  %7211 = vmatpush.msra.mxu0 %v2237
  %7212 = vmatpush.msra.mxu0 %v2233
  %7213 = vmatpush.msra.mxu0 %v2229
  %7214 = vmatpush.msra.mxu0 %v2225
  %7215 = vmatpush.msra.mxu0 %v2221
  %7216 = vmatpush.msra.mxu0 %v2217
  %7217 = vmatmul.f32.gmra.mxu0 %v6781
  %v7218 = vpop.f32.mrf.mxu0
  %v7219 = vadd.f32 %v7190, %v7218
  %7220 = vmatmul.f32.gmra.mxu0 %v6791
  %v7221 = vpop.f32.mrf.mxu0
  %v7222 = vadd.f32 %v7193, %v7221
  %7223 = vmatmul.f32.gmra.mxu0 %v6799
  %v7224 = vpop.f32.mrf.mxu0
  %v7225 = vadd.f32 %v7196, %v7224
  %7226 = vmatmul.f32.gmra.mxu0 %v6798
  %v7227 = vpop.f32.mrf.mxu0
  %v7228 = vadd.f32 %v7199, %v7227
  %7229 = vdwg.mxu0
  %7230 = vmatpush.msra.mxu0 %v2341
  %7231 = vmatpush.msra.mxu0 %v2337
  %7232 = vmatpush.msra.mxu0 %v2333
  %7233 = vmatpush.msra.mxu0 %v2329
  %7234 = vmatpush.msra.mxu0 %v2325
  %7235 = vmatpush.msra.mxu0 %v2321
  %7236 = vmatpush.msra.mxu0 %v2317
  %7237 = vmatpush.msra.mxu0 %v2313
  %7238 = vmatpush.msra.mxu0 %v2309
  %7239 = vmatpush.msra.mxu0 %v2305
  %7240 = vmatpush.msra.mxu0 %v2301
  %7241 = vmatpush.msra.mxu0 %v2297
  %7242 = vmatpush.msra.mxu0 %v2293
  %7243 = vmatpush.msra.mxu0 %v2289
  %7244 = vmatpush.msra.mxu0 %v2285
  %7245 = vmatpush.msra.mxu0 %v2281
  %7246 = vmatmul.f32.gmra.mxu0 %v6784
  %v7247 = vpop.f32.mrf.mxu0
  %v7248 = vadd.f32 %v7219, %v7247
  %7249 = vmatmul.f32.gmra.mxu0 %v6793
  %v7250 = vpop.f32.mrf.mxu0
  %v7251 = vadd.f32 %v7222, %v7250
  %7252 = vmatmul.f32.gmra.mxu0 %v6801
  %v7253 = vpop.f32.mrf.mxu0
  %v7254 = vadd.f32 %v7225, %v7253
  %7255 = vmatmul.f32.gmra.mxu0 %v6800
  %v7256 = vpop.f32.mrf.mxu0
  %v7257 = vadd.f32 %v7228, %v7256
  %7258 = vdwg.mxu0
  %7259 = vmatpush.msra.mxu0 0.0
  %7260 = vmatpush.msra.mxu0 0.0
  %7261 = vmatpush.msra.mxu0 0.0
  %7262 = vmatpush.msra.mxu0 0.0
  %7263 = vmatpush.msra.mxu0 %v2389
  %7264 = vmatpush.msra.mxu0 %v2385
  %7265 = vmatpush.msra.mxu0 %v2381
  %7266 = vmatpush.msra.mxu0 %v2377
  %7267 = vmatpush.msra.mxu0 %v2373
  %7268 = vmatpush.msra.mxu0 %v2369
  %7269 = vmatpush.msra.mxu0 %v2365
  %7270 = vmatpush.msra.mxu0 %v2361
  %7271 = vmatpush.msra.mxu0 %v2357
  %7272 = vmatpush.msra.mxu0 %v2353
  %7273 = vmatpush.msra.mxu0 %v2349
  %7274 = vmatpush.msra.mxu0 %v2345
  %7275 = vmatmul.f32.gmra.mxu0 %v6816
  %v7276 = vpop.f32.mrf.mxu0
  %v7277 = vadd.f32 %v7248, %v7276
  %7278 = vmatmul.f32.gmra.mxu0 %v6818
  %v7279 = vpop.f32.mrf.mxu0
  %v7280 = vadd.f32 %v7251, %v7279
  %7281 = vmatmul.f32.gmra.mxu0 %v6820
  %v7282 = vpop.f32.mrf.mxu0
  %v7283 = vadd.f32 %v7254, %v7282
  %7284 = vmatmul.f32.gmra.mxu0 %v6822
  %v7285 = vpop.f32.mrf.mxu0
  %v7286 = vadd.f32 %v7257, %v7285
  %7287 = vdwg.mxu0
  %v7288 = vadd.f32 %v6417, %v6929
  %v7289 = vadd.f32 %v6533, %v7045
  %v7290 = vadd.f32 %v6649, %v7161
  %v7291 = vadd.f32 %v6765, %v7277
  %v7292 = vadd.f32 %v6420, %v6932
  %v7293 = vadd.f32 %v6536, %v7048
  %v7294 = vadd.f32 %v6652, %v7164
  %v7295 = vadd.f32 %v6768, %v7280
  %v7296 = vadd.f32 %v6423, %v6935
  %v7297 = vadd.f32 %v6539, %v7051
  %v7298 = vadd.f32 %v6655, %v7167
  %v7299 = vadd.f32 %v6771, %v7283
  %v7300 = vadd.f32 %v6426, %v6938
  %v7301 = vadd.f32 %v6542, %v7054
  %v7302 = vadd.f32 %v6658, %v7170
  %v7303 = vadd.f32 %v6774, %v7286
  %v7304 = vadd.f32 %v7288, %v4786
  %v7305 = vadd.f32 %v7289, %v4787
  %v7306 = vadd.f32 %v7290, %v4788
  %v7307 = vadd.f32 %v7291, %v4789
  %v7308 = vadd.f32 %v7292, %v4786
  %v7309 = vadd.f32 %v7293, %v4787
  %v7310 = vadd.f32 %v7294, %v4788
  %v7311 = vadd.f32 %v7295, %v4789
  %v7312 = vadd.f32 %v7296, %v4786
  %v7313 = vadd.f32 %v7297, %v4787
  %v7314 = vadd.f32 %v7298, %v4788
  %v7315 = vadd.f32 %v7299, %v4789
  %v7316 = vadd.f32 %v7300, %v4786
  %v7317 = vadd.f32 %v7301, %v4787
  %v7318 = vadd.f32 %v7302, %v4788
  %v7319 = vadd.f32 %v7303, %v4789
  %v7320 = vmax.f32 %v7304, 0.0
  %v7321 = vmax.f32 %v7305, 0.0
  %v7322 = vmax.f32 %v7306, 0.0
  %v7323 = vmax.f32 %v7307, 0.0
  %v7324 = vmax.f32 %v7308, 0.0
  %v7325 = vmax.f32 %v7309, 0.0
  %v7326 = vmax.f32 %v7310, 0.0
  %v7327 = vmax.f32 %v7311, 0.0
  %v7328 = vmax.f32 %v7312, 0.0
  %v7329 = vmax.f32 %v7313, 0.0
  %v7330 = vmax.f32 %v7314, 0.0
  %v7331 = vmax.f32 %v7315, 0.0
  %v7332 = vmax.f32 %v7316, 0.0
  %v7333 = vmax.f32 %v7317, 0.0
  %v7334 = vmax.f32 %v7318, 0.0
  %v7335 = vmax.f32 %v7319, 0.0
  %v7337 = vsel %vm4829, %v7323, 0
  %v7340 = vsel %vm4829, %v7327, 0
  %v7343 = vsel %vm4829, %v7331, 0
  %v7346 = vsel %vm4829, %v7335, 0
  %7348 = vmatpush.msra.mxu0 %v2407
  %7349 = vmatpush.msra.mxu0 %v2406
  %7350 = vmatpush.msra.mxu0 %v2405
  %7351 = vmatpush.msra.mxu0 %v2404
  %7352 = vmatpush.msra.mxu0 %v2403
  %7353 = vmatpush.msra.mxu0 %v2402
  %7354 = vmatpush.msra.mxu0 %v2401
  %7355 = vmatpush.msra.mxu0 %v2400
  %7356 = vmatpush.msra.mxu0 %v2399
  %7357 = vmatpush.msra.mxu0 %v2398
  %7358 = vmatpush.msra.mxu0 %v2397
  %7359 = vmatpush.msra.mxu0 %v2396
  %7360 = vmatpush.msra.mxu0 %v2395
  %7361 = vmatpush.msra.mxu0 %v2394
  %7362 = vmatpush.msra.mxu0 %v2393
  %7363 = vmatpush.msra.mxu0 %v2392
  %7364 = vmatmul.f32.gmra.mxu0 %v7320
  %v7365 = vpop.f32.mrf.mxu0
  %v7366 = vadd.f32 %v4827, %v7365
  %7367 = vmatmul.f32.gmra.mxu0 %v7324
  %v7368 = vpop.f32.mrf.mxu0
  %v7369 = vadd.f32 %v4827, %v7368
  %7370 = vmatmul.f32.gmra.mxu0 %v7328
  %v7371 = vpop.f32.mrf.mxu0
  %v7372 = vadd.f32 %v4827, %v7371
  %7373 = vmatmul.f32.gmra.mxu0 %v7332
  %v7374 = vpop.f32.mrf.mxu0
  %v7375 = vadd.f32 %v4827, %v7374
  %7376 = vdwg.mxu0
  %7377 = vmatpush.msra.mxu0 %v2423
  %7378 = vmatpush.msra.mxu0 %v2422
  %7379 = vmatpush.msra.mxu0 %v2421
  %7380 = vmatpush.msra.mxu0 %v2420
  %7381 = vmatpush.msra.mxu0 %v2419
  %7382 = vmatpush.msra.mxu0 %v2418
  %7383 = vmatpush.msra.mxu0 %v2417
  %7384 = vmatpush.msra.mxu0 %v2416
  %7385 = vmatpush.msra.mxu0 %v2415
  %7386 = vmatpush.msra.mxu0 %v2414
  %7387 = vmatpush.msra.mxu0 %v2413
  %7388 = vmatpush.msra.mxu0 %v2412
  %7389 = vmatpush.msra.mxu0 %v2411
  %7390 = vmatpush.msra.mxu0 %v2410
  %7391 = vmatpush.msra.mxu0 %v2409
  %7392 = vmatpush.msra.mxu0 %v2408
  %7393 = vmatmul.f32.gmra.mxu0 %v7321
  %v7394 = vpop.f32.mrf.mxu0
  %v7395 = vadd.f32 %v7366, %v7394
  %7396 = vmatmul.f32.gmra.mxu0 %v7325
  %v7397 = vpop.f32.mrf.mxu0
  %v7398 = vadd.f32 %v7369, %v7397
  %7399 = vmatmul.f32.gmra.mxu0 %v7329
  %v7400 = vpop.f32.mrf.mxu0
  %v7401 = vadd.f32 %v7372, %v7400
  %7402 = vmatmul.f32.gmra.mxu0 %v7333
  %v7403 = vpop.f32.mrf.mxu0
  %v7404 = vadd.f32 %v7375, %v7403
  %7405 = vdwg.mxu0
  %7406 = vmatpush.msra.mxu0 %v2439
  %7407 = vmatpush.msra.mxu0 %v2438
  %7408 = vmatpush.msra.mxu0 %v2437
  %7409 = vmatpush.msra.mxu0 %v2436
  %7410 = vmatpush.msra.mxu0 %v2435
  %7411 = vmatpush.msra.mxu0 %v2434
  %7412 = vmatpush.msra.mxu0 %v2433
  %7413 = vmatpush.msra.mxu0 %v2432
  %7414 = vmatpush.msra.mxu0 %v2431
  %7415 = vmatpush.msra.mxu0 %v2430
  %7416 = vmatpush.msra.mxu0 %v2429
  %7417 = vmatpush.msra.mxu0 %v2428
  %7418 = vmatpush.msra.mxu0 %v2427
  %7419 = vmatpush.msra.mxu0 %v2426
  %7420 = vmatpush.msra.mxu0 %v2425
  %7421 = vmatpush.msra.mxu0 %v2424
  %7422 = vmatmul.f32.gmra.mxu0 %v7322
  %v7423 = vpop.f32.mrf.mxu0
  %v7424 = vadd.f32 %v7395, %v7423
  %7425 = vmatmul.f32.gmra.mxu0 %v7326
  %v7426 = vpop.f32.mrf.mxu0
  %v7427 = vadd.f32 %v7398, %v7426
  %7428 = vmatmul.f32.gmra.mxu0 %v7330
  %v7429 = vpop.f32.mrf.mxu0
  %v7430 = vadd.f32 %v7401, %v7429
  %7431 = vmatmul.f32.gmra.mxu0 %v7334
  %v7432 = vpop.f32.mrf.mxu0
  %v7433 = vadd.f32 %v7404, %v7432
  %7434 = vdwg.mxu0
  %7435 = vmatpush.msra.mxu0 0.0
  %7436 = vmatpush.msra.mxu0 0.0
  %7437 = vmatpush.msra.mxu0 0.0
  %7438 = vmatpush.msra.mxu0 0.0
  %7439 = vmatpush.msra.mxu0 0.0
  %7440 = vmatpush.msra.mxu0 0.0
  %7441 = vmatpush.msra.mxu0 0.0
  %7442 = vmatpush.msra.mxu0 0.0
  %7443 = vmatpush.msra.mxu0 %v2447
  %7444 = vmatpush.msra.mxu0 %v2446
  %7445 = vmatpush.msra.mxu0 %v2445
  %7446 = vmatpush.msra.mxu0 %v2444
  %7447 = vmatpush.msra.mxu0 %v2443
  %7448 = vmatpush.msra.mxu0 %v2442
  %7449 = vmatpush.msra.mxu0 %v2441
  %7450 = vmatpush.msra.mxu0 %v2440
  %7451 = vmatmul.f32.gmra.mxu0 %v7337
  %v7452 = vpop.f32.mrf.mxu0
  %v7453 = vadd.f32 %v7424, %v7452
  %7454 = vmatmul.f32.gmra.mxu0 %v7340
  %v7455 = vpop.f32.mrf.mxu0
  %v7456 = vadd.f32 %v7427, %v7455
  %7457 = vmatmul.f32.gmra.mxu0 %v7343
  %v7458 = vpop.f32.mrf.mxu0
  %v7459 = vadd.f32 %v7430, %v7458
  %7460 = vmatmul.f32.gmra.mxu0 %v7346
  %v7461 = vpop.f32.mrf.mxu0
  %v7462 = vadd.f32 %v7433, %v7461
  %7463 = vdwg.mxu0
  %v7464 = vmul.f32 %v7453, 0.5
  %v7465 = vmul.f32 %v7456, 0.5
  %v7466 = vmul.f32 %v7459, 0.5
  %v7467 = vmul.f32 %v7462, 0.5
  %v7468 = vtanh.pop %v7464
  %v7469 = vtanh.pop %v7465
  %v7470 = vtanh.pop %v7466
  %v7471 = vtanh.pop %v7467
  %v7472 = vmul.f32 %v7468, 0.5
  %v7473 = vmul.f32 %v7469, 0.5
  %v7474 = vmul.f32 %v7470, 0.5
  %v7475 = vmul.f32 %v7471, 0.5
  %v7476 = vadd.f32 %v7472, 0.5
  %v7477 = vadd.f32 %v7473, 0.5
  %v7478 = vadd.f32 %v7474, 0.5
  %v7479 = vadd.f32 %v7475, 0.5
  %s7480 = scalar_lea.vmem %s9, 32
  %7481 = vst.msk [vmem:[%s7480] sm:$0xff] %vm4974, %v7476
  %7482 = vst.msk [vmem:[%s7480 + $0x8] sm:$0xff] %vm4974, %v7477
  %7483 = vst.msk [vmem:[%s7480 + $0x10] sm:$0xff] %vm4974, %v7478
  %7484 = vst.msk [vmem:[%s7480 + $0x18] sm:$0xf] %vm4978, %v7479
  // Predicated region
  $region38: #{generator_forward.1} parent=0 // pred_check
    _
  $region39: #{generator_forward.1} parent=0 // pred_check_branch
    %7486 = sbr.rel (0) target = $region41
  $region40: #{generator_forward.1} parent=0 // pred_region
    _
  $region41: #{generator_forward.1} parent=0 // pred_fallthru
    _
  // Predicated region
  $region42: #{generator_forward.1} parent=0 // pred_check
    _
  $region43: #{generator_forward.1} parent=0 // pred_check_branch
    %7488 = sbr.rel (0) target = $region45
  $region44: #{generator_forward.1} parent=0 // pred_region
    _
  $region45: #{generator_forward.1} parent=0 // pred_fallthru
    _

</llo_original>
